<compile_context>
chip_gen: v7x
topology: tpu7x:2x2x1
jax: 0.10.0
libtpu: 0.0.40
codegen_flags: <defaults>
</compile_context>

<pallas_src>
from functools import partial

import jax
import jax.numpy as jnp
import numpy as np
from jax.experimental import pallas as pl
from jax.experimental.pallas import tpu as pltpu


def _relu6(x):
    return jnp.clip(x, 0.0, 6.0)


def _hswish(x):
    return x * _relu6(x + 3.0) * (1.0 / 6.0)


# ----------------------------- Pallas kernel --------------------------------
def ca_inverted_residual_kernel(
    x_ref,      # (nb, H, W*Cin)      f32   folded, lane-dense input
    w1_ref,     # (W*Cin, W*Chid)     bf16  kron(I_W, w1)            1x1 expand
    wdw9_ref,   # (9, W*Chid)         f32   per-lane depthwise taps; W-boundary masks folded
    w3_ref,     # (W*Chid, W*Cout)    bf16  kron(I_W, w3)            1x1 project
    psq_ref,    # (W*Chid, mip)       f32   pool-over-W fused with CA squeeze conv (H branch)
    wcaw_ref,   # (W*Chid, W*mip)     bf16  kron(I_W, wca)           CA squeeze, W branch
    wwv_ref,    # (W*mip, W*Chid)     bf16  kron(I_W, ww)            CA excite,  W branch
    affh_ref,   # (6+mip, W*Chid)     f32   rows: s1,b1,s2,b2,bh,bw (tiled W); tile(wh,(1,W))
    affo_ref,   # (6, Lmax)           f32   rows: s3,b3 (tiled); sca,bca (tiled); sca,bca
    o_ref,      # (nb, H, W*Cout)     f32   folded, lane-dense output
    pad_ref,    # (nb, H+2, W*Chid)   f32   VMEM scratch: H-zero-padded expanded features
    *, identity: bool, chid: int,
):
    nb, H, WCi = x_ref.shape
    WCh = w1_ref.shape[1]
    WCo = w3_ref.shape[1]
    mip = psq_ref.shape[1]
    Wm = wcaw_ref.shape[1]
    rows = nb * H
    bf16, f32 = jnp.bfloat16, jnp.float32

    x2 = x_ref[...].reshape(rows, WCi)                        # lane-dense (rows, 128)

    # ---- conv1: 1x1 expand + BN1 + ReLU6 (block-diagonal bf16 weight, one MXU matmul) ----
    h = jnp.dot(x2.astype(bf16), w1_ref[...], preferred_element_type=f32)
    h = _relu6(h * affh_ref[0:1, :] + affh_ref[1:2, :])       # (rows, W*Chid)

    # ---- conv2: 3x3 depthwise + BN2 + ReLU6 (VPU/XLU path, no banded matrices) ----------
    # Vertical (H) taps come from the H-zero-padded scratch; horizontal (W) taps are lane
    # rolls by +-Chid, and the W-boundary masks are pre-folded into the per-lane weight rows
    # (so the wrapped-around lanes are multiplied by exactly 0.0).
    # NOTE: edge rows are re-zeroed every step (not only on step 0) because under "parallel"
    # grid semantics each TensorCore has its own scratch and may never see program_id == 0.
    pad_ref[:, 0:1, :] = jnp.zeros((nb, 1, WCh), f32)
    pad_ref[:, H + 1:H + 2, :] = jnp.zeros((nb, 1, WCh), f32)
    pad_ref[:, 1:H + 1, :] = h.reshape(nb, H, WCh)

    w9 = wdw9_ref[...]                                        # (9, W*Chid) f32
    acc = None
    for di in range(3):
        v = pad_ref[:, di:di + H, :].reshape(rows, WCh)       # (rows, W*Chid) f32
        vl = pltpu.roll(v, shift=chid, axis=1)                # neighbor at w-1 (left tap)
        vr = pltpu.roll(v, shift=WCh - chid, axis=1)          # neighbor at w+1 (right tap)
        t = (vl * w9[3 * di + 0:3 * di + 1, :]
             + v * w9[3 * di + 1:3 * di + 2, :]
             + vr * w9[3 * di + 2:3 * di + 3, :])
        acc = t if acc is None else acc + t
    h2 = _relu6(acc * affh_ref[2:3, :] + affh_ref[3:4, :])    # (rows, W*Chid)

    # ---- CABlock: coordinate attention --------------------------------------------------
    # H-branch: mean over W fused with the squeeze conv into one tiny f32 matrix.
    yh = jnp.dot(h2, psq_ref[...], preferred_element_type=f32)             # (rows, mip)
    yh = _hswish(yh * affo_ref[4:5, 0:mip] + affo_ref[5:6, 0:mip])
    a_h = jax.nn.sigmoid(
        jnp.dot(yh, affh_ref[6:6 + mip, :], preferred_element_type=f32)
        + affh_ref[4:5, :])                                                # (rows, W*Chid)

    # W-branch: pool over H, then squeeze/excite with block-diagonal bf16 weights (folded).
    h2_3d = h2.reshape(nb, H, WCh)
    xw = jnp.mean(h2_3d, axis=1)                                           # (nb, W*Chid)
    yw = jnp.dot(xw.astype(bf16), wcaw_ref[...], preferred_element_type=f32)   # (nb, W*mip)
    yw = _hswish(yw * affo_ref[2:3, 0:Wm] + affo_ref[3:4, 0:Wm])
    a_w = jax.nn.sigmoid(
        jnp.dot(yw.astype(bf16), wwv_ref[...], preferred_element_type=f32)
        + affh_ref[5:6, :])                                                # (nb, W*Chid)

    # Gate and feed straight into the projection matmul.
    h3 = h2_3d * a_h.reshape(nb, H, WCh) * a_w[:, None, :]

    # ---- conv3: 1x1 project + BN3 (+ residual), fully lane-dense -------------------------
    out = jnp.dot(h3.reshape(rows, WCh).astype(bf16), w3_ref[...],
                  preferred_element_type=f32)                              # (rows, W*Cout)
    out = out * affo_ref[0:1, 0:WCo] + affo_ref[1:2, 0:WCo]
    if identity:
        out = out + x2
    o_ref[...] = out.reshape(nb, H, WCo)                      # unmasked, 128-lane store


# ----------------------------- parameter folding (run ONCE at init) -----------------------
def fold_params(params, W):
    """Fold raw per-channel weights into lane-dense slabs / block-diagonal matrices."""
    (w1, s1, b1, wdw, s2, b2, wca, sca, bca, wh, bh, ww, bw, w3, s3, b3) = params
    Cin, Chid = w1.shape
    mip = wca.shape[1]
    Cout = w3.shape[1]
    eyeW = jnp.eye(W, dtype=jnp.float32)

    w1_big = jnp.kron(eyeW, w1).astype(jnp.bfloat16)              # (W*Cin,  W*Chid)
    w3_big = jnp.kron(eyeW, w3).astype(jnp.bfloat16)              # (W*Chid, W*Cout)

    # Depthwise 3x3: 9 per-lane weight rows (tap weight tiled across W).  The left tap row
    # is zeroed at w==0 lanes and the right tap row at w==W-1 lanes, so the rolled/wrapped
    # lanes in the kernel contribute exactly zero (== zero padding in W).
    lane_w = jnp.arange(W * Chid) // Chid
    left_mask = (lane_w > 0).astype(jnp.float32)
    right_mask = (lane_w < W - 1).astype(jnp.float32)
    tap_rows = []
    for di in range(3):
        tap_rows.append(jnp.tile(wdw[3 * di + 0], (W,)) * left_mask)
        tap_rows.append(jnp.tile(wdw[3 * di + 1], (W,)))
        tap_rows.append(jnp.tile(wdw[3 * di + 2], (W,)) * right_mask)
    wdw9 = jnp.stack(tap_rows).astype(jnp.float32)                # (9, W*Chid)

    # CA H-branch: mean-over-W pooling fused with the squeeze conv (tiny, keep f32).
    pool_w = jnp.kron(jnp.ones((W, 1), jnp.float32) / W,
                      jnp.eye(Chid, dtype=jnp.float32))           # (W*Chid, Chid)
    psq = (pool_w @ wca).astype(jnp.float32)                      # (W*Chid, mip)

    # CA W-branch: keep folded kron structure but in bf16 (halves weight DMA bytes).
    wca_big = jnp.kron(eyeW, wca).astype(jnp.bfloat16)            # (W*Chid, W*mip)
    ww_big = jnp.kron(eyeW, ww).astype(jnp.bfloat16)              # (W*mip,  W*Chid)

    def tW(v):  # tile a per-channel (1, C) row W times along lanes -> (1, W*C)
        return jnp.tile(v.reshape(1, -1), (1, W))

    affh = jnp.concatenate(
        [tW(s1), tW(b1), tW(s2), tW(b2), tW(bh), tW(bw), jnp.tile(wh, (1, W))],
        axis=0).astype(jnp.float32)                               # (6+mip, W*Chid)

    Lmax = max(W * Cout, W * mip, mip)

    def padrow(v):
        v = v.reshape(1, -1)
        return jnp.pad(v, ((0, 0), (0, Lmax - v.shape[1])))

    affo = jnp.concatenate(
        [padrow(tW(s3)), padrow(tW(b3)), padrow(tW(sca)), padrow(tW(bca)),
         padrow(sca), padrow(bca)], axis=0).astype(jnp.float32)   # (6, Lmax)

    folded = (w1_big, wdw9, w3_big, psq, wca_big, ww_big, affh, affo)
    return folded, (Cin, Chid, Cout, mip)


# ----------------------------- block-size heuristic ---------------------------------------
def _pick_images_per_block(N, H, WCi, WCh, WCo, vmem_budget_bytes=24 << 20):
    """Largest per-step image count that fits a conservative VMEM budget, keeps >=2 grid
    steps when possible (pipelining + v7x 2-TensorCore split), preferring blocks whose
    matmul row count nb*H reaches >=128 (MXU row utilization)."""
    per_img = H * (2 * 4 * (WCi + WCo)        # double-buffered in/out blocks (f32)
                   + 4 * WCh                  # f32 pad scratch
                   + 4 * 4 * WCh)             # ~4 live f32 full-res temporaries
    cap = max(1, vmem_budget_bytes // max(per_img, 1))
    divs = [d for d in range(1, N + 1) if N % d == 0 and d <= cap]
    if not divs:
        return 1
    divs2 = [d for d in divs if N // d >= 2] or divs
    for d in divs2:                            # smallest block reaching 128 matmul rows
        if d * H >= 128:
            return d
    return divs2[-1]                           # otherwise the largest allowed block


# ----------------------------- wrapper -----------------------------------------------------
def ca_inverted_residual(x_nhwc, folded, dims, *, stride: int = 1, images_per_block=None):
    """x_nhwc: (N, H, W, Cin) f32 (== PyTorch NCHW input transposed). Returns (N, H, W, Cout).

    `folded, dims = fold_params(params, W)` must be computed once at init (hoisted)."""
    if stride != 1:
        # TODO(synk): stride=2 requires W-subsampling in the folded layout; not implemented.
        raise NotImplementedError("folded-layout Pallas kernel implements stride=1 only")
    N, H, W, Cin = x_nhwc.shape
    Cin_p, Chid, Cout, mip = dims
    assert Cin_p == Cin
    WCi, WCh, WCo, Wm = W * Cin, W * Chid, W * Cout, W * mip
    # Lane-dense layout is what this kernel is built for; fail loudly on off-sized configs.
    assert WCi % 128 == 0 and WCh % 128 == 0 and WCo % 128 == 0, (
        "folded kernel expects W*Cin, W*Chid, W*Cout to be multiples of 128 lanes")

    identity = (Cin == Cout)                   # stride == 1 here
    nb = (_pick_images_per_block(N, H, WCi, WCh, WCo)
          if images_per_block is None else images_per_block)
    assert N % nb == 0
    grid = (N // nb,)

    x_f = x_nhwc.reshape(N, H, WCi)            # lane-dense folded I/O layout (free reshape)

    rows_total = N * H
    flops = int(2 * rows_total * (WCi * WCh + WCh * WCo + 2 * WCh * mip)
                + 2 * 9 * rows_total * WCh
                + 2 * N * (WCh * Wm + Wm * WCh))
    transcendentals = int(rows_total * (WCh + mip) + N * (WCh + Wm))
    bytes_accessed = int(x_f.size * 4 + rows_total * WCo * 4
                         + sum(int(np.prod(p.shape)) * p.dtype.itemsize for p in folded))
    cost = pl.CostEstimate(flops=flops, transcendentals=transcendentals,
                           bytes_accessed=bytes_accessed)

    kernel = partial(ca_inverted_residual_kernel, identity=identity, chid=Chid)

    def _const_map(ndim):
        return lambda i, nd=ndim: (0,) * nd

    def _build(single_buffer_weights: bool):
        def wspec(p):
            if single_buffer_weights:
                # Grid-invariant weights: one buffer is enough (block index never changes).
                return pl.BlockSpec(p.shape, _const_map(p.ndim),
                                    pipeline_mode=pl.Buffered(1))
            return pl.BlockSpec(p.shape, _const_map(p.ndim))

        in_specs = [pl.BlockSpec((nb, H, WCi), lambda i: (i, 0, 0))]
        in_specs += [wspec(p) for p in folded]
        out_specs = pl.BlockSpec((nb, H, WCo), lambda i: (i, 0, 0))
        return pl.pallas_call(
            kernel,
            out_shape=jax.ShapeDtypeStruct((N, H, WCo), jnp.float32),
            grid_spec=pltpu.PrefetchScalarGridSpec(
                num_scalar_prefetch=0,
                grid=grid,
                in_specs=in_specs,
                out_specs=out_specs,
                scratch_shapes=[pltpu.VMEM((nb, H + 2, WCh), jnp.float32)],
            ),
            compiler_params=pltpu.CompilerParams(
                dimension_semantics=("parallel",),
                vmem_limit_bytes=32 * 1024 * 1024,   # raise v5e's 16 MiB; fits v7x's 64 MiB
            ),
            cost_estimate=cost,
        )

    try:
        out = _build(True)(x_f, *folded)
    except Exception:
        # Fallback for JAX builds that do not accept pipeline_mode on top-level BlockSpecs.
        out = _build(False)(x_f, *folded)
    return out.reshape(N, H, W, Cout)


# ----------------------------- pure-JAX reference ------------------------------------------
def ref_forward(x, params, *, stride: int = 1):
    """Unfolded NHWC reference; mirrors the kernel's precision choices (bf16 MXU operands on
    the 1x1 convs and the CA W-branch, f32 depthwise and f32 CA H-branch)."""
    (w1, s1, b1, wdw, s2, b2, wca, sca, bca, wh, bh, ww, bw, w3, s3, b3) = params
    N, H, W, Cin = x.shape
    Chid = w1.shape[1]
    Cout = w3.shape[1]
    bf = lambda a: a.astype(jnp.bfloat16)

    h = jnp.einsum('nhwc,cd->nhwd', bf(x), bf(w1), preferred_element_type=jnp.float32)
    h = jnp.clip(h * s1.reshape(1, 1, 1, -1) + b1.reshape(1, 1, 1, -1), 0.0, 6.0)

    hp = jnp.pad(h, ((0, 0), (1, 1), (1, 1), (0, 0)))
    Ho = (H + 2 - 3) // stride + 1
    Wo = (W + 2 - 3) // stride + 1
    acc = jnp.zeros((N, Ho, Wo, Chid), jnp.float32)
    for di in range(3):
        for dj in range(3):
            acc = acc + hp[:, di:di + stride * (Ho - 1) + 1:stride,
                           dj:dj + stride * (Wo - 1) + 1:stride, :] * wdw[3 * di + dj]
    h2 = jnp.clip(acc * s2.reshape(1, 1, 1, -1) + b2.reshape(1, 1, 1, -1), 0.0, 6.0)

    x_h = h2.mean(axis=2)                      # (N, Ho, C)
    x_w = h2.mean(axis=1)                      # (N, Wo, C)
    # H-branch (f32, like the kernel's f32 psq / wh path)
    y_h = jnp.einsum('nhc,cm->nhm', x_h, wca) * sca.reshape(1, 1, -1) + bca.reshape(1, 1, -1)
    y_h = y_h * jnp.clip(y_h + 3.0, 0.0, 6.0) / 6.0
    a_h = jax.nn.sigmoid(jnp.einsum('nhm,mc->nhc', y_h, wh) + bh.reshape(1, 1, -1))
    # W-branch (bf16 MXU operands, like the kernel's bf16 kron weights)
    y_w = jnp.einsum('nwc,cm->nwm', bf(x_w), bf(wca), preferred_element_type=jnp.float32)
    y_w = y_w * sca.reshape(1, 1, -1) + bca.reshape(1, 1, -1)
    y_w = y_w * jnp.clip(y_w + 3.0, 0.0, 6.0) / 6.0
    a_w = jax.nn.sigmoid(
        jnp.einsum('nwm,mc->nwc', bf(y_w), bf(ww), preferred_element_type=jnp.float32)
        + bw.reshape(1, 1, -1))
    h3 = h2 * a_h[:, :, None, :] * a_w[:, None, :, :]

    out = jnp.einsum('nhwc,cd->nhwd', bf(h3), bf(w3), preferred_element_type=jnp.float32)
    out = out * s3.reshape(1, 1, 1, -1) + b3.reshape(1, 1, 1, -1)
    if stride == 1 and Cin == Cout:
        out = out + x
    return out


# ----------------------------- parameter setup ---------------------------------------------
def make_params(key, in_chans, out_chans, expand_t, reduction):
    hidden = int(in_chans * expand_t)
    mip = max(8, hidden // reduction)
    ks = jax.random.split(key, 24)

    def nrm(k, shape, scale=0.1):
        return scale * jax.random.normal(k, shape, jnp.float32)

    def bn_fold(k4, C):
        kg, kb, km, kv = jax.random.split(k4, 4)
        gamma = 1.0 + 0.1 * jax.random.normal(kg, (C,), jnp.float32)
        beta = 0.1 * jax.random.normal(kb, (C,), jnp.float32)
        mean = 0.1 * jax.random.normal(km, (C,), jnp.float32)
        var = jnp.abs(1.0 + 0.1 * jax.random.normal(kv, (C,), jnp.float32))
        scale = gamma / jnp.sqrt(var + 1e-5)
        bias = beta - mean * scale
        return scale.reshape(1, C), bias.reshape(1, C)

    w1 = nrm(ks[0], (in_chans, hidden))          # 1x1 expand (Cin -> Chid)
    s1, b1 = bn_fold(ks[1], hidden)
    wdw = nrm(ks[2], (9, hidden))                # 3x3 depthwise taps
    s2, b2 = bn_fold(ks[3], hidden)
    wca = nrm(ks[4], (hidden, mip))              # CA squeeze 1x1
    sca, bca = bn_fold(ks[5], mip)
    wh = nrm(ks[6], (mip, hidden))               # CA conv_h (bias=True)
    bh = nrm(ks[7], (1, hidden))
    ww = nrm(ks[8], (mip, hidden))               # CA conv_w (bias=True)
    bw = nrm(ks[9], (1, hidden))
    w3 = nrm(ks[10], (hidden, out_chans))        # 1x1 project
    s3, b3 = bn_fold(ks[11], out_chans)
    return (w1, s1, b1, wdw, s2, b2, wca, sca, bca, wh, bh, ww, bw, w3, s3, b3)


if __name__ == "__main__":
    # Module config: in_chans=out_chans=8, stride=1, expand_t=2, reduction=32
    # => hidden=16, mip=8, identity residual; W*Cin = W*Cout = 128, W*Chid = 256 (lane-dense).
    # N=8 keeps the demo small but gives a multi-step grid (pipelining / v7x 2-TC split).
    N, H, W, Cin, Cout = 8, 16, 16, 8, 8
    expand_t, stride, reduction = 2, 1, 32

    key = jax.random.PRNGKey(0)
    kx, kp = jax.random.split(key)
    x = jax.random.normal(kx, (N, H, W, Cin), jnp.float32)   # NHWC (PyTorch NCHW transposed)
    params = make_params(kp, Cin, Cout, expand_t, reduction)

    # Fold weights ONCE (hoisted out of the per-call path per the perf review).
    folded, dims = fold_params(params, W)

    out = jax.block_until_ready(ca_inverted_residual(x, folded, dims, stride=stride))
    ref = jax.block_until_ready(ref_forward(x, params, stride=stride))
    assert out.shape == ref.shape
    # bf16 MXU operands on conv1/conv3/CA-W in both kernel and reference -> loose tolerance.
    np.testing.assert_allclose(np.asarray(out), np.asarray(ref), atol=2e-2, rtol=2e-2)

    print("KERNEL_OK")
</pallas_src>

<mosaic_0001>
module attributes {stable_mosaic.version = 11 : i64} {
  func.func @ca_inverted_residual_kernel(%arg0: i32, %arg1: memref<4x16x128xf32, #tpu.memory_space<vmem>>, %arg2: memref<128x256xbf16, #tpu.memory_space<vmem>>, %arg3: memref<9x256xf32, #tpu.memory_space<vmem>>, %arg4: memref<256x128xbf16, #tpu.memory_space<vmem>>, %arg5: memref<256x8xf32, #tpu.memory_space<vmem>>, %arg6: memref<256x128xbf16, #tpu.memory_space<vmem>>, %arg7: memref<128x256xbf16, #tpu.memory_space<vmem>>, %arg8: memref<14x256xf32, #tpu.memory_space<vmem>>, %arg9: memref<6x128xf32, #tpu.memory_space<vmem>>, %arg10: memref<4x16x128xf32, #tpu.memory_space<vmem>>, %arg11: memref<4x18x256xf32, #tpu.memory_space<vmem>>) attributes {dimension_semantics = [#tpu.dimension_semantics<parallel>], iteration_bounds = array<i64: 2>, scalar_prefetch = 0 : i64, scratch_operands = 1 : i64, tpu.core_type = #tpu.core_type<tc>, window_params = [{transform_indices = @transform_0, window_bounds = array<i64: 4, 16, 128>}, {pipeline_mode = #tpu.pipeline_mode<synchronous>, transform_indices = @transform_1, window_bounds = array<i64: 128, 256>}, {pipeline_mode = #tpu.pipeline_mode<synchronous>, transform_indices = @transform_2, window_bounds = array<i64: 9, 256>}, {pipeline_mode = #tpu.pipeline_mode<synchronous>, transform_indices = @transform_3, window_bounds = array<i64: 256, 128>}, {pipeline_mode = #tpu.pipeline_mode<synchronous>, transform_indices = @transform_4, window_bounds = array<i64: 256, 8>}, {pipeline_mode = #tpu.pipeline_mode<synchronous>, transform_indices = @transform_5, window_bounds = array<i64: 256, 128>}, {pipeline_mode = #tpu.pipeline_mode<synchronous>, transform_indices = @transform_6, window_bounds = array<i64: 128, 256>}, {pipeline_mode = #tpu.pipeline_mode<synchronous>, transform_indices = @transform_7, window_bounds = array<i64: 14, 256>}, {pipeline_mode = #tpu.pipeline_mode<synchronous>, transform_indices = @transform_8, window_bounds = array<i64: 6, 128>}, {transform_indices = @transform_9, window_bounds = array<i64: 4, 16, 128>}]} {
    %c0 = arith.constant 0 : index
    %c0_0 = arith.constant 0 : index
    %c0_1 = arith.constant 0 : index
    %0 = vector.load %arg1[%c0, %c0_0, %c0_1] : memref<4x16x128xf32, #tpu.memory_space<vmem>>, vector<4x16x128xf32>
    %1 = vector.shape_cast %0 : vector<4x16x128xf32> to vector<64x128xf32>
    %2 = arith.truncf %1 : vector<64x128xf32> to vector<64x128xbf16>
    %c0_2 = arith.constant 0 : index
    %c0_3 = arith.constant 0 : index
    %3 = vector.load %arg2[%c0_2, %c0_3] : memref<128x256xbf16, #tpu.memory_space<vmem>>, vector<128x256xbf16>
    %cst = arith.constant dense<0.000000e+00> : vector<64x256xf32>
    %4 = tpu.matmul %2, %3, %cst {dimension_numbers = #tpu.dot_dimension_numbers<[1], [0], [0], [1], [0, 0, 1, 1], [], []>} : vector<64x128xbf16>, vector<128x256xbf16>, vector<64x256xf32> -> vector<64x256xf32>
    %c0_4 = arith.constant 0 : index
    %c0_5 = arith.constant 0 : index
    %5 = vector.load %arg8[%c0_4, %c0_5] : memref<14x256xf32, #tpu.memory_space<vmem>>, vector<1x256xf32>
    %6 = vector.broadcast %5 : vector<1x256xf32> to vector<64x256xf32>
    %7 = arith.mulf %4, %6 : vector<64x256xf32>
    %c1 = arith.constant 1 : index
    %c0_6 = arith.constant 0 : index
    %8 = vector.load %arg8[%c1, %c0_6] : memref<14x256xf32, #tpu.memory_space<vmem>>, vector<1x256xf32>
    %9 = vector.broadcast %8 : vector<1x256xf32> to vector<64x256xf32>
    %10 = arith.addf %7, %9 : vector<64x256xf32>
    %cst_7 = arith.constant 0.000000e+00 : f32
    %cst_8 = arith.constant 6.000000e+00 : f32
    %11 = vector.broadcast %cst_7 : f32 to vector<64x256xf32>
    %12 = arith.maximumf %11, %10 : vector<64x256xf32>
    %13 = vector.broadcast %cst_8 : f32 to vector<64x256xf32>
    %14 = arith.minimumf %13, %12 : vector<64x256xf32>
    %cst_9 = arith.constant 0.000000e+00 : f32
    %15 = vector.broadcast %cst_9 : f32 to vector<4x1x256xf32>
    %c0_10 = arith.constant 0 : index
    %c0_11 = arith.constant 0 : index
    %c0_12 = arith.constant 0 : index
    %16 = vector.load %arg11[%c0_10, %c0_11, %c0_12] : memref<4x18x256xf32, #tpu.memory_space<vmem>>, vector<4x1x256xf32>
    tpu.vector_store %arg11[%c0_10, %c0_11, %c0_12], %15 {strides = array<i32>} : memref<4x18x256xf32, #tpu.memory_space<vmem>>, vector<4x1x256xf32>,
    %cst_13 = arith.constant 0.000000e+00 : f32
    %17 = vector.broadcast %cst_13 : f32 to vector<4x1x256xf32>
    %c0_14 = arith.constant 0 : index
    %c17 = arith.constant 17 : index
    %c0_15 = arith.constant 0 : index
    %18 = vector.load %arg11[%c0_14, %c17, %c0_15] : memref<4x18x256xf32, #tpu.memory_space<vmem>>, vector<4x1x256xf32>
    tpu.vector_store %arg11[%c0_14, %c17, %c0_15], %17 {strides = array<i32>} : memref<4x18x256xf32, #tpu.memory_space<vmem>>, vector<4x1x256xf32>,
    %19 = vector.shape_cast %14 : vector<64x256xf32> to vector<4x16x256xf32>
    %c0_16 = arith.constant 0 : index
    %c1_17 = arith.constant 1 : index
    %c0_18 = arith.constant 0 : index
    %20 = vector.load %arg11[%c0_16, %c1_17, %c0_18] : memref<4x18x256xf32, #tpu.memory_space<vmem>>, vector<4x16x256xf32>
    tpu.vector_store %arg11[%c0_16, %c1_17, %c0_18], %19 {strides = array<i32>} : memref<4x18x256xf32, #tpu.memory_space<vmem>>, vector<4x16x256xf32>,
    %c0_19 = arith.constant 0 : index
    %c0_20 = arith.constant 0 : index
    %21 = vector.load %arg3[%c0_19, %c0_20] : memref<9x256xf32, #tpu.memory_space<vmem>>, vector<9x256xf32>
    %c0_21 = arith.constant 0 : index
    %c0_22 = arith.constant 0 : index
    %c0_23 = arith.constant 0 : index
    %22 = vector.load %arg11[%c0_21, %c0_22, %c0_23] : memref<4x18x256xf32, #tpu.memory_space<vmem>>, vector<4x16x256xf32>
    %23 = vector.shape_cast %22 : vector<4x16x256xf32> to vector<64x256xf32>
    %c16_i32 = arith.constant 16 : i32
    %24 = tpu.dynamic_rotate %23 by %c16_i32 dim 1 : vector<64x256xf32>, i32 -> vector<64x256xf32>
    %c240_i32 = arith.constant 240 : i32
    %25 = tpu.dynamic_rotate %23 by %c240_i32 dim 1 : vector<64x256xf32>, i32 -> vector<64x256xf32>
    %26 = vector.extract_strided_slice %21 {offsets = [0, 0], sizes = [1, 256], strides = [1, 1]} : vector<9x256xf32> to vector<1x256xf32>
    %27 = vector.broadcast %26 : vector<1x256xf32> to vector<64x256xf32>
    %28 = arith.mulf %24, %27 : vector<64x256xf32>
    %29 = vector.extract_strided_slice %21 {offsets = [1, 0], sizes = [1, 256], strides = [1, 1]} : vector<9x256xf32> to vector<1x256xf32>
    %30 = vector.broadcast %29 : vector<1x256xf32> to vector<64x256xf32>
    %31 = arith.mulf %23, %30 : vector<64x256xf32>
    %32 = arith.addf %28, %31 : vector<64x256xf32>
    %33 = vector.extract_strided_slice %21 {offsets = [2, 0], sizes = [1, 256], strides = [1, 1]} : vector<9x256xf32> to vector<1x256xf32>
    %34 = vector.broadcast %33 : vector<1x256xf32> to vector<64x256xf32>
    %35 = arith.mulf %25, %34 : vector<64x256xf32>
    %36 = arith.addf %32, %35 : vector<64x256xf32>
    %c0_24 = arith.constant 0 : index
    %c1_25 = arith.constant 1 : index
    %c0_26 = arith.constant 0 : index
    %37 = vector.load %arg11[%c0_24, %c1_25, %c0_26] : memref<4x18x256xf32, #tpu.memory_space<vmem>>, vector<4x16x256xf32>
    %38 = vector.shape_cast %37 : vector<4x16x256xf32> to vector<64x256xf32>
    %c16_i32_27 = arith.constant 16 : i32
    %39 = tpu.dynamic_rotate %38 by %c16_i32_27 dim 1 : vector<64x256xf32>, i32 -> vector<64x256xf32>
    %c240_i32_28 = arith.constant 240 : i32
    %40 = tpu.dynamic_rotate %38 by %c240_i32_28 dim 1 : vector<64x256xf32>, i32 -> vector<64x256xf32>
    %41 = vector.extract_strided_slice %21 {offsets = [3, 0], sizes = [1, 256], strides = [1, 1]} : vector<9x256xf32> to vector<1x256xf32>
    %42 = vector.broadcast %41 : vector<1x256xf32> to vector<64x256xf32>
    %43 = arith.mulf %39, %42 : vector<64x256xf32>
    %44 = vector.extract_strided_slice %21 {offsets = [4, 0], sizes = [1, 256], strides = [1, 1]} : vector<9x256xf32> to vector<1x256xf32>
    %45 = vector.broadcast %44 : vector<1x256xf32> to vector<64x256xf32>
    %46 = arith.mulf %38, %45 : vector<64x256xf32>
    %47 = arith.addf %43, %46 : vector<64x256xf32>
    %48 = vector.extract_strided_slice %21 {offsets = [5, 0], sizes = [1, 256], strides = [1, 1]} : vector<9x256xf32> to vector<1x256xf32>
    %49 = vector.broadcast %48 : vector<1x256xf32> to vector<64x256xf32>
    %50 = arith.mulf %40, %49 : vector<64x256xf32>
    %51 = arith.addf %47, %50 : vector<64x256xf32>
    %52 = arith.addf %36, %51 : vector<64x256xf32>
    %c0_29 = arith.constant 0 : index
    %c2 = arith.constant 2 : index
    %c0_30 = arith.constant 0 : index
    %53 = vector.load %arg11[%c0_29, %c2, %c0_30] : memref<4x18x256xf32, #tpu.memory_space<vmem>>, vector<4x16x256xf32>
    %54 = vector.shape_cast %53 : vector<4x16x256xf32> to vector<64x256xf32>
    %c16_i32_31 = arith.constant 16 : i32
    %55 = tpu.dynamic_rotate %54 by %c16_i32_31 dim 1 : vector<64x256xf32>, i32 -> vector<64x256xf32>
    %c240_i32_32 = arith.constant 240 : i32
    %56 = tpu.dynamic_rotate %54 by %c240_i32_32 dim 1 : vector<64x256xf32>, i32 -> vector<64x256xf32>
    %57 = vector.extract_strided_slice %21 {offsets = [6, 0], sizes = [1, 256], strides = [1, 1]} : vector<9x256xf32> to vector<1x256xf32>
    %58 = vector.broadcast %57 : vector<1x256xf32> to vector<64x256xf32>
    %59 = arith.mulf %55, %58 : vector<64x256xf32>
    %60 = vector.extract_strided_slice %21 {offsets = [7, 0], sizes = [1, 256], strides = [1, 1]} : vector<9x256xf32> to vector<1x256xf32>
    %61 = vector.broadcast %60 : vector<1x256xf32> to vector<64x256xf32>
    %62 = arith.mulf %54, %61 : vector<64x256xf32>
    %63 = arith.addf %59, %62 : vector<64x256xf32>
    %64 = vector.extract_strided_slice %21 {offsets = [8, 0], sizes = [1, 256], strides = [1, 1]} : vector<9x256xf32> to vector<1x256xf32>
    %65 = vector.broadcast %64 : vector<1x256xf32> to vector<64x256xf32>
    %66 = arith.mulf %56, %65 : vector<64x256xf32>
    %67 = arith.addf %63, %66 : vector<64x256xf32>
    %68 = arith.addf %52, %67 : vector<64x256xf32>
    %c2_33 = arith.constant 2 : index
    %c0_34 = arith.constant 0 : index
    %69 = vector.load %arg8[%c2_33, %c0_34] : memref<14x256xf32, #tpu.memory_space<vmem>>, vector<1x256xf32>
    %70 = vector.broadcast %69 : vector<1x256xf32> to vector<64x256xf32>
    %71 = arith.mulf %68, %70 : vector<64x256xf32>
    %c3 = arith.constant 3 : index
    %c0_35 = arith.constant 0 : index
    %72 = vector.load %arg8[%c3, %c0_35] : memref<14x256xf32, #tpu.memory_space<vmem>>, vector<1x256xf32>
    %73 = vector.broadcast %72 : vector<1x256xf32> to vector<64x256xf32>
    %74 = arith.addf %71, %73 : vector<64x256xf32>
    %cst_36 = arith.constant 0.000000e+00 : f32
    %cst_37 = arith.constant 6.000000e+00 : f32
    %75 = vector.broadcast %cst_36 : f32 to vector<64x256xf32>
    %76 = arith.maximumf %75, %74 : vector<64x256xf32>
    %77 = vector.broadcast %cst_37 : f32 to vector<64x256xf32>
    %78 = arith.minimumf %77, %76 : vector<64x256xf32>
    %c0_38 = arith.constant 0 : index
    %c0_39 = arith.constant 0 : index
    %79 = vector.load %arg5[%c0_38, %c0_39] : memref<256x8xf32, #tpu.memory_space<vmem>>, vector<256x8xf32>
    %cst_40 = arith.constant dense<0.000000e+00> : vector<64x8xf32>
    %80 = tpu.matmul %78, %79, %cst_40 {dimension_numbers = #tpu.dot_dimension_numbers<[1], [0], [0], [1], [0, 0, 1, 1], [], []>} : vector<64x256xf32>, vector<256x8xf32>, vector<64x8xf32> -> vector<64x8xf32>
    %c4 = arith.constant 4 : index
    %c0_41 = arith.constant 0 : index
    %81 = vector.load %arg9[%c4, %c0_41] : memref<6x128xf32, #tpu.memory_space<vmem>>, vector<1x8xf32>
    %82 = vector.broadcast %81 : vector<1x8xf32> to vector<64x8xf32>
    %83 = arith.mulf %80, %82 : vector<64x8xf32>
    %c5 = arith.constant 5 : index
    %c0_42 = arith.constant 0 : index
    %84 = vector.load %arg9[%c5, %c0_42] : memref<6x128xf32, #tpu.memory_space<vmem>>, vector<1x8xf32>
    %85 = vector.broadcast %84 : vector<1x8xf32> to vector<64x8xf32>
    %86 = arith.addf %83, %85 : vector<64x8xf32>
    %cst_43 = arith.constant 3.000000e+00 : f32
    %87 = vector.broadcast %cst_43 : f32 to vector<64x8xf32>
    %88 = arith.addf %86, %87 : vector<64x8xf32>
    %cst_44 = arith.constant 0.000000e+00 : f32
    %cst_45 = arith.constant 6.000000e+00 : f32
    %89 = vector.broadcast %cst_44 : f32 to vector<64x8xf32>
    %90 = arith.maximumf %89, %88 : vector<64x8xf32>
    %91 = vector.broadcast %cst_45 : f32 to vector<64x8xf32>
    %92 = arith.minimumf %91, %90 : vector<64x8xf32>
    %93 = arith.mulf %86, %92 : vector<64x8xf32>
    %cst_46 = arith.constant 0.166666672 : f32
    %94 = vector.broadcast %cst_46 : f32 to vector<64x8xf32>
    %95 = arith.mulf %93, %94 : vector<64x8xf32>
    %c6 = arith.constant 6 : index
    %c0_47 = arith.constant 0 : index
    %96 = vector.load %arg8[%c6, %c0_47] : memref<14x256xf32, #tpu.memory_space<vmem>>, vector<8x256xf32>
    %cst_48 = arith.constant dense<0.000000e+00> : vector<64x256xf32>
    %97 = tpu.matmul %95, %96, %cst_48 {dimension_numbers = #tpu.dot_dimension_numbers<[1], [0], [0], [1], [0, 0, 1, 1], [], []>} : vector<64x8xf32>, vector<8x256xf32>, vector<64x256xf32> -> vector<64x256xf32>
    %c4_49 = arith.constant 4 : index
    %c0_50 = arith.constant 0 : index
    %98 = vector.load %arg8[%c4_49, %c0_50] : memref<14x256xf32, #tpu.memory_space<vmem>>, vector<1x256xf32>
    %99 = vector.broadcast %98 : vector<1x256xf32> to vector<64x256xf32>
    %100 = arith.addf %97, %99 : vector<64x256xf32>
    %101 = arith.negf %100 : vector<64x256xf32>
    %102 = math.exp %101 : vector<64x256xf32>
    %cst_51 = arith.constant 1.000000e+00 : f32
    %103 = vector.broadcast %cst_51 : f32 to vector<64x256xf32>
    %104 = arith.addf %103, %102 : vector<64x256xf32>
    %105 = arith.divf %103, %104 : vector<64x256xf32>
    %106 = vector.shape_cast %78 : vector<64x256xf32> to vector<4x16x256xf32>
    %cst_52 = arith.constant dense<0.000000e+00> : vector<4x256xf32>
    %107 = vector.multi_reduction <add>, %106, %cst_52 [1] : vector<4x16x256xf32> to vector<4x256xf32>
    %cst_53 = arith.constant 1.600000e+01 : f32
    %108 = vector.broadcast %cst_53 : f32 to vector<4x256xf32>
    %109 = arith.divf %107, %108 : vector<4x256xf32>
    %110 = arith.truncf %109 : vector<4x256xf32> to vector<4x256xbf16>
    %c0_54 = arith.constant 0 : index
    %c0_55 = arith.constant 0 : index
    %111 = vector.load %arg6[%c0_54, %c0_55] : memref<256x128xbf16, #tpu.memory_space<vmem>>, vector<256x128xbf16>
    %cst_56 = arith.constant dense<0.000000e+00> : vector<4x128xf32>
    %112 = tpu.matmul %110, %111, %cst_56 {dimension_numbers = #tpu.dot_dimension_numbers<[1], [0], [0], [1], [0, 0, 1, 1], [], []>} : vector<4x256xbf16>, vector<256x128xbf16>, vector<4x128xf32> -> vector<4x128xf32>
    %c2_57 = arith.constant 2 : index
    %c0_58 = arith.constant 0 : index
    %113 = vector.load %arg9[%c2_57, %c0_58] : memref<6x128xf32, #tpu.memory_space<vmem>>, vector<1x128xf32>
    %114 = vector.broadcast %113 : vector<1x128xf32> to vector<4x128xf32>
    %115 = arith.mulf %112, %114 : vector<4x128xf32>
    %c3_59 = arith.constant 3 : index
    %c0_60 = arith.constant 0 : index
    %116 = vector.load %arg9[%c3_59, %c0_60] : memref<6x128xf32, #tpu.memory_space<vmem>>, vector<1x128xf32>
    %117 = vector.broadcast %116 : vector<1x128xf32> to vector<4x128xf32>
    %118 = arith.addf %115, %117 : vector<4x128xf32>
    %cst_61 = arith.constant 3.000000e+00 : f32
    %119 = vector.broadcast %cst_61 : f32 to vector<4x128xf32>
    %120 = arith.addf %118, %119 : vector<4x128xf32>
    %cst_62 = arith.constant 0.000000e+00 : f32
    %cst_63 = arith.constant 6.000000e+00 : f32
    %121 = vector.broadcast %cst_62 : f32 to vector<4x128xf32>
    %122 = arith.maximumf %121, %120 : vector<4x128xf32>
    %123 = vector.broadcast %cst_63 : f32 to vector<4x128xf32>
    %124 = arith.minimumf %123, %122 : vector<4x128xf32>
    %125 = arith.mulf %118, %124 : vector<4x128xf32>
    %cst_64 = arith.constant 0.166666672 : f32
    %126 = vector.broadcast %cst_64 : f32 to vector<4x128xf32>
    %127 = arith.mulf %125, %126 : vector<4x128xf32>
    %128 = arith.truncf %127 : vector<4x128xf32> to vector<4x128xbf16>
    %c0_65 = arith.constant 0 : index
    %c0_66 = arith.constant 0 : index
    %129 = vector.load %arg7[%c0_65, %c0_66] : memref<128x256xbf16, #tpu.memory_space<vmem>>, vector<128x256xbf16>
    %cst_67 = arith.constant dense<0.000000e+00> : vector<4x256xf32>
    %130 = tpu.matmul %128, %129, %cst_67 {dimension_numbers = #tpu.dot_dimension_numbers<[1], [0], [0], [1], [0, 0, 1, 1], [], []>} : vector<4x128xbf16>, vector<128x256xbf16>, vector<4x256xf32> -> vector<4x256xf32>
    %c5_68 = arith.constant 5 : index
    %c0_69 = arith.constant 0 : index
    %131 = vector.load %arg8[%c5_68, %c0_69] : memref<14x256xf32, #tpu.memory_space<vmem>>, vector<1x256xf32>
    %132 = vector.broadcast %131 : vector<1x256xf32> to vector<4x256xf32>
    %133 = arith.addf %130, %132 : vector<4x256xf32>
    %134 = arith.negf %133 : vector<4x256xf32>
    %135 = math.exp %134 : vector<4x256xf32>
    %cst_70 = arith.constant 1.000000e+00 : f32
    %136 = vector.broadcast %cst_70 : f32 to vector<4x256xf32>
    %137 = arith.addf %136, %135 : vector<4x256xf32>
    %138 = arith.divf %136, %137 : vector<4x256xf32>
    %139 = vector.shape_cast %105 : vector<64x256xf32> to vector<4x16x256xf32>
    %140 = arith.mulf %106, %139 : vector<4x16x256xf32>
    %141 = vector.shape_cast %138 : vector<4x256xf32> to vector<4x1x256xf32>
    %142 = vector.broadcast %141 : vector<4x1x256xf32> to vector<4x16x256xf32>
    %143 = arith.mulf %140, %142 : vector<4x16x256xf32>
    %144 = vector.shape_cast %143 : vector<4x16x256xf32> to vector<64x256xf32>
    %145 = arith.truncf %144 : vector<64x256xf32> to vector<64x256xbf16>
    %c0_71 = arith.constant 0 : index
    %c0_72 = arith.constant 0 : index
    %146 = vector.load %arg4[%c0_71, %c0_72] : memref<256x128xbf16, #tpu.memory_space<vmem>>, vector<256x128xbf16>
    %cst_73 = arith.constant dense<0.000000e+00> : vector<64x128xf32>
    %147 = tpu.matmul %145, %146, %cst_73 {dimension_numbers = #tpu.dot_dimension_numbers<[1], [0], [0], [1], [0, 0, 1, 1], [], []>} : vector<64x256xbf16>, vector<256x128xbf16>, vector<64x128xf32> -> vector<64x128xf32>
    %c0_74 = arith.constant 0 : index
    %c0_75 = arith.constant 0 : index
    %148 = vector.load %arg9[%c0_74, %c0_75] : memref<6x128xf32, #tpu.memory_space<vmem>>, vector<1x128xf32>
    %149 = vector.broadcast %148 : vector<1x128xf32> to vector<64x128xf32>
    %150 = arith.mulf %147, %149 : vector<64x128xf32>
    %c1_76 = arith.constant 1 : index
    %c0_77 = arith.constant 0 : index
    %151 = vector.load %arg9[%c1_76, %c0_77] : memref<6x128xf32, #tpu.memory_space<vmem>>, vector<1x128xf32>
    %152 = vector.broadcast %151 : vector<1x128xf32> to vector<64x128xf32>
    %153 = arith.addf %150, %152 : vector<64x128xf32>
    %154 = arith.addf %153, %1 : vector<64x128xf32>
    %155 = vector.shape_cast %154 : vector<64x128xf32> to vector<4x16x128xf32>
    %c0_78 = arith.constant 0 : index
    %c0_79 = arith.constant 0 : index
    %c0_80 = arith.constant 0 : index
    %156 = vector.load %arg10[%c0_78, %c0_79, %c0_80] : memref<4x16x128xf32, #tpu.memory_space<vmem>>, vector<4x16x128xf32>
    tpu.vector_store %arg10[%c0_78, %c0_79, %c0_80], %155 {strides = array<i32>} : memref<4x16x128xf32, #tpu.memory_space<vmem>>, vector<4x16x128xf32>,
    return
  }
  func.func @transform_0(%arg0: i32) -> (i32, i32, i32) {
    %c0_i32 = arith.constant 0 : i32
    %c0_i32_0 = arith.constant 0 : i32
    %c0_i32_1 = arith.constant 0 : i32
    return %arg0, %c0_i32, %c0_i32_0 : i32, i32, i32
  }
  func.func @transform_1(%arg0: i32) -> (i32, i32) {
    %c0_i32 = arith.constant 0 : i32
    %c0_i32_0 = arith.constant 0 : i32
    %c0_i32_1 = arith.constant 0 : i32
    return %c0_i32, %c0_i32_0 : i32, i32
  }
  func.func @transform_2(%arg0: i32) -> (i32, i32) {
    %c0_i32 = arith.constant 0 : i32
    %c0_i32_0 = arith.constant 0 : i32
    %c0_i32_1 = arith.constant 0 : i32
    return %c0_i32, %c0_i32_0 : i32, i32
  }
  func.func @transform_3(%arg0: i32) -> (i32, i32) {
    %c0_i32 = arith.constant 0 : i32
    %c0_i32_0 = arith.constant 0 : i32
    %c0_i32_1 = arith.constant 0 : i32
    return %c0_i32, %c0_i32_0 : i32, i32
  }
  func.func @transform_4(%arg0: i32) -> (i32, i32) {
    %c0_i32 = arith.constant 0 : i32
    %c0_i32_0 = arith.constant 0 : i32
    %c0_i32_1 = arith.constant 0 : i32
    return %c0_i32, %c0_i32_0 : i32, i32
  }
  func.func @transform_5(%arg0: i32) -> (i32, i32) {
    %c0_i32 = arith.constant 0 : i32
    %c0_i32_0 = arith.constant 0 : i32
    %c0_i32_1 = arith.constant 0 : i32
    return %c0_i32, %c0_i32_0 : i32, i32
  }
  func.func @transform_6(%arg0: i32) -> (i32, i32) {
    %c0_i32 = arith.constant 0 : i32
    %c0_i32_0 = arith.constant 0 : i32
    %c0_i32_1 = arith.constant 0 : i32
    return %c0_i32, %c0_i32_0 : i32, i32
  }
  func.func @transform_7(%arg0: i32) -> (i32, i32) {
    %c0_i32 = arith.constant 0 : i32
    %c0_i32_0 = arith.constant 0 : i32
    %c0_i32_1 = arith.constant 0 : i32
    return %c0_i32, %c0_i32_0 : i32, i32
  }
  func.func @transform_8(%arg0: i32) -> (i32, i32) {
    %c0_i32 = arith.constant 0 : i32
    %c0_i32_0 = arith.constant 0 : i32
    %c0_i32_1 = arith.constant 0 : i32
    return %c0_i32, %c0_i32_0 : i32, i32
  }
  func.func @transform_9(%arg0: i32) -> (i32, i32, i32) {
    %c0_i32 = arith.constant 0 : i32
    %c0_i32_0 = arith.constant 0 : i32
    %c0_i32_1 = arith.constant 0 : i32
    return %arg0, %c0_i32, %c0_i32_0 : i32, i32, i32
  }
}

module attributes {stable_mosaic.version = 11 : i64} {
  func.func @ca_inverted_residual_kernel(%arg0: i32, %arg1: memref<4x16x128xf32, #tpu.memory_space<vmem>>, %arg2: memref<128x256xbf16, #tpu.memory_space<vmem>>, %arg3: memref<9x256xf32, #tpu.memory_space<vmem>>, %arg4: memref<256x128xbf16, #tpu.memory_space<vmem>>, %arg5: memref<256x8xf32, #tpu.memory_space<vmem>>, %arg6: memref<256x128xbf16, #tpu.memory_space<vmem>>, %arg7: memref<128x256xbf16, #tpu.memory_space<vmem>>, %arg8: memref<14x256xf32, #tpu.memory_space<vmem>>, %arg9: memref<6x128xf32, #tpu.memory_space<vmem>>, %arg10: memref<4x16x128xf32, #tpu.memory_space<vmem>>, %arg11: memref<4x18x256xf32, #tpu.memory_space<vmem>>) attributes {dimension_semantics = [#tpu.dimension_semantics<parallel>], iteration_bounds = array<i64: 2>, scalar_prefetch = 0 : i64, scratch_operands = 1 : i64, tpu.core_type = #tpu.core_type<tc>, window_params = [{transform_indices = @transform_0, window_bounds = array<i64: 4, 16, 128>}, {pipeline_mode = #tpu.pipeline_mode<synchronous>, transform_indices = @transform_1, window_bounds = array<i64: 128, 256>}, {pipeline_mode = #tpu.pipeline_mode<synchronous>, transform_indices = @transform_2, window_bounds = array<i64: 9, 256>}, {pipeline_mode = #tpu.pipeline_mode<synchronous>, transform_indices = @transform_3, window_bounds = array<i64: 256, 128>}, {pipeline_mode = #tpu.pipeline_mode<synchronous>, transform_indices = @transform_4, window_bounds = array<i64: 256, 8>}, {pipeline_mode = #tpu.pipeline_mode<synchronous>, transform_indices = @transform_5, window_bounds = array<i64: 256, 128>}, {pipeline_mode = #tpu.pipeline_mode<synchronous>, transform_indices = @transform_6, window_bounds = array<i64: 128, 256>}, {pipeline_mode = #tpu.pipeline_mode<synchronous>, transform_indices = @transform_7, window_bounds = array<i64: 14, 256>}, {pipeline_mode = #tpu.pipeline_mode<synchronous>, transform_indices = @transform_8, window_bounds = array<i64: 6, 128>}, {transform_indices = @transform_9, window_bounds = array<i64: 4, 16, 128>}]} {
    %c0 = arith.constant 0 : index
    %c0_0 = arith.constant 0 : index
    %c0_1 = arith.constant 0 : index
    %0 = vector.load %arg1[%c0, %c0_0, %c0_1] : memref<4x16x128xf32, #tpu.memory_space<vmem>>, vector<4x16x128xf32>
    %1 = vector.shape_cast %0 : vector<4x16x128xf32> to vector<64x128xf32>
    %2 = arith.truncf %1 : vector<64x128xf32> to vector<64x128xbf16>
    %c0_2 = arith.constant 0 : index
    %c0_3 = arith.constant 0 : index
    %3 = vector.load %arg2[%c0_2, %c0_3] : memref<128x256xbf16, #tpu.memory_space<vmem>>, vector<128x256xbf16>
    %cst = arith.constant dense<0.000000e+00> : vector<64x256xf32>
    %4 = tpu.matmul %2, %3, %cst {dimension_numbers = #tpu.dot_dimension_numbers<[1], [0], [0], [1], [0, 0, 1, 1], [], []>} : vector<64x128xbf16>, vector<128x256xbf16>, vector<64x256xf32> -> vector<64x256xf32>
    %c0_4 = arith.constant 0 : index
    %c0_5 = arith.constant 0 : index
    %5 = vector.load %arg8[%c0_4, %c0_5] : memref<14x256xf32, #tpu.memory_space<vmem>>, vector<1x256xf32>
    %6 = vector.broadcast %5 : vector<1x256xf32> to vector<64x256xf32>
    %7 = arith.mulf %4, %6 : vector<64x256xf32>
    %c1 = arith.constant 1 : index
    %c0_6 = arith.constant 0 : index
    %8 = vector.load %arg8[%c1, %c0_6] : memref<14x256xf32, #tpu.memory_space<vmem>>, vector<1x256xf32>
    %9 = vector.broadcast %8 : vector<1x256xf32> to vector<64x256xf32>
    %10 = arith.addf %7, %9 : vector<64x256xf32>
    %cst_7 = arith.constant 0.000000e+00 : f32
    %cst_8 = arith.constant 6.000000e+00 : f32
    %11 = vector.broadcast %cst_7 : f32 to vector<64x256xf32>
    %12 = arith.maximumf %11, %10 : vector<64x256xf32>
    %13 = vector.broadcast %cst_8 : f32 to vector<64x256xf32>
    %14 = arith.minimumf %13, %12 : vector<64x256xf32>
    %cst_9 = arith.constant 0.000000e+00 : f32
    %15 = vector.broadcast %cst_9 : f32 to vector<4x1x256xf32>
    %c0_10 = arith.constant 0 : index
    %c0_11 = arith.constant 0 : index
    %c0_12 = arith.constant 0 : index
    %16 = vector.load %arg11[%c0_10, %c0_11, %c0_12] : memref<4x18x256xf32, #tpu.memory_space<vmem>>, vector<4x1x256xf32>
    tpu.vector_store %arg11[%c0_10, %c0_11, %c0_12], %15 {strides = array<i32>} : memref<4x18x256xf32, #tpu.memory_space<vmem>>, vector<4x1x256xf32>,
    %cst_13 = arith.constant 0.000000e+00 : f32
    %17 = vector.broadcast %cst_13 : f32 to vector<4x1x256xf32>
    %c0_14 = arith.constant 0 : index
    %c17 = arith.constant 17 : index
    %c0_15 = arith.constant 0 : index
    %18 = vector.load %arg11[%c0_14, %c17, %c0_15] : memref<4x18x256xf32, #tpu.memory_space<vmem>>, vector<4x1x256xf32>
    tpu.vector_store %arg11[%c0_14, %c17, %c0_15], %17 {strides = array<i32>} : memref<4x18x256xf32, #tpu.memory_space<vmem>>, vector<4x1x256xf32>,
    %19 = vector.shape_cast %14 : vector<64x256xf32> to vector<4x16x256xf32>
    %c0_16 = arith.constant 0 : index
    %c1_17 = arith.constant 1 : index
    %c0_18 = arith.constant 0 : index
    %20 = vector.load %arg11[%c0_16, %c1_17, %c0_18] : memref<4x18x256xf32, #tpu.memory_space<vmem>>, vector<4x16x256xf32>
    tpu.vector_store %arg11[%c0_16, %c1_17, %c0_18], %19 {strides = array<i32>} : memref<4x18x256xf32, #tpu.memory_space<vmem>>, vector<4x16x256xf32>,
    %c0_19 = arith.constant 0 : index
    %c0_20 = arith.constant 0 : index
    %21 = vector.load %arg3[%c0_19, %c0_20] : memref<9x256xf32, #tpu.memory_space<vmem>>, vector<9x256xf32>
    %c0_21 = arith.constant 0 : index
    %c0_22 = arith.constant 0 : index
    %c0_23 = arith.constant 0 : index
    %22 = vector.load %arg11[%c0_21, %c0_22, %c0_23] : memref<4x18x256xf32, #tpu.memory_space<vmem>>, vector<4x16x256xf32>
    %23 = vector.shape_cast %22 : vector<4x16x256xf32> to vector<64x256xf32>
    %c16_i32 = arith.constant 16 : i32
    %24 = tpu.dynamic_rotate %23 by %c16_i32 dim 1 : vector<64x256xf32>, i32 -> vector<64x256xf32>
    %c240_i32 = arith.constant 240 : i32
    %25 = tpu.dynamic_rotate %23 by %c240_i32 dim 1 : vector<64x256xf32>, i32 -> vector<64x256xf32>
    %26 = vector.extract_strided_slice %21 {offsets = [0, 0], sizes = [1, 256], strides = [1, 1]} : vector<9x256xf32> to vector<1x256xf32>
    %27 = vector.broadcast %26 : vector<1x256xf32> to vector<64x256xf32>
    %28 = arith.mulf %24, %27 : vector<64x256xf32>
    %29 = vector.extract_strided_slice %21 {offsets = [1, 0], sizes = [1, 256], strides = [1, 1]} : vector<9x256xf32> to vector<1x256xf32>
    %30 = vector.broadcast %29 : vector<1x256xf32> to vector<64x256xf32>
    %31 = arith.mulf %23, %30 : vector<64x256xf32>
    %32 = arith.addf %28, %31 : vector<64x256xf32>
    %33 = vector.extract_strided_slice %21 {offsets = [2, 0], sizes = [1, 256], strides = [1, 1]} : vector<9x256xf32> to vector<1x256xf32>
    %34 = vector.broadcast %33 : vector<1x256xf32> to vector<64x256xf32>
    %35 = arith.mulf %25, %34 : vector<64x256xf32>
    %36 = arith.addf %32, %35 : vector<64x256xf32>
    %c0_24 = arith.constant 0 : index
    %c1_25 = arith.constant 1 : index
    %c0_26 = arith.constant 0 : index
    %37 = vector.load %arg11[%c0_24, %c1_25, %c0_26] : memref<4x18x256xf32, #tpu.memory_space<vmem>>, vector<4x16x256xf32>
    %38 = vector.shape_cast %37 : vector<4x16x256xf32> to vector<64x256xf32>
    %c16_i32_27 = arith.constant 16 : i32
    %39 = tpu.dynamic_rotate %38 by %c16_i32_27 dim 1 : vector<64x256xf32>, i32 -> vector<64x256xf32>
    %c240_i32_28 = arith.constant 240 : i32
    %40 = tpu.dynamic_rotate %38 by %c240_i32_28 dim 1 : vector<64x256xf32>, i32 -> vector<64x256xf32>
    %41 = vector.extract_strided_slice %21 {offsets = [3, 0], sizes = [1, 256], strides = [1, 1]} : vector<9x256xf32> to vector<1x256xf32>
    %42 = vector.broadcast %41 : vector<1x256xf32> to vector<64x256xf32>
    %43 = arith.mulf %39, %42 : vector<64x256xf32>
    %44 = vector.extract_strided_slice %21 {offsets = [4, 0], sizes = [1, 256], strides = [1, 1]} : vector<9x256xf32> to vector<1x256xf32>
    %45 = vector.broadcast %44 : vector<1x256xf32> to vector<64x256xf32>
    %46 = arith.mulf %38, %45 : vector<64x256xf32>
    %47 = arith.addf %43, %46 : vector<64x256xf32>
    %48 = vector.extract_strided_slice %21 {offsets = [5, 0], sizes = [1, 256], strides = [1, 1]} : vector<9x256xf32> to vector<1x256xf32>
    %49 = vector.broadcast %48 : vector<1x256xf32> to vector<64x256xf32>
    %50 = arith.mulf %40, %49 : vector<64x256xf32>
    %51 = arith.addf %47, %50 : vector<64x256xf32>
    %52 = arith.addf %36, %51 : vector<64x256xf32>
    %c0_29 = arith.constant 0 : index
    %c2 = arith.constant 2 : index
    %c0_30 = arith.constant 0 : index
    %53 = vector.load %arg11[%c0_29, %c2, %c0_30] : memref<4x18x256xf32, #tpu.memory_space<vmem>>, vector<4x16x256xf32>
    %54 = vector.shape_cast %53 : vector<4x16x256xf32> to vector<64x256xf32>
    %c16_i32_31 = arith.constant 16 : i32
    %55 = tpu.dynamic_rotate %54 by %c16_i32_31 dim 1 : vector<64x256xf32>, i32 -> vector<64x256xf32>
    %c240_i32_32 = arith.constant 240 : i32
    %56 = tpu.dynamic_rotate %54 by %c240_i32_32 dim 1 : vector<64x256xf32>, i32 -> vector<64x256xf32>
    %57 = vector.extract_strided_slice %21 {offsets = [6, 0], sizes = [1, 256], strides = [1, 1]} : vector<9x256xf32> to vector<1x256xf32>
    %58 = vector.broadcast %57 : vector<1x256xf32> to vector<64x256xf32>
    %59 = arith.mulf %55, %58 : vector<64x256xf32>
    %60 = vector.extract_strided_slice %21 {offsets = [7, 0], sizes = [1, 256], strides = [1, 1]} : vector<9x256xf32> to vector<1x256xf32>
    %61 = vector.broadcast %60 : vector<1x256xf32> to vector<64x256xf32>
    %62 = arith.mulf %54, %61 : vector<64x256xf32>
    %63 = arith.addf %59, %62 : vector<64x256xf32>
    %64 = vector.extract_strided_slice %21 {offsets = [8, 0], sizes = [1, 256], strides = [1, 1]} : vector<9x256xf32> to vector<1x256xf32>
    %65 = vector.broadcast %64 : vector<1x256xf32> to vector<64x256xf32>
    %66 = arith.mulf %56, %65 : vector<64x256xf32>
    %67 = arith.addf %63, %66 : vector<64x256xf32>
    %68 = arith.addf %52, %67 : vector<64x256xf32>
    %c2_33 = arith.constant 2 : index
    %c0_34 = arith.constant 0 : index
    %69 = vector.load %arg8[%c2_33, %c0_34] : memref<14x256xf32, #tpu.memory_space<vmem>>, vector<1x256xf32>
    %70 = vector.broadcast %69 : vector<1x256xf32> to vector<64x256xf32>
    %71 = arith.mulf %68, %70 : vector<64x256xf32>
    %c3 = arith.constant 3 : index
    %c0_35 = arith.constant 0 : index
    %72 = vector.load %arg8[%c3, %c0_35] : memref<14x256xf32, #tpu.memory_space<vmem>>, vector<1x256xf32>
    %73 = vector.broadcast %72 : vector<1x256xf32> to vector<64x256xf32>
    %74 = arith.addf %71, %73 : vector<64x256xf32>
    %cst_36 = arith.constant 0.000000e+00 : f32
    %cst_37 = arith.constant 6.000000e+00 : f32
    %75 = vector.broadcast %cst_36 : f32 to vector<64x256xf32>
    %76 = arith.maximumf %75, %74 : vector<64x256xf32>
    %77 = vector.broadcast %cst_37 : f32 to vector<64x256xf32>
    %78 = arith.minimumf %77, %76 : vector<64x256xf32>
    %c0_38 = arith.constant 0 : index
    %c0_39 = arith.constant 0 : index
    %79 = vector.load %arg5[%c0_38, %c0_39] : memref<256x8xf32, #tpu.memory_space<vmem>>, vector<256x8xf32>
    %cst_40 = arith.constant dense<0.000000e+00> : vector<64x8xf32>
    %80 = tpu.matmul %78, %79, %cst_40 {dimension_numbers = #tpu.dot_dimension_numbers<[1], [0], [0], [1], [0, 0, 1, 1], [], []>} : vector<64x256xf32>, vector<256x8xf32>, vector<64x8xf32> -> vector<64x8xf32>
    %c4 = arith.constant 4 : index
    %c0_41 = arith.constant 0 : index
    %81 = vector.load %arg9[%c4, %c0_41] : memref<6x128xf32, #tpu.memory_space<vmem>>, vector<1x8xf32>
    %82 = vector.broadcast %81 : vector<1x8xf32> to vector<64x8xf32>
    %83 = arith.mulf %80, %82 : vector<64x8xf32>
    %c5 = arith.constant 5 : index
    %c0_42 = arith.constant 0 : index
    %84 = vector.load %arg9[%c5, %c0_42] : memref<6x128xf32, #tpu.memory_space<vmem>>, vector<1x8xf32>
    %85 = vector.broadcast %84 : vector<1x8xf32> to vector<64x8xf32>
    %86 = arith.addf %83, %85 : vector<64x8xf32>
    %cst_43 = arith.constant 3.000000e+00 : f32
    %87 = vector.broadcast %cst_43 : f32 to vector<64x8xf32>
    %88 = arith.addf %86, %87 : vector<64x8xf32>
    %cst_44 = arith.constant 0.000000e+00 : f32
    %cst_45 = arith.constant 6.000000e+00 : f32
    %89 = vector.broadcast %cst_44 : f32 to vector<64x8xf32>
    %90 = arith.maximumf %89, %88 : vector<64x8xf32>
    %91 = vector.broadcast %cst_45 : f32 to vector<64x8xf32>
    %92 = arith.minimumf %91, %90 : vector<64x8xf32>
    %93 = arith.mulf %86, %92 : vector<64x8xf32>
    %cst_46 = arith.constant 0.166666672 : f32
    %94 = vector.broadcast %cst_46 : f32 to vector<64x8xf32>
    %95 = arith.mulf %93, %94 : vector<64x8xf32>
    %c6 = arith.constant 6 : index
    %c0_47 = arith.constant 0 : index
    %96 = vector.load %arg8[%c6, %c0_47] : memref<14x256xf32, #tpu.memory_space<vmem>>, vector<8x256xf32>
    %cst_48 = arith.constant dense<0.000000e+00> : vector<64x256xf32>
    %97 = tpu.matmul %95, %96, %cst_48 {dimension_numbers = #tpu.dot_dimension_numbers<[1], [0], [0], [1], [0, 0, 1, 1], [], []>} : vector<64x8xf32>, vector<8x256xf32>, vector<64x256xf32> -> vector<64x256xf32>
    %c4_49 = arith.constant 4 : index
    %c0_50 = arith.constant 0 : index
    %98 = vector.load %arg8[%c4_49, %c0_50] : memref<14x256xf32, #tpu.memory_space<vmem>>, vector<1x256xf32>
    %99 = vector.broadcast %98 : vector<1x256xf32> to vector<64x256xf32>
    %100 = arith.addf %97, %99 : vector<64x256xf32>
    %101 = arith.negf %100 : vector<64x256xf32>
    %102 = math.exp %101 : vector<64x256xf32>
    %cst_51 = arith.constant 1.000000e+00 : f32
    %103 = vector.broadcast %cst_51 : f32 to vector<64x256xf32>
    %104 = arith.addf %103, %102 : vector<64x256xf32>
    %105 = arith.divf %103, %104 : vector<64x256xf32>
    %106 = vector.shape_cast %78 : vector<64x256xf32> to vector<4x16x256xf32>
    %cst_52 = arith.constant dense<0.000000e+00> : vector<4x256xf32>
    %107 = vector.multi_reduction <add>, %106, %cst_52 [1] : vector<4x16x256xf32> to vector<4x256xf32>
    %cst_53 = arith.constant 1.600000e+01 : f32
    %108 = vector.broadcast %cst_53 : f32 to vector<4x256xf32>
    %109 = arith.divf %107, %108 : vector<4x256xf32>
    %110 = arith.truncf %109 : vector<4x256xf32> to vector<4x256xbf16>
    %c0_54 = arith.constant 0 : index
    %c0_55 = arith.constant 0 : index
    %111 = vector.load %arg6[%c0_54, %c0_55] : memref<256x128xbf16, #tpu.memory_space<vmem>>, vector<256x128xbf16>
    %cst_56 = arith.constant dense<0.000000e+00> : vector<4x128xf32>
    %112 = tpu.matmul %110, %111, %cst_56 {dimension_numbers = #tpu.dot_dimension_numbers<[1], [0], [0], [1], [0, 0, 1, 1], [], []>} : vector<4x256xbf16>, vector<256x128xbf16>, vector<4x128xf32> -> vector<4x128xf32>
    %c2_57 = arith.constant 2 : index
    %c0_58 = arith.constant 0 : index
    %113 = vector.load %arg9[%c2_57, %c0_58] : memref<6x128xf32, #tpu.memory_space<vmem>>, vector<1x128xf32>
    %114 = vector.broadcast %113 : vector<1x128xf32> to vector<4x128xf32>
    %115 = arith.mulf %112, %114 : vector<4x128xf32>
    %c3_59 = arith.constant 3 : index
    %c0_60 = arith.constant 0 : index
    %116 = vector.load %arg9[%c3_59, %c0_60] : memref<6x128xf32, #tpu.memory_space<vmem>>, vector<1x128xf32>
    %117 = vector.broadcast %116 : vector<1x128xf32> to vector<4x128xf32>
    %118 = arith.addf %115, %117 : vector<4x128xf32>
    %cst_61 = arith.constant 3.000000e+00 : f32
    %119 = vector.broadcast %cst_61 : f32 to vector<4x128xf32>
    %120 = arith.addf %118, %119 : vector<4x128xf32>
    %cst_62 = arith.constant 0.000000e+00 : f32
    %cst_63 = arith.constant 6.000000e+00 : f32
    %121 = vector.broadcast %cst_62 : f32 to vector<4x128xf32>
    %122 = arith.maximumf %121, %120 : vector<4x128xf32>
    %123 = vector.broadcast %cst_63 : f32 to vector<4x128xf32>
    %124 = arith.minimumf %123, %122 : vector<4x128xf32>
    %125 = arith.mulf %118, %124 : vector<4x128xf32>
    %cst_64 = arith.constant 0.166666672 : f32
    %126 = vector.broadcast %cst_64 : f32 to vector<4x128xf32>
    %127 = arith.mulf %125, %126 : vector<4x128xf32>
    %128 = arith.truncf %127 : vector<4x128xf32> to vector<4x128xbf16>
    %c0_65 = arith.constant 0 : index
    %c0_66 = arith.constant 0 : index
    %129 = vector.load %arg7[%c0_65, %c0_66] : memref<128x256xbf16, #tpu.memory_space<vmem>>, vector<128x256xbf16>
    %cst_67 = arith.constant dense<0.000000e+00> : vector<4x256xf32>
    %130 = tpu.matmul %128, %129, %cst_67 {dimension_numbers = #tpu.dot_dimension_numbers<[1], [0], [0], [1], [0, 0, 1, 1], [], []>} : vector<4x128xbf16>, vector<128x256xbf16>, vector<4x256xf32> -> vector<4x256xf32>
    %c5_68 = arith.constant 5 : index
    %c0_69 = arith.constant 0 : index
    %131 = vector.load %arg8[%c5_68, %c0_69] : memref<14x256xf32, #tpu.memory_space<vmem>>, vector<1x256xf32>
    %132 = vector.broadcast %131 : vector<1x256xf32> to vector<4x256xf32>
    %133 = arith.addf %130, %132 : vector<4x256xf32>
    %134 = arith.negf %133 : vector<4x256xf32>
    %135 = math.exp %134 : vector<4x256xf32>
    %cst_70 = arith.constant 1.000000e+00 : f32
    %136 = vector.broadcast %cst_70 : f32 to vector<4x256xf32>
    %137 = arith.addf %136, %135 : vector<4x256xf32>
    %138 = arith.divf %136, %137 : vector<4x256xf32>
    %139 = vector.shape_cast %105 : vector<64x256xf32> to vector<4x16x256xf32>
    %140 = arith.mulf %106, %139 : vector<4x16x256xf32>
    %141 = vector.shape_cast %138 : vector<4x256xf32> to vector<4x1x256xf32>
    %142 = vector.broadcast %141 : vector<4x1x256xf32> to vector<4x16x256xf32>
    %143 = arith.mulf %140, %142 : vector<4x16x256xf32>
    %144 = vector.shape_cast %143 : vector<4x16x256xf32> to vector<64x256xf32>
    %145 = arith.truncf %144 : vector<64x256xf32> to vector<64x256xbf16>
    %c0_71 = arith.constant 0 : index
    %c0_72 = arith.constant 0 : index
    %146 = vector.load %arg4[%c0_71, %c0_72] : memref<256x128xbf16, #tpu.memory_space<vmem>>, vector<256x128xbf16>
    %cst_73 = arith.constant dense<0.000000e+00> : vector<64x128xf32>
    %147 = tpu.matmul %145, %146, %cst_73 {dimension_numbers = #tpu.dot_dimension_numbers<[1], [0], [0], [1], [0, 0, 1, 1], [], []>} : vector<64x256xbf16>, vector<256x128xbf16>, vector<64x128xf32> -> vector<64x128xf32>
    %c0_74 = arith.constant 0 : index
    %c0_75 = arith.constant 0 : index
    %148 = vector.load %arg9[%c0_74, %c0_75] : memref<6x128xf32, #tpu.memory_space<vmem>>, vector<1x128xf32>
    %149 = vector.broadcast %148 : vector<1x128xf32> to vector<64x128xf32>
    %150 = arith.mulf %147, %149 : vector<64x128xf32>
    %c1_76 = arith.constant 1 : index
    %c0_77 = arith.constant 0 : index
    %151 = vector.load %arg9[%c1_76, %c0_77] : memref<6x128xf32, #tpu.memory_space<vmem>>, vector<1x128xf32>
    %152 = vector.broadcast %151 : vector<1x128xf32> to vector<64x128xf32>
    %153 = arith.addf %150, %152 : vector<64x128xf32>
    %154 = arith.addf %153, %1 : vector<64x128xf32>
    %155 = vector.shape_cast %154 : vector<64x128xf32> to vector<4x16x128xf32>
    %c0_78 = arith.constant 0 : index
    %c0_79 = arith.constant 0 : index
    %c0_80 = arith.constant 0 : index
    %156 = vector.load %arg10[%c0_78, %c0_79, %c0_80] : memref<4x16x128xf32, #tpu.memory_space<vmem>>, vector<4x16x128xf32>
    tpu.vector_store %arg10[%c0_78, %c0_79, %c0_80], %155 {strides = array<i32>} : memref<4x16x128xf32, #tpu.memory_space<vmem>>, vector<4x16x128xf32>,
    return
  }
  func.func @transform_0(%arg0: i32) -> (i32, i32, i32) {
    %c0_i32 = arith.constant 0 : i32
    %c0_i32_0 = arith.constant 0 : i32
    %c0_i32_1 = arith.constant 0 : i32
    return %arg0, %c0_i32, %c0_i32_0 : i32, i32, i32
  }
  func.func @transform_1(%arg0: i32) -> (i32, i32) {
    %c0_i32 = arith.constant 0 : i32
    %c0_i32_0 = arith.constant 0 : i32
    %c0_i32_1 = arith.constant 0 : i32
    return %c0_i32, %c0_i32_0 : i32, i32
  }
  func.func @transform_2(%arg0: i32) -> (i32, i32) {
    %c0_i32 = arith.constant 0 : i32
    %c0_i32_0 = arith.constant 0 : i32
    %c0_i32_1 = arith.constant 0 : i32
    return %c0_i32, %c0_i32_0 : i32, i32
  }
  func.func @transform_3(%arg0: i32) -> (i32, i32) {
    %c0_i32 = arith.constant 0 : i32
    %c0_i32_0 = arith.constant 0 : i32
    %c0_i32_1 = arith.constant 0 : i32
    return %c0_i32, %c0_i32_0 : i32, i32
  }
  func.func @transform_4(%arg0: i32) -> (i32, i32) {
    %c0_i32 = arith.constant 0 : i32
    %c0_i32_0 = arith.constant 0 : i32
    %c0_i32_1 = arith.constant 0 : i32
    return %c0_i32, %c0_i32_0 : i32, i32
  }
  func.func @transform_5(%arg0: i32) -> (i32, i32) {
    %c0_i32 = arith.constant 0 : i32
    %c0_i32_0 = arith.constant 0 : i32
    %c0_i32_1 = arith.constant 0 : i32
    return %c0_i32, %c0_i32_0 : i32, i32
  }
  func.func @transform_6(%arg0: i32) -> (i32, i32) {
    %c0_i32 = arith.constant 0 : i32
    %c0_i32_0 = arith.constant 0 : i32
    %c0_i32_1 = arith.constant 0 : i32
    return %c0_i32, %c0_i32_0 : i32, i32
  }
  func.func @transform_7(%arg0: i32) -> (i32, i32) {
    %c0_i32 = arith.constant 0 : i32
    %c0_i32_0 = arith.constant 0 : i32
    %c0_i32_1 = arith.constant 0 : i32
    return %c0_i32, %c0_i32_0 : i32, i32
  }
  func.func @transform_8(%arg0: i32) -> (i32, i32) {
    %c0_i32 = arith.constant 0 : i32
    %c0_i32_0 = arith.constant 0 : i32
    %c0_i32_1 = arith.constant 0 : i32
    return %c0_i32, %c0_i32_0 : i32, i32
  }
  func.func @transform_9(%arg0: i32) -> (i32, i32, i32) {
    %c0_i32 = arith.constant 0 : i32
    %c0_i32_0 = arith.constant 0 : i32
    %c0_i32_1 = arith.constant 0 : i32
    return %arg0, %c0_i32, %c0_i32_0 : i32, i32, i32
  }
}

</mosaic_0001>

<llo_original>
// kernel: tpu_custom_call.1
$region0: #{tpu_custom_call.1}
  #allocation0 [shape = 'u32[]', space=smem, size = 0x4, offset = 0x4, fixed_abs, tag = 'smem constant byte address 0x4 - core index']
  #allocation1 [shape = 'u32[144,128]{1,0:T(1,128)}', space=vmem, size = 0x12000, scoped, tag = 'internal scratch']
  #allocation2 [shape = 'f32[4,18,256]{2,1,0:T(8,128)}', space=vmem, size = 0x18000, scoped, tag = 'scratch operand']
  %s0 = inlined_call_operand.vmem [shape: f32[8,16,128], index: 0, kind: input, shape index: {}]
  %s1 = inlined_call_operand.vmem [shape: bf16[128,256], index: 1, kind: input, shape index: {}]
  %s2 = inlined_call_operand.hbm [shape: f32[9,256], index: 2, kind: input, shape index: {}]
  %s3 = inlined_call_operand.hbm [shape: bf16[256,128], index: 3, kind: input, shape index: {}]
  %s4 = inlined_call_operand.vmem [shape: f32[256,8], index: 4, kind: input, shape index: {}]
  %s5 = inlined_call_operand.hbm [shape: bf16[256,128], index: 5, kind: input, shape index: {}]
  %s6 = inlined_call_operand.hbm [shape: bf16[128,256], index: 6, kind: input, shape index: {}]
  %s7 = inlined_call_operand.vmem [shape: f32[14,256], index: 7, kind: input, shape index: {}]
  %s8 = inlined_call_operand.vmem [shape: f32[6,128], index: 8, kind: input, shape index: {}]
  %s9 = inlined_call_operand.hbm [shape: f32[8,16,128], index: 9, kind: output, shape index: {}]
  %s10 = sld [smem:[#allocation0]]
  $region85: #{tpu_custom_call.1} parent=0
    _
  %s12 = ssub.s32 1, %s10
  %s13 = scalar_select 0, %s12, %s10
  $region1: #{tpu_custom_call.1} parent=0
    #allocation3 [shape = 'u8[16384]{0}', space=vmem, size = 0x4000, scoped, tag = 'input window, operand 2, single buffered']
    #allocation4 [shape = 's32[2]{0}', space=sflag, size = 0x8, scoped, tag = 'scoped memory for tpu_custom_call.1']
    #allocation5 [shape = 's32[2]{0}', space=sflag, size = 0x8, scoped, tag = 'scoped memory for tpu_custom_call.1']
    #allocation6 [shape = 'u8[65536]{0}', space=vmem, size = 0x10000, scoped, tag = 'input window, operand 3, single buffered']
    #allocation7 [shape = 's32[1]{0}', space=sflag, size = 0x4, scoped, tag = 'scoped memory for tpu_custom_call.1']
    #allocation8 [shape = 'u8[65536]{0}', space=vmem, size = 0x10000, scoped, tag = 'input window, operand 5, single buffered']
    #allocation9 [shape = 'u8[65536]{0}', space=vmem, size = 0x10000, scoped, tag = 'input window, operand 6, single buffered']
    #allocation10 [shape = 's32[1]{0}', space=sflag, size = 0x4, scoped, tag = 'scoped memory for tpu_custom_call.1']
    #allocation11 [shape = 'u8[65536]{0}', space=vmem, size = 0x10000, scoped, tag = 'output window, operand 0']
    %14 = vsyncpa [#allocation4], 0
    %15 = vsyncpa [#allocation7], 0
    %16 = vsyncpa [#allocation10], 0
    %17 = vsyncpa [#allocation5], 0
    %s18 = scalar_lea.sflag [#allocation5], 1
    %19 = vsyncpa %s18, 0
    loop: start=0, step=1, limit=4
    $region2: #{tpu_custom_call.1} parent=1 // loop_pre_header
      _
    $region3: #{tpu_custom_call.1} parent=1 // loop_header
      %s21 = sphi 0, %s25
      %p22 = scmp.ge.s32.totalorder %s21, 4
      %s31 = sphi 0, %s33
      %s34 = sphi 0, %s31
      %s35 = sphi 0, %s34
      %s51 = sphi 0, %s35
      %s55 = sphi 0, %s55
      %s57 = sphi 0, %s55
      %s58 = sphi 0, %s57
      %s72 = sphi 0, %s58
      %s76 = sphi 0, %s76
      %s78 = sphi 0, %s76
      %s79 = sphi 0, %s78
      %s93 = sphi 0, %s79
      %s97 = sphi 0, %s97
      %s99 = sphi 0, %s97
      %s100 = sphi 0, %s99
      %s114 = sphi 0, %s100
      %s118 = sphi 0, %s118
      %s120 = sphi 0, %s118
      %s121 = sphi 0, %s120
      %s135 = sphi 0, %s121
      %s139 = sphi 0, %s139
      %s141 = sphi 0, %s139
      %s142 = sphi 0, %s141
      %s156 = sphi 0, %s142
      %s160 = sphi 0, %s160
      %s162 = sphi 0, %s160
      %s163 = sphi 0, %s162
      %s177 = sphi 0, %s163
      %s181 = sphi 0, %s181
      %s183 = sphi 0, %s181
      %s184 = sphi 0, %s183
      %s198 = sphi 0, %s184
      %s202 = sphi 0, %s202
      %s204 = sphi 0, %s202
      %s205 = sphi 0, %s204
      %s219 = sphi 0, %s205
      %s225 = sphi 0, %s227
      %s228 = sphi 0, %s225
      %s229 = sphi 0, %s228
      %s245 = sphi 0, %s229
    $region4: #{tpu_custom_call.1} parent=1 // loop_header_branch
      %24 = sbr.rel (%p22) target = $region8
    $region5: #{tpu_custom_call.1} parent=1 // loop_body
      %s26 = ssub.s32 %s21, 1
      %s27 = ssub.s32 %s21, 2
      %s28 = sadd.s32 %s21, 1
      %s29 = ssub.s32 %s21, %s28
      %p30 = scmp.eq.s32.totalorder %s29, 0
      %s32 = sadd.s32 %s31, 1
      %s33 = scalar_select %p30, %s31, %s32
      %p36 = pneg %p30
      %p37 = scmp.eq.s32.totalorder %s21, 1
      %p38 = por %p36, %p37
      %p39 = scmp.ne.s32.totalorder %s31, %s34
      %p40 = scmp.eq.s32.totalorder %s21, 0
      %p41 = por %p39, %p40
      %p42 = scmp.ne.s32.totalorder %s31, %s34
      %p43 = scmp.eq.s32.totalorder %s26, 1
      %p44 = por %p42, %p43
      %p45 = scmp.ne.s32.totalorder %s34, %s35
      %p46 = scmp.eq.s32.totalorder %s26, 0
      %p47 = por %p45, %p46
      %p48 = scmp.ne.s32.totalorder %s34, %s35
      %p49 = scmp.eq.s32.totalorder %s27, 1
      %p50 = por %p48, %p49
      %p52 = scmp.ne.s32.totalorder %s35, %s51
      %p53 = scmp.eq.s32.totalorder %s27, 0
      %p54 = por %p52, %p53
      %s56 = sadd.s32 %s55, 1
      %p59 = scmp.eq.s32.totalorder %s21, 1
      %p60 = scmp.ne.s32.totalorder %s55, %s57
      %p61 = scmp.eq.s32.totalorder %s21, 0
      %p62 = por %p60, %p61
      %p63 = scmp.ne.s32.totalorder %s55, %s57
      %p64 = scmp.eq.s32.totalorder %s26, 1
      %p65 = por %p63, %p64
      %p66 = scmp.ne.s32.totalorder %s57, %s58
      %p67 = scmp.eq.s32.totalorder %s26, 0
      %p68 = por %p66, %p67
      %p69 = scmp.ne.s32.totalorder %s57, %s58
      %p70 = scmp.eq.s32.totalorder %s27, 1
      %p71 = por %p69, %p70
      %p73 = scmp.ne.s32.totalorder %s58, %s72
      %p74 = scmp.eq.s32.totalorder %s27, 0
      %p75 = por %p73, %p74
      %s77 = sadd.s32 %s76, 1
      %p80 = scmp.eq.s32.totalorder %s21, 1
      %p81 = scmp.ne.s32.totalorder %s76, %s78
      %p82 = scmp.eq.s32.totalorder %s21, 0
      %p83 = por %p81, %p82
      %p84 = scmp.ne.s32.totalorder %s76, %s78
      %p85 = scmp.eq.s32.totalorder %s26, 1
      %p86 = por %p84, %p85
      %p87 = scmp.ne.s32.totalorder %s78, %s79
      %p88 = scmp.eq.s32.totalorder %s26, 0
      %p89 = por %p87, %p88
      %p90 = scmp.ne.s32.totalorder %s78, %s79
      %p91 = scmp.eq.s32.totalorder %s27, 1
      %p92 = por %p90, %p91
      %p94 = scmp.ne.s32.totalorder %s79, %s93
      %p95 = scmp.eq.s32.totalorder %s27, 0
      %p96 = por %p94, %p95
      %s98 = sadd.s32 %s97, 1
      %p101 = scmp.eq.s32.totalorder %s21, 1
      %p102 = scmp.ne.s32.totalorder %s97, %s99
      %p103 = scmp.eq.s32.totalorder %s21, 0
      %p104 = por %p102, %p103
      %p105 = scmp.ne.s32.totalorder %s97, %s99
      %p106 = scmp.eq.s32.totalorder %s26, 1
      %p107 = por %p105, %p106
      %p108 = scmp.ne.s32.totalorder %s99, %s100
      %p109 = scmp.eq.s32.totalorder %s26, 0
      %p110 = por %p108, %p109
      %p111 = scmp.ne.s32.totalorder %s99, %s100
      %p112 = scmp.eq.s32.totalorder %s27, 1
      %p113 = por %p111, %p112
      %p115 = scmp.ne.s32.totalorder %s100, %s114
      %p116 = scmp.eq.s32.totalorder %s27, 0
      %p117 = por %p115, %p116
      %s119 = sadd.s32 %s118, 1
      %p122 = scmp.eq.s32.totalorder %s21, 1
      %p123 = scmp.ne.s32.totalorder %s118, %s120
      %p124 = scmp.eq.s32.totalorder %s21, 0
      %p125 = por %p123, %p124
      %p126 = scmp.ne.s32.totalorder %s118, %s120
      %p127 = scmp.eq.s32.totalorder %s26, 1
      %p128 = por %p126, %p127
      %p129 = scmp.ne.s32.totalorder %s120, %s121
      %p130 = scmp.eq.s32.totalorder %s26, 0
      %p131 = por %p129, %p130
      %p132 = scmp.ne.s32.totalorder %s120, %s121
      %p133 = scmp.eq.s32.totalorder %s27, 1
      %p134 = por %p132, %p133
      %p136 = scmp.ne.s32.totalorder %s121, %s135
      %p137 = scmp.eq.s32.totalorder %s27, 0
      %p138 = por %p136, %p137
      %s140 = sadd.s32 %s139, 1
      %p143 = scmp.eq.s32.totalorder %s21, 1
      %p144 = scmp.ne.s32.totalorder %s139, %s141
      %p145 = scmp.eq.s32.totalorder %s21, 0
      %p146 = por %p144, %p145
      %p147 = scmp.ne.s32.totalorder %s139, %s141
      %p148 = scmp.eq.s32.totalorder %s26, 1
      %p149 = por %p147, %p148
      %p150 = scmp.ne.s32.totalorder %s141, %s142
      %p151 = scmp.eq.s32.totalorder %s26, 0
      %p152 = por %p150, %p151
      %p153 = scmp.ne.s32.totalorder %s141, %s142
      %p154 = scmp.eq.s32.totalorder %s27, 1
      %p155 = por %p153, %p154
      %p157 = scmp.ne.s32.totalorder %s142, %s156
      %p158 = scmp.eq.s32.totalorder %s27, 0
      %p159 = por %p157, %p158
      %s161 = sadd.s32 %s160, 1
      %p164 = scmp.eq.s32.totalorder %s21, 1
      %p165 = scmp.ne.s32.totalorder %s160, %s162
      %p166 = scmp.eq.s32.totalorder %s21, 0
      %p167 = por %p165, %p166
      %p168 = scmp.ne.s32.totalorder %s160, %s162
      %p169 = scmp.eq.s32.totalorder %s26, 1
      %p170 = por %p168, %p169
      %p171 = scmp.ne.s32.totalorder %s162, %s163
      %p172 = scmp.eq.s32.totalorder %s26, 0
      %p173 = por %p171, %p172
      %p174 = scmp.ne.s32.totalorder %s162, %s163
      %p175 = scmp.eq.s32.totalorder %s27, 1
      %p176 = por %p174, %p175
      %p178 = scmp.ne.s32.totalorder %s163, %s177
      %p179 = scmp.eq.s32.totalorder %s27, 0
      %p180 = por %p178, %p179
      %s182 = sadd.s32 %s181, 1
      %p185 = scmp.eq.s32.totalorder %s21, 1
      %p186 = scmp.ne.s32.totalorder %s181, %s183
      %p187 = scmp.eq.s32.totalorder %s21, 0
      %p188 = por %p186, %p187
      %p189 = scmp.ne.s32.totalorder %s181, %s183
      %p190 = scmp.eq.s32.totalorder %s26, 1
      %p191 = por %p189, %p190
      %p192 = scmp.ne.s32.totalorder %s183, %s184
      %p193 = scmp.eq.s32.totalorder %s26, 0
      %p194 = por %p192, %p193
      %p195 = scmp.ne.s32.totalorder %s183, %s184
      %p196 = scmp.eq.s32.totalorder %s27, 1
      %p197 = por %p195, %p196
      %p199 = scmp.ne.s32.totalorder %s184, %s198
      %p200 = scmp.eq.s32.totalorder %s27, 0
      %p201 = por %p199, %p200
      %s203 = sadd.s32 %s202, 1
      %p206 = scmp.eq.s32.totalorder %s21, 1
      %p207 = scmp.ne.s32.totalorder %s202, %s204
      %p208 = scmp.eq.s32.totalorder %s21, 0
      %p209 = por %p207, %p208
      %p210 = scmp.ne.s32.totalorder %s202, %s204
      %p211 = scmp.eq.s32.totalorder %s26, 1
      %p212 = por %p210, %p211
      %p213 = scmp.ne.s32.totalorder %s204, %s205
      %p214 = scmp.eq.s32.totalorder %s26, 0
      %p215 = por %p213, %p214
      %p216 = scmp.ne.s32.totalorder %s204, %s205
      %p217 = scmp.eq.s32.totalorder %s27, 1
      %p218 = por %p216, %p217
      %p220 = scmp.ne.s32.totalorder %s205, %s219
      %p221 = scmp.eq.s32.totalorder %s27, 0
      %p222 = por %p220, %p221
      %s223 = ssub.s32 %s21, %s28
      %p224 = scmp.eq.s32.totalorder %s223, 0
      %s226 = sadd.s32 %s225, 1
      %s227 = scalar_select %p224, %s225, %s226
      %p230 = pneg %p224
      %p231 = scmp.eq.s32.totalorder %s21, 1
      %p232 = por %p230, %p231
      %p233 = scmp.ne.s32.totalorder %s225, %s228
      %p234 = scmp.eq.s32.totalorder %s21, 0
      %p235 = por %p233, %p234
      %p236 = scmp.ne.s32.totalorder %s225, %s228
      %p237 = scmp.eq.s32.totalorder %s26, 1
      %p238 = por %p236, %p237
      %p239 = scmp.ne.s32.totalorder %s228, %s229
      %p240 = scmp.eq.s32.totalorder %s26, 0
      %p241 = por %p239, %p240
      %p242 = scmp.ne.s32.totalorder %s228, %s229
      %p243 = scmp.eq.s32.totalorder %s27, 1
      %p244 = por %p242, %p243
      %p246 = scmp.ne.s32.totalorder %s229, %s245
      %p247 = scmp.eq.s32.totalorder %s27, 0
      %p248 = por %p246, %p247
      %p249 = scmp.le.s32.totalorder 1, %s21
      %p250 = scmp.lt.s32.totalorder %s21, 3
      %p251 = pnand %p249, %p250
      %p252 = pneg %p251
      // Predicated region
      $region9: #{tpu_custom_call.1} parent=5 // pred_check
        _
      $region10: #{tpu_custom_call.1} parent=5 // pred_check_branch
        %254 = sbr.rel (%p251) target = $region12
      $region11: #{tpu_custom_call.1} parent=5 // pred_region
        %s255 = ssub.s32 %s21, 1
        // Predicated region
        $region13: #{tpu_custom_call.1} parent=11 // pred_check
          %p256 = pneg %p68
        $region14: #{tpu_custom_call.1} parent=11 // pred_check_branch
          %258 = sbr.rel (%p256) target = $region16
        $region15: #{tpu_custom_call.1} parent=11 // pred_region
          _
        $region16: #{tpu_custom_call.1} parent=11 // pred_fallthru
          _
        // Predicated region
        $region17: #{tpu_custom_call.1} parent=11 // pred_check
          %p259 = pneg %p89
        $region18: #{tpu_custom_call.1} parent=11 // pred_check_branch
          %261 = sbr.rel (%p259) target = $region20
        $region19: #{tpu_custom_call.1} parent=11 // pred_region
          %s263 = ssub.s32 512, 512
          %264 = vsyncadd [#allocation4], %s263
          %s265 = sshll.u32 [#allocation3], 4
          %s266 = int_to_ptr.vmem [resolvable:$true] %s265
          %271 = dma.hbm_to_vmem [thread:$0]  %s2, 512, %s266, [#allocation4], 256, 256, 16
        $region20: #{tpu_custom_call.1} parent=11 // pred_fallthru
          _
        // Predicated region
        $region21: #{tpu_custom_call.1} parent=11 // pred_check
          %p272 = pneg %p110
        $region22: #{tpu_custom_call.1} parent=11 // pred_check_branch
          %274 = sbr.rel (%p272) target = $region24
        $region23: #{tpu_custom_call.1} parent=11 // pred_region
          %s276 = ssub.s32 2048, 2048
          %277 = vsyncadd [#allocation7], %s276
          %s278 = sshll.u32 [#allocation6], 4
          %s279 = int_to_ptr.vmem [resolvable:$true] %s278
          %284 = dma.hbm_to_vmem [thread:$0]  %s3, 2048, %s279, [#allocation7], 64, 64, 4
        $region24: #{tpu_custom_call.1} parent=11 // pred_fallthru
          _
        // Predicated region
        $region25: #{tpu_custom_call.1} parent=11 // pred_check
          %p285 = pneg %p131
        $region26: #{tpu_custom_call.1} parent=11 // pred_check_branch
          %287 = sbr.rel (%p285) target = $region28
        $region27: #{tpu_custom_call.1} parent=11 // pred_region
          _
        $region28: #{tpu_custom_call.1} parent=11 // pred_fallthru
          _
        // Predicated region
        $region29: #{tpu_custom_call.1} parent=11 // pred_check
          %p288 = pneg %p152
        $region30: #{tpu_custom_call.1} parent=11 // pred_check_branch
          %290 = sbr.rel (%p288) target = $region32
        $region31: #{tpu_custom_call.1} parent=11 // pred_region
          %s292 = ssub.s32 2048, 2048
          %293 = vsyncadd [#allocation7], %s292
          %s294 = sshll.u32 [#allocation8], 4
          %s295 = int_to_ptr.vmem [resolvable:$true] %s294
          %300 = dma.hbm_to_vmem [thread:$0]  %s5, 2048, %s295, [#allocation7], 64, 64, 4
        $region32: #{tpu_custom_call.1} parent=11 // pred_fallthru
          _
        // Predicated region
        $region33: #{tpu_custom_call.1} parent=11 // pred_check
          %p301 = pneg %p173
        $region34: #{tpu_custom_call.1} parent=11 // pred_check_branch
          %303 = sbr.rel (%p301) target = $region36
        $region35: #{tpu_custom_call.1} parent=11 // pred_region
          %s305 = ssub.s32 2048, 2048
          %306 = vsyncadd [#allocation10], %s305
          %s307 = sshll.u32 [#allocation9], 4
          %s308 = int_to_ptr.vmem [resolvable:$true] %s307
          %313 = dma.hbm_to_vmem [thread:$0]  %s6, 2048, %s308, [#allocation10], 128, 128, 8
        $region36: #{tpu_custom_call.1} parent=11 // pred_fallthru
          _
        // Predicated region
        $region37: #{tpu_custom_call.1} parent=11 // pred_check
          %p314 = pneg %p194
        $region38: #{tpu_custom_call.1} parent=11 // pred_check_branch
          %316 = sbr.rel (%p314) target = $region40
        $region39: #{tpu_custom_call.1} parent=11 // pred_region
          _
        $region40: #{tpu_custom_call.1} parent=11 // pred_fallthru
          _
        // Predicated region
        $region41: #{tpu_custom_call.1} parent=11 // pred_check
          %p317 = pneg %p215
        $region42: #{tpu_custom_call.1} parent=11 // pred_check_branch
          %319 = sbr.rel (%p317) target = $region44
        $region43: #{tpu_custom_call.1} parent=11 // pred_region
          _
        $region44: #{tpu_custom_call.1} parent=11 // pred_fallthru
          _
      $region12: #{tpu_custom_call.1} parent=5 // pred_fallthru
        _
      %p320 = scmp.lt.s32.totalorder %s21, 2
      // Predicated region
      $region45: #{tpu_custom_call.1} parent=5 // pred_check
        %p321 = pneg %p320
      $region46: #{tpu_custom_call.1} parent=5 // pred_check_branch
        %323 = sbr.rel (%p321) target = $region48
      $region47: #{tpu_custom_call.1} parent=5 // pred_region
        // Predicated region
        $region49: #{tpu_custom_call.1} parent=47 // pred_check
          %p324 = pneg %p41
        $region50: #{tpu_custom_call.1} parent=47 // pred_check_branch
          %326 = sbr.rel (%p324) target = $region52
        $region51: #{tpu_custom_call.1} parent=47 // pred_region
          %s327 = smul.u32 4, %s21
          %p328 = scmp.lt.s32.totalorder %s327, 7
          %s329 = scalar_select %p328, %s327, 7
          %s330 = smul.addr %s329, 2
          %s331 = smul.addr %s330, 8
          %s332 = scalar_lea.vmem %s0, %s331
          %s333 = smul.u32 4, %s21
        $region52: #{tpu_custom_call.1} parent=47 // pred_fallthru
          _
      $region48: #{tpu_custom_call.1} parent=5 // pred_fallthru
        _
      %p334 = scmp.le.s32.totalorder 1, %s21
      %p335 = scmp.lt.s32.totalorder %s21, 3
      %p336 = pnand %p334, %p335
      %p337 = pneg %p336
      // Predicated region
      $region53: #{tpu_custom_call.1} parent=5 // pred_check
        _
      $region54: #{tpu_custom_call.1} parent=5 // pred_check_branch
        %339 = sbr.rel (%p336) target = $region56
      $region55: #{tpu_custom_call.1} parent=5 // pred_region
        %s340 = ssub.s32 %s21, 1
        // Predicated region
        $region57: #{tpu_custom_call.1} parent=55 // pred_check
          %p341 = pneg %p89
        $region58: #{tpu_custom_call.1} parent=55 // pred_check_branch
          %343 = sbr.rel (%p341) target = $region60
        $region59: #{tpu_custom_call.1} parent=55 // pred_region
          %344 = dma.done [#allocation4], 512
        $region60: #{tpu_custom_call.1} parent=55 // pred_fallthru
          _
        // Predicated region
        $region61: #{tpu_custom_call.1} parent=55 // pred_check
          %p345 = pneg %p110
        $region62: #{tpu_custom_call.1} parent=55 // pred_check_branch
          %347 = sbr.rel (%p345) target = $region64
        $region63: #{tpu_custom_call.1} parent=55 // pred_region
          %348 = dma.done [#allocation7], 2048
        $region64: #{tpu_custom_call.1} parent=55 // pred_fallthru
          _
        // Predicated region
        $region65: #{tpu_custom_call.1} parent=55 // pred_check
          %p349 = pneg %p152
        $region66: #{tpu_custom_call.1} parent=55 // pred_check_branch
          %351 = sbr.rel (%p349) target = $region68
        $region67: #{tpu_custom_call.1} parent=55 // pred_region
          %352 = dma.done [#allocation7], 2048
        $region68: #{tpu_custom_call.1} parent=55 // pred_fallthru
          _
        // Predicated region
        $region69: #{tpu_custom_call.1} parent=55 // pred_check
          %p353 = pneg %p173
        $region70: #{tpu_custom_call.1} parent=55 // pred_check_branch
          %355 = sbr.rel (%p353) target = $region72
        $region71: #{tpu_custom_call.1} parent=55 // pred_region
          %356 = dma.done [#allocation10], 2048
        $region72: #{tpu_custom_call.1} parent=55 // pred_fallthru
          _
        %s357 = smul.u32 4, %s26
        %p358 = scmp.lt.s32.totalorder %s357, 7
        %s359 = scalar_select %p358, %s357, 7
        %s360 = smul.addr %s359, 2
        %s361 = smul.addr %s360, 8
        %s362 = scalar_lea.vmem %s0, %s361
        %p363 = pneg %p47
        %p364 = pneg %p44
        %p365 = pneg %p68
        %p366 = pneg %p65
        %p367 = pneg %p89
        %p368 = pneg %p86
        %p369 = pneg %p110
        %p370 = pneg %p107
        %p371 = pneg %p131
        %p372 = pneg %p128
        %p373 = pneg %p152
        %p374 = pneg %p149
        %p375 = pneg %p173
        %p376 = pneg %p170
        %p377 = pneg %p194
        %p378 = pneg %p191
        %p379 = pneg %p215
        %p380 = pneg %p212
        %p381 = pneg %p241
        %p382 = pneg %p238
        %s383 = sand.u32 %s228, 1
        %s384 = scalar_lea.sflag [#allocation5], %s383
        %s385 = sand.u32 %s228, 1
        %s386 = smul.addr %s385, 64
        %s387 = scalar_lea.vmem [#allocation11], %s386
        %s388 = smul.u32 4, %s26
        %p389 = scmp.lt.s32.totalorder %s388, 7
        %s390 = scalar_select %p389, %s388, 7
        %s391 = smul.addr %s390, 2
        %s392 = smul.addr %s391, 8
        %s393 = scalar_lea.vmem %s0, %s392
        %s394 = smul.u32 4, %s26
        %s395 = smul.u32 4, %s26
        %v397 = vld [vmem:[%s393] sm:$0xff]
        %v398 = vld [vmem:[%s393 + $0x8] sm:$0xff]
        %v399 = vld [vmem:[%s393 + $0x10] sm:$0xff]
        %v400 = vld [vmem:[%s393 + $0x18] sm:$0xff]
        %v401 = vld [vmem:[%s393 + $0x20] sm:$0xff]
        %v402 = vld [vmem:[%s393 + $0x28] sm:$0xff]
        %v403 = vld [vmem:[%s393 + $0x30] sm:$0xff]
        %v404 = vld [vmem:[%s393 + $0x38] sm:$0xff]
        %v405 = vpack.c.bf16 %v398, %v397
        %v406 = vpack.c.bf16 %v400, %v399
        %v407 = vpack.c.bf16 %v402, %v401
        %v408 = vpack.c.bf16 %v404, %v403
        %v409 = vld [vmem:[%s1] sm:$0xff]
        %v410 = vld [vmem:[%s1 + $0x8] sm:$0xff]
        %v411 = vld [vmem:[%s1 + $0x10] sm:$0xff]
        %v412 = vld [vmem:[%s1 + $0x18] sm:$0xff]
        %v413 = vld [vmem:[%s1 + $0x20] sm:$0xff]
        %v414 = vld [vmem:[%s1 + $0x28] sm:$0xff]
        %v415 = vld [vmem:[%s1 + $0x30] sm:$0xff]
        %v416 = vld [vmem:[%s1 + $0x38] sm:$0xff]
        %v417 = vld [vmem:[%s1 + $0x40] sm:$0xff]
        %v418 = vld [vmem:[%s1 + $0x48] sm:$0xff]
        %v419 = vld [vmem:[%s1 + $0x50] sm:$0xff]
        %v420 = vld [vmem:[%s1 + $0x58] sm:$0xff]
        %v421 = vld [vmem:[%s1 + $0x60] sm:$0xff]
        %v422 = vld [vmem:[%s1 + $0x68] sm:$0xff]
        %v423 = vld [vmem:[%s1 + $0x70] sm:$0xff]
        %v424 = vld [vmem:[%s1 + $0x78] sm:$0xff]
        %v441 = vunpack.c.l.b16 %v409
        %v442 = vunpack.c.h.b16 %v409
        %v443 = vunpack.c.l.b16 %v410
        %v444 = vunpack.c.h.b16 %v410
        %v445 = vunpack.c.l.b16 %v411
        %v446 = vunpack.c.h.b16 %v411
        %v447 = vunpack.c.l.b16 %v412
        %v448 = vunpack.c.h.b16 %v412
        %v449 = vunpack.c.l.b16 %v413
        %v450 = vunpack.c.h.b16 %v413
        %v451 = vunpack.c.l.b16 %v414
        %v452 = vunpack.c.h.b16 %v414
        %v453 = vunpack.c.l.b16 %v415
        %v454 = vunpack.c.h.b16 %v415
        %v455 = vunpack.c.l.b16 %v416
        %v456 = vunpack.c.h.b16 %v416
        %v457 = vunpack.c.l.b16 %v417
        %v458 = vunpack.c.h.b16 %v417
        %v459 = vunpack.c.l.b16 %v418
        %v460 = vunpack.c.h.b16 %v418
        %v461 = vunpack.c.l.b16 %v419
        %v462 = vunpack.c.h.b16 %v419
        %v463 = vunpack.c.l.b16 %v420
        %v464 = vunpack.c.h.b16 %v420
        %v465 = vunpack.c.l.b16 %v421
        %v466 = vunpack.c.h.b16 %v421
        %v467 = vunpack.c.l.b16 %v422
        %v468 = vunpack.c.h.b16 %v422
        %v469 = vunpack.c.l.b16 %v423
        %v470 = vunpack.c.h.b16 %v423
        %v471 = vunpack.c.l.b16 %v424
        %v472 = vunpack.c.h.b16 %v424
        %v473 = vpack.c.b16 %v443, %v441
        %v474 = vpack.c.b16 %v444, %v442
        %v475 = vpack.c.b16 %v447, %v445
        %v476 = vpack.c.b16 %v448, %v446
        %v477 = vpack.c.b16 %v451, %v449
        %v478 = vpack.c.b16 %v452, %v450
        %v479 = vpack.c.b16 %v455, %v453
        %v480 = vpack.c.b16 %v456, %v454
        %v481 = vpack.c.b16 %v459, %v457
        %v482 = vpack.c.b16 %v460, %v458
        %v483 = vpack.c.b16 %v463, %v461
        %v484 = vpack.c.b16 %v464, %v462
        %v485 = vpack.c.b16 %v467, %v465
        %v486 = vpack.c.b16 %v468, %v466
        %v487 = vpack.c.b16 %v471, %v469
        %v488 = vpack.c.b16 %v472, %v470
        %505 = vmatprep.subr.bf16.mxu0 %v474
        %506 = vmatpush1.bf16.msra.mxu0 %v473
        %507 = vmatprep.subr.bf16.mxu0 %v476
        %508 = vmatpush1.bf16.msra.mxu0 %v475
        %509 = vmatprep.subr.bf16.mxu0 %v478
        %510 = vmatpush1.bf16.msra.mxu0 %v477
        %511 = vmatprep.subr.bf16.mxu0 %v480
        %512 = vmatpush1.bf16.msra.mxu0 %v479
        %513 = vmatprep.subr.bf16.mxu0 %v482
        %514 = vmatpush1.bf16.msra.mxu0 %v481
        %515 = vmatprep.subr.bf16.mxu0 %v484
        %516 = vmatpush1.bf16.msra.mxu0 %v483
        %517 = vmatprep.subr.bf16.mxu0 %v486
        %518 = vmatpush1.bf16.msra.mxu0 %v485
        %519 = vmatprep.subr.bf16.mxu0 %v488
        %520 = vmatpush1.bf16.msra.mxu0 %v487
        %521 = vmatprep.subr.bf16.mxu0 0
        %522 = vmatpush1.bf16.msra.mxu0 0
        %523 = vmatprep.subr.bf16.mxu0 0
        %524 = vmatpush1.bf16.msra.mxu0 0
        %525 = vmatprep.subr.bf16.mxu0 0
        %526 = vmatpush1.bf16.msra.mxu0 0
        %527 = vmatprep.subr.bf16.mxu0 0
        %528 = vmatpush1.bf16.msra.mxu0 0
        %529 = vmatprep.subr.bf16.mxu0 0
        %530 = vmatpush1.bf16.msra.mxu0 0
        %531 = vmatprep.subr.bf16.mxu0 0
        %532 = vmatpush1.bf16.msra.mxu0 0
        %533 = vmatprep.subr.bf16.mxu0 0
        %534 = vmatpush1.bf16.msra.mxu0 0
        %535 = vmatprep.subr.bf16.mxu0 0
        %536 = vmatpush1.bf16.msra.mxu0 0
        %537 = vmatprep.mubr.bf16.mxu0 0
        %538 = vmatmul.mubr.bf16.gmra.mrb[0].mxu0 %v405
        %v539 = vpop.f32.mrb[0].mxu0
        %v540 = vadd.f32 0.0, %v539
        %v541 = vpop.f32.mrb[0].mxu0
        %v542 = vadd.f32 0.0, %v541
        %v543 = vpop.f32.mrb[0].mxu0
        %v544 = vadd.f32 0.0, %v543
        %v545 = vpop.f32.mrb[0].mxu0
        %v546 = vadd.f32 0.0, %v545
        %547 = vmatprep.mubr.bf16.mxu0 0
        %548 = vmatmul.mubr.bf16.gmra.mrb[0].mxu0 %v406
        %v549 = vpop.f32.mrb[0].mxu0
        %v550 = vadd.f32 0.0, %v549
        %v551 = vpop.f32.mrb[0].mxu0
        %v552 = vadd.f32 0.0, %v551
        %v553 = vpop.f32.mrb[0].mxu0
        %v554 = vadd.f32 0.0, %v553
        %v555 = vpop.f32.mrb[0].mxu0
        %v556 = vadd.f32 0.0, %v555
        %557 = vmatprep.mubr.bf16.mxu0 0
        %558 = vmatmul.mubr.bf16.gmra.mrb[0].mxu0 %v407
        %v559 = vpop.f32.mrb[0].mxu0
        %v560 = vadd.f32 0.0, %v559
        %v561 = vpop.f32.mrb[0].mxu0
        %v562 = vadd.f32 0.0, %v561
        %v563 = vpop.f32.mrb[0].mxu0
        %v564 = vadd.f32 0.0, %v563
        %v565 = vpop.f32.mrb[0].mxu0
        %v566 = vadd.f32 0.0, %v565
        %567 = vmatprep.mubr.bf16.mxu0 0
        %568 = vmatmul.mubr.bf16.gmra.mrb[0].mxu0 %v408
        %v569 = vpop.f32.mrb[0].mxu0
        %v570 = vadd.f32 0.0, %v569
        %v571 = vpop.f32.mrb[0].mxu0
        %v572 = vadd.f32 0.0, %v571
        %v573 = vpop.f32.mrb[0].mxu0
        %v574 = vadd.f32 0.0, %v573
        %v575 = vpop.f32.mrb[0].mxu0
        %v576 = vadd.f32 0.0, %v575
        %577 = vdwg.mxu0
        %v578 = vld [vmem:[%s7] ss:$8 sm:$0x3]
        %v580 = vlaneseq
        %v581 = vshrl.u32 %v580, 7
        %v582 = vsub.s32 0, %v581
        %v583 = vrot.slane %v578, %v582
        %v584 = vlaneseq
        %v585 = vshrl.u32 %v584, 7
        %v586 = vsub.s32 1, %v585
        %v587 = vrot.slane %v578, %v586
        %v590 = vmul.f32 %v540, %v583
        %v591 = vmul.f32 %v542, %v587
        %v592 = vmul.f32 %v544, %v583
        %v593 = vmul.f32 %v546, %v587
        %v594 = vmul.f32 %v550, %v583
        %v595 = vmul.f32 %v552, %v587
        %v596 = vmul.f32 %v554, %v583
        %v597 = vmul.f32 %v556, %v587
        %v598 = vmul.f32 %v560, %v583
        %v599 = vmul.f32 %v562, %v587
        %v600 = vmul.f32 %v564, %v583
        %v601 = vmul.f32 %v566, %v587
        %v602 = vmul.f32 %v570, %v583
        %v603 = vmul.f32 %v572, %v587
        %v604 = vmul.f32 %v574, %v583
        %v605 = vmul.f32 %v576, %v587
        %s606 = scalar_lea.vmem %s7, 1
        %v607 = vld [vmem:[%s606] ss:$8 sm:$0x3]
        %v609 = vlaneseq
        %v610 = vshrl.u32 %v609, 7
        %v611 = vsub.s32 0, %v610
        %v612 = vrot.slane %v607, %v611
        %v613 = vlaneseq
        %v614 = vshrl.u32 %v613, 7
        %v615 = vsub.s32 1, %v614
        %v616 = vrot.slane %v607, %v615
        %v619 = vadd.f32 %v590, %v612
        %v620 = vadd.f32 %v591, %v616
        %v621 = vadd.f32 %v592, %v612
        %v622 = vadd.f32 %v593, %v616
        %v623 = vadd.f32 %v594, %v612
        %v624 = vadd.f32 %v595, %v616
        %v625 = vadd.f32 %v596, %v612
        %v626 = vadd.f32 %v597, %v616
        %v627 = vadd.f32 %v598, %v612
        %v628 = vadd.f32 %v599, %v616
        %v629 = vadd.f32 %v600, %v612
        %v630 = vadd.f32 %v601, %v616
        %v631 = vadd.f32 %v602, %v612
        %v632 = vadd.f32 %v603, %v616
        %v633 = vadd.f32 %v604, %v612
        %v634 = vadd.f32 %v605, %v616
        %v635 = vmax.f32 %v619, 0.0
        %v636 = vmax.f32 %v620, 0.0
        %v637 = vmax.f32 %v621, 0.0
        %v638 = vmax.f32 %v622, 0.0
        %v639 = vmax.f32 %v623, 0.0
        %v640 = vmax.f32 %v624, 0.0
        %v641 = vmax.f32 %v625, 0.0
        %v642 = vmax.f32 %v626, 0.0
        %v643 = vmax.f32 %v627, 0.0
        %v644 = vmax.f32 %v628, 0.0
        %v645 = vmax.f32 %v629, 0.0
        %v646 = vmax.f32 %v630, 0.0
        %v647 = vmax.f32 %v631, 0.0
        %v648 = vmax.f32 %v632, 0.0
        %v649 = vmax.f32 %v633, 0.0
        %v650 = vmax.f32 %v634, 0.0
        %v651 = vmin.f32 %v635, 6.0
        %v652 = vmin.f32 %v636, 6.0
        %v653 = vmin.f32 %v637, 6.0
        %v654 = vmin.f32 %v638, 6.0
        %v655 = vmin.f32 %v639, 6.0
        %v656 = vmin.f32 %v640, 6.0
        %v657 = vmin.f32 %v641, 6.0
        %v658 = vmin.f32 %v642, 6.0
        %v659 = vmin.f32 %v643, 6.0
        %v660 = vmin.f32 %v644, 6.0
        %v661 = vmin.f32 %v645, 6.0
        %v662 = vmin.f32 %v646, 6.0
        %v663 = vmin.f32 %v647, 6.0
        %v664 = vmin.f32 %v648, 6.0
        %v665 = vmin.f32 %v649, 6.0
        %v666 = vmin.f32 %v650, 6.0
        %v667 = vlaneseq
        %vm668 = vcmp.ge.s32.totalorder %v667, 0
        %vm669 = vcmp.lt.s32.totalorder %v667, 256
        %vm670 = vmand %vm668, %vm669
        %671 = vst.msk [vmem:[#allocation2] ss:$8 sm:$0x3] %vm670, 0.0
        %672 = vst.msk [vmem:[#allocation2] ss:$8 sm:$0x0] %vm670, 0.0
        %s673 = scalar_lea.vmem [#allocation2], 48
        %674 = vst.msk [vmem:[%s673] ss:$8 sm:$0x3] %vm670, 0.0
        %675 = vst.msk [vmem:[%s673] ss:$8 sm:$0x0] %vm670, 0.0
        %s676 = scalar_lea.vmem [#allocation2], 96
        %677 = vst.msk [vmem:[%s676] ss:$8 sm:$0x3] %vm670, 0.0
        %678 = vst.msk [vmem:[%s676] ss:$8 sm:$0x0] %vm670, 0.0
        %s679 = scalar_lea.vmem [#allocation2], 144
        %680 = vst.msk [vmem:[%s679] ss:$8 sm:$0x3] %vm670, 0.0
        %681 = vst.msk [vmem:[%s679] ss:$8 sm:$0x0] %vm670, 0.0
        %s682 = scalar_lea.vmem [#allocation2], 33
        %683 = vst.msk [vmem:[%s682] ss:$8 sm:$0x3] %vm670, 0.0
        %684 = vst.msk [vmem:[%s682] ss:$8 sm:$0x0] %vm670, 0.0
        %s685 = scalar_lea.vmem [#allocation2], 81
        %686 = vst.msk [vmem:[%s685] ss:$8 sm:$0x3] %vm670, 0.0
        %687 = vst.msk [vmem:[%s685] ss:$8 sm:$0x0] %vm670, 0.0
        %s688 = scalar_lea.vmem [#allocation2], 129
        %689 = vst.msk [vmem:[%s688] ss:$8 sm:$0x3] %vm670, 0.0
        %690 = vst.msk [vmem:[%s688] ss:$8 sm:$0x0] %vm670, 0.0
        %s691 = scalar_lea.vmem [#allocation2], 177
        %692 = vst.msk [vmem:[%s691] ss:$8 sm:$0x3] %vm670, 0.0
        %693 = vst.msk [vmem:[%s691] ss:$8 sm:$0x0] %vm670, 0.0
        %vm710 = vcmask 1040384
        %v711 = vrot.slane %v651, 7
        %v712 = vrot.slane %v652, 7
        %v713 = vrot.slane %v653, 7
        %v714 = vsel %vm710, %v711, %v713
        %v715 = vrot.slane %v654, 7
        %v716 = vsel %vm710, %v712, %v715
        %v717 = vrot.slane %v655, 7
        %v718 = vrot.slane %v656, 7
        %v719 = vrot.slane %v657, 7
        %v720 = vsel %vm710, %v717, %v719
        %v721 = vrot.slane %v658, 7
        %v722 = vsel %vm710, %v718, %v721
        %v723 = vrot.slane %v659, 7
        %v724 = vrot.slane %v660, 7
        %v725 = vrot.slane %v661, 7
        %v726 = vsel %vm710, %v723, %v725
        %v727 = vrot.slane %v662, 7
        %v728 = vsel %vm710, %v724, %v727
        %v729 = vrot.slane %v663, 7
        %v730 = vrot.slane %v664, 7
        %v731 = vrot.slane %v665, 7
        %v732 = vsel %vm710, %v729, %v731
        %v733 = vrot.slane %v666, 7
        %v734 = vsel %vm710, %v730, %v733
        %759 = vst [vmem:[#allocation2] sm:$0xfe] %v711
        %760 = vst [vmem:[#allocation2 + $0x8] sm:$0xfe] %v712
        %761 = vst [vmem:[#allocation2 + $0x10] sm:$0xff] %v714
        %762 = vst [vmem:[#allocation2 + $0x18] sm:$0xff] %v716
        %763 = vst [vmem:[#allocation2 + $0x20] sm:$0x1] %v713
        %764 = vst [vmem:[#allocation2 + $0x28] sm:$0x1] %v715
        %765 = vst [vmem:[#allocation2 + $0x30] sm:$0xfe] %v717
        %766 = vst [vmem:[#allocation2 + $0x38] sm:$0xfe] %v718
        %767 = vst [vmem:[#allocation2 + $0x40] sm:$0xff] %v720
        %768 = vst [vmem:[#allocation2 + $0x48] sm:$0xff] %v722
        %769 = vst [vmem:[#allocation2 + $0x50] sm:$0x1] %v719
        %770 = vst [vmem:[#allocation2 + $0x58] sm:$0x1] %v721
        %771 = vst [vmem:[#allocation2 + $0x60] sm:$0xfe] %v723
        %772 = vst [vmem:[#allocation2 + $0x68] sm:$0xfe] %v724
        %773 = vst [vmem:[#allocation2 + $0x70] sm:$0xff] %v726
        %774 = vst [vmem:[#allocation2 + $0x78] sm:$0xff] %v728
        %775 = vst [vmem:[#allocation2 + $0x80] sm:$0x1] %v725
        %776 = vst [vmem:[#allocation2 + $0x88] sm:$0x1] %v727
        %777 = vst [vmem:[#allocation2 + $0x90] sm:$0xfe] %v729
        %778 = vst [vmem:[#allocation2 + $0x98] sm:$0xfe] %v730
        %779 = vst [vmem:[#allocation2 + $0xa0] sm:$0xff] %v732
        %780 = vst [vmem:[#allocation2 + $0xa8] sm:$0xff] %v734
        %781 = vst [vmem:[#allocation2 + $0xb0] sm:$0x1] %v731
        %782 = vst [vmem:[#allocation2 + $0xb8] sm:$0x1] %v733
        %v783 = vld [vmem:[#allocation3] sm:$0xff]
        %v784 = vld [vmem:[#allocation3 + $0x8] sm:$0xff]
        %v785 = vld [vmem:[#allocation3 + $0x10] sm:$0x1]
        %v786 = vld [vmem:[#allocation3 + $0x18] sm:$0x1]
        %v787 = vld [vmem:[#allocation2] sm:$0xff]
        %v788 = vld [vmem:[#allocation2 + $0x8] sm:$0xff]
        %v789 = vld [vmem:[#allocation2 + $0x10] sm:$0xff]
        %v790 = vld [vmem:[#allocation2 + $0x18] sm:$0xff]
        %v791 = vld [vmem:[#allocation2 + $0x30] sm:$0xff]
        %v792 = vld [vmem:[#allocation2 + $0x38] sm:$0xff]
        %v793 = vld [vmem:[#allocation2 + $0x40] sm:$0xff]
        %v794 = vld [vmem:[#allocation2 + $0x48] sm:$0xff]
        %v795 = vld [vmem:[#allocation2 + $0x60] sm:$0xff]
        %v796 = vld [vmem:[#allocation2 + $0x68] sm:$0xff]
        %v797 = vld [vmem:[#allocation2 + $0x70] sm:$0xff]
        %v798 = vld [vmem:[#allocation2 + $0x78] sm:$0xff]
        %v799 = vld [vmem:[#allocation2 + $0x90] sm:$0xff]
        %v800 = vld [vmem:[#allocation2 + $0x98] sm:$0xff]
        %v801 = vld [vmem:[#allocation2 + $0xa0] sm:$0xff]
        %v802 = vld [vmem:[#allocation2 + $0xa8] sm:$0xff]
        %803 = vrot.lane.b32.xlu0 %v787, 16
        %v804 = vpop.permute.xlu0 %803
        %805 = vrot.lane.b32.xlu0 %v789, 16
        %v806 = vpop.permute.xlu0 %805
        %807 = vrot.lane.b32.xlu0 %v791, 16
        %v808 = vpop.permute.xlu0 %807
        %809 = vrot.lane.b32.xlu0 %v793, 16
        %v810 = vpop.permute.xlu0 %809
        %811 = vrot.lane.b32.xlu0 %v795, 16
        %v812 = vpop.permute.xlu0 %811
        %813 = vrot.lane.b32.xlu0 %v797, 16
        %v814 = vpop.permute.xlu0 %813
        %815 = vrot.lane.b32.xlu0 %v799, 16
        %v816 = vpop.permute.xlu0 %815
        %817 = vrot.lane.b32.xlu0 %v801, 16
        %v818 = vpop.permute.xlu0 %817
        %819 = vrot.lane.b32.xlu0 %v788, 16
        %v820 = vpop.permute.xlu0 %819
        %821 = vrot.lane.b32.xlu0 %v790, 16
        %v822 = vpop.permute.xlu0 %821
        %823 = vrot.lane.b32.xlu0 %v792, 16
        %v824 = vpop.permute.xlu0 %823
        %825 = vrot.lane.b32.xlu0 %v794, 16
        %v826 = vpop.permute.xlu0 %825
        %827 = vrot.lane.b32.xlu0 %v796, 16
        %v828 = vpop.permute.xlu0 %827
        %829 = vrot.lane.b32.xlu0 %v798, 16
        %v830 = vpop.permute.xlu0 %829
        %831 = vrot.lane.b32.xlu0 %v800, 16
        %v832 = vpop.permute.xlu0 %831
        %833 = vrot.lane.b32.xlu0 %v802, 16
        %v834 = vpop.permute.xlu0 %833
        %v835 = vlaneseq
        %v836 = vand.u32 %v835, 127
        %vm837 = vcmp.lt.s32.totalorder %v836, 16
        %v838 = vsel %vm837, %v804, %v820
        %v839 = vsel %vm837, %v806, %v822
        %v840 = vsel %vm837, %v808, %v824
        %v841 = vsel %vm837, %v810, %v826
        %v842 = vsel %vm837, %v812, %v828
        %v843 = vsel %vm837, %v814, %v830
        %v844 = vsel %vm837, %v816, %v832
        %v845 = vsel %vm837, %v818, %v834
        %v846 = vsel %vm837, %v820, %v804
        %v847 = vsel %vm837, %v822, %v806
        %v848 = vsel %vm837, %v824, %v808
        %v849 = vsel %vm837, %v826, %v810
        %v850 = vsel %vm837, %v828, %v812
        %v851 = vsel %vm837, %v830, %v814
        %v852 = vsel %vm837, %v832, %v816
        %v853 = vsel %vm837, %v834, %v818
        %854 = vrot.lane.b32.xlu0 %v787, 112
        %v855 = vpop.permute.xlu0 %854
        %856 = vrot.lane.b32.xlu0 %v789, 112
        %v857 = vpop.permute.xlu0 %856
        %858 = vrot.lane.b32.xlu0 %v791, 112
        %v859 = vpop.permute.xlu0 %858
        %860 = vrot.lane.b32.xlu0 %v793, 112
        %v861 = vpop.permute.xlu0 %860
        %862 = vrot.lane.b32.xlu0 %v795, 112
        %v863 = vpop.permute.xlu0 %862
        %864 = vrot.lane.b32.xlu0 %v797, 112
        %v865 = vpop.permute.xlu0 %864
        %866 = vrot.lane.b32.xlu0 %v799, 112
        %v867 = vpop.permute.xlu0 %866
        %868 = vrot.lane.b32.xlu0 %v801, 112
        %v869 = vpop.permute.xlu0 %868
        %870 = vrot.lane.b32.xlu0 %v788, 112
        %v871 = vpop.permute.xlu0 %870
        %872 = vrot.lane.b32.xlu0 %v790, 112
        %v873 = vpop.permute.xlu0 %872
        %874 = vrot.lane.b32.xlu0 %v792, 112
        %v875 = vpop.permute.xlu0 %874
        %876 = vrot.lane.b32.xlu0 %v794, 112
        %v877 = vpop.permute.xlu0 %876
        %878 = vrot.lane.b32.xlu0 %v796, 112
        %v879 = vpop.permute.xlu0 %878
        %880 = vrot.lane.b32.xlu0 %v798, 112
        %v881 = vpop.permute.xlu0 %880
        %882 = vrot.lane.b32.xlu0 %v800, 112
        %v883 = vpop.permute.xlu0 %882
        %884 = vrot.lane.b32.xlu0 %v802, 112
        %v885 = vpop.permute.xlu0 %884
        %vm886 = vcmp.lt.s32.totalorder %v836, 112
        %v887 = vsel %vm886, %v855, %v871
        %v888 = vsel %vm886, %v857, %v873
        %v889 = vsel %vm886, %v859, %v875
        %v890 = vsel %vm886, %v861, %v877
        %v891 = vsel %vm886, %v863, %v879
        %v892 = vsel %vm886, %v865, %v881
        %v893 = vsel %vm886, %v867, %v883
        %v894 = vsel %vm886, %v869, %v885
        %v895 = vsel %vm886, %v871, %v855
        %v896 = vsel %vm886, %v873, %v857
        %v897 = vsel %vm886, %v875, %v859
        %v898 = vsel %vm886, %v877, %v861
        %v899 = vsel %vm886, %v879, %v863
        %v900 = vsel %vm886, %v881, %v865
        %v901 = vsel %vm886, %v883, %v867
        %v902 = vsel %vm886, %v885, %v869
        %v903 = vlaneseq
        %v904 = vshrl.u32 %v903, 7
        %v905 = vsub.s32 0, %v904
        %v906 = vrot.slane %v783, %v905
        %v907 = vlaneseq
        %v908 = vshrl.u32 %v907, 7
        %v909 = vsub.s32 0, %v908
        %v910 = vrot.slane %v784, %v909
        %v911 = vmul.f32 %v846, %v906
        %v912 = vmul.f32 %v838, %v910
        %v913 = vmul.f32 %v847, %v906
        %v914 = vmul.f32 %v839, %v910
        %v915 = vmul.f32 %v848, %v906
        %v916 = vmul.f32 %v840, %v910
        %v917 = vmul.f32 %v849, %v906
        %v918 = vmul.f32 %v841, %v910
        %v919 = vmul.f32 %v850, %v906
        %v920 = vmul.f32 %v842, %v910
        %v921 = vmul.f32 %v851, %v906
        %v922 = vmul.f32 %v843, %v910
        %v923 = vmul.f32 %v852, %v906
        %v924 = vmul.f32 %v844, %v910
        %v925 = vmul.f32 %v853, %v906
        %v926 = vmul.f32 %v845, %v910
        %v927 = vlaneseq
        %v928 = vshrl.u32 %v927, 7
        %v929 = vsub.s32 1, %v928
        %v930 = vrot.slane %v783, %v929
        %v931 = vlaneseq
        %v932 = vshrl.u32 %v931, 7
        %v933 = vsub.s32 1, %v932
        %v934 = vrot.slane %v784, %v933
        %v935 = vmul.f32 %v787, %v930
        %v936 = vmul.f32 %v788, %v934
        %v937 = vmul.f32 %v789, %v930
        %v938 = vmul.f32 %v790, %v934
        %v939 = vmul.f32 %v791, %v930
        %v940 = vmul.f32 %v792, %v934
        %v941 = vmul.f32 %v793, %v930
        %v942 = vmul.f32 %v794, %v934
        %v943 = vmul.f32 %v795, %v930
        %v944 = vmul.f32 %v796, %v934
        %v945 = vmul.f32 %v797, %v930
        %v946 = vmul.f32 %v798, %v934
        %v947 = vmul.f32 %v799, %v930
        %v948 = vmul.f32 %v800, %v934
        %v949 = vmul.f32 %v801, %v930
        %v950 = vmul.f32 %v802, %v934
        %v951 = vadd.f32 %v911, %v935
        %v952 = vadd.f32 %v912, %v936
        %v953 = vadd.f32 %v913, %v937
        %v954 = vadd.f32 %v914, %v938
        %v955 = vadd.f32 %v915, %v939
        %v956 = vadd.f32 %v916, %v940
        %v957 = vadd.f32 %v917, %v941
        %v958 = vadd.f32 %v918, %v942
        %v959 = vadd.f32 %v919, %v943
        %v960 = vadd.f32 %v920, %v944
        %v961 = vadd.f32 %v921, %v945
        %v962 = vadd.f32 %v922, %v946
        %v963 = vadd.f32 %v923, %v947
        %v964 = vadd.f32 %v924, %v948
        %v965 = vadd.f32 %v925, %v949
        %v966 = vadd.f32 %v926, %v950
        %v967 = vlaneseq
        %v968 = vshrl.u32 %v967, 7
        %v969 = vsub.s32 2, %v968
        %v970 = vrot.slane %v783, %v969
        %v971 = vlaneseq
        %v972 = vshrl.u32 %v971, 7
        %v973 = vsub.s32 2, %v972
        %v974 = vrot.slane %v784, %v973
        %v975 = vmul.f32 %v887, %v970
        %v976 = vmul.f32 %v895, %v974
        %v977 = vmul.f32 %v888, %v970
        %v978 = vmul.f32 %v896, %v974
        %v979 = vmul.f32 %v889, %v970
        %v980 = vmul.f32 %v897, %v974
        %v981 = vmul.f32 %v890, %v970
        %v982 = vmul.f32 %v898, %v974
        %v983 = vmul.f32 %v891, %v970
        %v984 = vmul.f32 %v899, %v974
        %v985 = vmul.f32 %v892, %v970
        %v986 = vmul.f32 %v900, %v974
        %v987 = vmul.f32 %v893, %v970
        %v988 = vmul.f32 %v901, %v974
        %v989 = vmul.f32 %v894, %v970
        %v990 = vmul.f32 %v902, %v974
        %v991 = vadd.f32 %v951, %v975
        %v992 = vadd.f32 %v952, %v976
        %v993 = vadd.f32 %v953, %v977
        %v994 = vadd.f32 %v954, %v978
        %v995 = vadd.f32 %v955, %v979
        %v996 = vadd.f32 %v956, %v980
        %v997 = vadd.f32 %v957, %v981
        %v998 = vadd.f32 %v958, %v982
        %v999 = vadd.f32 %v959, %v983
        %v1000 = vadd.f32 %v960, %v984
        %v1001 = vadd.f32 %v961, %v985
        %v1002 = vadd.f32 %v962, %v986
        %v1003 = vadd.f32 %v963, %v987
        %v1004 = vadd.f32 %v964, %v988
        %v1005 = vadd.f32 %v965, %v989
        %v1006 = vadd.f32 %v966, %v990
        %v1007 = vld [vmem:[#allocation2] sm:$0xfe]
        %v1008 = vld [vmem:[#allocation2 + $0x8] sm:$0xfe]
        %v1009 = vld [vmem:[#allocation2 + $0x10] sm:$0xff]
        %v1010 = vld [vmem:[#allocation2 + $0x18] sm:$0xff]
        %v1011 = vld [vmem:[#allocation2 + $0x20] sm:$0x1]
        %v1012 = vld [vmem:[#allocation2 + $0x28] sm:$0x1]
        %v1013 = vld [vmem:[#allocation2 + $0x30] sm:$0xfe]
        %v1014 = vld [vmem:[#allocation2 + $0x38] sm:$0xfe]
        %v1015 = vld [vmem:[#allocation2 + $0x40] sm:$0xff]
        %v1016 = vld [vmem:[#allocation2 + $0x48] sm:$0xff]
        %v1017 = vld [vmem:[#allocation2 + $0x50] sm:$0x1]
        %v1018 = vld [vmem:[#allocation2 + $0x58] sm:$0x1]
        %v1019 = vld [vmem:[#allocation2 + $0x60] sm:$0xfe]
        %v1020 = vld [vmem:[#allocation2 + $0x68] sm:$0xfe]
        %v1021 = vld [vmem:[#allocation2 + $0x70] sm:$0xff]
        %v1022 = vld [vmem:[#allocation2 + $0x78] sm:$0xff]
        %v1023 = vld [vmem:[#allocation2 + $0x80] sm:$0x1]
        %v1024 = vld [vmem:[#allocation2 + $0x88] sm:$0x1]
        %v1025 = vld [vmem:[#allocation2 + $0x90] sm:$0xfe]
        %v1026 = vld [vmem:[#allocation2 + $0x98] sm:$0xfe]
        %v1027 = vld [vmem:[#allocation2 + $0xa0] sm:$0xff]
        %v1028 = vld [vmem:[#allocation2 + $0xa8] sm:$0xff]
        %v1029 = vld [vmem:[#allocation2 + $0xb0] sm:$0x1]
        %v1030 = vld [vmem:[#allocation2 + $0xb8] sm:$0x1]
        %vm1055 = vcmask 1046528
        %v1056 = vrot.slane %v1007, 1
        %v1057 = vrot.slane %v1009, 1
        %v1058 = vsel %vm1055, %v1056, %v1057
        %v1059 = vrot.slane %v1008, 1
        %v1060 = vrot.slane %v1010, 1
        %v1061 = vsel %vm1055, %v1059, %v1060
        %v1062 = vrot.slane %v1011, 1
        %v1063 = vsel %vm1055, %v1057, %v1062
        %v1064 = vrot.slane %v1012, 1
        %v1065 = vsel %vm1055, %v1060, %v1064
        %v1066 = vrot.slane %v1013, 1
        %v1067 = vrot.slane %v1015, 1
        %v1068 = vsel %vm1055, %v1066, %v1067
        %v1069 = vrot.slane %v1014, 1
        %v1070 = vrot.slane %v1016, 1
        %v1071 = vsel %vm1055, %v1069, %v1070
        %v1072 = vrot.slane %v1017, 1
        %v1073 = vsel %vm1055, %v1067, %v1072
        %v1074 = vrot.slane %v1018, 1
        %v1075 = vsel %vm1055, %v1070, %v1074
        %v1076 = vrot.slane %v1019, 1
        %v1077 = vrot.slane %v1021, 1
        %v1078 = vsel %vm1055, %v1076, %v1077
        %v1079 = vrot.slane %v1020, 1
        %v1080 = vrot.slane %v1022, 1
        %v1081 = vsel %vm1055, %v1079, %v1080
        %v1082 = vrot.slane %v1023, 1
        %v1083 = vsel %vm1055, %v1077, %v1082
        %v1084 = vrot.slane %v1024, 1
        %v1085 = vsel %vm1055, %v1080, %v1084
        %v1086 = vrot.slane %v1025, 1
        %v1087 = vrot.slane %v1027, 1
        %v1088 = vsel %vm1055, %v1086, %v1087
        %v1089 = vrot.slane %v1026, 1
        %v1090 = vrot.slane %v1028, 1
        %v1091 = vsel %vm1055, %v1089, %v1090
        %v1092 = vrot.slane %v1029, 1
        %v1093 = vsel %vm1055, %v1087, %v1092
        %v1094 = vrot.slane %v1030, 1
        %v1095 = vsel %vm1055, %v1090, %v1094
        %1112 = vrot.lane.b32.xlu0 %v1058, 16
        %v1113 = vpop.permute.xlu0 %1112
        %1114 = vrot.lane.b32.xlu0 %v1063, 16
        %v1115 = vpop.permute.xlu0 %1114
        %1116 = vrot.lane.b32.xlu0 %v1068, 16
        %v1117 = vpop.permute.xlu0 %1116
        %1118 = vrot.lane.b32.xlu0 %v1073, 16
        %v1119 = vpop.permute.xlu0 %1118
        %1120 = vrot.lane.b32.xlu0 %v1078, 16
        %v1121 = vpop.permute.xlu0 %1120
        %1122 = vrot.lane.b32.xlu0 %v1083, 16
        %v1123 = vpop.permute.xlu0 %1122
        %1124 = vrot.lane.b32.xlu0 %v1088, 16
        %v1125 = vpop.permute.xlu0 %1124
        %1126 = vrot.lane.b32.xlu0 %v1093, 16
        %v1127 = vpop.permute.xlu0 %1126
        %1128 = vrot.lane.b32.xlu0 %v1061, 16
        %v1129 = vpop.permute.xlu0 %1128
        %1130 = vrot.lane.b32.xlu0 %v1065, 16
        %v1131 = vpop.permute.xlu0 %1130
        %1132 = vrot.lane.b32.xlu0 %v1071, 16
        %v1133 = vpop.permute.xlu0 %1132
        %1134 = vrot.lane.b32.xlu0 %v1075, 16
        %v1135 = vpop.permute.xlu0 %1134
        %1136 = vrot.lane.b32.xlu0 %v1081, 16
        %v1137 = vpop.permute.xlu0 %1136
        %1138 = vrot.lane.b32.xlu0 %v1085, 16
        %v1139 = vpop.permute.xlu0 %1138
        %1140 = vrot.lane.b32.xlu0 %v1091, 16
        %v1141 = vpop.permute.xlu0 %1140
        %1142 = vrot.lane.b32.xlu0 %v1095, 16
        %v1143 = vpop.permute.xlu0 %1142
        %v1144 = vsel %vm837, %v1113, %v1129
        %v1145 = vsel %vm837, %v1115, %v1131
        %v1146 = vsel %vm837, %v1117, %v1133
        %v1147 = vsel %vm837, %v1119, %v1135
        %v1148 = vsel %vm837, %v1121, %v1137
        %v1149 = vsel %vm837, %v1123, %v1139
        %v1150 = vsel %vm837, %v1125, %v1141
        %v1151 = vsel %vm837, %v1127, %v1143
        %v1152 = vsel %vm837, %v1129, %v1113
        %v1153 = vsel %vm837, %v1131, %v1115
        %v1154 = vsel %vm837, %v1133, %v1117
        %v1155 = vsel %vm837, %v1135, %v1119
        %v1156 = vsel %vm837, %v1137, %v1121
        %v1157 = vsel %vm837, %v1139, %v1123
        %v1158 = vsel %vm837, %v1141, %v1125
        %v1159 = vsel %vm837, %v1143, %v1127
        %1160 = vrot.lane.b32.xlu0 %v1058, 112
        %v1161 = vpop.permute.xlu0 %1160
        %1162 = vrot.lane.b32.xlu0 %v1063, 112
        %v1163 = vpop.permute.xlu0 %1162
        %1164 = vrot.lane.b32.xlu0 %v1068, 112
        %v1165 = vpop.permute.xlu0 %1164
        %1166 = vrot.lane.b32.xlu0 %v1073, 112
        %v1167 = vpop.permute.xlu0 %1166
        %1168 = vrot.lane.b32.xlu0 %v1078, 112
        %v1169 = vpop.permute.xlu0 %1168
        %1170 = vrot.lane.b32.xlu0 %v1083, 112
        %v1171 = vpop.permute.xlu0 %1170
        %1172 = vrot.lane.b32.xlu0 %v1088, 112
        %v1173 = vpop.permute.xlu0 %1172
        %1174 = vrot.lane.b32.xlu0 %v1093, 112
        %v1175 = vpop.permute.xlu0 %1174
        %1176 = vrot.lane.b32.xlu0 %v1061, 112
        %v1177 = vpop.permute.xlu0 %1176
        %1178 = vrot.lane.b32.xlu0 %v1065, 112
        %v1179 = vpop.permute.xlu0 %1178
        %1180 = vrot.lane.b32.xlu0 %v1071, 112
        %v1181 = vpop.permute.xlu0 %1180
        %1182 = vrot.lane.b32.xlu0 %v1075, 112
        %v1183 = vpop.permute.xlu0 %1182
        %1184 = vrot.lane.b32.xlu0 %v1081, 112
        %v1185 = vpop.permute.xlu0 %1184
        %1186 = vrot.lane.b32.xlu0 %v1085, 112
        %v1187 = vpop.permute.xlu0 %1186
        %1188 = vrot.lane.b32.xlu0 %v1091, 112
        %v1189 = vpop.permute.xlu0 %1188
        %1190 = vrot.lane.b32.xlu0 %v1095, 112
        %v1191 = vpop.permute.xlu0 %1190
        %v1192 = vsel %vm886, %v1161, %v1177
        %v1193 = vsel %vm886, %v1163, %v1179
        %v1194 = vsel %vm886, %v1165, %v1181
        %v1195 = vsel %vm886, %v1167, %v1183
        %v1196 = vsel %vm886, %v1169, %v1185
        %v1197 = vsel %vm886, %v1171, %v1187
        %v1198 = vsel %vm886, %v1173, %v1189
        %v1199 = vsel %vm886, %v1175, %v1191
        %v1200 = vsel %vm886, %v1177, %v1161
        %v1201 = vsel %vm886, %v1179, %v1163
        %v1202 = vsel %vm886, %v1181, %v1165
        %v1203 = vsel %vm886, %v1183, %v1167
        %v1204 = vsel %vm886, %v1185, %v1169
        %v1205 = vsel %vm886, %v1187, %v1171
        %v1206 = vsel %vm886, %v1189, %v1173
        %v1207 = vsel %vm886, %v1191, %v1175
        %v1208 = vlaneseq
        %v1209 = vshrl.u32 %v1208, 7
        %v1210 = vsub.s32 3, %v1209
        %v1211 = vrot.slane %v783, %v1210
        %v1212 = vlaneseq
        %v1213 = vshrl.u32 %v1212, 7
        %v1214 = vsub.s32 3, %v1213
        %v1215 = vrot.slane %v784, %v1214
        %v1216 = vmul.f32 %v1152, %v1211
        %v1217 = vmul.f32 %v1144, %v1215
        %v1218 = vmul.f32 %v1153, %v1211
        %v1219 = vmul.f32 %v1145, %v1215
        %v1220 = vmul.f32 %v1154, %v1211
        %v1221 = vmul.f32 %v1146, %v1215
        %v1222 = vmul.f32 %v1155, %v1211
        %v1223 = vmul.f32 %v1147, %v1215
        %v1224 = vmul.f32 %v1156, %v1211
        %v1225 = vmul.f32 %v1148, %v1215
        %v1226 = vmul.f32 %v1157, %v1211
        %v1227 = vmul.f32 %v1149, %v1215
        %v1228 = vmul.f32 %v1158, %v1211
        %v1229 = vmul.f32 %v1150, %v1215
        %v1230 = vmul.f32 %v1159, %v1211
        %v1231 = vmul.f32 %v1151, %v1215
        %v1232 = vlaneseq
        %v1233 = vshrl.u32 %v1232, 7
        %v1234 = vsub.s32 4, %v1233
        %v1235 = vrot.slane %v783, %v1234
        %v1236 = vlaneseq
        %v1237 = vshrl.u32 %v1236, 7
        %v1238 = vsub.s32 4, %v1237
        %v1239 = vrot.slane %v784, %v1238
        %v1240 = vmul.f32 %v1058, %v1235
        %v1241 = vmul.f32 %v1061, %v1239
        %v1242 = vmul.f32 %v1063, %v1235
        %v1243 = vmul.f32 %v1065, %v1239
        %v1244 = vmul.f32 %v1068, %v1235
        %v1245 = vmul.f32 %v1071, %v1239
        %v1246 = vmul.f32 %v1073, %v1235
        %v1247 = vmul.f32 %v1075, %v1239
        %v1248 = vmul.f32 %v1078, %v1235
        %v1249 = vmul.f32 %v1081, %v1239
        %v1250 = vmul.f32 %v1083, %v1235
        %v1251 = vmul.f32 %v1085, %v1239
        %v1252 = vmul.f32 %v1088, %v1235
        %v1253 = vmul.f32 %v1091, %v1239
        %v1254 = vmul.f32 %v1093, %v1235
        %v1255 = vmul.f32 %v1095, %v1239
        %v1256 = vadd.f32 %v1216, %v1240
        %v1257 = vadd.f32 %v1217, %v1241
        %v1258 = vadd.f32 %v1218, %v1242
        %v1259 = vadd.f32 %v1219, %v1243
        %v1260 = vadd.f32 %v1220, %v1244
        %v1261 = vadd.f32 %v1221, %v1245
        %v1262 = vadd.f32 %v1222, %v1246
        %v1263 = vadd.f32 %v1223, %v1247
        %v1264 = vadd.f32 %v1224, %v1248
        %v1265 = vadd.f32 %v1225, %v1249
        %v1266 = vadd.f32 %v1226, %v1250
        %v1267 = vadd.f32 %v1227, %v1251
        %v1268 = vadd.f32 %v1228, %v1252
        %v1269 = vadd.f32 %v1229, %v1253
        %v1270 = vadd.f32 %v1230, %v1254
        %v1271 = vadd.f32 %v1231, %v1255
        %v1272 = vlaneseq
        %v1273 = vshrl.u32 %v1272, 7
        %v1274 = vsub.s32 5, %v1273
        %v1275 = vrot.slane %v783, %v1274
        %v1276 = vlaneseq
        %v1277 = vshrl.u32 %v1276, 7
        %v1278 = vsub.s32 5, %v1277
        %v1279 = vrot.slane %v784, %v1278
        %v1280 = vmul.f32 %v1192, %v1275
        %v1281 = vmul.f32 %v1200, %v1279
        %v1282 = vmul.f32 %v1193, %v1275
        %v1283 = vmul.f32 %v1201, %v1279
        %v1284 = vmul.f32 %v1194, %v1275
        %v1285 = vmul.f32 %v1202, %v1279
        %v1286 = vmul.f32 %v1195, %v1275
        %v1287 = vmul.f32 %v1203, %v1279
        %v1288 = vmul.f32 %v1196, %v1275
        %v1289 = vmul.f32 %v1204, %v1279
        %v1290 = vmul.f32 %v1197, %v1275
        %v1291 = vmul.f32 %v1205, %v1279
        %v1292 = vmul.f32 %v1198, %v1275
        %v1293 = vmul.f32 %v1206, %v1279
        %v1294 = vmul.f32 %v1199, %v1275
        %v1295 = vmul.f32 %v1207, %v1279
        %v1296 = vadd.f32 %v1256, %v1280
        %v1297 = vadd.f32 %v1257, %v1281
        %v1298 = vadd.f32 %v1258, %v1282
        %v1299 = vadd.f32 %v1259, %v1283
        %v1300 = vadd.f32 %v1260, %v1284
        %v1301 = vadd.f32 %v1261, %v1285
        %v1302 = vadd.f32 %v1262, %v1286
        %v1303 = vadd.f32 %v1263, %v1287
        %v1304 = vadd.f32 %v1264, %v1288
        %v1305 = vadd.f32 %v1265, %v1289
        %v1306 = vadd.f32 %v1266, %v1290
        %v1307 = vadd.f32 %v1267, %v1291
        %v1308 = vadd.f32 %v1268, %v1292
        %v1309 = vadd.f32 %v1269, %v1293
        %v1310 = vadd.f32 %v1270, %v1294
        %v1311 = vadd.f32 %v1271, %v1295
        %v1312 = vadd.f32 %v991, %v1296
        %v1313 = vadd.f32 %v992, %v1297
        %v1314 = vadd.f32 %v993, %v1298
        %v1315 = vadd.f32 %v994, %v1299
        %v1316 = vadd.f32 %v995, %v1300
        %v1317 = vadd.f32 %v996, %v1301
        %v1318 = vadd.f32 %v997, %v1302
        %v1319 = vadd.f32 %v998, %v1303
        %v1320 = vadd.f32 %v999, %v1304
        %v1321 = vadd.f32 %v1000, %v1305
        %v1322 = vadd.f32 %v1001, %v1306
        %v1323 = vadd.f32 %v1002, %v1307
        %v1324 = vadd.f32 %v1003, %v1308
        %v1325 = vadd.f32 %v1004, %v1309
        %v1326 = vadd.f32 %v1005, %v1310
        %v1327 = vadd.f32 %v1006, %v1311
        %v1328 = vld [vmem:[#allocation2] sm:$0xfc]
        %v1329 = vld [vmem:[#allocation2 + $0x8] sm:$0xfc]
        %v1330 = vld [vmem:[#allocation2 + $0x20] sm:$0x3]
        %v1331 = vld [vmem:[#allocation2 + $0x28] sm:$0x3]
        %v1332 = vld [vmem:[#allocation2 + $0x30] sm:$0xfc]
        %v1333 = vld [vmem:[#allocation2 + $0x38] sm:$0xfc]
        %v1334 = vld [vmem:[#allocation2 + $0x50] sm:$0x3]
        %v1335 = vld [vmem:[#allocation2 + $0x58] sm:$0x3]
        %v1336 = vld [vmem:[#allocation2 + $0x60] sm:$0xfc]
        %v1337 = vld [vmem:[#allocation2 + $0x68] sm:$0xfc]
        %v1338 = vld [vmem:[#allocation2 + $0x80] sm:$0x3]
        %v1339 = vld [vmem:[#allocation2 + $0x88] sm:$0x3]
        %v1340 = vld [vmem:[#allocation2 + $0x90] sm:$0xfc]
        %v1341 = vld [vmem:[#allocation2 + $0x98] sm:$0xfc]
        %v1342 = vld [vmem:[#allocation2 + $0xb0] sm:$0x3]
        %v1343 = vld [vmem:[#allocation2 + $0xb8] sm:$0x3]
        %vm1360 = vcmask 1045504
        %v1361 = vrot.slane %v1328, 2
        %v1362 = vrot.slane %v1009, 2
        %v1363 = vsel %vm1360, %v1361, %v1362
        %v1364 = vrot.slane %v1329, 2
        %v1365 = vrot.slane %v1010, 2
        %v1366 = vsel %vm1360, %v1364, %v1365
        %v1367 = vrot.slane %v1330, 2
        %v1368 = vsel %vm1360, %v1362, %v1367
        %v1369 = vrot.slane %v1331, 2
        %v1370 = vsel %vm1360, %v1365, %v1369
        %v1371 = vrot.slane %v1332, 2
        %v1372 = vrot.slane %v1015, 2
        %v1373 = vsel %vm1360, %v1371, %v1372
        %v1374 = vrot.slane %v1333, 2
        %v1375 = vrot.slane %v1016, 2
        %v1376 = vsel %vm1360, %v1374, %v1375
        %v1377 = vrot.slane %v1334, 2
        %v1378 = vsel %vm1360, %v1372, %v1377
        %v1379 = vrot.slane %v1335, 2
        %v1380 = vsel %vm1360, %v1375, %v1379
        %v1381 = vrot.slane %v1336, 2
        %v1382 = vrot.slane %v1021, 2
        %v1383 = vsel %vm1360, %v1381, %v1382
        %v1384 = vrot.slane %v1337, 2
        %v1385 = vrot.slane %v1022, 2
        %v1386 = vsel %vm1360, %v1384, %v1385
        %v1387 = vrot.slane %v1338, 2
        %v1388 = vsel %vm1360, %v1382, %v1387
        %v1389 = vrot.slane %v1339, 2
        %v1390 = vsel %vm1360, %v1385, %v1389
        %v1391 = vrot.slane %v1340, 2
        %v1392 = vrot.slane %v1027, 2
        %v1393 = vsel %vm1360, %v1391, %v1392
        %v1394 = vrot.slane %v1341, 2
        %v1395 = vrot.slane %v1028, 2
        %v1396 = vsel %vm1360, %v1394, %v1395
        %v1397 = vrot.slane %v1342, 2
        %v1398 = vsel %vm1360, %v1392, %v1397
        %v1399 = vrot.slane %v1343, 2
        %v1400 = vsel %vm1360, %v1395, %v1399
        %1417 = vrot.lane.b32.xlu0 %v1363, 16
        %v1418 = vpop.permute.xlu0 %1417
        %1419 = vrot.lane.b32.xlu0 %v1368, 16
        %v1420 = vpop.permute.xlu0 %1419
        %1421 = vrot.lane.b32.xlu0 %v1373, 16
        %v1422 = vpop.permute.xlu0 %1421
        %1423 = vrot.lane.b32.xlu0 %v1378, 16
        %v1424 = vpop.permute.xlu0 %1423
        %1425 = vrot.lane.b32.xlu0 %v1383, 16
        %v1426 = vpop.permute.xlu0 %1425
        %1427 = vrot.lane.b32.xlu0 %v1388, 16
        %v1428 = vpop.permute.xlu0 %1427
        %1429 = vrot.lane.b32.xlu0 %v1393, 16
        %v1430 = vpop.permute.xlu0 %1429
        %1431 = vrot.lane.b32.xlu0 %v1398, 16
        %v1432 = vpop.permute.xlu0 %1431
        %1433 = vrot.lane.b32.xlu0 %v1366, 16
        %v1434 = vpop.permute.xlu0 %1433
        %1435 = vrot.lane.b32.xlu0 %v1370, 16
        %v1436 = vpop.permute.xlu0 %1435
        %1437 = vrot.lane.b32.xlu0 %v1376, 16
        %v1438 = vpop.permute.xlu0 %1437
        %1439 = vrot.lane.b32.xlu0 %v1380, 16
        %v1440 = vpop.permute.xlu0 %1439
        %1441 = vrot.lane.b32.xlu0 %v1386, 16
        %v1442 = vpop.permute.xlu0 %1441
        %1443 = vrot.lane.b32.xlu0 %v1390, 16
        %v1444 = vpop.permute.xlu0 %1443
        %1445 = vrot.lane.b32.xlu0 %v1396, 16
        %v1446 = vpop.permute.xlu0 %1445
        %1447 = vrot.lane.b32.xlu0 %v1400, 16
        %v1448 = vpop.permute.xlu0 %1447
        %v1449 = vsel %vm837, %v1418, %v1434
        %v1450 = vsel %vm837, %v1420, %v1436
        %v1451 = vsel %vm837, %v1422, %v1438
        %v1452 = vsel %vm837, %v1424, %v1440
        %v1453 = vsel %vm837, %v1426, %v1442
        %v1454 = vsel %vm837, %v1428, %v1444
        %v1455 = vsel %vm837, %v1430, %v1446
        %v1456 = vsel %vm837, %v1432, %v1448
        %v1457 = vsel %vm837, %v1434, %v1418
        %v1458 = vsel %vm837, %v1436, %v1420
        %v1459 = vsel %vm837, %v1438, %v1422
        %v1460 = vsel %vm837, %v1440, %v1424
        %v1461 = vsel %vm837, %v1442, %v1426
        %v1462 = vsel %vm837, %v1444, %v1428
        %v1463 = vsel %vm837, %v1446, %v1430
        %v1464 = vsel %vm837, %v1448, %v1432
        %1465 = vrot.lane.b32.xlu0 %v1363, 112
        %v1466 = vpop.permute.xlu0 %1465
        %1467 = vrot.lane.b32.xlu0 %v1368, 112
        %v1468 = vpop.permute.xlu0 %1467
        %1469 = vrot.lane.b32.xlu0 %v1373, 112
        %v1470 = vpop.permute.xlu0 %1469
        %1471 = vrot.lane.b32.xlu0 %v1378, 112
        %v1472 = vpop.permute.xlu0 %1471
        %1473 = vrot.lane.b32.xlu0 %v1383, 112
        %v1474 = vpop.permute.xlu0 %1473
        %1475 = vrot.lane.b32.xlu0 %v1388, 112
        %v1476 = vpop.permute.xlu0 %1475
        %1477 = vrot.lane.b32.xlu0 %v1393, 112
        %v1478 = vpop.permute.xlu0 %1477
        %1479 = vrot.lane.b32.xlu0 %v1398, 112
        %v1480 = vpop.permute.xlu0 %1479
        %1481 = vrot.lane.b32.xlu0 %v1366, 112
        %v1482 = vpop.permute.xlu0 %1481
        %1483 = vrot.lane.b32.xlu0 %v1370, 112
        %v1484 = vpop.permute.xlu0 %1483
        %1485 = vrot.lane.b32.xlu0 %v1376, 112
        %v1486 = vpop.permute.xlu0 %1485
        %1487 = vrot.lane.b32.xlu0 %v1380, 112
        %v1488 = vpop.permute.xlu0 %1487
        %1489 = vrot.lane.b32.xlu0 %v1386, 112
        %v1490 = vpop.permute.xlu0 %1489
        %1491 = vrot.lane.b32.xlu0 %v1390, 112
        %v1492 = vpop.permute.xlu0 %1491
        %1493 = vrot.lane.b32.xlu0 %v1396, 112
        %v1494 = vpop.permute.xlu0 %1493
        %1495 = vrot.lane.b32.xlu0 %v1400, 112
        %v1496 = vpop.permute.xlu0 %1495
        %v1497 = vsel %vm886, %v1466, %v1482
        %v1498 = vsel %vm886, %v1468, %v1484
        %v1499 = vsel %vm886, %v1470, %v1486
        %v1500 = vsel %vm886, %v1472, %v1488
        %v1501 = vsel %vm886, %v1474, %v1490
        %v1502 = vsel %vm886, %v1476, %v1492
        %v1503 = vsel %vm886, %v1478, %v1494
        %v1504 = vsel %vm886, %v1480, %v1496
        %v1505 = vsel %vm886, %v1482, %v1466
        %v1506 = vsel %vm886, %v1484, %v1468
        %v1507 = vsel %vm886, %v1486, %v1470
        %v1508 = vsel %vm886, %v1488, %v1472
        %v1509 = vsel %vm886, %v1490, %v1474
        %v1510 = vsel %vm886, %v1492, %v1476
        %v1511 = vsel %vm886, %v1494, %v1478
        %v1512 = vsel %vm886, %v1496, %v1480
        %v1513 = vlaneseq
        %v1514 = vshrl.u32 %v1513, 7
        %v1515 = vsub.s32 6, %v1514
        %v1516 = vrot.slane %v783, %v1515
        %v1517 = vlaneseq
        %v1518 = vshrl.u32 %v1517, 7
        %v1519 = vsub.s32 6, %v1518
        %v1520 = vrot.slane %v784, %v1519
        %v1521 = vmul.f32 %v1457, %v1516
        %v1522 = vmul.f32 %v1449, %v1520
        %v1523 = vmul.f32 %v1458, %v1516
        %v1524 = vmul.f32 %v1450, %v1520
        %v1525 = vmul.f32 %v1459, %v1516
        %v1526 = vmul.f32 %v1451, %v1520
        %v1527 = vmul.f32 %v1460, %v1516
        %v1528 = vmul.f32 %v1452, %v1520
        %v1529 = vmul.f32 %v1461, %v1516
        %v1530 = vmul.f32 %v1453, %v1520
        %v1531 = vmul.f32 %v1462, %v1516
        %v1532 = vmul.f32 %v1454, %v1520
        %v1533 = vmul.f32 %v1463, %v1516
        %v1534 = vmul.f32 %v1455, %v1520
        %v1535 = vmul.f32 %v1464, %v1516
        %v1536 = vmul.f32 %v1456, %v1520
        %v1537 = vlaneseq
        %v1538 = vshrl.u32 %v1537, 7
        %v1539 = vsub.s32 7, %v1538
        %v1540 = vrot.slane %v783, %v1539
        %v1541 = vlaneseq
        %v1542 = vshrl.u32 %v1541, 7
        %v1543 = vsub.s32 7, %v1542
        %v1544 = vrot.slane %v784, %v1543
        %v1545 = vmul.f32 %v1363, %v1540
        %v1546 = vmul.f32 %v1366, %v1544
        %v1547 = vmul.f32 %v1368, %v1540
        %v1548 = vmul.f32 %v1370, %v1544
        %v1549 = vmul.f32 %v1373, %v1540
        %v1550 = vmul.f32 %v1376, %v1544
        %v1551 = vmul.f32 %v1378, %v1540
        %v1552 = vmul.f32 %v1380, %v1544
        %v1553 = vmul.f32 %v1383, %v1540
        %v1554 = vmul.f32 %v1386, %v1544
        %v1555 = vmul.f32 %v1388, %v1540
        %v1556 = vmul.f32 %v1390, %v1544
        %v1557 = vmul.f32 %v1393, %v1540
        %v1558 = vmul.f32 %v1396, %v1544
        %v1559 = vmul.f32 %v1398, %v1540
        %v1560 = vmul.f32 %v1400, %v1544
        %v1561 = vadd.f32 %v1521, %v1545
        %v1562 = vadd.f32 %v1522, %v1546
        %v1563 = vadd.f32 %v1523, %v1547
        %v1564 = vadd.f32 %v1524, %v1548
        %v1565 = vadd.f32 %v1525, %v1549
        %v1566 = vadd.f32 %v1526, %v1550
        %v1567 = vadd.f32 %v1527, %v1551
        %v1568 = vadd.f32 %v1528, %v1552
        %v1569 = vadd.f32 %v1529, %v1553
        %v1570 = vadd.f32 %v1530, %v1554
        %v1571 = vadd.f32 %v1531, %v1555
        %v1572 = vadd.f32 %v1532, %v1556
        %v1573 = vadd.f32 %v1533, %v1557
        %v1574 = vadd.f32 %v1534, %v1558
        %v1575 = vadd.f32 %v1535, %v1559
        %v1576 = vadd.f32 %v1536, %v1560
        %v1577 = vlaneseq
        %v1578 = vshrl.u32 %v1577, 7
        %v1579 = vsub.s32 0, %v1578
        %v1580 = vrot.slane %v785, %v1579
        %v1581 = vlaneseq
        %v1582 = vshrl.u32 %v1581, 7
        %v1583 = vsub.s32 0, %v1582
        %v1584 = vrot.slane %v786, %v1583
        %v1585 = vmul.f32 %v1497, %v1580
        %v1586 = vmul.f32 %v1505, %v1584
        %v1587 = vmul.f32 %v1498, %v1580
        %v1588 = vmul.f32 %v1506, %v1584
        %v1589 = vmul.f32 %v1499, %v1580
        %v1590 = vmul.f32 %v1507, %v1584
        %v1591 = vmul.f32 %v1500, %v1580
        %v1592 = vmul.f32 %v1508, %v1584
        %v1593 = vmul.f32 %v1501, %v1580
        %v1594 = vmul.f32 %v1509, %v1584
        %v1595 = vmul.f32 %v1502, %v1580
        %v1596 = vmul.f32 %v1510, %v1584
        %v1597 = vmul.f32 %v1503, %v1580
        %v1598 = vmul.f32 %v1511, %v1584
        %v1599 = vmul.f32 %v1504, %v1580
        %v1600 = vmul.f32 %v1512, %v1584
        %v1601 = vadd.f32 %v1561, %v1585
        %v1602 = vadd.f32 %v1562, %v1586
        %v1603 = vadd.f32 %v1563, %v1587
        %v1604 = vadd.f32 %v1564, %v1588
        %v1605 = vadd.f32 %v1565, %v1589
        %v1606 = vadd.f32 %v1566, %v1590
        %v1607 = vadd.f32 %v1567, %v1591
        %v1608 = vadd.f32 %v1568, %v1592
        %v1609 = vadd.f32 %v1569, %v1593
        %v1610 = vadd.f32 %v1570, %v1594
        %v1611 = vadd.f32 %v1571, %v1595
        %v1612 = vadd.f32 %v1572, %v1596
        %v1613 = vadd.f32 %v1573, %v1597
        %v1614 = vadd.f32 %v1574, %v1598
        %v1615 = vadd.f32 %v1575, %v1599
        %v1616 = vadd.f32 %v1576, %v1600
        %v1617 = vadd.f32 %v1312, %v1601
        %v1618 = vadd.f32 %v1313, %v1602
        %v1619 = vadd.f32 %v1314, %v1603
        %v1620 = vadd.f32 %v1315, %v1604
        %v1621 = vadd.f32 %v1316, %v1605
        %v1622 = vadd.f32 %v1317, %v1606
        %v1623 = vadd.f32 %v1318, %v1607
        %v1624 = vadd.f32 %v1319, %v1608
        %v1625 = vadd.f32 %v1320, %v1609
        %v1626 = vadd.f32 %v1321, %v1610
        %v1627 = vadd.f32 %v1322, %v1611
        %v1628 = vadd.f32 %v1323, %v1612
        %v1629 = vadd.f32 %v1324, %v1613
        %v1630 = vadd.f32 %v1325, %v1614
        %v1631 = vadd.f32 %v1326, %v1615
        %v1632 = vadd.f32 %v1327, %v1616
        %s1633 = scalar_lea.vmem %s7, 2
        %v1634 = vld [vmem:[%s1633] ss:$8 sm:$0x3]
        %v1636 = vlaneseq
        %v1637 = vshrl.u32 %v1636, 7
        %v1638 = vsub.s32 0, %v1637
        %v1639 = vrot.slane %v1634, %v1638
        %v1640 = vlaneseq
        %v1641 = vshrl.u32 %v1640, 7
        %v1642 = vsub.s32 1, %v1641
        %v1643 = vrot.slane %v1634, %v1642
        %v1646 = vmul.f32 %v1617, %v1639
        %v1647 = vmul.f32 %v1618, %v1643
        %v1648 = vmul.f32 %v1619, %v1639
        %v1649 = vmul.f32 %v1620, %v1643
        %v1650 = vmul.f32 %v1621, %v1639
        %v1651 = vmul.f32 %v1622, %v1643
        %v1652 = vmul.f32 %v1623, %v1639
        %v1653 = vmul.f32 %v1624, %v1643
        %v1654 = vmul.f32 %v1625, %v1639
        %v1655 = vmul.f32 %v1626, %v1643
        %v1656 = vmul.f32 %v1627, %v1639
        %v1657 = vmul.f32 %v1628, %v1643
        %v1658 = vmul.f32 %v1629, %v1639
        %v1659 = vmul.f32 %v1630, %v1643
        %v1660 = vmul.f32 %v1631, %v1639
        %v1661 = vmul.f32 %v1632, %v1643
        %s1662 = scalar_lea.vmem %s7, 3
        %v1663 = vld [vmem:[%s1662] ss:$8 sm:$0x3]
        %v1665 = vlaneseq
        %v1666 = vshrl.u32 %v1665, 7
        %v1667 = vsub.s32 0, %v1666
        %v1668 = vrot.slane %v1663, %v1667
        %v1669 = vlaneseq
        %v1670 = vshrl.u32 %v1669, 7
        %v1671 = vsub.s32 1, %v1670
        %v1672 = vrot.slane %v1663, %v1671
        %v1675 = vadd.f32 %v1646, %v1668
        %v1676 = vadd.f32 %v1647, %v1672
        %v1677 = vadd.f32 %v1648, %v1668
        %v1678 = vadd.f32 %v1649, %v1672
        %v1679 = vadd.f32 %v1650, %v1668
        %v1680 = vadd.f32 %v1651, %v1672
        %v1681 = vadd.f32 %v1652, %v1668
        %v1682 = vadd.f32 %v1653, %v1672
        %v1683 = vadd.f32 %v1654, %v1668
        %v1684 = vadd.f32 %v1655, %v1672
        %v1685 = vadd.f32 %v1656, %v1668
        %v1686 = vadd.f32 %v1657, %v1672
        %v1687 = vadd.f32 %v1658, %v1668
        %v1688 = vadd.f32 %v1659, %v1672
        %v1689 = vadd.f32 %v1660, %v1668
        %v1690 = vadd.f32 %v1661, %v1672
        %v1691 = vmax.f32 %v1675, 0.0
        %v1692 = vmax.f32 %v1676, 0.0
        %v1693 = vmax.f32 %v1677, 0.0
        %v1694 = vmax.f32 %v1678, 0.0
        %v1695 = vmax.f32 %v1679, 0.0
        %v1696 = vmax.f32 %v1680, 0.0
        %v1697 = vmax.f32 %v1681, 0.0
        %v1698 = vmax.f32 %v1682, 0.0
        %v1699 = vmax.f32 %v1683, 0.0
        %v1700 = vmax.f32 %v1684, 0.0
        %v1701 = vmax.f32 %v1685, 0.0
        %v1702 = vmax.f32 %v1686, 0.0
        %v1703 = vmax.f32 %v1687, 0.0
        %v1704 = vmax.f32 %v1688, 0.0
        %v1705 = vmax.f32 %v1689, 0.0
        %v1706 = vmax.f32 %v1690, 0.0
        %v1707 = vmin.f32 %v1691, 6.0
        %v1708 = vmin.f32 %v1692, 6.0
        %v1709 = vmin.f32 %v1693, 6.0
        %v1710 = vmin.f32 %v1694, 6.0
        %v1711 = vmin.f32 %v1695, 6.0
        %v1712 = vmin.f32 %v1696, 6.0
        %v1713 = vmin.f32 %v1697, 6.0
        %v1714 = vmin.f32 %v1698, 6.0
        %v1715 = vmin.f32 %v1699, 6.0
        %v1716 = vmin.f32 %v1700, 6.0
        %v1717 = vmin.f32 %v1701, 6.0
        %v1718 = vmin.f32 %v1702, 6.0
        %v1719 = vmin.f32 %v1703, 6.0
        %v1720 = vmin.f32 %v1704, 6.0
        %v1721 = vmin.f32 %v1705, 6.0
        %v1722 = vmin.f32 %v1706, 6.0
        %v1723 = vld [vmem:[%s4] sm:$0xff]
        %v1724 = vld [vmem:[%s4 + $0x8] sm:$0xff]
        %v1725 = vld [vmem:[%s4 + $0x10] sm:$0xff]
        %v1726 = vld [vmem:[%s4 + $0x18] sm:$0xff]
        %v1727 = vld [vmem:[%s4 + $0x20] sm:$0xff]
        %v1728 = vld [vmem:[%s4 + $0x28] sm:$0xff]
        %v1729 = vld [vmem:[%s4 + $0x30] sm:$0xff]
        %v1730 = vld [vmem:[%s4 + $0x38] sm:$0xff]
        %v1731 = vld [vmem:[%s4 + $0x40] sm:$0xff]
        %v1732 = vld [vmem:[%s4 + $0x48] sm:$0xff]
        %v1733 = vld [vmem:[%s4 + $0x50] sm:$0xff]
        %v1734 = vld [vmem:[%s4 + $0x58] sm:$0xff]
        %v1735 = vld [vmem:[%s4 + $0x60] sm:$0xff]
        %v1736 = vld [vmem:[%s4 + $0x68] sm:$0xff]
        %v1737 = vld [vmem:[%s4 + $0x70] sm:$0xff]
        %v1738 = vld [vmem:[%s4 + $0x78] sm:$0xff]
        %v1739 = vld [vmem:[%s4 + $0x80] sm:$0xff]
        %v1740 = vld [vmem:[%s4 + $0x88] sm:$0xff]
        %v1741 = vld [vmem:[%s4 + $0x90] sm:$0xff]
        %v1742 = vld [vmem:[%s4 + $0x98] sm:$0xff]
        %v1743 = vld [vmem:[%s4 + $0xa0] sm:$0xff]
        %v1744 = vld [vmem:[%s4 + $0xa8] sm:$0xff]
        %v1745 = vld [vmem:[%s4 + $0xb0] sm:$0xff]
        %v1746 = vld [vmem:[%s4 + $0xb8] sm:$0xff]
        %v1747 = vld [vmem:[%s4 + $0xc0] sm:$0xff]
        %v1748 = vld [vmem:[%s4 + $0xc8] sm:$0xff]
        %v1749 = vld [vmem:[%s4 + $0xd0] sm:$0xff]
        %v1750 = vld [vmem:[%s4 + $0xd8] sm:$0xff]
        %v1751 = vld [vmem:[%s4 + $0xe0] sm:$0xff]
        %v1752 = vld [vmem:[%s4 + $0xe8] sm:$0xff]
        %v1753 = vld [vmem:[%s4 + $0xf0] sm:$0xff]
        %v1754 = vld [vmem:[%s4 + $0xf8] sm:$0xff]
        %1755 = vmatprep.subr.mxu0 0.0
        %1756 = vmatpush1.msra.mxu0 %v1723
        %1757 = vmatprep.subr.mxu0 0.0
        %1758 = vmatpush1.msra.mxu0 %v1724
        %1759 = vmatprep.subr.mxu0 0.0
        %1760 = vmatpush1.msra.mxu0 %v1725
        %1761 = vmatprep.subr.mxu0 0.0
        %1762 = vmatpush1.msra.mxu0 %v1726
        %1763 = vmatprep.subr.mxu0 0.0
        %1764 = vmatpush1.msra.mxu0 %v1727
        %1765 = vmatprep.subr.mxu0 0.0
        %1766 = vmatpush1.msra.mxu0 %v1728
        %1767 = vmatprep.subr.mxu0 0.0
        %1768 = vmatpush1.msra.mxu0 %v1729
        %1769 = vmatprep.subr.mxu0 0.0
        %1770 = vmatpush1.msra.mxu0 %v1730
        %1771 = vmatprep.subr.mxu0 0.0
        %1772 = vmatpush1.msra.mxu0 %v1731
        %1773 = vmatprep.subr.mxu0 0.0
        %1774 = vmatpush1.msra.mxu0 %v1732
        %1775 = vmatprep.subr.mxu0 0.0
        %1776 = vmatpush1.msra.mxu0 %v1733
        %1777 = vmatprep.subr.mxu0 0.0
        %1778 = vmatpush1.msra.mxu0 %v1734
        %1779 = vmatprep.subr.mxu0 0.0
        %1780 = vmatpush1.msra.mxu0 %v1735
        %1781 = vmatprep.subr.mxu0 0.0
        %1782 = vmatpush1.msra.mxu0 %v1736
        %1783 = vmatprep.subr.mxu0 0.0
        %1784 = vmatpush1.msra.mxu0 %v1737
        %1785 = vmatprep.subr.mxu0 0.0
        %1786 = vmatpush1.msra.mxu0 %v1738
        %1787 = vmatprep.subr.mxu0 0.0
        %1788 = vmatpush1.msra.mxu0 %v1739
        %1789 = vmatprep.subr.mxu0 0.0
        %1790 = vmatpush1.msra.mxu0 %v1740
        %1791 = vmatprep.subr.mxu0 0.0
        %1792 = vmatpush1.msra.mxu0 %v1741
        %1793 = vmatprep.subr.mxu0 0.0
        %1794 = vmatpush1.msra.mxu0 %v1742
        %1795 = vmatprep.subr.mxu0 0.0
        %1796 = vmatpush1.msra.mxu0 %v1743
        %1797 = vmatprep.subr.mxu0 0.0
        %1798 = vmatpush1.msra.mxu0 %v1744
        %1799 = vmatprep.subr.mxu0 0.0
        %1800 = vmatpush1.msra.mxu0 %v1745
        %1801 = vmatprep.subr.mxu0 0.0
        %1802 = vmatpush1.msra.mxu0 %v1746
        %1803 = vmatprep.subr.mxu0 0.0
        %1804 = vmatpush1.msra.mxu0 %v1747
        %1805 = vmatprep.subr.mxu0 0.0
        %1806 = vmatpush1.msra.mxu0 %v1748
        %1807 = vmatprep.subr.mxu0 0.0
        %1808 = vmatpush1.msra.mxu0 %v1749
        %1809 = vmatprep.subr.mxu0 0.0
        %1810 = vmatpush1.msra.mxu0 %v1750
        %1811 = vmatprep.subr.mxu0 0.0
        %1812 = vmatpush1.msra.mxu0 %v1751
        %1813 = vmatprep.subr.mxu0 0.0
        %1814 = vmatpush1.msra.mxu0 %v1752
        %1815 = vmatprep.subr.mxu0 0.0
        %1816 = vmatpush1.msra.mxu0 %v1753
        %1817 = vmatprep.subr.mxu0 0.0
        %1818 = vmatpush1.msra.mxu0 %v1754
        %1819 = vmatprep.mubr.f32.mxu0 %v1708
        %1820 = vmatmul.mubr.f32.gmra.mrb[0].mxu0 %v1707
        %v1821 = vpop.f32.mrb[0].mxu0
        %v1822 = vadd.f32 0.0, %v1821
        %v1823 = vpop.f32.mrb[0].mxu0
        %1824 = vmatprep.mubr.f32.mxu0 %v1710
        %1825 = vmatmul.mubr.f32.gmra.mrb[0].mxu0 %v1709
        %v1826 = vpop.f32.mrb[0].mxu0
        %v1827 = vadd.f32 0.0, %v1826
        %v1828 = vpop.f32.mrb[0].mxu0
        %1829 = vmatprep.mubr.f32.mxu0 %v1712
        %1830 = vmatmul.mubr.f32.gmra.mrb[0].mxu0 %v1711
        %v1831 = vpop.f32.mrb[0].mxu0
        %v1832 = vadd.f32 0.0, %v1831
        %v1833 = vpop.f32.mrb[0].mxu0
        %1834 = vmatprep.mubr.f32.mxu0 %v1714
        %1835 = vmatmul.mubr.f32.gmra.mrb[0].mxu0 %v1713
        %v1836 = vpop.f32.mrb[0].mxu0
        %v1837 = vadd.f32 0.0, %v1836
        %v1838 = vpop.f32.mrb[0].mxu0
        %1839 = vmatprep.mubr.f32.mxu0 %v1716
        %1840 = vmatmul.mubr.f32.gmra.mrb[0].mxu0 %v1715
        %v1841 = vpop.f32.mrb[0].mxu0
        %v1842 = vadd.f32 0.0, %v1841
        %v1843 = vpop.f32.mrb[0].mxu0
        %1844 = vmatprep.mubr.f32.mxu0 %v1718
        %1845 = vmatmul.mubr.f32.gmra.mrb[0].mxu0 %v1717
        %v1846 = vpop.f32.mrb[0].mxu0
        %v1847 = vadd.f32 0.0, %v1846
        %v1848 = vpop.f32.mrb[0].mxu0
        %1849 = vmatprep.mubr.f32.mxu0 %v1720
        %1850 = vmatmul.mubr.f32.gmra.mrb[0].mxu0 %v1719
        %v1851 = vpop.f32.mrb[0].mxu0
        %v1852 = vadd.f32 0.0, %v1851
        %v1853 = vpop.f32.mrb[0].mxu0
        %1854 = vmatprep.mubr.f32.mxu0 %v1722
        %1855 = vmatmul.mubr.f32.gmra.mrb[0].mxu0 %v1721
        %v1856 = vpop.f32.mrb[0].mxu0
        %v1857 = vadd.f32 0.0, %v1856
        %v1858 = vpop.f32.mrb[0].mxu0
        %1859 = vdwg.mxu0
        %v1860 = vld [vmem:[%s8 + $0x4] sm:$0x1]
        %v1861 = vlaneseq
        %v1862 = vshrl.u32 %v1861, 7
        %v1863 = vsub.s32 0, %v1862
        %v1864 = vrot.slane %v1860, %v1863
        %v1865 = vmul.f32 %v1822, %v1864
        %v1866 = vmul.f32 %v1827, %v1864
        %v1867 = vmul.f32 %v1832, %v1864
        %v1868 = vmul.f32 %v1837, %v1864
        %v1869 = vmul.f32 %v1842, %v1864
        %v1870 = vmul.f32 %v1847, %v1864
        %v1871 = vmul.f32 %v1852, %v1864
        %v1872 = vmul.f32 %v1857, %v1864
        %v1873 = vld [vmem:[%s8 + $0x5] sm:$0x1]
        %v1874 = vlaneseq
        %v1875 = vshrl.u32 %v1874, 7
        %v1876 = vsub.s32 0, %v1875
        %v1877 = vrot.slane %v1873, %v1876
        %v1878 = vadd.f32 %v1865, %v1877
        %v1879 = vadd.f32 %v1866, %v1877
        %v1880 = vadd.f32 %v1867, %v1877
        %v1881 = vadd.f32 %v1868, %v1877
        %v1882 = vadd.f32 %v1869, %v1877
        %v1883 = vadd.f32 %v1870, %v1877
        %v1884 = vadd.f32 %v1871, %v1877
        %v1885 = vadd.f32 %v1872, %v1877
        %v1886 = vadd.f32 %v1878, 3.0
        %v1887 = vadd.f32 %v1879, 3.0
        %v1888 = vadd.f32 %v1880, 3.0
        %v1889 = vadd.f32 %v1881, 3.0
        %v1890 = vadd.f32 %v1882, 3.0
        %v1891 = vadd.f32 %v1883, 3.0
        %v1892 = vadd.f32 %v1884, 3.0
        %v1893 = vadd.f32 %v1885, 3.0
        %v1894 = vmax.f32 %v1886, 0.0
        %v1895 = vmax.f32 %v1887, 0.0
        %v1896 = vmax.f32 %v1888, 0.0
        %v1897 = vmax.f32 %v1889, 0.0
        %v1898 = vmax.f32 %v1890, 0.0
        %v1899 = vmax.f32 %v1891, 0.0
        %v1900 = vmax.f32 %v1892, 0.0
        %v1901 = vmax.f32 %v1893, 0.0
        %v1902 = vmin.f32 %v1894, 6.0
        %v1903 = vmin.f32 %v1895, 6.0
        %v1904 = vmin.f32 %v1896, 6.0
        %v1905 = vmin.f32 %v1897, 6.0
        %v1906 = vmin.f32 %v1898, 6.0
        %v1907 = vmin.f32 %v1899, 6.0
        %v1908 = vmin.f32 %v1900, 6.0
        %v1909 = vmin.f32 %v1901, 6.0
        %v1910 = vmul.f32 %v1878, %v1902
        %v1911 = vmul.f32 %v1879, %v1903
        %v1912 = vmul.f32 %v1880, %v1904
        %v1913 = vmul.f32 %v1881, %v1905
        %v1914 = vmul.f32 %v1882, %v1906
        %v1915 = vmul.f32 %v1883, %v1907
        %v1916 = vmul.f32 %v1884, %v1908
        %v1917 = vmul.f32 %v1885, %v1909
        %v1918 = vmul.f32 %v1910, 0.16666667
        %v1919 = vmul.f32 %v1911, 0.16666667
        %v1920 = vmul.f32 %v1912, 0.16666667
        %v1921 = vmul.f32 %v1913, 0.16666667
        %v1922 = vmul.f32 %v1914, 0.16666667
        %v1923 = vmul.f32 %v1915, 0.16666667
        %v1924 = vmul.f32 %v1916, 0.16666667
        %v1925 = vmul.f32 %v1917, 0.16666667
        %v1926 = vld [vmem:[%s7] sm:$0xc0]
        %v1927 = vld [vmem:[%s7 + $0x8] sm:$0xc0]
        %v1928 = vld [vmem:[%s7 + $0x10] sm:$0x3f]
        %v1929 = vld [vmem:[%s7 + $0x18] sm:$0x3f]
        %s1930 = scalar_lea.vmem %s7, 4
        %v1931 = vld [vmem:[%s1930] ss:$8 sm:$0x3]
        %v1933 = vlaneseq
        %v1934 = vshrl.u32 %v1933, 7
        %v1935 = vsub.s32 0, %v1934
        %v1936 = vrot.slane %v1931, %v1935
        %v1937 = vlaneseq
        %v1938 = vshrl.u32 %v1937, 7
        %v1939 = vsub.s32 1, %v1938
        %v1940 = vrot.slane %v1931, %v1939
        %vm1947 = vcmask 1041408
        %v1948 = vrot.slane %v1926, 6
        %v1949 = vrot.slane %v1928, 6
        %v1950 = vsel %vm1947, %v1948, %v1949
        %v1951 = vrot.slane %v1927, 6
        %v1952 = vrot.slane %v1929, 6
        %v1953 = vsel %vm1947, %v1951, %v1952
        %vm1956 = vcmask 64512
        %v1958 = vsel %vm1956, %v1918, 0
        %v1961 = vsel %vm1956, %v1919, 0
        %v1964 = vsel %vm1956, %v1920, 0
        %v1967 = vsel %vm1956, %v1921, 0
        %v1970 = vsel %vm1956, %v1922, 0
        %v1973 = vsel %vm1956, %v1923, 0
        %v1976 = vsel %vm1956, %v1924, 0
        %v1979 = vsel %vm1956, %v1925, 0
        %1981 = vmatprep.subr.mxu0 %v1953
        %1982 = vmatpush1.msra.mxu0 %v1950
        %1983 = vmatprep.subr.mxu0 0.0
        %1984 = vmatpush1.msra.mxu0 0.0
        %1985 = vmatprep.subr.mxu0 0.0
        %1986 = vmatpush1.msra.mxu0 0.0
        %1987 = vmatprep.subr.mxu0 0.0
        %1988 = vmatpush1.msra.mxu0 0.0
        %1989 = vmatprep.subr.mxu0 0.0
        %1990 = vmatpush1.msra.mxu0 0.0
        %1991 = vmatprep.subr.mxu0 0.0
        %1992 = vmatpush1.msra.mxu0 0.0
        %1993 = vmatprep.subr.mxu0 0.0
        %1994 = vmatpush1.msra.mxu0 0.0
        %1995 = vmatprep.subr.mxu0 0.0
        %1996 = vmatpush1.msra.mxu0 0.0
        %1997 = vmatprep.subr.mxu0 0.0
        %1998 = vmatpush1.msra.mxu0 0.0
        %1999 = vmatprep.subr.mxu0 0.0
        %2000 = vmatpush1.msra.mxu0 0.0
        %2001 = vmatprep.subr.mxu0 0.0
        %2002 = vmatpush1.msra.mxu0 0.0
        %2003 = vmatprep.subr.mxu0 0.0
        %2004 = vmatpush1.msra.mxu0 0.0
        %2005 = vmatprep.subr.mxu0 0.0
        %2006 = vmatpush1.msra.mxu0 0.0
        %2007 = vmatprep.subr.mxu0 0.0
        %2008 = vmatpush1.msra.mxu0 0.0
        %2009 = vmatprep.subr.mxu0 0.0
        %2010 = vmatpush1.msra.mxu0 0.0
        %2011 = vmatprep.subr.mxu0 0.0
        %2012 = vmatpush1.msra.mxu0 0.0
        %2013 = vmatprep.subr.mxu0 0.0
        %2014 = vmatpush1.msra.mxu0 0.0
        %2015 = vmatprep.subr.mxu0 0.0
        %2016 = vmatpush1.msra.mxu0 0.0
        %2017 = vmatprep.subr.mxu0 0.0
        %2018 = vmatpush1.msra.mxu0 0.0
        %2019 = vmatprep.subr.mxu0 0.0
        %2020 = vmatpush1.msra.mxu0 0.0
        %2021 = vmatprep.subr.mxu0 0.0
        %2022 = vmatpush1.msra.mxu0 0.0
        %2023 = vmatprep.subr.mxu0 0.0
        %2024 = vmatpush1.msra.mxu0 0.0
        %2025 = vmatprep.subr.mxu0 0.0
        %2026 = vmatpush1.msra.mxu0 0.0
        %2027 = vmatprep.subr.mxu0 0.0
        %2028 = vmatpush1.msra.mxu0 0.0
        %2029 = vmatprep.subr.mxu0 0.0
        %2030 = vmatpush1.msra.mxu0 0.0
        %2031 = vmatprep.subr.mxu0 0.0
        %2032 = vmatpush1.msra.mxu0 0.0
        %2033 = vmatprep.subr.mxu0 0.0
        %2034 = vmatpush1.msra.mxu0 0.0
        %2035 = vmatprep.subr.mxu0 0.0
        %2036 = vmatpush1.msra.mxu0 0.0
        %2037 = vmatprep.subr.mxu0 0.0
        %2038 = vmatpush1.msra.mxu0 0.0
        %2039 = vmatprep.subr.mxu0 0.0
        %2040 = vmatpush1.msra.mxu0 0.0
        %2041 = vmatprep.subr.mxu0 0.0
        %2042 = vmatpush1.msra.mxu0 0.0
        %2043 = vmatprep.subr.mxu0 0.0
        %2044 = vmatpush1.msra.mxu0 0.0
        %2045 = vmatprep.mubr.f32.mxu0 0.0
        %2046 = vmatmul.mubr.f32.gmra.mrb[0].mxu0 %v1958
        %v2047 = vpop.f32.mrb[0].mxu0
        %v2048 = vadd.f32 %v1936, %v2047
        %v2049 = vpop.f32.mrb[0].mxu0
        %v2050 = vadd.f32 %v1940, %v2049
        %2051 = vmatprep.mubr.f32.mxu0 0.0
        %2052 = vmatmul.mubr.f32.gmra.mrb[0].mxu0 %v1961
        %v2053 = vpop.f32.mrb[0].mxu0
        %v2054 = vadd.f32 %v1936, %v2053
        %v2055 = vpop.f32.mrb[0].mxu0
        %v2056 = vadd.f32 %v1940, %v2055
        %2057 = vmatprep.mubr.f32.mxu0 0.0
        %2058 = vmatmul.mubr.f32.gmra.mrb[0].mxu0 %v1964
        %v2059 = vpop.f32.mrb[0].mxu0
        %v2060 = vadd.f32 %v1936, %v2059
        %v2061 = vpop.f32.mrb[0].mxu0
        %v2062 = vadd.f32 %v1940, %v2061
        %2063 = vmatprep.mubr.f32.mxu0 0.0
        %2064 = vmatmul.mubr.f32.gmra.mrb[0].mxu0 %v1967
        %v2065 = vpop.f32.mrb[0].mxu0
        %v2066 = vadd.f32 %v1936, %v2065
        %v2067 = vpop.f32.mrb[0].mxu0
        %v2068 = vadd.f32 %v1940, %v2067
        %2069 = vmatprep.mubr.f32.mxu0 0.0
        %2070 = vmatmul.mubr.f32.gmra.mrb[0].mxu0 %v1970
        %v2071 = vpop.f32.mrb[0].mxu0
        %v2072 = vadd.f32 %v1936, %v2071
        %v2073 = vpop.f32.mrb[0].mxu0
        %v2074 = vadd.f32 %v1940, %v2073
        %2075 = vmatprep.mubr.f32.mxu0 0.0
        %2076 = vmatmul.mubr.f32.gmra.mrb[0].mxu0 %v1973
        %v2077 = vpop.f32.mrb[0].mxu0
        %v2078 = vadd.f32 %v1936, %v2077
        %v2079 = vpop.f32.mrb[0].mxu0
        %v2080 = vadd.f32 %v1940, %v2079
        %2081 = vmatprep.mubr.f32.mxu0 0.0
        %2082 = vmatmul.mubr.f32.gmra.mrb[0].mxu0 %v1976
        %v2083 = vpop.f32.mrb[0].mxu0
        %v2084 = vadd.f32 %v1936, %v2083
        %v2085 = vpop.f32.mrb[0].mxu0
        %v2086 = vadd.f32 %v1940, %v2085
        %2087 = vmatprep.mubr.f32.mxu0 0.0
        %2088 = vmatmul.mubr.f32.gmra.mrb[0].mxu0 %v1979
        %v2089 = vpop.f32.mrb[0].mxu0
        %v2090 = vadd.f32 %v1936, %v2089
        %v2091 = vpop.f32.mrb[0].mxu0
        %v2092 = vadd.f32 %v1940, %v2091
        %2093 = vdwg.mxu0
        %v2094 = vxor.u32 %v2048, 2147483648
        %v2095 = vxor.u32 %v2050, 2147483648
        %v2096 = vxor.u32 %v2054, 2147483648
        %v2097 = vxor.u32 %v2056, 2147483648
        %v2098 = vxor.u32 %v2060, 2147483648
        %v2099 = vxor.u32 %v2062, 2147483648
        %v2100 = vxor.u32 %v2066, 2147483648
        %v2101 = vxor.u32 %v2068, 2147483648
        %v2102 = vxor.u32 %v2072, 2147483648
        %v2103 = vxor.u32 %v2074, 2147483648
        %v2104 = vxor.u32 %v2078, 2147483648
        %v2105 = vxor.u32 %v2080, 2147483648
        %v2106 = vxor.u32 %v2084, 2147483648
        %v2107 = vxor.u32 %v2086, 2147483648
        %v2108 = vxor.u32 %v2090, 2147483648
        %v2109 = vxor.u32 %v2092, 2147483648
        %v2110 = vmul.f32 %v2094, 1.442695
        %v2111 = vpow.pop %v2110
        %v2112 = vmul.f32 %v2095, 1.442695
        %v2113 = vpow.pop %v2112
        %v2114 = vmul.f32 %v2096, 1.442695
        %v2115 = vpow.pop %v2114
        %v2116 = vmul.f32 %v2097, 1.442695
        %v2117 = vpow.pop %v2116
        %v2118 = vmul.f32 %v2098, 1.442695
        %v2119 = vpow.pop %v2118
        %v2120 = vmul.f32 %v2099, 1.442695
        %v2121 = vpow.pop %v2120
        %v2122 = vmul.f32 %v2100, 1.442695
        %v2123 = vpow.pop %v2122
        %v2124 = vmul.f32 %v2101, 1.442695
        %v2125 = vpow.pop %v2124
        %v2126 = vmul.f32 %v2102, 1.442695
        %v2127 = vpow.pop %v2126
        %v2128 = vmul.f32 %v2103, 1.442695
        %v2129 = vpow.pop %v2128
        %v2130 = vmul.f32 %v2104, 1.442695
        %v2131 = vpow.pop %v2130
        %v2132 = vmul.f32 %v2105, 1.442695
        %v2133 = vpow.pop %v2132
        %v2134 = vmul.f32 %v2106, 1.442695
        %v2135 = vpow.pop %v2134
        %v2136 = vmul.f32 %v2107, 1.442695
        %v2137 = vpow.pop %v2136
        %v2138 = vmul.f32 %v2108, 1.442695
        %v2139 = vpow.pop %v2138
        %v2140 = vmul.f32 %v2109, 1.442695
        %v2141 = vpow.pop %v2140
        %v2142 = vadd.f32 %v2111, 1.0
        %v2143 = vadd.f32 %v2113, 1.0
        %v2144 = vadd.f32 %v2115, 1.0
        %v2145 = vadd.f32 %v2117, 1.0
        %v2146 = vadd.f32 %v2119, 1.0
        %v2147 = vadd.f32 %v2121, 1.0
        %v2148 = vadd.f32 %v2123, 1.0
        %v2149 = vadd.f32 %v2125, 1.0
        %v2150 = vadd.f32 %v2127, 1.0
        %v2151 = vadd.f32 %v2129, 1.0
        %v2152 = vadd.f32 %v2131, 1.0
        %v2153 = vadd.f32 %v2133, 1.0
        %v2154 = vadd.f32 %v2135, 1.0
        %v2155 = vadd.f32 %v2137, 1.0
        %v2156 = vadd.f32 %v2139, 1.0
        %v2157 = vadd.f32 %v2141, 1.0
        %v2158 = vrcp.pop %v2142
        %v2159 = vmul.f32 1.0, %v2158
        %v2160 = vrcp.pop %v2143
        %v2161 = vmul.f32 1.0, %v2160
        %v2162 = vrcp.pop %v2144
        %v2163 = vmul.f32 1.0, %v2162
        %v2164 = vrcp.pop %v2145
        %v2165 = vmul.f32 1.0, %v2164
        %v2166 = vrcp.pop %v2146
        %v2167 = vmul.f32 1.0, %v2166
        %v2168 = vrcp.pop %v2147
        %v2169 = vmul.f32 1.0, %v2168
        %v2170 = vrcp.pop %v2148
        %v2171 = vmul.f32 1.0, %v2170
        %v2172 = vrcp.pop %v2149
        %v2173 = vmul.f32 1.0, %v2172
        %v2174 = vrcp.pop %v2150
        %v2175 = vmul.f32 1.0, %v2174
        %v2176 = vrcp.pop %v2151
        %v2177 = vmul.f32 1.0, %v2176
        %v2178 = vrcp.pop %v2152
        %v2179 = vmul.f32 1.0, %v2178
        %v2180 = vrcp.pop %v2153
        %v2181 = vmul.f32 1.0, %v2180
        %v2182 = vrcp.pop %v2154
        %v2183 = vmul.f32 1.0, %v2182
        %v2184 = vrcp.pop %v2155
        %v2185 = vmul.f32 1.0, %v2184
        %v2186 = vrcp.pop %v2156
        %v2187 = vmul.f32 1.0, %v2186
        %v2188 = vrcp.pop %v2157
        %v2189 = vmul.f32 1.0, %v2188
        %v2190 = vadd.f32 %v1707, %v1709
        %v2191 = vrot.slane %v2190, 4
        %v2192 = vadd.f32 %v2190, %v2191
        %v2193 = vrot.slane %v2192, 2
        %v2194 = vadd.f32 %v2192, %v2193
        %v2195 = vrot.slane %v2194, 1
        %v2196 = vadd.f32 %v2194, %v2195
        %v2197 = vadd.f32 %v1708, %v1710
        %v2198 = vrot.slane %v2197, 4
        %v2199 = vadd.f32 %v2197, %v2198
        %v2200 = vrot.slane %v2199, 2
        %v2201 = vadd.f32 %v2199, %v2200
        %v2202 = vrot.slane %v2201, 1
        %v2203 = vadd.f32 %v2201, %v2202
        %v2204 = vadd.f32 %v1711, %v1713
        %v2205 = vrot.slane %v2204, 4
        %v2206 = vadd.f32 %v2204, %v2205
        %v2207 = vrot.slane %v2206, 2
        %v2208 = vadd.f32 %v2206, %v2207
        %v2209 = vrot.slane %v2208, 1
        %v2210 = vadd.f32 %v2208, %v2209
        %v2211 = vadd.f32 %v1712, %v1714
        %v2212 = vrot.slane %v2211, 4
        %v2213 = vadd.f32 %v2211, %v2212
        %v2214 = vrot.slane %v2213, 2
        %v2215 = vadd.f32 %v2213, %v2214
        %v2216 = vrot.slane %v2215, 1
        %v2217 = vadd.f32 %v2215, %v2216
        %v2218 = vadd.f32 %v1715, %v1717
        %v2219 = vrot.slane %v2218, 4
        %v2220 = vadd.f32 %v2218, %v2219
        %v2221 = vrot.slane %v2220, 2
        %v2222 = vadd.f32 %v2220, %v2221
        %v2223 = vrot.slane %v2222, 1
        %v2224 = vadd.f32 %v2222, %v2223
        %v2225 = vadd.f32 %v1716, %v1718
        %v2226 = vrot.slane %v2225, 4
        %v2227 = vadd.f32 %v2225, %v2226
        %v2228 = vrot.slane %v2227, 2
        %v2229 = vadd.f32 %v2227, %v2228
        %v2230 = vrot.slane %v2229, 1
        %v2231 = vadd.f32 %v2229, %v2230
        %v2232 = vadd.f32 %v1719, %v1721
        %v2233 = vrot.slane %v2232, 4
        %v2234 = vadd.f32 %v2232, %v2233
        %v2235 = vrot.slane %v2234, 2
        %v2236 = vadd.f32 %v2234, %v2235
        %v2237 = vrot.slane %v2236, 1
        %v2238 = vadd.f32 %v2236, %v2237
        %v2239 = vadd.f32 %v1720, %v1722
        %v2240 = vrot.slane %v2239, 4
        %v2241 = vadd.f32 %v2239, %v2240
        %v2242 = vrot.slane %v2241, 2
        %v2243 = vadd.f32 %v2241, %v2242
        %v2244 = vrot.slane %v2243, 1
        %v2245 = vadd.f32 %v2243, %v2244
        %v2246 = vrcp.pop 16.0
        %v2247 = vmul.f32 %v2196, %v2246
        %v2248 = vmul.f32 %v2203, %v2246
        %v2249 = vmul.f32 %v2210, %v2246
        %v2250 = vmul.f32 %v2217, %v2246
        %v2251 = vmul.f32 %v2224, %v2246
        %v2252 = vmul.f32 %v2231, %v2246
        %v2253 = vmul.f32 %v2238, %v2246
        %v2254 = vmul.f32 %v2245, %v2246
        %v2255 = vpack.c.bf16 %v2247, %v2247
        %v2256 = vpack.c.bf16 %v2248, %v2248
        %v2257 = vpack.c.bf16 %v2249, %v2249
        %v2258 = vpack.c.bf16 %v2250, %v2250
        %v2259 = vpack.c.bf16 %v2251, %v2251
        %v2260 = vpack.c.bf16 %v2252, %v2252
        %v2261 = vpack.c.bf16 %v2253, %v2253
        %v2262 = vpack.c.bf16 %v2254, %v2254
        %v2263 = vld [vmem:[#allocation8] sm:$0xf]
        %v2264 = vld [vmem:[#allocation8 + $0x4] sm:$0xf]
        %v2265 = vld [vmem:[#allocation8 + $0x8] sm:$0xf]
        %v2266 = vld [vmem:[#allocation8 + $0xc] sm:$0xf]
        %v2267 = vld [vmem:[#allocation8 + $0x10] sm:$0xf]
        %v2268 = vld [vmem:[#allocation8 + $0x14] sm:$0xf]
        %v2269 = vld [vmem:[#allocation8 + $0x18] sm:$0xf]
        %v2270 = vld [vmem:[#allocation8 + $0x1c] sm:$0xf]
        %v2271 = vld [vmem:[#allocation8 + $0x20] sm:$0xf]
        %v2272 = vld [vmem:[#allocation8 + $0x24] sm:$0xf]
        %v2273 = vld [vmem:[#allocation8 + $0x28] sm:$0xf]
        %v2274 = vld [vmem:[#allocation8 + $0x2c] sm:$0xf]
        %v2275 = vld [vmem:[#allocation8 + $0x30] sm:$0xf]
        %v2276 = vld [vmem:[#allocation8 + $0x34] sm:$0xf]
        %v2277 = vld [vmem:[#allocation8 + $0x38] sm:$0xf]
        %v2278 = vld [vmem:[#allocation8 + $0x3c] sm:$0xf]
        %v2279 = vld [vmem:[#allocation8 + $0x40] sm:$0xf]
        %v2280 = vld [vmem:[#allocation8 + $0x44] sm:$0xf]
        %v2281 = vld [vmem:[#allocation8 + $0x48] sm:$0xf]
        %v2282 = vld [vmem:[#allocation8 + $0x4c] sm:$0xf]
        %v2283 = vld [vmem:[#allocation8 + $0x50] sm:$0xf]
        %v2284 = vld [vmem:[#allocation8 + $0x54] sm:$0xf]
        %v2285 = vld [vmem:[#allocation8 + $0x58] sm:$0xf]
        %v2286 = vld [vmem:[#allocation8 + $0x5c] sm:$0xf]
        %v2287 = vld [vmem:[#allocation8 + $0x60] sm:$0xf]
        %v2288 = vld [vmem:[#allocation8 + $0x64] sm:$0xf]
        %v2289 = vld [vmem:[#allocation8 + $0x68] sm:$0xf]
        %v2290 = vld [vmem:[#allocation8 + $0x6c] sm:$0xf]
        %v2291 = vld [vmem:[#allocation8 + $0x70] sm:$0xf]
        %v2292 = vld [vmem:[#allocation8 + $0x74] sm:$0xf]
        %v2293 = vld [vmem:[#allocation8 + $0x78] sm:$0xf]
        %v2294 = vld [vmem:[#allocation8 + $0x7c] sm:$0xf]
        %v2303 = vunpack.c.l.b16 %v2255
        %v2304 = vunpack.c.l.b16 %v2256
        %v2305 = vunpack.c.l.b16 %v2257
        %v2306 = vunpack.c.l.b16 %v2258
        %v2307 = vunpack.c.l.b16 %v2259
        %v2308 = vunpack.c.l.b16 %v2260
        %v2309 = vunpack.c.l.b16 %v2261
        %v2310 = vunpack.c.l.b16 %v2262
        %vm2311 = vcmask 1041409
        %v2312 = vsel %vm2311, %v2305, %v2303
        %vm2313 = vcmask 1042434
        %v2314 = vsel %vm2313, %v2307, %v2312
        %vm2315 = vcmask 1043459
        %v2316 = vsel %vm2315, %v2309, %v2314
        %v2317 = vsel %vm2311, %v2306, %v2304
        %v2318 = vsel %vm2313, %v2308, %v2317
        %v2319 = vsel %vm2315, %v2310, %v2318
        %v2320 = vpack.c.b16 %v2316, %v2316
        %v2321 = vpack.c.b16 %v2319, %v2319
        %v2356 = vunpack.c.l.b16 %v2263
        %v2357 = vunpack.c.l.b16 %v2264
        %v2358 = vunpack.c.l.b16 %v2265
        %v2359 = vunpack.c.l.b16 %v2266
        %v2360 = vunpack.c.l.b16 %v2267
        %v2361 = vunpack.c.l.b16 %v2268
        %v2362 = vunpack.c.l.b16 %v2269
        %v2363 = vunpack.c.l.b16 %v2270
        %v2364 = vunpack.c.l.b16 %v2271
        %v2365 = vunpack.c.l.b16 %v2272
        %v2366 = vunpack.c.l.b16 %v2273
        %v2367 = vunpack.c.l.b16 %v2274
        %v2368 = vunpack.c.l.b16 %v2275
        %v2369 = vunpack.c.l.b16 %v2276
        %v2370 = vunpack.c.l.b16 %v2277
        %v2371 = vunpack.c.l.b16 %v2278
        %v2372 = vunpack.c.l.b16 %v2279
        %v2373 = vunpack.c.l.b16 %v2280
        %v2374 = vunpack.c.l.b16 %v2281
        %v2375 = vunpack.c.l.b16 %v2282
        %v2376 = vunpack.c.l.b16 %v2283
        %v2377 = vunpack.c.l.b16 %v2284
        %v2378 = vunpack.c.l.b16 %v2285
        %v2379 = vunpack.c.l.b16 %v2286
        %v2380 = vunpack.c.l.b16 %v2287
        %v2381 = vunpack.c.l.b16 %v2288
        %v2382 = vunpack.c.l.b16 %v2289
        %v2383 = vunpack.c.l.b16 %v2290
        %v2384 = vunpack.c.l.b16 %v2291
        %v2385 = vunpack.c.l.b16 %v2292
        %v2386 = vunpack.c.l.b16 %v2293
        %v2387 = vunpack.c.l.b16 %v2294
        %v2388 = vpack.c.b16 %v2357, %v2356
        %v2389 = vpack.c.b16 %v2359, %v2358
        %v2390 = vpack.c.b16 %v2361, %v2360
        %v2391 = vpack.c.b16 %v2363, %v2362
        %v2392 = vpack.c.b16 %v2365, %v2364
        %v2393 = vpack.c.b16 %v2367, %v2366
        %v2394 = vpack.c.b16 %v2369, %v2368
        %v2395 = vpack.c.b16 %v2371, %v2370
        %v2396 = vpack.c.b16 %v2373, %v2372
        %v2397 = vpack.c.b16 %v2375, %v2374
        %v2398 = vpack.c.b16 %v2377, %v2376
        %v2399 = vpack.c.b16 %v2379, %v2378
        %v2400 = vpack.c.b16 %v2381, %v2380
        %v2401 = vpack.c.b16 %v2383, %v2382
        %v2402 = vpack.c.b16 %v2385, %v2384
        %v2403 = vpack.c.b16 %v2387, %v2386
        %2420 = vmatprep.subr.bf16.mxu0 0
        %2421 = vmatpush1.bf16.msra.mxu0 %v2388
        %2422 = vmatprep.subr.bf16.mxu0 0
        %2423 = vmatpush1.bf16.msra.mxu0 %v2389
        %2424 = vmatprep.subr.bf16.mxu0 0
        %2425 = vmatpush1.bf16.msra.mxu0 %v2390
        %2426 = vmatprep.subr.bf16.mxu0 0
        %2427 = vmatpush1.bf16.msra.mxu0 %v2391
        %2428 = vmatprep.subr.bf16.mxu0 0
        %2429 = vmatpush1.bf16.msra.mxu0 %v2392
        %2430 = vmatprep.subr.bf16.mxu0 0
        %2431 = vmatpush1.bf16.msra.mxu0 %v2393
        %2432 = vmatprep.subr.bf16.mxu0 0
        %2433 = vmatpush1.bf16.msra.mxu0 %v2394
        %2434 = vmatprep.subr.bf16.mxu0 0
        %2435 = vmatpush1.bf16.msra.mxu0 %v2395
        %2436 = vmatprep.subr.bf16.mxu0 0
        %2437 = vmatpush1.bf16.msra.mxu0 %v2396
        %2438 = vmatprep.subr.bf16.mxu0 0
        %2439 = vmatpush1.bf16.msra.mxu0 %v2397
        %2440 = vmatprep.subr.bf16.mxu0 0
        %2441 = vmatpush1.bf16.msra.mxu0 %v2398
        %2442 = vmatprep.subr.bf16.mxu0 0
        %2443 = vmatpush1.bf16.msra.mxu0 %v2399
        %2444 = vmatprep.subr.bf16.mxu0 0
        %2445 = vmatpush1.bf16.msra.mxu0 %v2400
        %2446 = vmatprep.subr.bf16.mxu0 0
        %2447 = vmatpush1.bf16.msra.mxu0 %v2401
        %2448 = vmatprep.subr.bf16.mxu0 0
        %2449 = vmatpush1.bf16.msra.mxu0 %v2402
        %2450 = vmatprep.subr.bf16.mxu0 0
        %2451 = vmatpush1.bf16.msra.mxu0 %v2403
        %2452 = vmatprep.mubr.bf16.mxu0 %v2321
        %2453 = vmatmul.mubr.bf16.gmra.mrb[0].mxu0 %v2320
        %v2454 = vpop.f32.mrb[0].mxu0
        %v2455 = vadd.f32 0.0, %v2454
        %v2456 = vpop.f32.mrb[0].mxu0
        %v2457 = vpop.f32.mrb[0].mxu0
        %v2458 = vpop.f32.mrb[0].mxu0
        %2459 = vdwg.mxu0
        %v2460 = vld [vmem:[%s8 + $0x2] sm:$0x1]
        %v2461 = vlaneseq
        %v2462 = vshrl.u32 %v2461, 7
        %v2463 = vsub.s32 0, %v2462
        %v2464 = vrot.slane %v2460, %v2463
        %v2465 = vmul.f32 %v2455, %v2464
        %v2466 = vld [vmem:[%s8 + $0x3] sm:$0x1]
        %v2467 = vlaneseq
        %v2468 = vshrl.u32 %v2467, 7
        %v2469 = vsub.s32 0, %v2468
        %v2470 = vrot.slane %v2466, %v2469
        %v2471 = vadd.f32 %v2465, %v2470
        %v2472 = vadd.f32 %v2471, 3.0
        %v2473 = vmax.f32 %v2472, 0.0
        %v2474 = vmin.f32 %v2473, 6.0
        %v2475 = vmul.f32 %v2471, %v2474
        %v2476 = vmul.f32 %v2475, 0.16666667
        %v2477 = vpack.c.bf16 %v2476, %v2476
        %v2478 = vld [vmem:[#allocation9] sm:$0xff]
        %v2479 = vld [vmem:[#allocation9 + $0x8] sm:$0xff]
        %v2480 = vld [vmem:[#allocation9 + $0x10] sm:$0xff]
        %v2481 = vld [vmem:[#allocation9 + $0x18] sm:$0xff]
        %v2482 = vld [vmem:[#allocation9 + $0x20] sm:$0xff]
        %v2483 = vld [vmem:[#allocation9 + $0x28] sm:$0xff]
        %v2484 = vld [vmem:[#allocation9 + $0x30] sm:$0xff]
        %v2485 = vld [vmem:[#allocation9 + $0x38] sm:$0xff]
        %v2486 = vld [vmem:[#allocation9 + $0x40] sm:$0xff]
        %v2487 = vld [vmem:[#allocation9 + $0x48] sm:$0xff]
        %v2488 = vld [vmem:[#allocation9 + $0x50] sm:$0xff]
        %v2489 = vld [vmem:[#allocation9 + $0x58] sm:$0xff]
        %v2490 = vld [vmem:[#allocation9 + $0x60] sm:$0xff]
        %v2491 = vld [vmem:[#allocation9 + $0x68] sm:$0xff]
        %v2492 = vld [vmem:[#allocation9 + $0x70] sm:$0xff]
        %v2493 = vld [vmem:[#allocation9 + $0x78] sm:$0xff]
        %s2494 = scalar_lea.vmem %s7, 5
        %v2495 = vld [vmem:[%s2494] ss:$8 sm:$0x3]
        %v2497 = vlaneseq
        %v2498 = vshrl.u32 %v2497, 7
        %v2499 = vsub.s32 0, %v2498
        %v2500 = vrot.slane %v2495, %v2499
        %v2501 = vlaneseq
        %v2502 = vshrl.u32 %v2501, 7
        %v2503 = vsub.s32 1, %v2502
        %v2504 = vrot.slane %v2495, %v2503
        %v2523 = vunpack.c.l.b16 %v2478
        %v2524 = vunpack.c.h.b16 %v2478
        %v2525 = vunpack.c.l.b16 %v2479
        %v2526 = vunpack.c.h.b16 %v2479
        %v2527 = vunpack.c.l.b16 %v2480
        %v2528 = vunpack.c.h.b16 %v2480
        %v2529 = vunpack.c.l.b16 %v2481
        %v2530 = vunpack.c.h.b16 %v2481
        %v2531 = vunpack.c.l.b16 %v2482
        %v2532 = vunpack.c.h.b16 %v2482
        %v2533 = vunpack.c.l.b16 %v2483
        %v2534 = vunpack.c.h.b16 %v2483
        %v2535 = vunpack.c.l.b16 %v2484
        %v2536 = vunpack.c.h.b16 %v2484
        %v2537 = vunpack.c.l.b16 %v2485
        %v2538 = vunpack.c.h.b16 %v2485
        %v2539 = vunpack.c.l.b16 %v2486
        %v2540 = vunpack.c.h.b16 %v2486
        %v2541 = vunpack.c.l.b16 %v2487
        %v2542 = vunpack.c.h.b16 %v2487
        %v2543 = vunpack.c.l.b16 %v2488
        %v2544 = vunpack.c.h.b16 %v2488
        %v2545 = vunpack.c.l.b16 %v2489
        %v2546 = vunpack.c.h.b16 %v2489
        %v2547 = vunpack.c.l.b16 %v2490
        %v2548 = vunpack.c.h.b16 %v2490
        %v2549 = vunpack.c.l.b16 %v2491
        %v2550 = vunpack.c.h.b16 %v2491
        %v2551 = vunpack.c.l.b16 %v2492
        %v2552 = vunpack.c.h.b16 %v2492
        %v2553 = vunpack.c.l.b16 %v2493
        %v2554 = vunpack.c.h.b16 %v2493
        %v2555 = vpack.c.b16 %v2525, %v2523
        %v2556 = vpack.c.b16 %v2526, %v2524
        %v2557 = vpack.c.b16 %v2529, %v2527
        %v2558 = vpack.c.b16 %v2530, %v2528
        %v2559 = vpack.c.b16 %v2533, %v2531
        %v2560 = vpack.c.b16 %v2534, %v2532
        %v2561 = vpack.c.b16 %v2537, %v2535
        %v2562 = vpack.c.b16 %v2538, %v2536
        %v2563 = vpack.c.b16 %v2541, %v2539
        %v2564 = vpack.c.b16 %v2542, %v2540
        %v2565 = vpack.c.b16 %v2545, %v2543
        %v2566 = vpack.c.b16 %v2546, %v2544
        %v2567 = vpack.c.b16 %v2549, %v2547
        %v2568 = vpack.c.b16 %v2550, %v2548
        %v2569 = vpack.c.b16 %v2553, %v2551
        %v2570 = vpack.c.b16 %v2554, %v2552
        %2587 = vmatprep.subr.bf16.mxu0 %v2556
        %2588 = vmatpush1.bf16.msra.mxu0 %v2555
        %2589 = vmatprep.subr.bf16.mxu0 %v2558
        %2590 = vmatpush1.bf16.msra.mxu0 %v2557
        %2591 = vmatprep.subr.bf16.mxu0 %v2560
        %2592 = vmatpush1.bf16.msra.mxu0 %v2559
        %2593 = vmatprep.subr.bf16.mxu0 %v2562
        %2594 = vmatpush1.bf16.msra.mxu0 %v2561
        %2595 = vmatprep.subr.bf16.mxu0 %v2564
        %2596 = vmatpush1.bf16.msra.mxu0 %v2563
        %2597 = vmatprep.subr.bf16.mxu0 %v2566
        %2598 = vmatpush1.bf16.msra.mxu0 %v2565
        %2599 = vmatprep.subr.bf16.mxu0 %v2568
        %2600 = vmatpush1.bf16.msra.mxu0 %v2567
        %2601 = vmatprep.subr.bf16.mxu0 %v2570
        %2602 = vmatpush1.bf16.msra.mxu0 %v2569
        %2603 = vmatprep.subr.bf16.mxu0 0
        %2604 = vmatpush1.bf16.msra.mxu0 0
        %2605 = vmatprep.subr.bf16.mxu0 0
        %2606 = vmatpush1.bf16.msra.mxu0 0
        %2607 = vmatprep.subr.bf16.mxu0 0
        %2608 = vmatpush1.bf16.msra.mxu0 0
        %2609 = vmatprep.subr.bf16.mxu0 0
        %2610 = vmatpush1.bf16.msra.mxu0 0
        %2611 = vmatprep.subr.bf16.mxu0 0
        %2612 = vmatpush1.bf16.msra.mxu0 0
        %2613 = vmatprep.subr.bf16.mxu0 0
        %2614 = vmatpush1.bf16.msra.mxu0 0
        %2615 = vmatprep.subr.bf16.mxu0 0
        %2616 = vmatpush1.bf16.msra.mxu0 0
        %2617 = vmatprep.subr.bf16.mxu0 0
        %2618 = vmatpush1.bf16.msra.mxu0 0
        %2619 = vmatprep.mubr.bf16.mxu0 0
        %2620 = vmatmul.mubr.bf16.gmra.mrb[0].mxu0 %v2477
        %v2621 = vpop.f32.mrb[0].mxu0
        %v2622 = vadd.f32 %v2500, %v2621
        %v2623 = vpop.f32.mrb[0].mxu0
        %v2624 = vadd.f32 %v2504, %v2623
        %v2625 = vpop.f32.mrb[0].mxu0
        %v2626 = vpop.f32.mrb[0].mxu0
        %2627 = vdwg.mxu0
        %v2628 = vxor.u32 %v2622, 2147483648
        %v2629 = vxor.u32 %v2624, 2147483648
        %v2630 = vmul.f32 %v2628, 1.442695
        %v2631 = vpow.pop %v2630
        %v2632 = vmul.f32 %v2629, 1.442695
        %v2633 = vpow.pop %v2632
        %v2634 = vadd.f32 %v2631, 1.0
        %v2635 = vadd.f32 %v2633, 1.0
        %v2636 = vrcp.pop %v2634
        %v2637 = vmul.f32 1.0, %v2636
        %v2638 = vrcp.pop %v2635
        %v2639 = vmul.f32 1.0, %v2638
        %v2640 = vmul.f32 %v1707, %v2159
        %v2641 = vmul.f32 %v1708, %v2161
        %v2642 = vmul.f32 %v1709, %v2163
        %v2643 = vmul.f32 %v1710, %v2165
        %v2644 = vmul.f32 %v1711, %v2167
        %v2645 = vmul.f32 %v1712, %v2169
        %v2646 = vmul.f32 %v1713, %v2171
        %v2647 = vmul.f32 %v1714, %v2173
        %v2648 = vmul.f32 %v1715, %v2175
        %v2649 = vmul.f32 %v1716, %v2177
        %v2650 = vmul.f32 %v1717, %v2179
        %v2651 = vmul.f32 %v1718, %v2181
        %v2652 = vmul.f32 %v1719, %v2183
        %v2653 = vmul.f32 %v1720, %v2185
        %v2654 = vmul.f32 %v1721, %v2187
        %v2655 = vmul.f32 %v1722, %v2189
        %v2658 = vcombine.low %v2637, %v2639
        %v2660 = vunpack.c.l.s4 1966171168
        %v2661 = vunpack.c.0.s8 %v2660
        %v2662 = vlaneseq
        %v2663 = vshrl.u32 %v2662, 7
        %v2664 = vsub.s32 %v2661, %v2663
        %v2665 = vrot.slane %v2658, %v2664
        %v2666 = vcombine.high %v2665, %v2665
        %v2668 = vunpack.c.l.s4 1966171168
        %v2669 = vunpack.c.0.s8 %v2668
        %v2670 = vlaneseq
        %v2671 = vshrl.u32 %v2670, 7
        %v2672 = vsub.s32 %v2669, %v2671
        %v2673 = vrot.slane %v2665, %v2672
        %v2675 = vunpack.c.l.s4 1966171168
        %v2676 = vunpack.c.0.s8 %v2675
        %v2677 = vlaneseq
        %v2678 = vshrl.u32 %v2677, 7
        %v2679 = vsub.s32 %v2676, %v2678
        %v2680 = vrot.slane %v2666, %v2679
        %v2681 = vcombine.high %v2673, %v2673
        %v2682 = vcombine.high %v2680, %v2680
        %v2683 = vlaneseq
        %v2684 = vshrl.u32 %v2683, 7
        %v2685 = vsub.s32 0, %v2684
        %v2686 = vrot.slane %v2673, %v2685
        %v2687 = vlaneseq
        %v2688 = vshrl.u32 %v2687, 7
        %v2689 = vsub.s32 1, %v2688
        %v2690 = vrot.slane %v2673, %v2689
        %v2691 = vlaneseq
        %v2692 = vshrl.u32 %v2691, 7
        %v2693 = vsub.s32 0, %v2692
        %v2694 = vrot.slane %v2680, %v2693
        %v2695 = vlaneseq
        %v2696 = vshrl.u32 %v2695, 7
        %v2697 = vsub.s32 1, %v2696
        %v2698 = vrot.slane %v2680, %v2697
        %v2699 = vlaneseq
        %v2700 = vshrl.u32 %v2699, 7
        %v2701 = vsub.s32 0, %v2700
        %v2702 = vrot.slane %v2681, %v2701
        %v2703 = vlaneseq
        %v2704 = vshrl.u32 %v2703, 7
        %v2705 = vsub.s32 1, %v2704
        %v2706 = vrot.slane %v2681, %v2705
        %v2707 = vlaneseq
        %v2708 = vshrl.u32 %v2707, 7
        %v2709 = vsub.s32 0, %v2708
        %v2710 = vrot.slane %v2682, %v2709
        %v2711 = vlaneseq
        %v2712 = vshrl.u32 %v2711, 7
        %v2713 = vsub.s32 1, %v2712
        %v2714 = vrot.slane %v2682, %v2713
        %v2723 = vmul.f32 %v2640, %v2686
        %v2724 = vmul.f32 %v2641, %v2690
        %v2725 = vmul.f32 %v2642, %v2686
        %v2726 = vmul.f32 %v2643, %v2690
        %v2727 = vmul.f32 %v2644, %v2694
        %v2728 = vmul.f32 %v2645, %v2698
        %v2729 = vmul.f32 %v2646, %v2694
        %v2730 = vmul.f32 %v2647, %v2698
        %v2731 = vmul.f32 %v2648, %v2702
        %v2732 = vmul.f32 %v2649, %v2706
        %v2733 = vmul.f32 %v2650, %v2702
        %v2734 = vmul.f32 %v2651, %v2706
        %v2735 = vmul.f32 %v2652, %v2710
        %v2736 = vmul.f32 %v2653, %v2714
        %v2737 = vmul.f32 %v2654, %v2710
        %v2738 = vmul.f32 %v2655, %v2714
        %v2739 = vpack.c.bf16 %v2725, %v2723
        %v2740 = vpack.c.bf16 %v2726, %v2724
        %v2741 = vpack.c.bf16 %v2729, %v2727
        %v2742 = vpack.c.bf16 %v2730, %v2728
        %v2743 = vpack.c.bf16 %v2733, %v2731
        %v2744 = vpack.c.bf16 %v2734, %v2732
        %v2745 = vpack.c.bf16 %v2737, %v2735
        %v2746 = vpack.c.bf16 %v2738, %v2736
        %v2747 = vld [vmem:[#allocation6] sm:$0xf]
        %v2748 = vld [vmem:[#allocation6 + $0x4] sm:$0xf]
        %v2749 = vld [vmem:[#allocation6 + $0x8] sm:$0xf]
        %v2750 = vld [vmem:[#allocation6 + $0xc] sm:$0xf]
        %v2751 = vld [vmem:[#allocation6 + $0x10] sm:$0xf]
        %v2752 = vld [vmem:[#allocation6 + $0x14] sm:$0xf]
        %v2753 = vld [vmem:[#allocation6 + $0x18] sm:$0xf]
        %v2754 = vld [vmem:[#allocation6 + $0x1c] sm:$0xf]
        %v2755 = vld [vmem:[#allocation6 + $0x20] sm:$0xf]
        %v2756 = vld [vmem:[#allocation6 + $0x24] sm:$0xf]
        %v2757 = vld [vmem:[#allocation6 + $0x28] sm:$0xf]
        %v2758 = vld [vmem:[#allocation6 + $0x2c] sm:$0xf]
        %v2759 = vld [vmem:[#allocation6 + $0x30] sm:$0xf]
        %v2760 = vld [vmem:[#allocation6 + $0x34] sm:$0xf]
        %v2761 = vld [vmem:[#allocation6 + $0x38] sm:$0xf]
        %v2762 = vld [vmem:[#allocation6 + $0x3c] sm:$0xf]
        %v2763 = vld [vmem:[#allocation6 + $0x40] sm:$0xf]
        %v2764 = vld [vmem:[#allocation6 + $0x44] sm:$0xf]
        %v2765 = vld [vmem:[#allocation6 + $0x48] sm:$0xf]
        %v2766 = vld [vmem:[#allocation6 + $0x4c] sm:$0xf]
        %v2767 = vld [vmem:[#allocation6 + $0x50] sm:$0xf]
        %v2768 = vld [vmem:[#allocation6 + $0x54] sm:$0xf]
        %v2769 = vld [vmem:[#allocation6 + $0x58] sm:$0xf]
        %v2770 = vld [vmem:[#allocation6 + $0x5c] sm:$0xf]
        %v2771 = vld [vmem:[#allocation6 + $0x60] sm:$0xf]
        %v2772 = vld [vmem:[#allocation6 + $0x64] sm:$0xf]
        %v2773 = vld [vmem:[#allocation6 + $0x68] sm:$0xf]
        %v2774 = vld [vmem:[#allocation6 + $0x6c] sm:$0xf]
        %v2775 = vld [vmem:[#allocation6 + $0x70] sm:$0xf]
        %v2776 = vld [vmem:[#allocation6 + $0x74] sm:$0xf]
        %v2777 = vld [vmem:[#allocation6 + $0x78] sm:$0xf]
        %v2778 = vld [vmem:[#allocation6 + $0x7c] sm:$0xf]
        %v2811 = vunpack.c.l.b16 %v2747
        %v2812 = vunpack.c.l.b16 %v2748
        %v2813 = vunpack.c.l.b16 %v2749
        %v2814 = vunpack.c.l.b16 %v2750
        %v2815 = vunpack.c.l.b16 %v2751
        %v2816 = vunpack.c.l.b16 %v2752
        %v2817 = vunpack.c.l.b16 %v2753
        %v2818 = vunpack.c.l.b16 %v2754
        %v2819 = vunpack.c.l.b16 %v2755
        %v2820 = vunpack.c.l.b16 %v2756
        %v2821 = vunpack.c.l.b16 %v2757
        %v2822 = vunpack.c.l.b16 %v2758
        %v2823 = vunpack.c.l.b16 %v2759
        %v2824 = vunpack.c.l.b16 %v2760
        %v2825 = vunpack.c.l.b16 %v2761
        %v2826 = vunpack.c.l.b16 %v2762
        %v2827 = vunpack.c.l.b16 %v2763
        %v2828 = vunpack.c.l.b16 %v2764
        %v2829 = vunpack.c.l.b16 %v2765
        %v2830 = vunpack.c.l.b16 %v2766
        %v2831 = vunpack.c.l.b16 %v2767
        %v2832 = vunpack.c.l.b16 %v2768
        %v2833 = vunpack.c.l.b16 %v2769
        %v2834 = vunpack.c.l.b16 %v2770
        %v2835 = vunpack.c.l.b16 %v2771
        %v2836 = vunpack.c.l.b16 %v2772
        %v2837 = vunpack.c.l.b16 %v2773
        %v2838 = vunpack.c.l.b16 %v2774
        %v2839 = vunpack.c.l.b16 %v2775
        %v2840 = vunpack.c.l.b16 %v2776
        %v2841 = vunpack.c.l.b16 %v2777
        %v2842 = vunpack.c.l.b16 %v2778
        %v2843 = vpack.c.b16 %v2812, %v2811
        %v2844 = vpack.c.b16 %v2814, %v2813
        %v2845 = vpack.c.b16 %v2816, %v2815
        %v2846 = vpack.c.b16 %v2818, %v2817
        %v2847 = vpack.c.b16 %v2820, %v2819
        %v2848 = vpack.c.b16 %v2822, %v2821
        %v2849 = vpack.c.b16 %v2824, %v2823
        %v2850 = vpack.c.b16 %v2826, %v2825
        %v2851 = vpack.c.b16 %v2828, %v2827
        %v2852 = vpack.c.b16 %v2830, %v2829
        %v2853 = vpack.c.b16 %v2832, %v2831
        %v2854 = vpack.c.b16 %v2834, %v2833
        %v2855 = vpack.c.b16 %v2836, %v2835
        %v2856 = vpack.c.b16 %v2838, %v2837
        %v2857 = vpack.c.b16 %v2840, %v2839
        %v2858 = vpack.c.b16 %v2842, %v2841
        %2875 = vmatprep.subr.bf16.mxu0 0
        %2876 = vmatpush1.bf16.msra.mxu0 %v2843
        %2877 = vmatprep.subr.bf16.mxu0 0
        %2878 = vmatpush1.bf16.msra.mxu0 %v2844
        %2879 = vmatprep.subr.bf16.mxu0 0
        %2880 = vmatpush1.bf16.msra.mxu0 %v2845
        %2881 = vmatprep.subr.bf16.mxu0 0
        %2882 = vmatpush1.bf16.msra.mxu0 %v2846
        %2883 = vmatprep.subr.bf16.mxu0 0
        %2884 = vmatpush1.bf16.msra.mxu0 %v2847
        %2885 = vmatprep.subr.bf16.mxu0 0
        %2886 = vmatpush1.bf16.msra.mxu0 %v2848
        %2887 = vmatprep.subr.bf16.mxu0 0
        %2888 = vmatpush1.bf16.msra.mxu0 %v2849
        %2889 = vmatprep.subr.bf16.mxu0 0
        %2890 = vmatpush1.bf16.msra.mxu0 %v2850
        %2891 = vmatprep.subr.bf16.mxu0 0
        %2892 = vmatpush1.bf16.msra.mxu0 %v2851
        %2893 = vmatprep.subr.bf16.mxu0 0
        %2894 = vmatpush1.bf16.msra.mxu0 %v2852
        %2895 = vmatprep.subr.bf16.mxu0 0
        %2896 = vmatpush1.bf16.msra.mxu0 %v2853
        %2897 = vmatprep.subr.bf16.mxu0 0
        %2898 = vmatpush1.bf16.msra.mxu0 %v2854
        %2899 = vmatprep.subr.bf16.mxu0 0
        %2900 = vmatpush1.bf16.msra.mxu0 %v2855
        %2901 = vmatprep.subr.bf16.mxu0 0
        %2902 = vmatpush1.bf16.msra.mxu0 %v2856
        %2903 = vmatprep.subr.bf16.mxu0 0
        %2904 = vmatpush1.bf16.msra.mxu0 %v2857
        %2905 = vmatprep.subr.bf16.mxu0 0
        %2906 = vmatpush1.bf16.msra.mxu0 %v2858
        %2907 = vmatprep.mubr.bf16.mxu0 %v2740
        %2908 = vmatmul.mubr.bf16.gmra.mrb[0].mxu0 %v2739
        %v2909 = vpop.f32.mrb[0].mxu0
        %v2910 = vadd.f32 0.0, %v2909
        %v2911 = vpop.f32.mrb[0].mxu0
        %v2912 = vpop.f32.mrb[0].mxu0
        %v2913 = vadd.f32 0.0, %v2912
        %v2914 = vpop.f32.mrb[0].mxu0
        %2915 = vmatprep.mubr.bf16.mxu0 %v2742
        %2916 = vmatmul.mubr.bf16.gmra.mrb[0].mxu0 %v2741
        %v2917 = vpop.f32.mrb[0].mxu0
        %v2918 = vadd.f32 0.0, %v2917
        %v2919 = vpop.f32.mrb[0].mxu0
        %v2920 = vpop.f32.mrb[0].mxu0
        %v2921 = vadd.f32 0.0, %v2920
        %v2922 = vpop.f32.mrb[0].mxu0
        %2923 = vmatprep.mubr.bf16.mxu0 %v2744
        %2924 = vmatmul.mubr.bf16.gmra.mrb[0].mxu0 %v2743
        %v2925 = vpop.f32.mrb[0].mxu0
        %v2926 = vadd.f32 0.0, %v2925
        %v2927 = vpop.f32.mrb[0].mxu0
        %v2928 = vpop.f32.mrb[0].mxu0
        %v2929 = vadd.f32 0.0, %v2928
        %v2930 = vpop.f32.mrb[0].mxu0
        %2931 = vmatprep.mubr.bf16.mxu0 %v2746
        %2932 = vmatmul.mubr.bf16.gmra.mrb[0].mxu0 %v2745
        %v2933 = vpop.f32.mrb[0].mxu0
        %v2934 = vadd.f32 0.0, %v2933
        %v2935 = vpop.f32.mrb[0].mxu0
        %v2936 = vpop.f32.mrb[0].mxu0
        %v2937 = vadd.f32 0.0, %v2936
        %v2938 = vpop.f32.mrb[0].mxu0
        %2939 = vdwg.mxu0
        %v2940 = vld [vmem:[%s8] sm:$0x1]
        %v2941 = vlaneseq
        %v2942 = vshrl.u32 %v2941, 7
        %v2943 = vsub.s32 0, %v2942
        %v2944 = vrot.slane %v2940, %v2943
        %v2945 = vmul.f32 %v2910, %v2944
        %v2946 = vmul.f32 %v2913, %v2944
        %v2947 = vmul.f32 %v2918, %v2944
        %v2948 = vmul.f32 %v2921, %v2944
        %v2949 = vmul.f32 %v2926, %v2944
        %v2950 = vmul.f32 %v2929, %v2944
        %v2951 = vmul.f32 %v2934, %v2944
        %v2952 = vmul.f32 %v2937, %v2944
        %v2953 = vld [vmem:[%s8 + $0x1] sm:$0x1]
        %v2954 = vlaneseq
        %v2955 = vshrl.u32 %v2954, 7
        %v2956 = vsub.s32 0, %v2955
        %v2957 = vrot.slane %v2953, %v2956
        %v2958 = vadd.f32 %v2945, %v2957
        %v2959 = vadd.f32 %v2946, %v2957
        %v2960 = vadd.f32 %v2947, %v2957
        %v2961 = vadd.f32 %v2948, %v2957
        %v2962 = vadd.f32 %v2949, %v2957
        %v2963 = vadd.f32 %v2950, %v2957
        %v2964 = vadd.f32 %v2951, %v2957
        %v2965 = vadd.f32 %v2952, %v2957
        %v2966 = vadd.f32 %v2958, %v397
        %v2967 = vadd.f32 %v2959, %v398
        %v2968 = vadd.f32 %v2960, %v399
        %v2969 = vadd.f32 %v2961, %v400
        %v2970 = vadd.f32 %v2962, %v401
        %v2971 = vadd.f32 %v2963, %v402
        %v2972 = vadd.f32 %v2964, %v403
        %v2973 = vadd.f32 %v2965, %v404
        %2974 = vst [vmem:[%s387] sm:$0xff] %v2966
        %2975 = vst [vmem:[%s387 + $0x8] sm:$0xff] %v2967
        %2976 = vst [vmem:[%s387 + $0x10] sm:$0xff] %v2968
        %2977 = vst [vmem:[%s387 + $0x18] sm:$0xff] %v2969
        %2978 = vst [vmem:[%s387 + $0x20] sm:$0xff] %v2970
        %2979 = vst [vmem:[%s387 + $0x28] sm:$0xff] %v2971
        %2980 = vst [vmem:[%s387 + $0x30] sm:$0xff] %v2972
        %2981 = vst [vmem:[%s387 + $0x38] sm:$0xff] %v2973
        %s2982 = sand.u32 %s228, 1
        %s2983 = scalar_lea.sflag [#allocation5], %s2982
        %s2984 = sand.u32 %s228, 1
        %s2985 = smul.addr %s2984, 64
        %s2986 = scalar_lea.vmem [#allocation11], %s2985
        // Predicated region
        $region73: #{tpu_custom_call.1} parent=55 // pred_check
          %p2987 = pneg %p238
        $region74: #{tpu_custom_call.1} parent=55 // pred_check_branch
          %2989 = sbr.rel (%p2987) target = $region76
        $region75: #{tpu_custom_call.1} parent=55 // pred_region
          %s2990 = smul.u32 4, %s26
          %s2992 = ssub.s32 1024, 1024
          %2993 = vsyncadd %s2983, %s2992
          %s2994 = smul.addr %s2990, 2
          %s2995 = smul.addr %s2994, 128
          %s2996 = scalar_lea.hbm %s9, %s2995
          %s2997 = sshll.u32 %s2986, 4
          %s2998 = int_to_ptr.vmem [resolvable:$true] %s2997
          %3003 = dma.vmem_to_hbm [thread:$0]  %s2998, 1024, %s2996, %s2983, 128, 128, 8
        $region76: #{tpu_custom_call.1} parent=55 // pred_fallthru
          _
      $region56: #{tpu_custom_call.1} parent=5 // pred_fallthru
        _
      %p3004 = scmp.le.s32.totalorder 2, %s21
      // Predicated region
      $region77: #{tpu_custom_call.1} parent=5 // pred_check
        %p3005 = pneg %p3004
      $region78: #{tpu_custom_call.1} parent=5 // pred_check_branch
        %3007 = sbr.rel (%p3005) target = $region80
      $region79: #{tpu_custom_call.1} parent=5 // pred_region
        %s3008 = ssub.s32 %s21, 2
        // Predicated region
        $region81: #{tpu_custom_call.1} parent=79 // pred_check
          %p3009 = pneg %p244
        $region82: #{tpu_custom_call.1} parent=79 // pred_check_branch
          %3011 = sbr.rel (%p3009) target = $region84
        $region83: #{tpu_custom_call.1} parent=79 // pred_region
          %s3012 = sand.u32 %s229, 1
          %s3013 = scalar_lea.sflag [#allocation5], %s3012
          %s3014 = sand.u32 %s229, 1
          %s3015 = smul.addr %s3014, 64
          %s3016 = scalar_lea.vmem [#allocation11], %s3015
          %3017 = dma.done %s3013, 1024
        $region84: #{tpu_custom_call.1} parent=79 // pred_fallthru
          _
      $region80: #{tpu_custom_call.1} parent=5 // pred_fallthru
        _
    $region6: #{tpu_custom_call.1} parent=1 // loop_footer
      %s25 = sadd.s32 1, %s21
    $region7: #{tpu_custom_call.1} parent=1 // loop_footer_branch
      %20 = sbr.rel target = $region3
    $region8: #{tpu_custom_call.1} parent=1 // loop_exit
      _
    %3018 = vsyncpa [#allocation4], 1
    %s3019 = scalar_lea.sflag [#allocation4], 1
    %3020 = vsyncpa %s3019, 1
    %3021 = vsyncpa [#allocation7], 1
    %3022 = vsyncpa [#allocation10], 1
    %3023 = vsyncpa [#allocation5], 1
    %s3024 = scalar_lea.sflag [#allocation5], 1
    %3025 = vsyncpa %s3024, 1

// kernel: tpu_custom_call.1
$region0: #{tpu_custom_call.1}
  #allocation0 [shape = 'u32[]', space=smem, size = 0x4, offset = 0x4, fixed_abs, tag = 'smem constant byte address 0x4 - core index']
  #allocation1 [shape = 'u32[144,128]{1,0:T(1,128)}', space=vmem, size = 0x12000, scoped, tag = 'internal scratch']
  #allocation2 [shape = 'f32[4,18,256]{2,1,0:T(8,128)}', space=vmem, size = 0x18000, scoped, tag = 'scratch operand']
  %s0 = inlined_call_operand.vmem [shape: f32[8,16,128], index: 0, kind: input, shape index: {}]
  %s1 = inlined_call_operand.vmem [shape: bf16[128,256], index: 1, kind: input, shape index: {}]
  %s2 = inlined_call_operand.hbm [shape: f32[9,256], index: 2, kind: input, shape index: {}]
  %s3 = inlined_call_operand.hbm [shape: bf16[256,128], index: 3, kind: input, shape index: {}]
  %s4 = inlined_call_operand.vmem [shape: f32[256,8], index: 4, kind: input, shape index: {}]
  %s5 = inlined_call_operand.hbm [shape: bf16[256,128], index: 5, kind: input, shape index: {}]
  %s6 = inlined_call_operand.hbm [shape: bf16[128,256], index: 6, kind: input, shape index: {}]
  %s7 = inlined_call_operand.vmem [shape: f32[14,256], index: 7, kind: input, shape index: {}]
  %s8 = inlined_call_operand.vmem [shape: f32[6,128], index: 8, kind: input, shape index: {}]
  %s9 = inlined_call_operand.hbm [shape: f32[8,16,128], index: 9, kind: output, shape index: {}]
  %s10 = sld [smem:[#allocation0]]
  $region85: #{tpu_custom_call.1} parent=0
    _
  %s12 = ssub.s32 1, %s10
  %s13 = scalar_select 0, %s12, %s10
  $region1: #{tpu_custom_call.1} parent=0
    #allocation3 [shape = 'u8[16384]{0}', space=vmem, size = 0x4000, scoped, tag = 'input window, operand 2, single buffered']
    #allocation4 [shape = 's32[2]{0}', space=sflag, size = 0x8, scoped, tag = 'scoped memory for tpu_custom_call.1']
    #allocation5 [shape = 's32[2]{0}', space=sflag, size = 0x8, scoped, tag = 'scoped memory for tpu_custom_call.1']
    #allocation6 [shape = 'u8[65536]{0}', space=vmem, size = 0x10000, scoped, tag = 'input window, operand 3, single buffered']
    #allocation7 [shape = 's32[1]{0}', space=sflag, size = 0x4, scoped, tag = 'scoped memory for tpu_custom_call.1']
    #allocation8 [shape = 'u8[65536]{0}', space=vmem, size = 0x10000, scoped, tag = 'input window, operand 5, single buffered']
    #allocation9 [shape = 'u8[65536]{0}', space=vmem, size = 0x10000, scoped, tag = 'input window, operand 6, single buffered']
    #allocation10 [shape = 's32[1]{0}', space=sflag, size = 0x4, scoped, tag = 'scoped memory for tpu_custom_call.1']
    #allocation11 [shape = 'u8[65536]{0}', space=vmem, size = 0x10000, scoped, tag = 'output window, operand 0']
    %14 = vsyncpa [#allocation4], 0
    %15 = vsyncpa [#allocation7], 0
    %16 = vsyncpa [#allocation10], 0
    %17 = vsyncpa [#allocation5], 0
    %s18 = scalar_lea.sflag [#allocation5], 1
    %19 = vsyncpa %s18, 0
    loop: start=0, step=1, limit=4
    $region2: #{tpu_custom_call.1} parent=1 // loop_pre_header
      _
    $region3: #{tpu_custom_call.1} parent=1 // loop_header
      %s21 = sphi 0, %s25
      %p22 = scmp.ge.s32.totalorder %s21, 4
      %s31 = sphi 0, %s33
      %s34 = sphi 0, %s31
      %s35 = sphi 0, %s34
      %s51 = sphi 0, %s35
      %s55 = sphi 0, %s55
      %s57 = sphi 0, %s55
      %s58 = sphi 0, %s57
      %s72 = sphi 0, %s58
      %s76 = sphi 0, %s76
      %s78 = sphi 0, %s76
      %s79 = sphi 0, %s78
      %s93 = sphi 0, %s79
      %s97 = sphi 0, %s97
      %s99 = sphi 0, %s97
      %s100 = sphi 0, %s99
      %s114 = sphi 0, %s100
      %s118 = sphi 0, %s118
      %s120 = sphi 0, %s118
      %s121 = sphi 0, %s120
      %s135 = sphi 0, %s121
      %s139 = sphi 0, %s139
      %s141 = sphi 0, %s139
      %s142 = sphi 0, %s141
      %s156 = sphi 0, %s142
      %s160 = sphi 0, %s160
      %s162 = sphi 0, %s160
      %s163 = sphi 0, %s162
      %s177 = sphi 0, %s163
      %s181 = sphi 0, %s181
      %s183 = sphi 0, %s181
      %s184 = sphi 0, %s183
      %s198 = sphi 0, %s184
      %s202 = sphi 0, %s202
      %s204 = sphi 0, %s202
      %s205 = sphi 0, %s204
      %s219 = sphi 0, %s205
      %s225 = sphi 0, %s227
      %s228 = sphi 0, %s225
      %s229 = sphi 0, %s228
      %s245 = sphi 0, %s229
    $region4: #{tpu_custom_call.1} parent=1 // loop_header_branch
      %24 = sbr.rel (%p22) target = $region8
    $region5: #{tpu_custom_call.1} parent=1 // loop_body
      %s26 = ssub.s32 %s21, 1
      %s27 = ssub.s32 %s21, 2
      %s28 = sadd.s32 %s21, 1
      %s29 = ssub.s32 %s21, %s28
      %p30 = scmp.eq.s32.totalorder %s29, 0
      %s32 = sadd.s32 %s31, 1
      %s33 = scalar_select %p30, %s31, %s32
      %p36 = pneg %p30
      %p37 = scmp.eq.s32.totalorder %s21, 1
      %p38 = por %p36, %p37
      %p39 = scmp.ne.s32.totalorder %s31, %s34
      %p40 = scmp.eq.s32.totalorder %s21, 0
      %p41 = por %p39, %p40
      %p42 = scmp.ne.s32.totalorder %s31, %s34
      %p43 = scmp.eq.s32.totalorder %s26, 1
      %p44 = por %p42, %p43
      %p45 = scmp.ne.s32.totalorder %s34, %s35
      %p46 = scmp.eq.s32.totalorder %s26, 0
      %p47 = por %p45, %p46
      %p48 = scmp.ne.s32.totalorder %s34, %s35
      %p49 = scmp.eq.s32.totalorder %s27, 1
      %p50 = por %p48, %p49
      %p52 = scmp.ne.s32.totalorder %s35, %s51
      %p53 = scmp.eq.s32.totalorder %s27, 0
      %p54 = por %p52, %p53
      %s56 = sadd.s32 %s55, 1
      %p59 = scmp.eq.s32.totalorder %s21, 1
      %p60 = scmp.ne.s32.totalorder %s55, %s57
      %p61 = scmp.eq.s32.totalorder %s21, 0
      %p62 = por %p60, %p61
      %p63 = scmp.ne.s32.totalorder %s55, %s57
      %p64 = scmp.eq.s32.totalorder %s26, 1
      %p65 = por %p63, %p64
      %p66 = scmp.ne.s32.totalorder %s57, %s58
      %p67 = scmp.eq.s32.totalorder %s26, 0
      %p68 = por %p66, %p67
      %p69 = scmp.ne.s32.totalorder %s57, %s58
      %p70 = scmp.eq.s32.totalorder %s27, 1
      %p71 = por %p69, %p70
      %p73 = scmp.ne.s32.totalorder %s58, %s72
      %p74 = scmp.eq.s32.totalorder %s27, 0
      %p75 = por %p73, %p74
      %s77 = sadd.s32 %s76, 1
      %p80 = scmp.eq.s32.totalorder %s21, 1
      %p81 = scmp.ne.s32.totalorder %s76, %s78
      %p82 = scmp.eq.s32.totalorder %s21, 0
      %p83 = por %p81, %p82
      %p84 = scmp.ne.s32.totalorder %s76, %s78
      %p85 = scmp.eq.s32.totalorder %s26, 1
      %p86 = por %p84, %p85
      %p87 = scmp.ne.s32.totalorder %s78, %s79
      %p88 = scmp.eq.s32.totalorder %s26, 0
      %p89 = por %p87, %p88
      %p90 = scmp.ne.s32.totalorder %s78, %s79
      %p91 = scmp.eq.s32.totalorder %s27, 1
      %p92 = por %p90, %p91
      %p94 = scmp.ne.s32.totalorder %s79, %s93
      %p95 = scmp.eq.s32.totalorder %s27, 0
      %p96 = por %p94, %p95
      %s98 = sadd.s32 %s97, 1
      %p101 = scmp.eq.s32.totalorder %s21, 1
      %p102 = scmp.ne.s32.totalorder %s97, %s99
      %p103 = scmp.eq.s32.totalorder %s21, 0
      %p104 = por %p102, %p103
      %p105 = scmp.ne.s32.totalorder %s97, %s99
      %p106 = scmp.eq.s32.totalorder %s26, 1
      %p107 = por %p105, %p106
      %p108 = scmp.ne.s32.totalorder %s99, %s100
      %p109 = scmp.eq.s32.totalorder %s26, 0
      %p110 = por %p108, %p109
      %p111 = scmp.ne.s32.totalorder %s99, %s100
      %p112 = scmp.eq.s32.totalorder %s27, 1
      %p113 = por %p111, %p112
      %p115 = scmp.ne.s32.totalorder %s100, %s114
      %p116 = scmp.eq.s32.totalorder %s27, 0
      %p117 = por %p115, %p116
      %s119 = sadd.s32 %s118, 1
      %p122 = scmp.eq.s32.totalorder %s21, 1
      %p123 = scmp.ne.s32.totalorder %s118, %s120
      %p124 = scmp.eq.s32.totalorder %s21, 0
      %p125 = por %p123, %p124
      %p126 = scmp.ne.s32.totalorder %s118, %s120
      %p127 = scmp.eq.s32.totalorder %s26, 1
      %p128 = por %p126, %p127
      %p129 = scmp.ne.s32.totalorder %s120, %s121
      %p130 = scmp.eq.s32.totalorder %s26, 0
      %p131 = por %p129, %p130
      %p132 = scmp.ne.s32.totalorder %s120, %s121
      %p133 = scmp.eq.s32.totalorder %s27, 1
      %p134 = por %p132, %p133
      %p136 = scmp.ne.s32.totalorder %s121, %s135
      %p137 = scmp.eq.s32.totalorder %s27, 0
      %p138 = por %p136, %p137
      %s140 = sadd.s32 %s139, 1
      %p143 = scmp.eq.s32.totalorder %s21, 1
      %p144 = scmp.ne.s32.totalorder %s139, %s141
      %p145 = scmp.eq.s32.totalorder %s21, 0
      %p146 = por %p144, %p145
      %p147 = scmp.ne.s32.totalorder %s139, %s141
      %p148 = scmp.eq.s32.totalorder %s26, 1
      %p149 = por %p147, %p148
      %p150 = scmp.ne.s32.totalorder %s141, %s142
      %p151 = scmp.eq.s32.totalorder %s26, 0
      %p152 = por %p150, %p151
      %p153 = scmp.ne.s32.totalorder %s141, %s142
      %p154 = scmp.eq.s32.totalorder %s27, 1
      %p155 = por %p153, %p154
      %p157 = scmp.ne.s32.totalorder %s142, %s156
      %p158 = scmp.eq.s32.totalorder %s27, 0
      %p159 = por %p157, %p158
      %s161 = sadd.s32 %s160, 1
      %p164 = scmp.eq.s32.totalorder %s21, 1
      %p165 = scmp.ne.s32.totalorder %s160, %s162
      %p166 = scmp.eq.s32.totalorder %s21, 0
      %p167 = por %p165, %p166
      %p168 = scmp.ne.s32.totalorder %s160, %s162
      %p169 = scmp.eq.s32.totalorder %s26, 1
      %p170 = por %p168, %p169
      %p171 = scmp.ne.s32.totalorder %s162, %s163
      %p172 = scmp.eq.s32.totalorder %s26, 0
      %p173 = por %p171, %p172
      %p174 = scmp.ne.s32.totalorder %s162, %s163
      %p175 = scmp.eq.s32.totalorder %s27, 1
      %p176 = por %p174, %p175
      %p178 = scmp.ne.s32.totalorder %s163, %s177
      %p179 = scmp.eq.s32.totalorder %s27, 0
      %p180 = por %p178, %p179
      %s182 = sadd.s32 %s181, 1
      %p185 = scmp.eq.s32.totalorder %s21, 1
      %p186 = scmp.ne.s32.totalorder %s181, %s183
      %p187 = scmp.eq.s32.totalorder %s21, 0
      %p188 = por %p186, %p187
      %p189 = scmp.ne.s32.totalorder %s181, %s183
      %p190 = scmp.eq.s32.totalorder %s26, 1
      %p191 = por %p189, %p190
      %p192 = scmp.ne.s32.totalorder %s183, %s184
      %p193 = scmp.eq.s32.totalorder %s26, 0
      %p194 = por %p192, %p193
      %p195 = scmp.ne.s32.totalorder %s183, %s184
      %p196 = scmp.eq.s32.totalorder %s27, 1
      %p197 = por %p195, %p196
      %p199 = scmp.ne.s32.totalorder %s184, %s198
      %p200 = scmp.eq.s32.totalorder %s27, 0
      %p201 = por %p199, %p200
      %s203 = sadd.s32 %s202, 1
      %p206 = scmp.eq.s32.totalorder %s21, 1
      %p207 = scmp.ne.s32.totalorder %s202, %s204
      %p208 = scmp.eq.s32.totalorder %s21, 0
      %p209 = por %p207, %p208
      %p210 = scmp.ne.s32.totalorder %s202, %s204
      %p211 = scmp.eq.s32.totalorder %s26, 1
      %p212 = por %p210, %p211
      %p213 = scmp.ne.s32.totalorder %s204, %s205
      %p214 = scmp.eq.s32.totalorder %s26, 0
      %p215 = por %p213, %p214
      %p216 = scmp.ne.s32.totalorder %s204, %s205
      %p217 = scmp.eq.s32.totalorder %s27, 1
      %p218 = por %p216, %p217
      %p220 = scmp.ne.s32.totalorder %s205, %s219
      %p221 = scmp.eq.s32.totalorder %s27, 0
      %p222 = por %p220, %p221
      %s223 = ssub.s32 %s21, %s28
      %p224 = scmp.eq.s32.totalorder %s223, 0
      %s226 = sadd.s32 %s225, 1
      %s227 = scalar_select %p224, %s225, %s226
      %p230 = pneg %p224
      %p231 = scmp.eq.s32.totalorder %s21, 1
      %p232 = por %p230, %p231
      %p233 = scmp.ne.s32.totalorder %s225, %s228
      %p234 = scmp.eq.s32.totalorder %s21, 0
      %p235 = por %p233, %p234
      %p236 = scmp.ne.s32.totalorder %s225, %s228
      %p237 = scmp.eq.s32.totalorder %s26, 1
      %p238 = por %p236, %p237
      %p239 = scmp.ne.s32.totalorder %s228, %s229
      %p240 = scmp.eq.s32.totalorder %s26, 0
      %p241 = por %p239, %p240
      %p242 = scmp.ne.s32.totalorder %s228, %s229
      %p243 = scmp.eq.s32.totalorder %s27, 1
      %p244 = por %p242, %p243
      %p246 = scmp.ne.s32.totalorder %s229, %s245
      %p247 = scmp.eq.s32.totalorder %s27, 0
      %p248 = por %p246, %p247
      %p249 = scmp.le.s32.totalorder 1, %s21
      %p250 = scmp.lt.s32.totalorder %s21, 3
      %p251 = pnand %p249, %p250
      %p252 = pneg %p251
      // Predicated region
      $region9: #{tpu_custom_call.1} parent=5 // pred_check
        _
      $region10: #{tpu_custom_call.1} parent=5 // pred_check_branch
        %254 = sbr.rel (%p251) target = $region12
      $region11: #{tpu_custom_call.1} parent=5 // pred_region
        %s255 = ssub.s32 %s21, 1
        // Predicated region
        $region13: #{tpu_custom_call.1} parent=11 // pred_check
          %p256 = pneg %p68
        $region14: #{tpu_custom_call.1} parent=11 // pred_check_branch
          %258 = sbr.rel (%p256) target = $region16
        $region15: #{tpu_custom_call.1} parent=11 // pred_region
          _
        $region16: #{tpu_custom_call.1} parent=11 // pred_fallthru
          _
        // Predicated region
        $region17: #{tpu_custom_call.1} parent=11 // pred_check
          %p259 = pneg %p89
        $region18: #{tpu_custom_call.1} parent=11 // pred_check_branch
          %261 = sbr.rel (%p259) target = $region20
        $region19: #{tpu_custom_call.1} parent=11 // pred_region
          %s263 = ssub.s32 512, 512
          %264 = vsyncadd [#allocation4], %s263
          %s265 = sshll.u32 [#allocation3], 4
          %s266 = int_to_ptr.vmem [resolvable:$true] %s265
          %271 = dma.hbm_to_vmem [thread:$0]  %s2, 512, %s266, [#allocation4], 256, 256, 16
        $region20: #{tpu_custom_call.1} parent=11 // pred_fallthru
          _
        // Predicated region
        $region21: #{tpu_custom_call.1} parent=11 // pred_check
          %p272 = pneg %p110
        $region22: #{tpu_custom_call.1} parent=11 // pred_check_branch
          %274 = sbr.rel (%p272) target = $region24
        $region23: #{tpu_custom_call.1} parent=11 // pred_region
          %s276 = ssub.s32 2048, 2048
          %277 = vsyncadd [#allocation7], %s276
          %s278 = sshll.u32 [#allocation6], 4
          %s279 = int_to_ptr.vmem [resolvable:$true] %s278
          %284 = dma.hbm_to_vmem [thread:$0]  %s3, 2048, %s279, [#allocation7], 64, 64, 4
        $region24: #{tpu_custom_call.1} parent=11 // pred_fallthru
          _
        // Predicated region
        $region25: #{tpu_custom_call.1} parent=11 // pred_check
          %p285 = pneg %p131
        $region26: #{tpu_custom_call.1} parent=11 // pred_check_branch
          %287 = sbr.rel (%p285) target = $region28
        $region27: #{tpu_custom_call.1} parent=11 // pred_region
          _
        $region28: #{tpu_custom_call.1} parent=11 // pred_fallthru
          _
        // Predicated region
        $region29: #{tpu_custom_call.1} parent=11 // pred_check
          %p288 = pneg %p152
        $region30: #{tpu_custom_call.1} parent=11 // pred_check_branch
          %290 = sbr.rel (%p288) target = $region32
        $region31: #{tpu_custom_call.1} parent=11 // pred_region
          %s292 = ssub.s32 2048, 2048
          %293 = vsyncadd [#allocation7], %s292
          %s294 = sshll.u32 [#allocation8], 4
          %s295 = int_to_ptr.vmem [resolvable:$true] %s294
          %300 = dma.hbm_to_vmem [thread:$0]  %s5, 2048, %s295, [#allocation7], 64, 64, 4
        $region32: #{tpu_custom_call.1} parent=11 // pred_fallthru
          _
        // Predicated region
        $region33: #{tpu_custom_call.1} parent=11 // pred_check
          %p301 = pneg %p173
        $region34: #{tpu_custom_call.1} parent=11 // pred_check_branch
          %303 = sbr.rel (%p301) target = $region36
        $region35: #{tpu_custom_call.1} parent=11 // pred_region
          %s305 = ssub.s32 2048, 2048
          %306 = vsyncadd [#allocation10], %s305
          %s307 = sshll.u32 [#allocation9], 4
          %s308 = int_to_ptr.vmem [resolvable:$true] %s307
          %313 = dma.hbm_to_vmem [thread:$0]  %s6, 2048, %s308, [#allocation10], 128, 128, 8
        $region36: #{tpu_custom_call.1} parent=11 // pred_fallthru
          _
        // Predicated region
        $region37: #{tpu_custom_call.1} parent=11 // pred_check
          %p314 = pneg %p194
        $region38: #{tpu_custom_call.1} parent=11 // pred_check_branch
          %316 = sbr.rel (%p314) target = $region40
        $region39: #{tpu_custom_call.1} parent=11 // pred_region
          _
        $region40: #{tpu_custom_call.1} parent=11 // pred_fallthru
          _
        // Predicated region
        $region41: #{tpu_custom_call.1} parent=11 // pred_check
          %p317 = pneg %p215
        $region42: #{tpu_custom_call.1} parent=11 // pred_check_branch
          %319 = sbr.rel (%p317) target = $region44
        $region43: #{tpu_custom_call.1} parent=11 // pred_region
          _
        $region44: #{tpu_custom_call.1} parent=11 // pred_fallthru
          _
      $region12: #{tpu_custom_call.1} parent=5 // pred_fallthru
        _
      %p320 = scmp.lt.s32.totalorder %s21, 2
      // Predicated region
      $region45: #{tpu_custom_call.1} parent=5 // pred_check
        %p321 = pneg %p320
      $region46: #{tpu_custom_call.1} parent=5 // pred_check_branch
        %323 = sbr.rel (%p321) target = $region48
      $region47: #{tpu_custom_call.1} parent=5 // pred_region
        // Predicated region
        $region49: #{tpu_custom_call.1} parent=47 // pred_check
          %p324 = pneg %p41
        $region50: #{tpu_custom_call.1} parent=47 // pred_check_branch
          %326 = sbr.rel (%p324) target = $region52
        $region51: #{tpu_custom_call.1} parent=47 // pred_region
          %s327 = smul.u32 4, %s21
          %p328 = scmp.lt.s32.totalorder %s327, 7
          %s329 = scalar_select %p328, %s327, 7
          %s330 = smul.addr %s329, 2
          %s331 = smul.addr %s330, 8
          %s332 = scalar_lea.vmem %s0, %s331
          %s333 = smul.u32 4, %s21
        $region52: #{tpu_custom_call.1} parent=47 // pred_fallthru
          _
      $region48: #{tpu_custom_call.1} parent=5 // pred_fallthru
        _
      %p334 = scmp.le.s32.totalorder 1, %s21
      %p335 = scmp.lt.s32.totalorder %s21, 3
      %p336 = pnand %p334, %p335
      %p337 = pneg %p336
      // Predicated region
      $region53: #{tpu_custom_call.1} parent=5 // pred_check
        _
      $region54: #{tpu_custom_call.1} parent=5 // pred_check_branch
        %339 = sbr.rel (%p336) target = $region56
      $region55: #{tpu_custom_call.1} parent=5 // pred_region
        %s340 = ssub.s32 %s21, 1
        // Predicated region
        $region57: #{tpu_custom_call.1} parent=55 // pred_check
          %p341 = pneg %p89
        $region58: #{tpu_custom_call.1} parent=55 // pred_check_branch
          %343 = sbr.rel (%p341) target = $region60
        $region59: #{tpu_custom_call.1} parent=55 // pred_region
          %344 = dma.done [#allocation4], 512
        $region60: #{tpu_custom_call.1} parent=55 // pred_fallthru
          _
        // Predicated region
        $region61: #{tpu_custom_call.1} parent=55 // pred_check
          %p345 = pneg %p110
        $region62: #{tpu_custom_call.1} parent=55 // pred_check_branch
          %347 = sbr.rel (%p345) target = $region64
        $region63: #{tpu_custom_call.1} parent=55 // pred_region
          %348 = dma.done [#allocation7], 2048
        $region64: #{tpu_custom_call.1} parent=55 // pred_fallthru
          _
        // Predicated region
        $region65: #{tpu_custom_call.1} parent=55 // pred_check
          %p349 = pneg %p152
        $region66: #{tpu_custom_call.1} parent=55 // pred_check_branch
          %351 = sbr.rel (%p349) target = $region68
        $region67: #{tpu_custom_call.1} parent=55 // pred_region
          %352 = dma.done [#allocation7], 2048
        $region68: #{tpu_custom_call.1} parent=55 // pred_fallthru
          _
        // Predicated region
        $region69: #{tpu_custom_call.1} parent=55 // pred_check
          %p353 = pneg %p173
        $region70: #{tpu_custom_call.1} parent=55 // pred_check_branch
          %355 = sbr.rel (%p353) target = $region72
        $region71: #{tpu_custom_call.1} parent=55 // pred_region
          %356 = dma.done [#allocation10], 2048
        $region72: #{tpu_custom_call.1} parent=55 // pred_fallthru
          _
        %s357 = smul.u32 4, %s26
        %p358 = scmp.lt.s32.totalorder %s357, 7
        %s359 = scalar_select %p358, %s357, 7
        %s360 = smul.addr %s359, 2
        %s361 = smul.addr %s360, 8
        %s362 = scalar_lea.vmem %s0, %s361
        %p363 = pneg %p47
        %p364 = pneg %p44
        %p365 = pneg %p68
        %p366 = pneg %p65
        %p367 = pneg %p89
        %p368 = pneg %p86
        %p369 = pneg %p110
        %p370 = pneg %p107
        %p371 = pneg %p131
        %p372 = pneg %p128
        %p373 = pneg %p152
        %p374 = pneg %p149
        %p375 = pneg %p173
        %p376 = pneg %p170
        %p377 = pneg %p194
        %p378 = pneg %p191
        %p379 = pneg %p215
        %p380 = pneg %p212
        %p381 = pneg %p241
        %p382 = pneg %p238
        %s383 = sand.u32 %s228, 1
        %s384 = scalar_lea.sflag [#allocation5], %s383
        %s385 = sand.u32 %s228, 1
        %s386 = smul.addr %s385, 64
        %s387 = scalar_lea.vmem [#allocation11], %s386
        %s388 = smul.u32 4, %s26
        %p389 = scmp.lt.s32.totalorder %s388, 7
        %s390 = scalar_select %p389, %s388, 7
        %s391 = smul.addr %s390, 2
        %s392 = smul.addr %s391, 8
        %s393 = scalar_lea.vmem %s0, %s392
        %s394 = smul.u32 4, %s26
        %s395 = smul.u32 4, %s26
        %v397 = vld [vmem:[%s393] sm:$0xff]
        %v398 = vld [vmem:[%s393 + $0x8] sm:$0xff]
        %v399 = vld [vmem:[%s393 + $0x10] sm:$0xff]
        %v400 = vld [vmem:[%s393 + $0x18] sm:$0xff]
        %v401 = vld [vmem:[%s393 + $0x20] sm:$0xff]
        %v402 = vld [vmem:[%s393 + $0x28] sm:$0xff]
        %v403 = vld [vmem:[%s393 + $0x30] sm:$0xff]
        %v404 = vld [vmem:[%s393 + $0x38] sm:$0xff]
        %v405 = vpack.c.bf16 %v398, %v397
        %v406 = vpack.c.bf16 %v400, %v399
        %v407 = vpack.c.bf16 %v402, %v401
        %v408 = vpack.c.bf16 %v404, %v403
        %v409 = vld [vmem:[%s1] sm:$0xff]
        %v410 = vld [vmem:[%s1 + $0x8] sm:$0xff]
        %v411 = vld [vmem:[%s1 + $0x10] sm:$0xff]
        %v412 = vld [vmem:[%s1 + $0x18] sm:$0xff]
        %v413 = vld [vmem:[%s1 + $0x20] sm:$0xff]
        %v414 = vld [vmem:[%s1 + $0x28] sm:$0xff]
        %v415 = vld [vmem:[%s1 + $0x30] sm:$0xff]
        %v416 = vld [vmem:[%s1 + $0x38] sm:$0xff]
        %v417 = vld [vmem:[%s1 + $0x40] sm:$0xff]
        %v418 = vld [vmem:[%s1 + $0x48] sm:$0xff]
        %v419 = vld [vmem:[%s1 + $0x50] sm:$0xff]
        %v420 = vld [vmem:[%s1 + $0x58] sm:$0xff]
        %v421 = vld [vmem:[%s1 + $0x60] sm:$0xff]
        %v422 = vld [vmem:[%s1 + $0x68] sm:$0xff]
        %v423 = vld [vmem:[%s1 + $0x70] sm:$0xff]
        %v424 = vld [vmem:[%s1 + $0x78] sm:$0xff]
        %v441 = vunpack.c.l.b16 %v409
        %v442 = vunpack.c.h.b16 %v409
        %v443 = vunpack.c.l.b16 %v410
        %v444 = vunpack.c.h.b16 %v410
        %v445 = vunpack.c.l.b16 %v411
        %v446 = vunpack.c.h.b16 %v411
        %v447 = vunpack.c.l.b16 %v412
        %v448 = vunpack.c.h.b16 %v412
        %v449 = vunpack.c.l.b16 %v413
        %v450 = vunpack.c.h.b16 %v413
        %v451 = vunpack.c.l.b16 %v414
        %v452 = vunpack.c.h.b16 %v414
        %v453 = vunpack.c.l.b16 %v415
        %v454 = vunpack.c.h.b16 %v415
        %v455 = vunpack.c.l.b16 %v416
        %v456 = vunpack.c.h.b16 %v416
        %v457 = vunpack.c.l.b16 %v417
        %v458 = vunpack.c.h.b16 %v417
        %v459 = vunpack.c.l.b16 %v418
        %v460 = vunpack.c.h.b16 %v418
        %v461 = vunpack.c.l.b16 %v419
        %v462 = vunpack.c.h.b16 %v419
        %v463 = vunpack.c.l.b16 %v420
        %v464 = vunpack.c.h.b16 %v420
        %v465 = vunpack.c.l.b16 %v421
        %v466 = vunpack.c.h.b16 %v421
        %v467 = vunpack.c.l.b16 %v422
        %v468 = vunpack.c.h.b16 %v422
        %v469 = vunpack.c.l.b16 %v423
        %v470 = vunpack.c.h.b16 %v423
        %v471 = vunpack.c.l.b16 %v424
        %v472 = vunpack.c.h.b16 %v424
        %v473 = vpack.c.b16 %v443, %v441
        %v474 = vpack.c.b16 %v444, %v442
        %v475 = vpack.c.b16 %v447, %v445
        %v476 = vpack.c.b16 %v448, %v446
        %v477 = vpack.c.b16 %v451, %v449
        %v478 = vpack.c.b16 %v452, %v450
        %v479 = vpack.c.b16 %v455, %v453
        %v480 = vpack.c.b16 %v456, %v454
        %v481 = vpack.c.b16 %v459, %v457
        %v482 = vpack.c.b16 %v460, %v458
        %v483 = vpack.c.b16 %v463, %v461
        %v484 = vpack.c.b16 %v464, %v462
        %v485 = vpack.c.b16 %v467, %v465
        %v486 = vpack.c.b16 %v468, %v466
        %v487 = vpack.c.b16 %v471, %v469
        %v488 = vpack.c.b16 %v472, %v470
        %505 = vmatprep.subr.bf16.mxu0 %v474
        %506 = vmatpush1.bf16.msra.mxu0 %v473
        %507 = vmatprep.subr.bf16.mxu0 %v476
        %508 = vmatpush1.bf16.msra.mxu0 %v475
        %509 = vmatprep.subr.bf16.mxu0 %v478
        %510 = vmatpush1.bf16.msra.mxu0 %v477
        %511 = vmatprep.subr.bf16.mxu0 %v480
        %512 = vmatpush1.bf16.msra.mxu0 %v479
        %513 = vmatprep.subr.bf16.mxu0 %v482
        %514 = vmatpush1.bf16.msra.mxu0 %v481
        %515 = vmatprep.subr.bf16.mxu0 %v484
        %516 = vmatpush1.bf16.msra.mxu0 %v483
        %517 = vmatprep.subr.bf16.mxu0 %v486
        %518 = vmatpush1.bf16.msra.mxu0 %v485
        %519 = vmatprep.subr.bf16.mxu0 %v488
        %520 = vmatpush1.bf16.msra.mxu0 %v487
        %521 = vmatprep.subr.bf16.mxu0 0
        %522 = vmatpush1.bf16.msra.mxu0 0
        %523 = vmatprep.subr.bf16.mxu0 0
        %524 = vmatpush1.bf16.msra.mxu0 0
        %525 = vmatprep.subr.bf16.mxu0 0
        %526 = vmatpush1.bf16.msra.mxu0 0
        %527 = vmatprep.subr.bf16.mxu0 0
        %528 = vmatpush1.bf16.msra.mxu0 0
        %529 = vmatprep.subr.bf16.mxu0 0
        %530 = vmatpush1.bf16.msra.mxu0 0
        %531 = vmatprep.subr.bf16.mxu0 0
        %532 = vmatpush1.bf16.msra.mxu0 0
        %533 = vmatprep.subr.bf16.mxu0 0
        %534 = vmatpush1.bf16.msra.mxu0 0
        %535 = vmatprep.subr.bf16.mxu0 0
        %536 = vmatpush1.bf16.msra.mxu0 0
        %537 = vmatprep.mubr.bf16.mxu0 0
        %538 = vmatmul.mubr.bf16.gmra.mrb[0].mxu0 %v405
        %v539 = vpop.f32.mrb[0].mxu0
        %v540 = vadd.f32 0.0, %v539
        %v541 = vpop.f32.mrb[0].mxu0
        %v542 = vadd.f32 0.0, %v541
        %v543 = vpop.f32.mrb[0].mxu0
        %v544 = vadd.f32 0.0, %v543
        %v545 = vpop.f32.mrb[0].mxu0
        %v546 = vadd.f32 0.0, %v545
        %547 = vmatprep.mubr.bf16.mxu0 0
        %548 = vmatmul.mubr.bf16.gmra.mrb[0].mxu0 %v406
        %v549 = vpop.f32.mrb[0].mxu0
        %v550 = vadd.f32 0.0, %v549
        %v551 = vpop.f32.mrb[0].mxu0
        %v552 = vadd.f32 0.0, %v551
        %v553 = vpop.f32.mrb[0].mxu0
        %v554 = vadd.f32 0.0, %v553
        %v555 = vpop.f32.mrb[0].mxu0
        %v556 = vadd.f32 0.0, %v555
        %557 = vmatprep.mubr.bf16.mxu0 0
        %558 = vmatmul.mubr.bf16.gmra.mrb[0].mxu0 %v407
        %v559 = vpop.f32.mrb[0].mxu0
        %v560 = vadd.f32 0.0, %v559
        %v561 = vpop.f32.mrb[0].mxu0
        %v562 = vadd.f32 0.0, %v561
        %v563 = vpop.f32.mrb[0].mxu0
        %v564 = vadd.f32 0.0, %v563
        %v565 = vpop.f32.mrb[0].mxu0
        %v566 = vadd.f32 0.0, %v565
        %567 = vmatprep.mubr.bf16.mxu0 0
        %568 = vmatmul.mubr.bf16.gmra.mrb[0].mxu0 %v408
        %v569 = vpop.f32.mrb[0].mxu0
        %v570 = vadd.f32 0.0, %v569
        %v571 = vpop.f32.mrb[0].mxu0
        %v572 = vadd.f32 0.0, %v571
        %v573 = vpop.f32.mrb[0].mxu0
        %v574 = vadd.f32 0.0, %v573
        %v575 = vpop.f32.mrb[0].mxu0
        %v576 = vadd.f32 0.0, %v575
        %577 = vdwg.mxu0
        %v578 = vld [vmem:[%s7] ss:$8 sm:$0x3]
        %v580 = vlaneseq
        %v581 = vshrl.u32 %v580, 7
        %v582 = vsub.s32 0, %v581
        %v583 = vrot.slane %v578, %v582
        %v584 = vlaneseq
        %v585 = vshrl.u32 %v584, 7
        %v586 = vsub.s32 1, %v585
        %v587 = vrot.slane %v578, %v586
        %v590 = vmul.f32 %v540, %v583
        %v591 = vmul.f32 %v542, %v587
        %v592 = vmul.f32 %v544, %v583
        %v593 = vmul.f32 %v546, %v587
        %v594 = vmul.f32 %v550, %v583
        %v595 = vmul.f32 %v552, %v587
        %v596 = vmul.f32 %v554, %v583
        %v597 = vmul.f32 %v556, %v587
        %v598 = vmul.f32 %v560, %v583
        %v599 = vmul.f32 %v562, %v587
        %v600 = vmul.f32 %v564, %v583
        %v601 = vmul.f32 %v566, %v587
        %v602 = vmul.f32 %v570, %v583
        %v603 = vmul.f32 %v572, %v587
        %v604 = vmul.f32 %v574, %v583
        %v605 = vmul.f32 %v576, %v587
        %s606 = scalar_lea.vmem %s7, 1
        %v607 = vld [vmem:[%s606] ss:$8 sm:$0x3]
        %v609 = vlaneseq
        %v610 = vshrl.u32 %v609, 7
        %v611 = vsub.s32 0, %v610
        %v612 = vrot.slane %v607, %v611
        %v613 = vlaneseq
        %v614 = vshrl.u32 %v613, 7
        %v615 = vsub.s32 1, %v614
        %v616 = vrot.slane %v607, %v615
        %v619 = vadd.f32 %v590, %v612
        %v620 = vadd.f32 %v591, %v616
        %v621 = vadd.f32 %v592, %v612
        %v622 = vadd.f32 %v593, %v616
        %v623 = vadd.f32 %v594, %v612
        %v624 = vadd.f32 %v595, %v616
        %v625 = vadd.f32 %v596, %v612
        %v626 = vadd.f32 %v597, %v616
        %v627 = vadd.f32 %v598, %v612
        %v628 = vadd.f32 %v599, %v616
        %v629 = vadd.f32 %v600, %v612
        %v630 = vadd.f32 %v601, %v616
        %v631 = vadd.f32 %v602, %v612
        %v632 = vadd.f32 %v603, %v616
        %v633 = vadd.f32 %v604, %v612
        %v634 = vadd.f32 %v605, %v616
        %v635 = vmax.f32 %v619, 0.0
        %v636 = vmax.f32 %v620, 0.0
        %v637 = vmax.f32 %v621, 0.0
        %v638 = vmax.f32 %v622, 0.0
        %v639 = vmax.f32 %v623, 0.0
        %v640 = vmax.f32 %v624, 0.0
        %v641 = vmax.f32 %v625, 0.0
        %v642 = vmax.f32 %v626, 0.0
        %v643 = vmax.f32 %v627, 0.0
        %v644 = vmax.f32 %v628, 0.0
        %v645 = vmax.f32 %v629, 0.0
        %v646 = vmax.f32 %v630, 0.0
        %v647 = vmax.f32 %v631, 0.0
        %v648 = vmax.f32 %v632, 0.0
        %v649 = vmax.f32 %v633, 0.0
        %v650 = vmax.f32 %v634, 0.0
        %v651 = vmin.f32 %v635, 6.0
        %v652 = vmin.f32 %v636, 6.0
        %v653 = vmin.f32 %v637, 6.0
        %v654 = vmin.f32 %v638, 6.0
        %v655 = vmin.f32 %v639, 6.0
        %v656 = vmin.f32 %v640, 6.0
        %v657 = vmin.f32 %v641, 6.0
        %v658 = vmin.f32 %v642, 6.0
        %v659 = vmin.f32 %v643, 6.0
        %v660 = vmin.f32 %v644, 6.0
        %v661 = vmin.f32 %v645, 6.0
        %v662 = vmin.f32 %v646, 6.0
        %v663 = vmin.f32 %v647, 6.0
        %v664 = vmin.f32 %v648, 6.0
        %v665 = vmin.f32 %v649, 6.0
        %v666 = vmin.f32 %v650, 6.0
        %v667 = vlaneseq
        %vm668 = vcmp.ge.s32.totalorder %v667, 0
        %vm669 = vcmp.lt.s32.totalorder %v667, 256
        %vm670 = vmand %vm668, %vm669
        %671 = vst.msk [vmem:[#allocation2] ss:$8 sm:$0x3] %vm670, 0.0
        %672 = vst.msk [vmem:[#allocation2] ss:$8 sm:$0x0] %vm670, 0.0
        %s673 = scalar_lea.vmem [#allocation2], 48
        %674 = vst.msk [vmem:[%s673] ss:$8 sm:$0x3] %vm670, 0.0
        %675 = vst.msk [vmem:[%s673] ss:$8 sm:$0x0] %vm670, 0.0
        %s676 = scalar_lea.vmem [#allocation2], 96
        %677 = vst.msk [vmem:[%s676] ss:$8 sm:$0x3] %vm670, 0.0
        %678 = vst.msk [vmem:[%s676] ss:$8 sm:$0x0] %vm670, 0.0
        %s679 = scalar_lea.vmem [#allocation2], 144
        %680 = vst.msk [vmem:[%s679] ss:$8 sm:$0x3] %vm670, 0.0
        %681 = vst.msk [vmem:[%s679] ss:$8 sm:$0x0] %vm670, 0.0
        %s682 = scalar_lea.vmem [#allocation2], 33
        %683 = vst.msk [vmem:[%s682] ss:$8 sm:$0x3] %vm670, 0.0
        %684 = vst.msk [vmem:[%s682] ss:$8 sm:$0x0] %vm670, 0.0
        %s685 = scalar_lea.vmem [#allocation2], 81
        %686 = vst.msk [vmem:[%s685] ss:$8 sm:$0x3] %vm670, 0.0
        %687 = vst.msk [vmem:[%s685] ss:$8 sm:$0x0] %vm670, 0.0
        %s688 = scalar_lea.vmem [#allocation2], 129
        %689 = vst.msk [vmem:[%s688] ss:$8 sm:$0x3] %vm670, 0.0
        %690 = vst.msk [vmem:[%s688] ss:$8 sm:$0x0] %vm670, 0.0
        %s691 = scalar_lea.vmem [#allocation2], 177
        %692 = vst.msk [vmem:[%s691] ss:$8 sm:$0x3] %vm670, 0.0
        %693 = vst.msk [vmem:[%s691] ss:$8 sm:$0x0] %vm670, 0.0
        %vm710 = vcmask 1040384
        %v711 = vrot.slane %v651, 7
        %v712 = vrot.slane %v652, 7
        %v713 = vrot.slane %v653, 7
        %v714 = vsel %vm710, %v711, %v713
        %v715 = vrot.slane %v654, 7
        %v716 = vsel %vm710, %v712, %v715
        %v717 = vrot.slane %v655, 7
        %v718 = vrot.slane %v656, 7
        %v719 = vrot.slane %v657, 7
        %v720 = vsel %vm710, %v717, %v719
        %v721 = vrot.slane %v658, 7
        %v722 = vsel %vm710, %v718, %v721
        %v723 = vrot.slane %v659, 7
        %v724 = vrot.slane %v660, 7
        %v725 = vrot.slane %v661, 7
        %v726 = vsel %vm710, %v723, %v725
        %v727 = vrot.slane %v662, 7
        %v728 = vsel %vm710, %v724, %v727
        %v729 = vrot.slane %v663, 7
        %v730 = vrot.slane %v664, 7
        %v731 = vrot.slane %v665, 7
        %v732 = vsel %vm710, %v729, %v731
        %v733 = vrot.slane %v666, 7
        %v734 = vsel %vm710, %v730, %v733
        %759 = vst [vmem:[#allocation2] sm:$0xfe] %v711
        %760 = vst [vmem:[#allocation2 + $0x8] sm:$0xfe] %v712
        %761 = vst [vmem:[#allocation2 + $0x10] sm:$0xff] %v714
        %762 = vst [vmem:[#allocation2 + $0x18] sm:$0xff] %v716
        %763 = vst [vmem:[#allocation2 + $0x20] sm:$0x1] %v713
        %764 = vst [vmem:[#allocation2 + $0x28] sm:$0x1] %v715
        %765 = vst [vmem:[#allocation2 + $0x30] sm:$0xfe] %v717
        %766 = vst [vmem:[#allocation2 + $0x38] sm:$0xfe] %v718
        %767 = vst [vmem:[#allocation2 + $0x40] sm:$0xff] %v720
        %768 = vst [vmem:[#allocation2 + $0x48] sm:$0xff] %v722
        %769 = vst [vmem:[#allocation2 + $0x50] sm:$0x1] %v719
        %770 = vst [vmem:[#allocation2 + $0x58] sm:$0x1] %v721
        %771 = vst [vmem:[#allocation2 + $0x60] sm:$0xfe] %v723
        %772 = vst [vmem:[#allocation2 + $0x68] sm:$0xfe] %v724
        %773 = vst [vmem:[#allocation2 + $0x70] sm:$0xff] %v726
        %774 = vst [vmem:[#allocation2 + $0x78] sm:$0xff] %v728
        %775 = vst [vmem:[#allocation2 + $0x80] sm:$0x1] %v725
        %776 = vst [vmem:[#allocation2 + $0x88] sm:$0x1] %v727
        %777 = vst [vmem:[#allocation2 + $0x90] sm:$0xfe] %v729
        %778 = vst [vmem:[#allocation2 + $0x98] sm:$0xfe] %v730
        %779 = vst [vmem:[#allocation2 + $0xa0] sm:$0xff] %v732
        %780 = vst [vmem:[#allocation2 + $0xa8] sm:$0xff] %v734
        %781 = vst [vmem:[#allocation2 + $0xb0] sm:$0x1] %v731
        %782 = vst [vmem:[#allocation2 + $0xb8] sm:$0x1] %v733
        %v783 = vld [vmem:[#allocation3] sm:$0xff]
        %v784 = vld [vmem:[#allocation3 + $0x8] sm:$0xff]
        %v785 = vld [vmem:[#allocation3 + $0x10] sm:$0x1]
        %v786 = vld [vmem:[#allocation3 + $0x18] sm:$0x1]
        %v787 = vld [vmem:[#allocation2] sm:$0xff]
        %v788 = vld [vmem:[#allocation2 + $0x8] sm:$0xff]
        %v789 = vld [vmem:[#allocation2 + $0x10] sm:$0xff]
        %v790 = vld [vmem:[#allocation2 + $0x18] sm:$0xff]
        %v791 = vld [vmem:[#allocation2 + $0x30] sm:$0xff]
        %v792 = vld [vmem:[#allocation2 + $0x38] sm:$0xff]
        %v793 = vld [vmem:[#allocation2 + $0x40] sm:$0xff]
        %v794 = vld [vmem:[#allocation2 + $0x48] sm:$0xff]
        %v795 = vld [vmem:[#allocation2 + $0x60] sm:$0xff]
        %v796 = vld [vmem:[#allocation2 + $0x68] sm:$0xff]
        %v797 = vld [vmem:[#allocation2 + $0x70] sm:$0xff]
        %v798 = vld [vmem:[#allocation2 + $0x78] sm:$0xff]
        %v799 = vld [vmem:[#allocation2 + $0x90] sm:$0xff]
        %v800 = vld [vmem:[#allocation2 + $0x98] sm:$0xff]
        %v801 = vld [vmem:[#allocation2 + $0xa0] sm:$0xff]
        %v802 = vld [vmem:[#allocation2 + $0xa8] sm:$0xff]
        %803 = vrot.lane.b32.xlu0 %v787, 16
        %v804 = vpop.permute.xlu0 %803
        %805 = vrot.lane.b32.xlu0 %v789, 16
        %v806 = vpop.permute.xlu0 %805
        %807 = vrot.lane.b32.xlu0 %v791, 16
        %v808 = vpop.permute.xlu0 %807
        %809 = vrot.lane.b32.xlu0 %v793, 16
        %v810 = vpop.permute.xlu0 %809
        %811 = vrot.lane.b32.xlu0 %v795, 16
        %v812 = vpop.permute.xlu0 %811
        %813 = vrot.lane.b32.xlu0 %v797, 16
        %v814 = vpop.permute.xlu0 %813
        %815 = vrot.lane.b32.xlu0 %v799, 16
        %v816 = vpop.permute.xlu0 %815
        %817 = vrot.lane.b32.xlu0 %v801, 16
        %v818 = vpop.permute.xlu0 %817
        %819 = vrot.lane.b32.xlu0 %v788, 16
        %v820 = vpop.permute.xlu0 %819
        %821 = vrot.lane.b32.xlu0 %v790, 16
        %v822 = vpop.permute.xlu0 %821
        %823 = vrot.lane.b32.xlu0 %v792, 16
        %v824 = vpop.permute.xlu0 %823
        %825 = vrot.lane.b32.xlu0 %v794, 16
        %v826 = vpop.permute.xlu0 %825
        %827 = vrot.lane.b32.xlu0 %v796, 16
        %v828 = vpop.permute.xlu0 %827
        %829 = vrot.lane.b32.xlu0 %v798, 16
        %v830 = vpop.permute.xlu0 %829
        %831 = vrot.lane.b32.xlu0 %v800, 16
        %v832 = vpop.permute.xlu0 %831
        %833 = vrot.lane.b32.xlu0 %v802, 16
        %v834 = vpop.permute.xlu0 %833
        %v835 = vlaneseq
        %v836 = vand.u32 %v835, 127
        %vm837 = vcmp.lt.s32.totalorder %v836, 16
        %v838 = vsel %vm837, %v804, %v820
        %v839 = vsel %vm837, %v806, %v822
        %v840 = vsel %vm837, %v808, %v824
        %v841 = vsel %vm837, %v810, %v826
        %v842 = vsel %vm837, %v812, %v828
        %v843 = vsel %vm837, %v814, %v830
        %v844 = vsel %vm837, %v816, %v832
        %v845 = vsel %vm837, %v818, %v834
        %v846 = vsel %vm837, %v820, %v804
        %v847 = vsel %vm837, %v822, %v806
        %v848 = vsel %vm837, %v824, %v808
        %v849 = vsel %vm837, %v826, %v810
        %v850 = vsel %vm837, %v828, %v812
        %v851 = vsel %vm837, %v830, %v814
        %v852 = vsel %vm837, %v832, %v816
        %v853 = vsel %vm837, %v834, %v818
        %854 = vrot.lane.b32.xlu0 %v787, 112
        %v855 = vpop.permute.xlu0 %854
        %856 = vrot.lane.b32.xlu0 %v789, 112
        %v857 = vpop.permute.xlu0 %856
        %858 = vrot.lane.b32.xlu0 %v791, 112
        %v859 = vpop.permute.xlu0 %858
        %860 = vrot.lane.b32.xlu0 %v793, 112
        %v861 = vpop.permute.xlu0 %860
        %862 = vrot.lane.b32.xlu0 %v795, 112
        %v863 = vpop.permute.xlu0 %862
        %864 = vrot.lane.b32.xlu0 %v797, 112
        %v865 = vpop.permute.xlu0 %864
        %866 = vrot.lane.b32.xlu0 %v799, 112
        %v867 = vpop.permute.xlu0 %866
        %868 = vrot.lane.b32.xlu0 %v801, 112
        %v869 = vpop.permute.xlu0 %868
        %870 = vrot.lane.b32.xlu0 %v788, 112
        %v871 = vpop.permute.xlu0 %870
        %872 = vrot.lane.b32.xlu0 %v790, 112
        %v873 = vpop.permute.xlu0 %872
        %874 = vrot.lane.b32.xlu0 %v792, 112
        %v875 = vpop.permute.xlu0 %874
        %876 = vrot.lane.b32.xlu0 %v794, 112
        %v877 = vpop.permute.xlu0 %876
        %878 = vrot.lane.b32.xlu0 %v796, 112
        %v879 = vpop.permute.xlu0 %878
        %880 = vrot.lane.b32.xlu0 %v798, 112
        %v881 = vpop.permute.xlu0 %880
        %882 = vrot.lane.b32.xlu0 %v800, 112
        %v883 = vpop.permute.xlu0 %882
        %884 = vrot.lane.b32.xlu0 %v802, 112
        %v885 = vpop.permute.xlu0 %884
        %vm886 = vcmp.lt.s32.totalorder %v836, 112
        %v887 = vsel %vm886, %v855, %v871
        %v888 = vsel %vm886, %v857, %v873
        %v889 = vsel %vm886, %v859, %v875
        %v890 = vsel %vm886, %v861, %v877
        %v891 = vsel %vm886, %v863, %v879
        %v892 = vsel %vm886, %v865, %v881
        %v893 = vsel %vm886, %v867, %v883
        %v894 = vsel %vm886, %v869, %v885
        %v895 = vsel %vm886, %v871, %v855
        %v896 = vsel %vm886, %v873, %v857
        %v897 = vsel %vm886, %v875, %v859
        %v898 = vsel %vm886, %v877, %v861
        %v899 = vsel %vm886, %v879, %v863
        %v900 = vsel %vm886, %v881, %v865
        %v901 = vsel %vm886, %v883, %v867
        %v902 = vsel %vm886, %v885, %v869
        %v903 = vlaneseq
        %v904 = vshrl.u32 %v903, 7
        %v905 = vsub.s32 0, %v904
        %v906 = vrot.slane %v783, %v905
        %v907 = vlaneseq
        %v908 = vshrl.u32 %v907, 7
        %v909 = vsub.s32 0, %v908
        %v910 = vrot.slane %v784, %v909
        %v911 = vmul.f32 %v846, %v906
        %v912 = vmul.f32 %v838, %v910
        %v913 = vmul.f32 %v847, %v906
        %v914 = vmul.f32 %v839, %v910
        %v915 = vmul.f32 %v848, %v906
        %v916 = vmul.f32 %v840, %v910
        %v917 = vmul.f32 %v849, %v906
        %v918 = vmul.f32 %v841, %v910
        %v919 = vmul.f32 %v850, %v906
        %v920 = vmul.f32 %v842, %v910
        %v921 = vmul.f32 %v851, %v906
        %v922 = vmul.f32 %v843, %v910
        %v923 = vmul.f32 %v852, %v906
        %v924 = vmul.f32 %v844, %v910
        %v925 = vmul.f32 %v853, %v906
        %v926 = vmul.f32 %v845, %v910
        %v927 = vlaneseq
        %v928 = vshrl.u32 %v927, 7
        %v929 = vsub.s32 1, %v928
        %v930 = vrot.slane %v783, %v929
        %v931 = vlaneseq
        %v932 = vshrl.u32 %v931, 7
        %v933 = vsub.s32 1, %v932
        %v934 = vrot.slane %v784, %v933
        %v935 = vmul.f32 %v787, %v930
        %v936 = vmul.f32 %v788, %v934
        %v937 = vmul.f32 %v789, %v930
        %v938 = vmul.f32 %v790, %v934
        %v939 = vmul.f32 %v791, %v930
        %v940 = vmul.f32 %v792, %v934
        %v941 = vmul.f32 %v793, %v930
        %v942 = vmul.f32 %v794, %v934
        %v943 = vmul.f32 %v795, %v930
        %v944 = vmul.f32 %v796, %v934
        %v945 = vmul.f32 %v797, %v930
        %v946 = vmul.f32 %v798, %v934
        %v947 = vmul.f32 %v799, %v930
        %v948 = vmul.f32 %v800, %v934
        %v949 = vmul.f32 %v801, %v930
        %v950 = vmul.f32 %v802, %v934
        %v951 = vadd.f32 %v911, %v935
        %v952 = vadd.f32 %v912, %v936
        %v953 = vadd.f32 %v913, %v937
        %v954 = vadd.f32 %v914, %v938
        %v955 = vadd.f32 %v915, %v939
        %v956 = vadd.f32 %v916, %v940
        %v957 = vadd.f32 %v917, %v941
        %v958 = vadd.f32 %v918, %v942
        %v959 = vadd.f32 %v919, %v943
        %v960 = vadd.f32 %v920, %v944
        %v961 = vadd.f32 %v921, %v945
        %v962 = vadd.f32 %v922, %v946
        %v963 = vadd.f32 %v923, %v947
        %v964 = vadd.f32 %v924, %v948
        %v965 = vadd.f32 %v925, %v949
        %v966 = vadd.f32 %v926, %v950
        %v967 = vlaneseq
        %v968 = vshrl.u32 %v967, 7
        %v969 = vsub.s32 2, %v968
        %v970 = vrot.slane %v783, %v969
        %v971 = vlaneseq
        %v972 = vshrl.u32 %v971, 7
        %v973 = vsub.s32 2, %v972
        %v974 = vrot.slane %v784, %v973
        %v975 = vmul.f32 %v887, %v970
        %v976 = vmul.f32 %v895, %v974
        %v977 = vmul.f32 %v888, %v970
        %v978 = vmul.f32 %v896, %v974
        %v979 = vmul.f32 %v889, %v970
        %v980 = vmul.f32 %v897, %v974
        %v981 = vmul.f32 %v890, %v970
        %v982 = vmul.f32 %v898, %v974
        %v983 = vmul.f32 %v891, %v970
        %v984 = vmul.f32 %v899, %v974
        %v985 = vmul.f32 %v892, %v970
        %v986 = vmul.f32 %v900, %v974
        %v987 = vmul.f32 %v893, %v970
        %v988 = vmul.f32 %v901, %v974
        %v989 = vmul.f32 %v894, %v970
        %v990 = vmul.f32 %v902, %v974
        %v991 = vadd.f32 %v951, %v975
        %v992 = vadd.f32 %v952, %v976
        %v993 = vadd.f32 %v953, %v977
        %v994 = vadd.f32 %v954, %v978
        %v995 = vadd.f32 %v955, %v979
        %v996 = vadd.f32 %v956, %v980
        %v997 = vadd.f32 %v957, %v981
        %v998 = vadd.f32 %v958, %v982
        %v999 = vadd.f32 %v959, %v983
        %v1000 = vadd.f32 %v960, %v984
        %v1001 = vadd.f32 %v961, %v985
        %v1002 = vadd.f32 %v962, %v986
        %v1003 = vadd.f32 %v963, %v987
        %v1004 = vadd.f32 %v964, %v988
        %v1005 = vadd.f32 %v965, %v989
        %v1006 = vadd.f32 %v966, %v990
        %v1007 = vld [vmem:[#allocation2] sm:$0xfe]
        %v1008 = vld [vmem:[#allocation2 + $0x8] sm:$0xfe]
        %v1009 = vld [vmem:[#allocation2 + $0x10] sm:$0xff]
        %v1010 = vld [vmem:[#allocation2 + $0x18] sm:$0xff]
        %v1011 = vld [vmem:[#allocation2 + $0x20] sm:$0x1]
        %v1012 = vld [vmem:[#allocation2 + $0x28] sm:$0x1]
        %v1013 = vld [vmem:[#allocation2 + $0x30] sm:$0xfe]
        %v1014 = vld [vmem:[#allocation2 + $0x38] sm:$0xfe]
        %v1015 = vld [vmem:[#allocation2 + $0x40] sm:$0xff]
        %v1016 = vld [vmem:[#allocation2 + $0x48] sm:$0xff]
        %v1017 = vld [vmem:[#allocation2 + $0x50] sm:$0x1]
        %v1018 = vld [vmem:[#allocation2 + $0x58] sm:$0x1]
        %v1019 = vld [vmem:[#allocation2 + $0x60] sm:$0xfe]
        %v1020 = vld [vmem:[#allocation2 + $0x68] sm:$0xfe]
        %v1021 = vld [vmem:[#allocation2 + $0x70] sm:$0xff]
        %v1022 = vld [vmem:[#allocation2 + $0x78] sm:$0xff]
        %v1023 = vld [vmem:[#allocation2 + $0x80] sm:$0x1]
        %v1024 = vld [vmem:[#allocation2 + $0x88] sm:$0x1]
        %v1025 = vld [vmem:[#allocation2 + $0x90] sm:$0xfe]
        %v1026 = vld [vmem:[#allocation2 + $0x98] sm:$0xfe]
        %v1027 = vld [vmem:[#allocation2 + $0xa0] sm:$0xff]
        %v1028 = vld [vmem:[#allocation2 + $0xa8] sm:$0xff]
        %v1029 = vld [vmem:[#allocation2 + $0xb0] sm:$0x1]
        %v1030 = vld [vmem:[#allocation2 + $0xb8] sm:$0x1]
        %vm1055 = vcmask 1046528
        %v1056 = vrot.slane %v1007, 1
        %v1057 = vrot.slane %v1009, 1
        %v1058 = vsel %vm1055, %v1056, %v1057
        %v1059 = vrot.slane %v1008, 1
        %v1060 = vrot.slane %v1010, 1
        %v1061 = vsel %vm1055, %v1059, %v1060
        %v1062 = vrot.slane %v1011, 1
        %v1063 = vsel %vm1055, %v1057, %v1062
        %v1064 = vrot.slane %v1012, 1
        %v1065 = vsel %vm1055, %v1060, %v1064
        %v1066 = vrot.slane %v1013, 1
        %v1067 = vrot.slane %v1015, 1
        %v1068 = vsel %vm1055, %v1066, %v1067
        %v1069 = vrot.slane %v1014, 1
        %v1070 = vrot.slane %v1016, 1
        %v1071 = vsel %vm1055, %v1069, %v1070
        %v1072 = vrot.slane %v1017, 1
        %v1073 = vsel %vm1055, %v1067, %v1072
        %v1074 = vrot.slane %v1018, 1
        %v1075 = vsel %vm1055, %v1070, %v1074
        %v1076 = vrot.slane %v1019, 1
        %v1077 = vrot.slane %v1021, 1
        %v1078 = vsel %vm1055, %v1076, %v1077
        %v1079 = vrot.slane %v1020, 1
        %v1080 = vrot.slane %v1022, 1
        %v1081 = vsel %vm1055, %v1079, %v1080
        %v1082 = vrot.slane %v1023, 1
        %v1083 = vsel %vm1055, %v1077, %v1082
        %v1084 = vrot.slane %v1024, 1
        %v1085 = vsel %vm1055, %v1080, %v1084
        %v1086 = vrot.slane %v1025, 1
        %v1087 = vrot.slane %v1027, 1
        %v1088 = vsel %vm1055, %v1086, %v1087
        %v1089 = vrot.slane %v1026, 1
        %v1090 = vrot.slane %v1028, 1
        %v1091 = vsel %vm1055, %v1089, %v1090
        %v1092 = vrot.slane %v1029, 1
        %v1093 = vsel %vm1055, %v1087, %v1092
        %v1094 = vrot.slane %v1030, 1
        %v1095 = vsel %vm1055, %v1090, %v1094
        %1112 = vrot.lane.b32.xlu0 %v1058, 16
        %v1113 = vpop.permute.xlu0 %1112
        %1114 = vrot.lane.b32.xlu0 %v1063, 16
        %v1115 = vpop.permute.xlu0 %1114
        %1116 = vrot.lane.b32.xlu0 %v1068, 16
        %v1117 = vpop.permute.xlu0 %1116
        %1118 = vrot.lane.b32.xlu0 %v1073, 16
        %v1119 = vpop.permute.xlu0 %1118
        %1120 = vrot.lane.b32.xlu0 %v1078, 16
        %v1121 = vpop.permute.xlu0 %1120
        %1122 = vrot.lane.b32.xlu0 %v1083, 16
        %v1123 = vpop.permute.xlu0 %1122
        %1124 = vrot.lane.b32.xlu0 %v1088, 16
        %v1125 = vpop.permute.xlu0 %1124
        %1126 = vrot.lane.b32.xlu0 %v1093, 16
        %v1127 = vpop.permute.xlu0 %1126
        %1128 = vrot.lane.b32.xlu0 %v1061, 16
        %v1129 = vpop.permute.xlu0 %1128
        %1130 = vrot.lane.b32.xlu0 %v1065, 16
        %v1131 = vpop.permute.xlu0 %1130
        %1132 = vrot.lane.b32.xlu0 %v1071, 16
        %v1133 = vpop.permute.xlu0 %1132
        %1134 = vrot.lane.b32.xlu0 %v1075, 16
        %v1135 = vpop.permute.xlu0 %1134
        %1136 = vrot.lane.b32.xlu0 %v1081, 16
        %v1137 = vpop.permute.xlu0 %1136
        %1138 = vrot.lane.b32.xlu0 %v1085, 16
        %v1139 = vpop.permute.xlu0 %1138
        %1140 = vrot.lane.b32.xlu0 %v1091, 16
        %v1141 = vpop.permute.xlu0 %1140
        %1142 = vrot.lane.b32.xlu0 %v1095, 16
        %v1143 = vpop.permute.xlu0 %1142
        %v1144 = vsel %vm837, %v1113, %v1129
        %v1145 = vsel %vm837, %v1115, %v1131
        %v1146 = vsel %vm837, %v1117, %v1133
        %v1147 = vsel %vm837, %v1119, %v1135
        %v1148 = vsel %vm837, %v1121, %v1137
        %v1149 = vsel %vm837, %v1123, %v1139
        %v1150 = vsel %vm837, %v1125, %v1141
        %v1151 = vsel %vm837, %v1127, %v1143
        %v1152 = vsel %vm837, %v1129, %v1113
        %v1153 = vsel %vm837, %v1131, %v1115
        %v1154 = vsel %vm837, %v1133, %v1117
        %v1155 = vsel %vm837, %v1135, %v1119
        %v1156 = vsel %vm837, %v1137, %v1121
        %v1157 = vsel %vm837, %v1139, %v1123
        %v1158 = vsel %vm837, %v1141, %v1125
        %v1159 = vsel %vm837, %v1143, %v1127
        %1160 = vrot.lane.b32.xlu0 %v1058, 112
        %v1161 = vpop.permute.xlu0 %1160
        %1162 = vrot.lane.b32.xlu0 %v1063, 112
        %v1163 = vpop.permute.xlu0 %1162
        %1164 = vrot.lane.b32.xlu0 %v1068, 112
        %v1165 = vpop.permute.xlu0 %1164
        %1166 = vrot.lane.b32.xlu0 %v1073, 112
        %v1167 = vpop.permute.xlu0 %1166
        %1168 = vrot.lane.b32.xlu0 %v1078, 112
        %v1169 = vpop.permute.xlu0 %1168
        %1170 = vrot.lane.b32.xlu0 %v1083, 112
        %v1171 = vpop.permute.xlu0 %1170
        %1172 = vrot.lane.b32.xlu0 %v1088, 112
        %v1173 = vpop.permute.xlu0 %1172
        %1174 = vrot.lane.b32.xlu0 %v1093, 112
        %v1175 = vpop.permute.xlu0 %1174
        %1176 = vrot.lane.b32.xlu0 %v1061, 112
        %v1177 = vpop.permute.xlu0 %1176
        %1178 = vrot.lane.b32.xlu0 %v1065, 112
        %v1179 = vpop.permute.xlu0 %1178
        %1180 = vrot.lane.b32.xlu0 %v1071, 112
        %v1181 = vpop.permute.xlu0 %1180
        %1182 = vrot.lane.b32.xlu0 %v1075, 112
        %v1183 = vpop.permute.xlu0 %1182
        %1184 = vrot.lane.b32.xlu0 %v1081, 112
        %v1185 = vpop.permute.xlu0 %1184
        %1186 = vrot.lane.b32.xlu0 %v1085, 112
        %v1187 = vpop.permute.xlu0 %1186
        %1188 = vrot.lane.b32.xlu0 %v1091, 112
        %v1189 = vpop.permute.xlu0 %1188
        %1190 = vrot.lane.b32.xlu0 %v1095, 112
        %v1191 = vpop.permute.xlu0 %1190
        %v1192 = vsel %vm886, %v1161, %v1177
        %v1193 = vsel %vm886, %v1163, %v1179
        %v1194 = vsel %vm886, %v1165, %v1181
        %v1195 = vsel %vm886, %v1167, %v1183
        %v1196 = vsel %vm886, %v1169, %v1185
        %v1197 = vsel %vm886, %v1171, %v1187
        %v1198 = vsel %vm886, %v1173, %v1189
        %v1199 = vsel %vm886, %v1175, %v1191
        %v1200 = vsel %vm886, %v1177, %v1161
        %v1201 = vsel %vm886, %v1179, %v1163
        %v1202 = vsel %vm886, %v1181, %v1165
        %v1203 = vsel %vm886, %v1183, %v1167
        %v1204 = vsel %vm886, %v1185, %v1169
        %v1205 = vsel %vm886, %v1187, %v1171
        %v1206 = vsel %vm886, %v1189, %v1173
        %v1207 = vsel %vm886, %v1191, %v1175
        %v1208 = vlaneseq
        %v1209 = vshrl.u32 %v1208, 7
        %v1210 = vsub.s32 3, %v1209
        %v1211 = vrot.slane %v783, %v1210
        %v1212 = vlaneseq
        %v1213 = vshrl.u32 %v1212, 7
        %v1214 = vsub.s32 3, %v1213
        %v1215 = vrot.slane %v784, %v1214
        %v1216 = vmul.f32 %v1152, %v1211
        %v1217 = vmul.f32 %v1144, %v1215
        %v1218 = vmul.f32 %v1153, %v1211
        %v1219 = vmul.f32 %v1145, %v1215
        %v1220 = vmul.f32 %v1154, %v1211
        %v1221 = vmul.f32 %v1146, %v1215
        %v1222 = vmul.f32 %v1155, %v1211
        %v1223 = vmul.f32 %v1147, %v1215
        %v1224 = vmul.f32 %v1156, %v1211
        %v1225 = vmul.f32 %v1148, %v1215
        %v1226 = vmul.f32 %v1157, %v1211
        %v1227 = vmul.f32 %v1149, %v1215
        %v1228 = vmul.f32 %v1158, %v1211
        %v1229 = vmul.f32 %v1150, %v1215
        %v1230 = vmul.f32 %v1159, %v1211
        %v1231 = vmul.f32 %v1151, %v1215
        %v1232 = vlaneseq
        %v1233 = vshrl.u32 %v1232, 7
        %v1234 = vsub.s32 4, %v1233
        %v1235 = vrot.slane %v783, %v1234
        %v1236 = vlaneseq
        %v1237 = vshrl.u32 %v1236, 7
        %v1238 = vsub.s32 4, %v1237
        %v1239 = vrot.slane %v784, %v1238
        %v1240 = vmul.f32 %v1058, %v1235
        %v1241 = vmul.f32 %v1061, %v1239
        %v1242 = vmul.f32 %v1063, %v1235
        %v1243 = vmul.f32 %v1065, %v1239
        %v1244 = vmul.f32 %v1068, %v1235
        %v1245 = vmul.f32 %v1071, %v1239
        %v1246 = vmul.f32 %v1073, %v1235
        %v1247 = vmul.f32 %v1075, %v1239
        %v1248 = vmul.f32 %v1078, %v1235
        %v1249 = vmul.f32 %v1081, %v1239
        %v1250 = vmul.f32 %v1083, %v1235
        %v1251 = vmul.f32 %v1085, %v1239
        %v1252 = vmul.f32 %v1088, %v1235
        %v1253 = vmul.f32 %v1091, %v1239
        %v1254 = vmul.f32 %v1093, %v1235
        %v1255 = vmul.f32 %v1095, %v1239
        %v1256 = vadd.f32 %v1216, %v1240
        %v1257 = vadd.f32 %v1217, %v1241
        %v1258 = vadd.f32 %v1218, %v1242
        %v1259 = vadd.f32 %v1219, %v1243
        %v1260 = vadd.f32 %v1220, %v1244
        %v1261 = vadd.f32 %v1221, %v1245
        %v1262 = vadd.f32 %v1222, %v1246
        %v1263 = vadd.f32 %v1223, %v1247
        %v1264 = vadd.f32 %v1224, %v1248
        %v1265 = vadd.f32 %v1225, %v1249
        %v1266 = vadd.f32 %v1226, %v1250
        %v1267 = vadd.f32 %v1227, %v1251
        %v1268 = vadd.f32 %v1228, %v1252
        %v1269 = vadd.f32 %v1229, %v1253
        %v1270 = vadd.f32 %v1230, %v1254
        %v1271 = vadd.f32 %v1231, %v1255
        %v1272 = vlaneseq
        %v1273 = vshrl.u32 %v1272, 7
        %v1274 = vsub.s32 5, %v1273
        %v1275 = vrot.slane %v783, %v1274
        %v1276 = vlaneseq
        %v1277 = vshrl.u32 %v1276, 7
        %v1278 = vsub.s32 5, %v1277
        %v1279 = vrot.slane %v784, %v1278
        %v1280 = vmul.f32 %v1192, %v1275
        %v1281 = vmul.f32 %v1200, %v1279
        %v1282 = vmul.f32 %v1193, %v1275
        %v1283 = vmul.f32 %v1201, %v1279
        %v1284 = vmul.f32 %v1194, %v1275
        %v1285 = vmul.f32 %v1202, %v1279
        %v1286 = vmul.f32 %v1195, %v1275
        %v1287 = vmul.f32 %v1203, %v1279
        %v1288 = vmul.f32 %v1196, %v1275
        %v1289 = vmul.f32 %v1204, %v1279
        %v1290 = vmul.f32 %v1197, %v1275
        %v1291 = vmul.f32 %v1205, %v1279
        %v1292 = vmul.f32 %v1198, %v1275
        %v1293 = vmul.f32 %v1206, %v1279
        %v1294 = vmul.f32 %v1199, %v1275
        %v1295 = vmul.f32 %v1207, %v1279
        %v1296 = vadd.f32 %v1256, %v1280
        %v1297 = vadd.f32 %v1257, %v1281
        %v1298 = vadd.f32 %v1258, %v1282
        %v1299 = vadd.f32 %v1259, %v1283
        %v1300 = vadd.f32 %v1260, %v1284
        %v1301 = vadd.f32 %v1261, %v1285
        %v1302 = vadd.f32 %v1262, %v1286
        %v1303 = vadd.f32 %v1263, %v1287
        %v1304 = vadd.f32 %v1264, %v1288
        %v1305 = vadd.f32 %v1265, %v1289
        %v1306 = vadd.f32 %v1266, %v1290
        %v1307 = vadd.f32 %v1267, %v1291
        %v1308 = vadd.f32 %v1268, %v1292
        %v1309 = vadd.f32 %v1269, %v1293
        %v1310 = vadd.f32 %v1270, %v1294
        %v1311 = vadd.f32 %v1271, %v1295
        %v1312 = vadd.f32 %v991, %v1296
        %v1313 = vadd.f32 %v992, %v1297
        %v1314 = vadd.f32 %v993, %v1298
        %v1315 = vadd.f32 %v994, %v1299
        %v1316 = vadd.f32 %v995, %v1300
        %v1317 = vadd.f32 %v996, %v1301
        %v1318 = vadd.f32 %v997, %v1302
        %v1319 = vadd.f32 %v998, %v1303
        %v1320 = vadd.f32 %v999, %v1304
        %v1321 = vadd.f32 %v1000, %v1305
        %v1322 = vadd.f32 %v1001, %v1306
        %v1323 = vadd.f32 %v1002, %v1307
        %v1324 = vadd.f32 %v1003, %v1308
        %v1325 = vadd.f32 %v1004, %v1309
        %v1326 = vadd.f32 %v1005, %v1310
        %v1327 = vadd.f32 %v1006, %v1311
        %v1328 = vld [vmem:[#allocation2] sm:$0xfc]
        %v1329 = vld [vmem:[#allocation2 + $0x8] sm:$0xfc]
        %v1330 = vld [vmem:[#allocation2 + $0x20] sm:$0x3]
        %v1331 = vld [vmem:[#allocation2 + $0x28] sm:$0x3]
        %v1332 = vld [vmem:[#allocation2 + $0x30] sm:$0xfc]
        %v1333 = vld [vmem:[#allocation2 + $0x38] sm:$0xfc]
        %v1334 = vld [vmem:[#allocation2 + $0x50] sm:$0x3]
        %v1335 = vld [vmem:[#allocation2 + $0x58] sm:$0x3]
        %v1336 = vld [vmem:[#allocation2 + $0x60] sm:$0xfc]
        %v1337 = vld [vmem:[#allocation2 + $0x68] sm:$0xfc]
        %v1338 = vld [vmem:[#allocation2 + $0x80] sm:$0x3]
        %v1339 = vld [vmem:[#allocation2 + $0x88] sm:$0x3]
        %v1340 = vld [vmem:[#allocation2 + $0x90] sm:$0xfc]
        %v1341 = vld [vmem:[#allocation2 + $0x98] sm:$0xfc]
        %v1342 = vld [vmem:[#allocation2 + $0xb0] sm:$0x3]
        %v1343 = vld [vmem:[#allocation2 + $0xb8] sm:$0x3]
        %vm1360 = vcmask 1045504
        %v1361 = vrot.slane %v1328, 2
        %v1362 = vrot.slane %v1009, 2
        %v1363 = vsel %vm1360, %v1361, %v1362
        %v1364 = vrot.slane %v1329, 2
        %v1365 = vrot.slane %v1010, 2
        %v1366 = vsel %vm1360, %v1364, %v1365
        %v1367 = vrot.slane %v1330, 2
        %v1368 = vsel %vm1360, %v1362, %v1367
        %v1369 = vrot.slane %v1331, 2
        %v1370 = vsel %vm1360, %v1365, %v1369
        %v1371 = vrot.slane %v1332, 2
        %v1372 = vrot.slane %v1015, 2
        %v1373 = vsel %vm1360, %v1371, %v1372
        %v1374 = vrot.slane %v1333, 2
        %v1375 = vrot.slane %v1016, 2
        %v1376 = vsel %vm1360, %v1374, %v1375
        %v1377 = vrot.slane %v1334, 2
        %v1378 = vsel %vm1360, %v1372, %v1377
        %v1379 = vrot.slane %v1335, 2
        %v1380 = vsel %vm1360, %v1375, %v1379
        %v1381 = vrot.slane %v1336, 2
        %v1382 = vrot.slane %v1021, 2
        %v1383 = vsel %vm1360, %v1381, %v1382
        %v1384 = vrot.slane %v1337, 2
        %v1385 = vrot.slane %v1022, 2
        %v1386 = vsel %vm1360, %v1384, %v1385
        %v1387 = vrot.slane %v1338, 2
        %v1388 = vsel %vm1360, %v1382, %v1387
        %v1389 = vrot.slane %v1339, 2
        %v1390 = vsel %vm1360, %v1385, %v1389
        %v1391 = vrot.slane %v1340, 2
        %v1392 = vrot.slane %v1027, 2
        %v1393 = vsel %vm1360, %v1391, %v1392
        %v1394 = vrot.slane %v1341, 2
        %v1395 = vrot.slane %v1028, 2
        %v1396 = vsel %vm1360, %v1394, %v1395
        %v1397 = vrot.slane %v1342, 2
        %v1398 = vsel %vm1360, %v1392, %v1397
        %v1399 = vrot.slane %v1343, 2
        %v1400 = vsel %vm1360, %v1395, %v1399
        %1417 = vrot.lane.b32.xlu0 %v1363, 16
        %v1418 = vpop.permute.xlu0 %1417
        %1419 = vrot.lane.b32.xlu0 %v1368, 16
        %v1420 = vpop.permute.xlu0 %1419
        %1421 = vrot.lane.b32.xlu0 %v1373, 16
        %v1422 = vpop.permute.xlu0 %1421
        %1423 = vrot.lane.b32.xlu0 %v1378, 16
        %v1424 = vpop.permute.xlu0 %1423
        %1425 = vrot.lane.b32.xlu0 %v1383, 16
        %v1426 = vpop.permute.xlu0 %1425
        %1427 = vrot.lane.b32.xlu0 %v1388, 16
        %v1428 = vpop.permute.xlu0 %1427
        %1429 = vrot.lane.b32.xlu0 %v1393, 16
        %v1430 = vpop.permute.xlu0 %1429
        %1431 = vrot.lane.b32.xlu0 %v1398, 16
        %v1432 = vpop.permute.xlu0 %1431
        %1433 = vrot.lane.b32.xlu0 %v1366, 16
        %v1434 = vpop.permute.xlu0 %1433
        %1435 = vrot.lane.b32.xlu0 %v1370, 16
        %v1436 = vpop.permute.xlu0 %1435
        %1437 = vrot.lane.b32.xlu0 %v1376, 16
        %v1438 = vpop.permute.xlu0 %1437
        %1439 = vrot.lane.b32.xlu0 %v1380, 16
        %v1440 = vpop.permute.xlu0 %1439
        %1441 = vrot.lane.b32.xlu0 %v1386, 16
        %v1442 = vpop.permute.xlu0 %1441
        %1443 = vrot.lane.b32.xlu0 %v1390, 16
        %v1444 = vpop.permute.xlu0 %1443
        %1445 = vrot.lane.b32.xlu0 %v1396, 16
        %v1446 = vpop.permute.xlu0 %1445
        %1447 = vrot.lane.b32.xlu0 %v1400, 16
        %v1448 = vpop.permute.xlu0 %1447
        %v1449 = vsel %vm837, %v1418, %v1434
        %v1450 = vsel %vm837, %v1420, %v1436
        %v1451 = vsel %vm837, %v1422, %v1438
        %v1452 = vsel %vm837, %v1424, %v1440
        %v1453 = vsel %vm837, %v1426, %v1442
        %v1454 = vsel %vm837, %v1428, %v1444
        %v1455 = vsel %vm837, %v1430, %v1446
        %v1456 = vsel %vm837, %v1432, %v1448
        %v1457 = vsel %vm837, %v1434, %v1418
        %v1458 = vsel %vm837, %v1436, %v1420
        %v1459 = vsel %vm837, %v1438, %v1422
        %v1460 = vsel %vm837, %v1440, %v1424
        %v1461 = vsel %vm837, %v1442, %v1426
        %v1462 = vsel %vm837, %v1444, %v1428
        %v1463 = vsel %vm837, %v1446, %v1430
        %v1464 = vsel %vm837, %v1448, %v1432
        %1465 = vrot.lane.b32.xlu0 %v1363, 112
        %v1466 = vpop.permute.xlu0 %1465
        %1467 = vrot.lane.b32.xlu0 %v1368, 112
        %v1468 = vpop.permute.xlu0 %1467
        %1469 = vrot.lane.b32.xlu0 %v1373, 112
        %v1470 = vpop.permute.xlu0 %1469
        %1471 = vrot.lane.b32.xlu0 %v1378, 112
        %v1472 = vpop.permute.xlu0 %1471
        %1473 = vrot.lane.b32.xlu0 %v1383, 112
        %v1474 = vpop.permute.xlu0 %1473
        %1475 = vrot.lane.b32.xlu0 %v1388, 112
        %v1476 = vpop.permute.xlu0 %1475
        %1477 = vrot.lane.b32.xlu0 %v1393, 112
        %v1478 = vpop.permute.xlu0 %1477
        %1479 = vrot.lane.b32.xlu0 %v1398, 112
        %v1480 = vpop.permute.xlu0 %1479
        %1481 = vrot.lane.b32.xlu0 %v1366, 112
        %v1482 = vpop.permute.xlu0 %1481
        %1483 = vrot.lane.b32.xlu0 %v1370, 112
        %v1484 = vpop.permute.xlu0 %1483
        %1485 = vrot.lane.b32.xlu0 %v1376, 112
        %v1486 = vpop.permute.xlu0 %1485
        %1487 = vrot.lane.b32.xlu0 %v1380, 112
        %v1488 = vpop.permute.xlu0 %1487
        %1489 = vrot.lane.b32.xlu0 %v1386, 112
        %v1490 = vpop.permute.xlu0 %1489
        %1491 = vrot.lane.b32.xlu0 %v1390, 112
        %v1492 = vpop.permute.xlu0 %1491
        %1493 = vrot.lane.b32.xlu0 %v1396, 112
        %v1494 = vpop.permute.xlu0 %1493
        %1495 = vrot.lane.b32.xlu0 %v1400, 112
        %v1496 = vpop.permute.xlu0 %1495
        %v1497 = vsel %vm886, %v1466, %v1482
        %v1498 = vsel %vm886, %v1468, %v1484
        %v1499 = vsel %vm886, %v1470, %v1486
        %v1500 = vsel %vm886, %v1472, %v1488
        %v1501 = vsel %vm886, %v1474, %v1490
        %v1502 = vsel %vm886, %v1476, %v1492
        %v1503 = vsel %vm886, %v1478, %v1494
        %v1504 = vsel %vm886, %v1480, %v1496
        %v1505 = vsel %vm886, %v1482, %v1466
        %v1506 = vsel %vm886, %v1484, %v1468
        %v1507 = vsel %vm886, %v1486, %v1470
        %v1508 = vsel %vm886, %v1488, %v1472
        %v1509 = vsel %vm886, %v1490, %v1474
        %v1510 = vsel %vm886, %v1492, %v1476
        %v1511 = vsel %vm886, %v1494, %v1478
        %v1512 = vsel %vm886, %v1496, %v1480
        %v1513 = vlaneseq
        %v1514 = vshrl.u32 %v1513, 7
        %v1515 = vsub.s32 6, %v1514
        %v1516 = vrot.slane %v783, %v1515
        %v1517 = vlaneseq
        %v1518 = vshrl.u32 %v1517, 7
        %v1519 = vsub.s32 6, %v1518
        %v1520 = vrot.slane %v784, %v1519
        %v1521 = vmul.f32 %v1457, %v1516
        %v1522 = vmul.f32 %v1449, %v1520
        %v1523 = vmul.f32 %v1458, %v1516
        %v1524 = vmul.f32 %v1450, %v1520
        %v1525 = vmul.f32 %v1459, %v1516
        %v1526 = vmul.f32 %v1451, %v1520
        %v1527 = vmul.f32 %v1460, %v1516
        %v1528 = vmul.f32 %v1452, %v1520
        %v1529 = vmul.f32 %v1461, %v1516
        %v1530 = vmul.f32 %v1453, %v1520
        %v1531 = vmul.f32 %v1462, %v1516
        %v1532 = vmul.f32 %v1454, %v1520
        %v1533 = vmul.f32 %v1463, %v1516
        %v1534 = vmul.f32 %v1455, %v1520
        %v1535 = vmul.f32 %v1464, %v1516
        %v1536 = vmul.f32 %v1456, %v1520
        %v1537 = vlaneseq
        %v1538 = vshrl.u32 %v1537, 7
        %v1539 = vsub.s32 7, %v1538
        %v1540 = vrot.slane %v783, %v1539
        %v1541 = vlaneseq
        %v1542 = vshrl.u32 %v1541, 7
        %v1543 = vsub.s32 7, %v1542
        %v1544 = vrot.slane %v784, %v1543
        %v1545 = vmul.f32 %v1363, %v1540
        %v1546 = vmul.f32 %v1366, %v1544
        %v1547 = vmul.f32 %v1368, %v1540
        %v1548 = vmul.f32 %v1370, %v1544
        %v1549 = vmul.f32 %v1373, %v1540
        %v1550 = vmul.f32 %v1376, %v1544
        %v1551 = vmul.f32 %v1378, %v1540
        %v1552 = vmul.f32 %v1380, %v1544
        %v1553 = vmul.f32 %v1383, %v1540
        %v1554 = vmul.f32 %v1386, %v1544
        %v1555 = vmul.f32 %v1388, %v1540
        %v1556 = vmul.f32 %v1390, %v1544
        %v1557 = vmul.f32 %v1393, %v1540
        %v1558 = vmul.f32 %v1396, %v1544
        %v1559 = vmul.f32 %v1398, %v1540
        %v1560 = vmul.f32 %v1400, %v1544
        %v1561 = vadd.f32 %v1521, %v1545
        %v1562 = vadd.f32 %v1522, %v1546
        %v1563 = vadd.f32 %v1523, %v1547
        %v1564 = vadd.f32 %v1524, %v1548
        %v1565 = vadd.f32 %v1525, %v1549
        %v1566 = vadd.f32 %v1526, %v1550
        %v1567 = vadd.f32 %v1527, %v1551
        %v1568 = vadd.f32 %v1528, %v1552
        %v1569 = vadd.f32 %v1529, %v1553
        %v1570 = vadd.f32 %v1530, %v1554
        %v1571 = vadd.f32 %v1531, %v1555
        %v1572 = vadd.f32 %v1532, %v1556
        %v1573 = vadd.f32 %v1533, %v1557
        %v1574 = vadd.f32 %v1534, %v1558
        %v1575 = vadd.f32 %v1535, %v1559
        %v1576 = vadd.f32 %v1536, %v1560
        %v1577 = vlaneseq
        %v1578 = vshrl.u32 %v1577, 7
        %v1579 = vsub.s32 0, %v1578
        %v1580 = vrot.slane %v785, %v1579
        %v1581 = vlaneseq
        %v1582 = vshrl.u32 %v1581, 7
        %v1583 = vsub.s32 0, %v1582
        %v1584 = vrot.slane %v786, %v1583
        %v1585 = vmul.f32 %v1497, %v1580
        %v1586 = vmul.f32 %v1505, %v1584
        %v1587 = vmul.f32 %v1498, %v1580
        %v1588 = vmul.f32 %v1506, %v1584
        %v1589 = vmul.f32 %v1499, %v1580
        %v1590 = vmul.f32 %v1507, %v1584
        %v1591 = vmul.f32 %v1500, %v1580
        %v1592 = vmul.f32 %v1508, %v1584
        %v1593 = vmul.f32 %v1501, %v1580
        %v1594 = vmul.f32 %v1509, %v1584
        %v1595 = vmul.f32 %v1502, %v1580
        %v1596 = vmul.f32 %v1510, %v1584
        %v1597 = vmul.f32 %v1503, %v1580
        %v1598 = vmul.f32 %v1511, %v1584
        %v1599 = vmul.f32 %v1504, %v1580
        %v1600 = vmul.f32 %v1512, %v1584
        %v1601 = vadd.f32 %v1561, %v1585
        %v1602 = vadd.f32 %v1562, %v1586
        %v1603 = vadd.f32 %v1563, %v1587
        %v1604 = vadd.f32 %v1564, %v1588
        %v1605 = vadd.f32 %v1565, %v1589
        %v1606 = vadd.f32 %v1566, %v1590
        %v1607 = vadd.f32 %v1567, %v1591
        %v1608 = vadd.f32 %v1568, %v1592
        %v1609 = vadd.f32 %v1569, %v1593
        %v1610 = vadd.f32 %v1570, %v1594
        %v1611 = vadd.f32 %v1571, %v1595
        %v1612 = vadd.f32 %v1572, %v1596
        %v1613 = vadd.f32 %v1573, %v1597
        %v1614 = vadd.f32 %v1574, %v1598
        %v1615 = vadd.f32 %v1575, %v1599
        %v1616 = vadd.f32 %v1576, %v1600
        %v1617 = vadd.f32 %v1312, %v1601
        %v1618 = vadd.f32 %v1313, %v1602
        %v1619 = vadd.f32 %v1314, %v1603
        %v1620 = vadd.f32 %v1315, %v1604
        %v1621 = vadd.f32 %v1316, %v1605
        %v1622 = vadd.f32 %v1317, %v1606
        %v1623 = vadd.f32 %v1318, %v1607
        %v1624 = vadd.f32 %v1319, %v1608
        %v1625 = vadd.f32 %v1320, %v1609
        %v1626 = vadd.f32 %v1321, %v1610
        %v1627 = vadd.f32 %v1322, %v1611
        %v1628 = vadd.f32 %v1323, %v1612
        %v1629 = vadd.f32 %v1324, %v1613
        %v1630 = vadd.f32 %v1325, %v1614
        %v1631 = vadd.f32 %v1326, %v1615
        %v1632 = vadd.f32 %v1327, %v1616
        %s1633 = scalar_lea.vmem %s7, 2
        %v1634 = vld [vmem:[%s1633] ss:$8 sm:$0x3]
        %v1636 = vlaneseq
        %v1637 = vshrl.u32 %v1636, 7
        %v1638 = vsub.s32 0, %v1637
        %v1639 = vrot.slane %v1634, %v1638
        %v1640 = vlaneseq
        %v1641 = vshrl.u32 %v1640, 7
        %v1642 = vsub.s32 1, %v1641
        %v1643 = vrot.slane %v1634, %v1642
        %v1646 = vmul.f32 %v1617, %v1639
        %v1647 = vmul.f32 %v1618, %v1643
        %v1648 = vmul.f32 %v1619, %v1639
        %v1649 = vmul.f32 %v1620, %v1643
        %v1650 = vmul.f32 %v1621, %v1639
        %v1651 = vmul.f32 %v1622, %v1643
        %v1652 = vmul.f32 %v1623, %v1639
        %v1653 = vmul.f32 %v1624, %v1643
        %v1654 = vmul.f32 %v1625, %v1639
        %v1655 = vmul.f32 %v1626, %v1643
        %v1656 = vmul.f32 %v1627, %v1639
        %v1657 = vmul.f32 %v1628, %v1643
        %v1658 = vmul.f32 %v1629, %v1639
        %v1659 = vmul.f32 %v1630, %v1643
        %v1660 = vmul.f32 %v1631, %v1639
        %v1661 = vmul.f32 %v1632, %v1643
        %s1662 = scalar_lea.vmem %s7, 3
        %v1663 = vld [vmem:[%s1662] ss:$8 sm:$0x3]
        %v1665 = vlaneseq
        %v1666 = vshrl.u32 %v1665, 7
        %v1667 = vsub.s32 0, %v1666
        %v1668 = vrot.slane %v1663, %v1667
        %v1669 = vlaneseq
        %v1670 = vshrl.u32 %v1669, 7
        %v1671 = vsub.s32 1, %v1670
        %v1672 = vrot.slane %v1663, %v1671
        %v1675 = vadd.f32 %v1646, %v1668
        %v1676 = vadd.f32 %v1647, %v1672
        %v1677 = vadd.f32 %v1648, %v1668
        %v1678 = vadd.f32 %v1649, %v1672
        %v1679 = vadd.f32 %v1650, %v1668
        %v1680 = vadd.f32 %v1651, %v1672
        %v1681 = vadd.f32 %v1652, %v1668
        %v1682 = vadd.f32 %v1653, %v1672
        %v1683 = vadd.f32 %v1654, %v1668
        %v1684 = vadd.f32 %v1655, %v1672
        %v1685 = vadd.f32 %v1656, %v1668
        %v1686 = vadd.f32 %v1657, %v1672
        %v1687 = vadd.f32 %v1658, %v1668
        %v1688 = vadd.f32 %v1659, %v1672
        %v1689 = vadd.f32 %v1660, %v1668
        %v1690 = vadd.f32 %v1661, %v1672
        %v1691 = vmax.f32 %v1675, 0.0
        %v1692 = vmax.f32 %v1676, 0.0
        %v1693 = vmax.f32 %v1677, 0.0
        %v1694 = vmax.f32 %v1678, 0.0
        %v1695 = vmax.f32 %v1679, 0.0
        %v1696 = vmax.f32 %v1680, 0.0
        %v1697 = vmax.f32 %v1681, 0.0
        %v1698 = vmax.f32 %v1682, 0.0
        %v1699 = vmax.f32 %v1683, 0.0
        %v1700 = vmax.f32 %v1684, 0.0
        %v1701 = vmax.f32 %v1685, 0.0
        %v1702 = vmax.f32 %v1686, 0.0
        %v1703 = vmax.f32 %v1687, 0.0
        %v1704 = vmax.f32 %v1688, 0.0
        %v1705 = vmax.f32 %v1689, 0.0
        %v1706 = vmax.f32 %v1690, 0.0
        %v1707 = vmin.f32 %v1691, 6.0
        %v1708 = vmin.f32 %v1692, 6.0
        %v1709 = vmin.f32 %v1693, 6.0
        %v1710 = vmin.f32 %v1694, 6.0
        %v1711 = vmin.f32 %v1695, 6.0
        %v1712 = vmin.f32 %v1696, 6.0
        %v1713 = vmin.f32 %v1697, 6.0
        %v1714 = vmin.f32 %v1698, 6.0
        %v1715 = vmin.f32 %v1699, 6.0
        %v1716 = vmin.f32 %v1700, 6.0
        %v1717 = vmin.f32 %v1701, 6.0
        %v1718 = vmin.f32 %v1702, 6.0
        %v1719 = vmin.f32 %v1703, 6.0
        %v1720 = vmin.f32 %v1704, 6.0
        %v1721 = vmin.f32 %v1705, 6.0
        %v1722 = vmin.f32 %v1706, 6.0
        %v1723 = vld [vmem:[%s4] sm:$0xff]
        %v1724 = vld [vmem:[%s4 + $0x8] sm:$0xff]
        %v1725 = vld [vmem:[%s4 + $0x10] sm:$0xff]
        %v1726 = vld [vmem:[%s4 + $0x18] sm:$0xff]
        %v1727 = vld [vmem:[%s4 + $0x20] sm:$0xff]
        %v1728 = vld [vmem:[%s4 + $0x28] sm:$0xff]
        %v1729 = vld [vmem:[%s4 + $0x30] sm:$0xff]
        %v1730 = vld [vmem:[%s4 + $0x38] sm:$0xff]
        %v1731 = vld [vmem:[%s4 + $0x40] sm:$0xff]
        %v1732 = vld [vmem:[%s4 + $0x48] sm:$0xff]
        %v1733 = vld [vmem:[%s4 + $0x50] sm:$0xff]
        %v1734 = vld [vmem:[%s4 + $0x58] sm:$0xff]
        %v1735 = vld [vmem:[%s4 + $0x60] sm:$0xff]
        %v1736 = vld [vmem:[%s4 + $0x68] sm:$0xff]
        %v1737 = vld [vmem:[%s4 + $0x70] sm:$0xff]
        %v1738 = vld [vmem:[%s4 + $0x78] sm:$0xff]
        %v1739 = vld [vmem:[%s4 + $0x80] sm:$0xff]
        %v1740 = vld [vmem:[%s4 + $0x88] sm:$0xff]
        %v1741 = vld [vmem:[%s4 + $0x90] sm:$0xff]
        %v1742 = vld [vmem:[%s4 + $0x98] sm:$0xff]
        %v1743 = vld [vmem:[%s4 + $0xa0] sm:$0xff]
        %v1744 = vld [vmem:[%s4 + $0xa8] sm:$0xff]
        %v1745 = vld [vmem:[%s4 + $0xb0] sm:$0xff]
        %v1746 = vld [vmem:[%s4 + $0xb8] sm:$0xff]
        %v1747 = vld [vmem:[%s4 + $0xc0] sm:$0xff]
        %v1748 = vld [vmem:[%s4 + $0xc8] sm:$0xff]
        %v1749 = vld [vmem:[%s4 + $0xd0] sm:$0xff]
        %v1750 = vld [vmem:[%s4 + $0xd8] sm:$0xff]
        %v1751 = vld [vmem:[%s4 + $0xe0] sm:$0xff]
        %v1752 = vld [vmem:[%s4 + $0xe8] sm:$0xff]
        %v1753 = vld [vmem:[%s4 + $0xf0] sm:$0xff]
        %v1754 = vld [vmem:[%s4 + $0xf8] sm:$0xff]
        %1755 = vmatprep.subr.mxu0 0.0
        %1756 = vmatpush1.msra.mxu0 %v1723
        %1757 = vmatprep.subr.mxu0 0.0
        %1758 = vmatpush1.msra.mxu0 %v1724
        %1759 = vmatprep.subr.mxu0 0.0
        %1760 = vmatpush1.msra.mxu0 %v1725
        %1761 = vmatprep.subr.mxu0 0.0
        %1762 = vmatpush1.msra.mxu0 %v1726
        %1763 = vmatprep.subr.mxu0 0.0
        %1764 = vmatpush1.msra.mxu0 %v1727
        %1765 = vmatprep.subr.mxu0 0.0
        %1766 = vmatpush1.msra.mxu0 %v1728
        %1767 = vmatprep.subr.mxu0 0.0
        %1768 = vmatpush1.msra.mxu0 %v1729
        %1769 = vmatprep.subr.mxu0 0.0
        %1770 = vmatpush1.msra.mxu0 %v1730
        %1771 = vmatprep.subr.mxu0 0.0
        %1772 = vmatpush1.msra.mxu0 %v1731
        %1773 = vmatprep.subr.mxu0 0.0
        %1774 = vmatpush1.msra.mxu0 %v1732
        %1775 = vmatprep.subr.mxu0 0.0
        %1776 = vmatpush1.msra.mxu0 %v1733
        %1777 = vmatprep.subr.mxu0 0.0
        %1778 = vmatpush1.msra.mxu0 %v1734
        %1779 = vmatprep.subr.mxu0 0.0
        %1780 = vmatpush1.msra.mxu0 %v1735
        %1781 = vmatprep.subr.mxu0 0.0
        %1782 = vmatpush1.msra.mxu0 %v1736
        %1783 = vmatprep.subr.mxu0 0.0
        %1784 = vmatpush1.msra.mxu0 %v1737
        %1785 = vmatprep.subr.mxu0 0.0
        %1786 = vmatpush1.msra.mxu0 %v1738
        %1787 = vmatprep.subr.mxu0 0.0
        %1788 = vmatpush1.msra.mxu0 %v1739
        %1789 = vmatprep.subr.mxu0 0.0
        %1790 = vmatpush1.msra.mxu0 %v1740
        %1791 = vmatprep.subr.mxu0 0.0
        %1792 = vmatpush1.msra.mxu0 %v1741
        %1793 = vmatprep.subr.mxu0 0.0
        %1794 = vmatpush1.msra.mxu0 %v1742
        %1795 = vmatprep.subr.mxu0 0.0
        %1796 = vmatpush1.msra.mxu0 %v1743
        %1797 = vmatprep.subr.mxu0 0.0
        %1798 = vmatpush1.msra.mxu0 %v1744
        %1799 = vmatprep.subr.mxu0 0.0
        %1800 = vmatpush1.msra.mxu0 %v1745
        %1801 = vmatprep.subr.mxu0 0.0
        %1802 = vmatpush1.msra.mxu0 %v1746
        %1803 = vmatprep.subr.mxu0 0.0
        %1804 = vmatpush1.msra.mxu0 %v1747
        %1805 = vmatprep.subr.mxu0 0.0
        %1806 = vmatpush1.msra.mxu0 %v1748
        %1807 = vmatprep.subr.mxu0 0.0
        %1808 = vmatpush1.msra.mxu0 %v1749
        %1809 = vmatprep.subr.mxu0 0.0
        %1810 = vmatpush1.msra.mxu0 %v1750
        %1811 = vmatprep.subr.mxu0 0.0
        %1812 = vmatpush1.msra.mxu0 %v1751
        %1813 = vmatprep.subr.mxu0 0.0
        %1814 = vmatpush1.msra.mxu0 %v1752
        %1815 = vmatprep.subr.mxu0 0.0
        %1816 = vmatpush1.msra.mxu0 %v1753
        %1817 = vmatprep.subr.mxu0 0.0
        %1818 = vmatpush1.msra.mxu0 %v1754
        %1819 = vmatprep.mubr.f32.mxu0 %v1708
        %1820 = vmatmul.mubr.f32.gmra.mrb[0].mxu0 %v1707
        %v1821 = vpop.f32.mrb[0].mxu0
        %v1822 = vadd.f32 0.0, %v1821
        %v1823 = vpop.f32.mrb[0].mxu0
        %1824 = vmatprep.mubr.f32.mxu0 %v1710
        %1825 = vmatmul.mubr.f32.gmra.mrb[0].mxu0 %v1709
        %v1826 = vpop.f32.mrb[0].mxu0
        %v1827 = vadd.f32 0.0, %v1826
        %v1828 = vpop.f32.mrb[0].mxu0
        %1829 = vmatprep.mubr.f32.mxu0 %v1712
        %1830 = vmatmul.mubr.f32.gmra.mrb[0].mxu0 %v1711
        %v1831 = vpop.f32.mrb[0].mxu0
        %v1832 = vadd.f32 0.0, %v1831
        %v1833 = vpop.f32.mrb[0].mxu0
        %1834 = vmatprep.mubr.f32.mxu0 %v1714
        %1835 = vmatmul.mubr.f32.gmra.mrb[0].mxu0 %v1713
        %v1836 = vpop.f32.mrb[0].mxu0
        %v1837 = vadd.f32 0.0, %v1836
        %v1838 = vpop.f32.mrb[0].mxu0
        %1839 = vmatprep.mubr.f32.mxu0 %v1716
        %1840 = vmatmul.mubr.f32.gmra.mrb[0].mxu0 %v1715
        %v1841 = vpop.f32.mrb[0].mxu0
        %v1842 = vadd.f32 0.0, %v1841
        %v1843 = vpop.f32.mrb[0].mxu0
        %1844 = vmatprep.mubr.f32.mxu0 %v1718
        %1845 = vmatmul.mubr.f32.gmra.mrb[0].mxu0 %v1717
        %v1846 = vpop.f32.mrb[0].mxu0
        %v1847 = vadd.f32 0.0, %v1846
        %v1848 = vpop.f32.mrb[0].mxu0
        %1849 = vmatprep.mubr.f32.mxu0 %v1720
        %1850 = vmatmul.mubr.f32.gmra.mrb[0].mxu0 %v1719
        %v1851 = vpop.f32.mrb[0].mxu0
        %v1852 = vadd.f32 0.0, %v1851
        %v1853 = vpop.f32.mrb[0].mxu0
        %1854 = vmatprep.mubr.f32.mxu0 %v1722
        %1855 = vmatmul.mubr.f32.gmra.mrb[0].mxu0 %v1721
        %v1856 = vpop.f32.mrb[0].mxu0
        %v1857 = vadd.f32 0.0, %v1856
        %v1858 = vpop.f32.mrb[0].mxu0
        %1859 = vdwg.mxu0
        %v1860 = vld [vmem:[%s8 + $0x4] sm:$0x1]
        %v1861 = vlaneseq
        %v1862 = vshrl.u32 %v1861, 7
        %v1863 = vsub.s32 0, %v1862
        %v1864 = vrot.slane %v1860, %v1863
        %v1865 = vmul.f32 %v1822, %v1864
        %v1866 = vmul.f32 %v1827, %v1864
        %v1867 = vmul.f32 %v1832, %v1864
        %v1868 = vmul.f32 %v1837, %v1864
        %v1869 = vmul.f32 %v1842, %v1864
        %v1870 = vmul.f32 %v1847, %v1864
        %v1871 = vmul.f32 %v1852, %v1864
        %v1872 = vmul.f32 %v1857, %v1864
        %v1873 = vld [vmem:[%s8 + $0x5] sm:$0x1]
        %v1874 = vlaneseq
        %v1875 = vshrl.u32 %v1874, 7
        %v1876 = vsub.s32 0, %v1875
        %v1877 = vrot.slane %v1873, %v1876
        %v1878 = vadd.f32 %v1865, %v1877
        %v1879 = vadd.f32 %v1866, %v1877
        %v1880 = vadd.f32 %v1867, %v1877
        %v1881 = vadd.f32 %v1868, %v1877
        %v1882 = vadd.f32 %v1869, %v1877
        %v1883 = vadd.f32 %v1870, %v1877
        %v1884 = vadd.f32 %v1871, %v1877
        %v1885 = vadd.f32 %v1872, %v1877
        %v1886 = vadd.f32 %v1878, 3.0
        %v1887 = vadd.f32 %v1879, 3.0
        %v1888 = vadd.f32 %v1880, 3.0
        %v1889 = vadd.f32 %v1881, 3.0
        %v1890 = vadd.f32 %v1882, 3.0
        %v1891 = vadd.f32 %v1883, 3.0
        %v1892 = vadd.f32 %v1884, 3.0
        %v1893 = vadd.f32 %v1885, 3.0
        %v1894 = vmax.f32 %v1886, 0.0
        %v1895 = vmax.f32 %v1887, 0.0
        %v1896 = vmax.f32 %v1888, 0.0
        %v1897 = vmax.f32 %v1889, 0.0
        %v1898 = vmax.f32 %v1890, 0.0
        %v1899 = vmax.f32 %v1891, 0.0
        %v1900 = vmax.f32 %v1892, 0.0
        %v1901 = vmax.f32 %v1893, 0.0
        %v1902 = vmin.f32 %v1894, 6.0
        %v1903 = vmin.f32 %v1895, 6.0
        %v1904 = vmin.f32 %v1896, 6.0
        %v1905 = vmin.f32 %v1897, 6.0
        %v1906 = vmin.f32 %v1898, 6.0
        %v1907 = vmin.f32 %v1899, 6.0
        %v1908 = vmin.f32 %v1900, 6.0
        %v1909 = vmin.f32 %v1901, 6.0
        %v1910 = vmul.f32 %v1878, %v1902
        %v1911 = vmul.f32 %v1879, %v1903
        %v1912 = vmul.f32 %v1880, %v1904
        %v1913 = vmul.f32 %v1881, %v1905
        %v1914 = vmul.f32 %v1882, %v1906
        %v1915 = vmul.f32 %v1883, %v1907
        %v1916 = vmul.f32 %v1884, %v1908
        %v1917 = vmul.f32 %v1885, %v1909
        %v1918 = vmul.f32 %v1910, 0.16666667
        %v1919 = vmul.f32 %v1911, 0.16666667
        %v1920 = vmul.f32 %v1912, 0.16666667
        %v1921 = vmul.f32 %v1913, 0.16666667
        %v1922 = vmul.f32 %v1914, 0.16666667
        %v1923 = vmul.f32 %v1915, 0.16666667
        %v1924 = vmul.f32 %v1916, 0.16666667
        %v1925 = vmul.f32 %v1917, 0.16666667
        %v1926 = vld [vmem:[%s7] sm:$0xc0]
        %v1927 = vld [vmem:[%s7 + $0x8] sm:$0xc0]
        %v1928 = vld [vmem:[%s7 + $0x10] sm:$0x3f]
        %v1929 = vld [vmem:[%s7 + $0x18] sm:$0x3f]
        %s1930 = scalar_lea.vmem %s7, 4
        %v1931 = vld [vmem:[%s1930] ss:$8 sm:$0x3]
        %v1933 = vlaneseq
        %v1934 = vshrl.u32 %v1933, 7
        %v1935 = vsub.s32 0, %v1934
        %v1936 = vrot.slane %v1931, %v1935
        %v1937 = vlaneseq
        %v1938 = vshrl.u32 %v1937, 7
        %v1939 = vsub.s32 1, %v1938
        %v1940 = vrot.slane %v1931, %v1939
        %vm1947 = vcmask 1041408
        %v1948 = vrot.slane %v1926, 6
        %v1949 = vrot.slane %v1928, 6
        %v1950 = vsel %vm1947, %v1948, %v1949
        %v1951 = vrot.slane %v1927, 6
        %v1952 = vrot.slane %v1929, 6
        %v1953 = vsel %vm1947, %v1951, %v1952
        %vm1956 = vcmask 64512
        %v1958 = vsel %vm1956, %v1918, 0
        %v1961 = vsel %vm1956, %v1919, 0
        %v1964 = vsel %vm1956, %v1920, 0
        %v1967 = vsel %vm1956, %v1921, 0
        %v1970 = vsel %vm1956, %v1922, 0
        %v1973 = vsel %vm1956, %v1923, 0
        %v1976 = vsel %vm1956, %v1924, 0
        %v1979 = vsel %vm1956, %v1925, 0
        %1981 = vmatprep.subr.mxu0 %v1953
        %1982 = vmatpush1.msra.mxu0 %v1950
        %1983 = vmatprep.subr.mxu0 0.0
        %1984 = vmatpush1.msra.mxu0 0.0
        %1985 = vmatprep.subr.mxu0 0.0
        %1986 = vmatpush1.msra.mxu0 0.0
        %1987 = vmatprep.subr.mxu0 0.0
        %1988 = vmatpush1.msra.mxu0 0.0
        %1989 = vmatprep.subr.mxu0 0.0
        %1990 = vmatpush1.msra.mxu0 0.0
        %1991 = vmatprep.subr.mxu0 0.0
        %1992 = vmatpush1.msra.mxu0 0.0
        %1993 = vmatprep.subr.mxu0 0.0
        %1994 = vmatpush1.msra.mxu0 0.0
        %1995 = vmatprep.subr.mxu0 0.0
        %1996 = vmatpush1.msra.mxu0 0.0
        %1997 = vmatprep.subr.mxu0 0.0
        %1998 = vmatpush1.msra.mxu0 0.0
        %1999 = vmatprep.subr.mxu0 0.0
        %2000 = vmatpush1.msra.mxu0 0.0
        %2001 = vmatprep.subr.mxu0 0.0
        %2002 = vmatpush1.msra.mxu0 0.0
        %2003 = vmatprep.subr.mxu0 0.0
        %2004 = vmatpush1.msra.mxu0 0.0
        %2005 = vmatprep.subr.mxu0 0.0
        %2006 = vmatpush1.msra.mxu0 0.0
        %2007 = vmatprep.subr.mxu0 0.0
        %2008 = vmatpush1.msra.mxu0 0.0
        %2009 = vmatprep.subr.mxu0 0.0
        %2010 = vmatpush1.msra.mxu0 0.0
        %2011 = vmatprep.subr.mxu0 0.0
        %2012 = vmatpush1.msra.mxu0 0.0
        %2013 = vmatprep.subr.mxu0 0.0
        %2014 = vmatpush1.msra.mxu0 0.0
        %2015 = vmatprep.subr.mxu0 0.0
        %2016 = vmatpush1.msra.mxu0 0.0
        %2017 = vmatprep.subr.mxu0 0.0
        %2018 = vmatpush1.msra.mxu0 0.0
        %2019 = vmatprep.subr.mxu0 0.0
        %2020 = vmatpush1.msra.mxu0 0.0
        %2021 = vmatprep.subr.mxu0 0.0
        %2022 = vmatpush1.msra.mxu0 0.0
        %2023 = vmatprep.subr.mxu0 0.0
        %2024 = vmatpush1.msra.mxu0 0.0
        %2025 = vmatprep.subr.mxu0 0.0
        %2026 = vmatpush1.msra.mxu0 0.0
        %2027 = vmatprep.subr.mxu0 0.0
        %2028 = vmatpush1.msra.mxu0 0.0
        %2029 = vmatprep.subr.mxu0 0.0
        %2030 = vmatpush1.msra.mxu0 0.0
        %2031 = vmatprep.subr.mxu0 0.0
        %2032 = vmatpush1.msra.mxu0 0.0
        %2033 = vmatprep.subr.mxu0 0.0
        %2034 = vmatpush1.msra.mxu0 0.0
        %2035 = vmatprep.subr.mxu0 0.0
        %2036 = vmatpush1.msra.mxu0 0.0
        %2037 = vmatprep.subr.mxu0 0.0
        %2038 = vmatpush1.msra.mxu0 0.0
        %2039 = vmatprep.subr.mxu0 0.0
        %2040 = vmatpush1.msra.mxu0 0.0
        %2041 = vmatprep.subr.mxu0 0.0
        %2042 = vmatpush1.msra.mxu0 0.0
        %2043 = vmatprep.subr.mxu0 0.0
        %2044 = vmatpush1.msra.mxu0 0.0
        %2045 = vmatprep.mubr.f32.mxu0 0.0
        %2046 = vmatmul.mubr.f32.gmra.mrb[0].mxu0 %v1958
        %v2047 = vpop.f32.mrb[0].mxu0
        %v2048 = vadd.f32 %v1936, %v2047
        %v2049 = vpop.f32.mrb[0].mxu0
        %v2050 = vadd.f32 %v1940, %v2049
        %2051 = vmatprep.mubr.f32.mxu0 0.0
        %2052 = vmatmul.mubr.f32.gmra.mrb[0].mxu0 %v1961
        %v2053 = vpop.f32.mrb[0].mxu0
        %v2054 = vadd.f32 %v1936, %v2053
        %v2055 = vpop.f32.mrb[0].mxu0
        %v2056 = vadd.f32 %v1940, %v2055
        %2057 = vmatprep.mubr.f32.mxu0 0.0
        %2058 = vmatmul.mubr.f32.gmra.mrb[0].mxu0 %v1964
        %v2059 = vpop.f32.mrb[0].mxu0
        %v2060 = vadd.f32 %v1936, %v2059
        %v2061 = vpop.f32.mrb[0].mxu0
        %v2062 = vadd.f32 %v1940, %v2061
        %2063 = vmatprep.mubr.f32.mxu0 0.0
        %2064 = vmatmul.mubr.f32.gmra.mrb[0].mxu0 %v1967
        %v2065 = vpop.f32.mrb[0].mxu0
        %v2066 = vadd.f32 %v1936, %v2065
        %v2067 = vpop.f32.mrb[0].mxu0
        %v2068 = vadd.f32 %v1940, %v2067
        %2069 = vmatprep.mubr.f32.mxu0 0.0
        %2070 = vmatmul.mubr.f32.gmra.mrb[0].mxu0 %v1970
        %v2071 = vpop.f32.mrb[0].mxu0
        %v2072 = vadd.f32 %v1936, %v2071
        %v2073 = vpop.f32.mrb[0].mxu0
        %v2074 = vadd.f32 %v1940, %v2073
        %2075 = vmatprep.mubr.f32.mxu0 0.0
        %2076 = vmatmul.mubr.f32.gmra.mrb[0].mxu0 %v1973
        %v2077 = vpop.f32.mrb[0].mxu0
        %v2078 = vadd.f32 %v1936, %v2077
        %v2079 = vpop.f32.mrb[0].mxu0
        %v2080 = vadd.f32 %v1940, %v2079
        %2081 = vmatprep.mubr.f32.mxu0 0.0
        %2082 = vmatmul.mubr.f32.gmra.mrb[0].mxu0 %v1976
        %v2083 = vpop.f32.mrb[0].mxu0
        %v2084 = vadd.f32 %v1936, %v2083
        %v2085 = vpop.f32.mrb[0].mxu0
        %v2086 = vadd.f32 %v1940, %v2085
        %2087 = vmatprep.mubr.f32.mxu0 0.0
        %2088 = vmatmul.mubr.f32.gmra.mrb[0].mxu0 %v1979
        %v2089 = vpop.f32.mrb[0].mxu0
        %v2090 = vadd.f32 %v1936, %v2089
        %v2091 = vpop.f32.mrb[0].mxu0
        %v2092 = vadd.f32 %v1940, %v2091
        %2093 = vdwg.mxu0
        %v2094 = vxor.u32 %v2048, 2147483648
        %v2095 = vxor.u32 %v2050, 2147483648
        %v2096 = vxor.u32 %v2054, 2147483648
        %v2097 = vxor.u32 %v2056, 2147483648
        %v2098 = vxor.u32 %v2060, 2147483648
        %v2099 = vxor.u32 %v2062, 2147483648
        %v2100 = vxor.u32 %v2066, 2147483648
        %v2101 = vxor.u32 %v2068, 2147483648
        %v2102 = vxor.u32 %v2072, 2147483648
        %v2103 = vxor.u32 %v2074, 2147483648
        %v2104 = vxor.u32 %v2078, 2147483648
        %v2105 = vxor.u32 %v2080, 2147483648
        %v2106 = vxor.u32 %v2084, 2147483648
        %v2107 = vxor.u32 %v2086, 2147483648
        %v2108 = vxor.u32 %v2090, 2147483648
        %v2109 = vxor.u32 %v2092, 2147483648
        %v2110 = vmul.f32 %v2094, 1.442695
        %v2111 = vpow.pop %v2110
        %v2112 = vmul.f32 %v2095, 1.442695
        %v2113 = vpow.pop %v2112
        %v2114 = vmul.f32 %v2096, 1.442695
        %v2115 = vpow.pop %v2114
        %v2116 = vmul.f32 %v2097, 1.442695
        %v2117 = vpow.pop %v2116
        %v2118 = vmul.f32 %v2098, 1.442695
        %v2119 = vpow.pop %v2118
        %v2120 = vmul.f32 %v2099, 1.442695
        %v2121 = vpow.pop %v2120
        %v2122 = vmul.f32 %v2100, 1.442695
        %v2123 = vpow.pop %v2122
        %v2124 = vmul.f32 %v2101, 1.442695
        %v2125 = vpow.pop %v2124
        %v2126 = vmul.f32 %v2102, 1.442695
        %v2127 = vpow.pop %v2126
        %v2128 = vmul.f32 %v2103, 1.442695
        %v2129 = vpow.pop %v2128
        %v2130 = vmul.f32 %v2104, 1.442695
        %v2131 = vpow.pop %v2130
        %v2132 = vmul.f32 %v2105, 1.442695
        %v2133 = vpow.pop %v2132
        %v2134 = vmul.f32 %v2106, 1.442695
        %v2135 = vpow.pop %v2134
        %v2136 = vmul.f32 %v2107, 1.442695
        %v2137 = vpow.pop %v2136
        %v2138 = vmul.f32 %v2108, 1.442695
        %v2139 = vpow.pop %v2138
        %v2140 = vmul.f32 %v2109, 1.442695
        %v2141 = vpow.pop %v2140
        %v2142 = vadd.f32 %v2111, 1.0
        %v2143 = vadd.f32 %v2113, 1.0
        %v2144 = vadd.f32 %v2115, 1.0
        %v2145 = vadd.f32 %v2117, 1.0
        %v2146 = vadd.f32 %v2119, 1.0
        %v2147 = vadd.f32 %v2121, 1.0
        %v2148 = vadd.f32 %v2123, 1.0
        %v2149 = vadd.f32 %v2125, 1.0
        %v2150 = vadd.f32 %v2127, 1.0
        %v2151 = vadd.f32 %v2129, 1.0
        %v2152 = vadd.f32 %v2131, 1.0
        %v2153 = vadd.f32 %v2133, 1.0
        %v2154 = vadd.f32 %v2135, 1.0
        %v2155 = vadd.f32 %v2137, 1.0
        %v2156 = vadd.f32 %v2139, 1.0
        %v2157 = vadd.f32 %v2141, 1.0
        %v2158 = vrcp.pop %v2142
        %v2159 = vmul.f32 1.0, %v2158
        %v2160 = vrcp.pop %v2143
        %v2161 = vmul.f32 1.0, %v2160
        %v2162 = vrcp.pop %v2144
        %v2163 = vmul.f32 1.0, %v2162
        %v2164 = vrcp.pop %v2145
        %v2165 = vmul.f32 1.0, %v2164
        %v2166 = vrcp.pop %v2146
        %v2167 = vmul.f32 1.0, %v2166
        %v2168 = vrcp.pop %v2147
        %v2169 = vmul.f32 1.0, %v2168
        %v2170 = vrcp.pop %v2148
        %v2171 = vmul.f32 1.0, %v2170
        %v2172 = vrcp.pop %v2149
        %v2173 = vmul.f32 1.0, %v2172
        %v2174 = vrcp.pop %v2150
        %v2175 = vmul.f32 1.0, %v2174
        %v2176 = vrcp.pop %v2151
        %v2177 = vmul.f32 1.0, %v2176
        %v2178 = vrcp.pop %v2152
        %v2179 = vmul.f32 1.0, %v2178
        %v2180 = vrcp.pop %v2153
        %v2181 = vmul.f32 1.0, %v2180
        %v2182 = vrcp.pop %v2154
        %v2183 = vmul.f32 1.0, %v2182
        %v2184 = vrcp.pop %v2155
        %v2185 = vmul.f32 1.0, %v2184
        %v2186 = vrcp.pop %v2156
        %v2187 = vmul.f32 1.0, %v2186
        %v2188 = vrcp.pop %v2157
        %v2189 = vmul.f32 1.0, %v2188
        %v2190 = vadd.f32 %v1707, %v1709
        %v2191 = vrot.slane %v2190, 4
        %v2192 = vadd.f32 %v2190, %v2191
        %v2193 = vrot.slane %v2192, 2
        %v2194 = vadd.f32 %v2192, %v2193
        %v2195 = vrot.slane %v2194, 1
        %v2196 = vadd.f32 %v2194, %v2195
        %v2197 = vadd.f32 %v1708, %v1710
        %v2198 = vrot.slane %v2197, 4
        %v2199 = vadd.f32 %v2197, %v2198
        %v2200 = vrot.slane %v2199, 2
        %v2201 = vadd.f32 %v2199, %v2200
        %v2202 = vrot.slane %v2201, 1
        %v2203 = vadd.f32 %v2201, %v2202
        %v2204 = vadd.f32 %v1711, %v1713
        %v2205 = vrot.slane %v2204, 4
        %v2206 = vadd.f32 %v2204, %v2205
        %v2207 = vrot.slane %v2206, 2
        %v2208 = vadd.f32 %v2206, %v2207
        %v2209 = vrot.slane %v2208, 1
        %v2210 = vadd.f32 %v2208, %v2209
        %v2211 = vadd.f32 %v1712, %v1714
        %v2212 = vrot.slane %v2211, 4
        %v2213 = vadd.f32 %v2211, %v2212
        %v2214 = vrot.slane %v2213, 2
        %v2215 = vadd.f32 %v2213, %v2214
        %v2216 = vrot.slane %v2215, 1
        %v2217 = vadd.f32 %v2215, %v2216
        %v2218 = vadd.f32 %v1715, %v1717
        %v2219 = vrot.slane %v2218, 4
        %v2220 = vadd.f32 %v2218, %v2219
        %v2221 = vrot.slane %v2220, 2
        %v2222 = vadd.f32 %v2220, %v2221
        %v2223 = vrot.slane %v2222, 1
        %v2224 = vadd.f32 %v2222, %v2223
        %v2225 = vadd.f32 %v1716, %v1718
        %v2226 = vrot.slane %v2225, 4
        %v2227 = vadd.f32 %v2225, %v2226
        %v2228 = vrot.slane %v2227, 2
        %v2229 = vadd.f32 %v2227, %v2228
        %v2230 = vrot.slane %v2229, 1
        %v2231 = vadd.f32 %v2229, %v2230
        %v2232 = vadd.f32 %v1719, %v1721
        %v2233 = vrot.slane %v2232, 4
        %v2234 = vadd.f32 %v2232, %v2233
        %v2235 = vrot.slane %v2234, 2
        %v2236 = vadd.f32 %v2234, %v2235
        %v2237 = vrot.slane %v2236, 1
        %v2238 = vadd.f32 %v2236, %v2237
        %v2239 = vadd.f32 %v1720, %v1722
        %v2240 = vrot.slane %v2239, 4
        %v2241 = vadd.f32 %v2239, %v2240
        %v2242 = vrot.slane %v2241, 2
        %v2243 = vadd.f32 %v2241, %v2242
        %v2244 = vrot.slane %v2243, 1
        %v2245 = vadd.f32 %v2243, %v2244
        %v2246 = vrcp.pop 16.0
        %v2247 = vmul.f32 %v2196, %v2246
        %v2248 = vmul.f32 %v2203, %v2246
        %v2249 = vmul.f32 %v2210, %v2246
        %v2250 = vmul.f32 %v2217, %v2246
        %v2251 = vmul.f32 %v2224, %v2246
        %v2252 = vmul.f32 %v2231, %v2246
        %v2253 = vmul.f32 %v2238, %v2246
        %v2254 = vmul.f32 %v2245, %v2246
        %v2255 = vpack.c.bf16 %v2247, %v2247
        %v2256 = vpack.c.bf16 %v2248, %v2248
        %v2257 = vpack.c.bf16 %v2249, %v2249
        %v2258 = vpack.c.bf16 %v2250, %v2250
        %v2259 = vpack.c.bf16 %v2251, %v2251
        %v2260 = vpack.c.bf16 %v2252, %v2252
        %v2261 = vpack.c.bf16 %v2253, %v2253
        %v2262 = vpack.c.bf16 %v2254, %v2254
        %v2263 = vld [vmem:[#allocation8] sm:$0xf]
        %v2264 = vld [vmem:[#allocation8 + $0x4] sm:$0xf]
        %v2265 = vld [vmem:[#allocation8 + $0x8] sm:$0xf]
        %v2266 = vld [vmem:[#allocation8 + $0xc] sm:$0xf]
        %v2267 = vld [vmem:[#allocation8 + $0x10] sm:$0xf]
        %v2268 = vld [vmem:[#allocation8 + $0x14] sm:$0xf]
        %v2269 = vld [vmem:[#allocation8 + $0x18] sm:$0xf]
        %v2270 = vld [vmem:[#allocation8 + $0x1c] sm:$0xf]
        %v2271 = vld [vmem:[#allocation8 + $0x20] sm:$0xf]
        %v2272 = vld [vmem:[#allocation8 + $0x24] sm:$0xf]
        %v2273 = vld [vmem:[#allocation8 + $0x28] sm:$0xf]
        %v2274 = vld [vmem:[#allocation8 + $0x2c] sm:$0xf]
        %v2275 = vld [vmem:[#allocation8 + $0x30] sm:$0xf]
        %v2276 = vld [vmem:[#allocation8 + $0x34] sm:$0xf]
        %v2277 = vld [vmem:[#allocation8 + $0x38] sm:$0xf]
        %v2278 = vld [vmem:[#allocation8 + $0x3c] sm:$0xf]
        %v2279 = vld [vmem:[#allocation8 + $0x40] sm:$0xf]
        %v2280 = vld [vmem:[#allocation8 + $0x44] sm:$0xf]
        %v2281 = vld [vmem:[#allocation8 + $0x48] sm:$0xf]
        %v2282 = vld [vmem:[#allocation8 + $0x4c] sm:$0xf]
        %v2283 = vld [vmem:[#allocation8 + $0x50] sm:$0xf]
        %v2284 = vld [vmem:[#allocation8 + $0x54] sm:$0xf]
        %v2285 = vld [vmem:[#allocation8 + $0x58] sm:$0xf]
        %v2286 = vld [vmem:[#allocation8 + $0x5c] sm:$0xf]
        %v2287 = vld [vmem:[#allocation8 + $0x60] sm:$0xf]
        %v2288 = vld [vmem:[#allocation8 + $0x64] sm:$0xf]
        %v2289 = vld [vmem:[#allocation8 + $0x68] sm:$0xf]
        %v2290 = vld [vmem:[#allocation8 + $0x6c] sm:$0xf]
        %v2291 = vld [vmem:[#allocation8 + $0x70] sm:$0xf]
        %v2292 = vld [vmem:[#allocation8 + $0x74] sm:$0xf]
        %v2293 = vld [vmem:[#allocation8 + $0x78] sm:$0xf]
        %v2294 = vld [vmem:[#allocation8 + $0x7c] sm:$0xf]
        %v2303 = vunpack.c.l.b16 %v2255
        %v2304 = vunpack.c.l.b16 %v2256
        %v2305 = vunpack.c.l.b16 %v2257
        %v2306 = vunpack.c.l.b16 %v2258
        %v2307 = vunpack.c.l.b16 %v2259
        %v2308 = vunpack.c.l.b16 %v2260
        %v2309 = vunpack.c.l.b16 %v2261
        %v2310 = vunpack.c.l.b16 %v2262
        %vm2311 = vcmask 1041409
        %v2312 = vsel %vm2311, %v2305, %v2303
        %vm2313 = vcmask 1042434
        %v2314 = vsel %vm2313, %v2307, %v2312
        %vm2315 = vcmask 1043459
        %v2316 = vsel %vm2315, %v2309, %v2314
        %v2317 = vsel %vm2311, %v2306, %v2304
        %v2318 = vsel %vm2313, %v2308, %v2317
        %v2319 = vsel %vm2315, %v2310, %v2318
        %v2320 = vpack.c.b16 %v2316, %v2316
        %v2321 = vpack.c.b16 %v2319, %v2319
        %v2356 = vunpack.c.l.b16 %v2263
        %v2357 = vunpack.c.l.b16 %v2264
        %v2358 = vunpack.c.l.b16 %v2265
        %v2359 = vunpack.c.l.b16 %v2266
        %v2360 = vunpack.c.l.b16 %v2267
        %v2361 = vunpack.c.l.b16 %v2268
        %v2362 = vunpack.c.l.b16 %v2269
        %v2363 = vunpack.c.l.b16 %v2270
        %v2364 = vunpack.c.l.b16 %v2271
        %v2365 = vunpack.c.l.b16 %v2272
        %v2366 = vunpack.c.l.b16 %v2273
        %v2367 = vunpack.c.l.b16 %v2274
        %v2368 = vunpack.c.l.b16 %v2275
        %v2369 = vunpack.c.l.b16 %v2276
        %v2370 = vunpack.c.l.b16 %v2277
        %v2371 = vunpack.c.l.b16 %v2278
        %v2372 = vunpack.c.l.b16 %v2279
        %v2373 = vunpack.c.l.b16 %v2280
        %v2374 = vunpack.c.l.b16 %v2281
        %v2375 = vunpack.c.l.b16 %v2282
        %v2376 = vunpack.c.l.b16 %v2283
        %v2377 = vunpack.c.l.b16 %v2284
        %v2378 = vunpack.c.l.b16 %v2285
        %v2379 = vunpack.c.l.b16 %v2286
        %v2380 = vunpack.c.l.b16 %v2287
        %v2381 = vunpack.c.l.b16 %v2288
        %v2382 = vunpack.c.l.b16 %v2289
        %v2383 = vunpack.c.l.b16 %v2290
        %v2384 = vunpack.c.l.b16 %v2291
        %v2385 = vunpack.c.l.b16 %v2292
        %v2386 = vunpack.c.l.b16 %v2293
        %v2387 = vunpack.c.l.b16 %v2294
        %v2388 = vpack.c.b16 %v2357, %v2356
        %v2389 = vpack.c.b16 %v2359, %v2358
        %v2390 = vpack.c.b16 %v2361, %v2360
        %v2391 = vpack.c.b16 %v2363, %v2362
        %v2392 = vpack.c.b16 %v2365, %v2364
        %v2393 = vpack.c.b16 %v2367, %v2366
        %v2394 = vpack.c.b16 %v2369, %v2368
        %v2395 = vpack.c.b16 %v2371, %v2370
        %v2396 = vpack.c.b16 %v2373, %v2372
        %v2397 = vpack.c.b16 %v2375, %v2374
        %v2398 = vpack.c.b16 %v2377, %v2376
        %v2399 = vpack.c.b16 %v2379, %v2378
        %v2400 = vpack.c.b16 %v2381, %v2380
        %v2401 = vpack.c.b16 %v2383, %v2382
        %v2402 = vpack.c.b16 %v2385, %v2384
        %v2403 = vpack.c.b16 %v2387, %v2386
        %2420 = vmatprep.subr.bf16.mxu0 0
        %2421 = vmatpush1.bf16.msra.mxu0 %v2388
        %2422 = vmatprep.subr.bf16.mxu0 0
        %2423 = vmatpush1.bf16.msra.mxu0 %v2389
        %2424 = vmatprep.subr.bf16.mxu0 0
        %2425 = vmatpush1.bf16.msra.mxu0 %v2390
        %2426 = vmatprep.subr.bf16.mxu0 0
        %2427 = vmatpush1.bf16.msra.mxu0 %v2391
        %2428 = vmatprep.subr.bf16.mxu0 0
        %2429 = vmatpush1.bf16.msra.mxu0 %v2392
        %2430 = vmatprep.subr.bf16.mxu0 0
        %2431 = vmatpush1.bf16.msra.mxu0 %v2393
        %2432 = vmatprep.subr.bf16.mxu0 0
        %2433 = vmatpush1.bf16.msra.mxu0 %v2394
        %2434 = vmatprep.subr.bf16.mxu0 0
        %2435 = vmatpush1.bf16.msra.mxu0 %v2395
        %2436 = vmatprep.subr.bf16.mxu0 0
        %2437 = vmatpush1.bf16.msra.mxu0 %v2396
        %2438 = vmatprep.subr.bf16.mxu0 0
        %2439 = vmatpush1.bf16.msra.mxu0 %v2397
        %2440 = vmatprep.subr.bf16.mxu0 0
        %2441 = vmatpush1.bf16.msra.mxu0 %v2398
        %2442 = vmatprep.subr.bf16.mxu0 0
        %2443 = vmatpush1.bf16.msra.mxu0 %v2399
        %2444 = vmatprep.subr.bf16.mxu0 0
        %2445 = vmatpush1.bf16.msra.mxu0 %v2400
        %2446 = vmatprep.subr.bf16.mxu0 0
        %2447 = vmatpush1.bf16.msra.mxu0 %v2401
        %2448 = vmatprep.subr.bf16.mxu0 0
        %2449 = vmatpush1.bf16.msra.mxu0 %v2402
        %2450 = vmatprep.subr.bf16.mxu0 0
        %2451 = vmatpush1.bf16.msra.mxu0 %v2403
        %2452 = vmatprep.mubr.bf16.mxu0 %v2321
        %2453 = vmatmul.mubr.bf16.gmra.mrb[0].mxu0 %v2320
        %v2454 = vpop.f32.mrb[0].mxu0
        %v2455 = vadd.f32 0.0, %v2454
        %v2456 = vpop.f32.mrb[0].mxu0
        %v2457 = vpop.f32.mrb[0].mxu0
        %v2458 = vpop.f32.mrb[0].mxu0
        %2459 = vdwg.mxu0
        %v2460 = vld [vmem:[%s8 + $0x2] sm:$0x1]
        %v2461 = vlaneseq
        %v2462 = vshrl.u32 %v2461, 7
        %v2463 = vsub.s32 0, %v2462
        %v2464 = vrot.slane %v2460, %v2463
        %v2465 = vmul.f32 %v2455, %v2464
        %v2466 = vld [vmem:[%s8 + $0x3] sm:$0x1]
        %v2467 = vlaneseq
        %v2468 = vshrl.u32 %v2467, 7
        %v2469 = vsub.s32 0, %v2468
        %v2470 = vrot.slane %v2466, %v2469
        %v2471 = vadd.f32 %v2465, %v2470
        %v2472 = vadd.f32 %v2471, 3.0
        %v2473 = vmax.f32 %v2472, 0.0
        %v2474 = vmin.f32 %v2473, 6.0
        %v2475 = vmul.f32 %v2471, %v2474
        %v2476 = vmul.f32 %v2475, 0.16666667
        %v2477 = vpack.c.bf16 %v2476, %v2476
        %v2478 = vld [vmem:[#allocation9] sm:$0xff]
        %v2479 = vld [vmem:[#allocation9 + $0x8] sm:$0xff]
        %v2480 = vld [vmem:[#allocation9 + $0x10] sm:$0xff]
        %v2481 = vld [vmem:[#allocation9 + $0x18] sm:$0xff]
        %v2482 = vld [vmem:[#allocation9 + $0x20] sm:$0xff]
        %v2483 = vld [vmem:[#allocation9 + $0x28] sm:$0xff]
        %v2484 = vld [vmem:[#allocation9 + $0x30] sm:$0xff]
        %v2485 = vld [vmem:[#allocation9 + $0x38] sm:$0xff]
        %v2486 = vld [vmem:[#allocation9 + $0x40] sm:$0xff]
        %v2487 = vld [vmem:[#allocation9 + $0x48] sm:$0xff]
        %v2488 = vld [vmem:[#allocation9 + $0x50] sm:$0xff]
        %v2489 = vld [vmem:[#allocation9 + $0x58] sm:$0xff]
        %v2490 = vld [vmem:[#allocation9 + $0x60] sm:$0xff]
        %v2491 = vld [vmem:[#allocation9 + $0x68] sm:$0xff]
        %v2492 = vld [vmem:[#allocation9 + $0x70] sm:$0xff]
        %v2493 = vld [vmem:[#allocation9 + $0x78] sm:$0xff]
        %s2494 = scalar_lea.vmem %s7, 5
        %v2495 = vld [vmem:[%s2494] ss:$8 sm:$0x3]
        %v2497 = vlaneseq
        %v2498 = vshrl.u32 %v2497, 7
        %v2499 = vsub.s32 0, %v2498
        %v2500 = vrot.slane %v2495, %v2499
        %v2501 = vlaneseq
        %v2502 = vshrl.u32 %v2501, 7
        %v2503 = vsub.s32 1, %v2502
        %v2504 = vrot.slane %v2495, %v2503
        %v2523 = vunpack.c.l.b16 %v2478
        %v2524 = vunpack.c.h.b16 %v2478
        %v2525 = vunpack.c.l.b16 %v2479
        %v2526 = vunpack.c.h.b16 %v2479
        %v2527 = vunpack.c.l.b16 %v2480
        %v2528 = vunpack.c.h.b16 %v2480
        %v2529 = vunpack.c.l.b16 %v2481
        %v2530 = vunpack.c.h.b16 %v2481
        %v2531 = vunpack.c.l.b16 %v2482
        %v2532 = vunpack.c.h.b16 %v2482
        %v2533 = vunpack.c.l.b16 %v2483
        %v2534 = vunpack.c.h.b16 %v2483
        %v2535 = vunpack.c.l.b16 %v2484
        %v2536 = vunpack.c.h.b16 %v2484
        %v2537 = vunpack.c.l.b16 %v2485
        %v2538 = vunpack.c.h.b16 %v2485
        %v2539 = vunpack.c.l.b16 %v2486
        %v2540 = vunpack.c.h.b16 %v2486
        %v2541 = vunpack.c.l.b16 %v2487
        %v2542 = vunpack.c.h.b16 %v2487
        %v2543 = vunpack.c.l.b16 %v2488
        %v2544 = vunpack.c.h.b16 %v2488
        %v2545 = vunpack.c.l.b16 %v2489
        %v2546 = vunpack.c.h.b16 %v2489
        %v2547 = vunpack.c.l.b16 %v2490
        %v2548 = vunpack.c.h.b16 %v2490
        %v2549 = vunpack.c.l.b16 %v2491
        %v2550 = vunpack.c.h.b16 %v2491
        %v2551 = vunpack.c.l.b16 %v2492
        %v2552 = vunpack.c.h.b16 %v2492
        %v2553 = vunpack.c.l.b16 %v2493
        %v2554 = vunpack.c.h.b16 %v2493
        %v2555 = vpack.c.b16 %v2525, %v2523
        %v2556 = vpack.c.b16 %v2526, %v2524
        %v2557 = vpack.c.b16 %v2529, %v2527
        %v2558 = vpack.c.b16 %v2530, %v2528
        %v2559 = vpack.c.b16 %v2533, %v2531
        %v2560 = vpack.c.b16 %v2534, %v2532
        %v2561 = vpack.c.b16 %v2537, %v2535
        %v2562 = vpack.c.b16 %v2538, %v2536
        %v2563 = vpack.c.b16 %v2541, %v2539
        %v2564 = vpack.c.b16 %v2542, %v2540
        %v2565 = vpack.c.b16 %v2545, %v2543
        %v2566 = vpack.c.b16 %v2546, %v2544
        %v2567 = vpack.c.b16 %v2549, %v2547
        %v2568 = vpack.c.b16 %v2550, %v2548
        %v2569 = vpack.c.b16 %v2553, %v2551
        %v2570 = vpack.c.b16 %v2554, %v2552
        %2587 = vmatprep.subr.bf16.mxu0 %v2556
        %2588 = vmatpush1.bf16.msra.mxu0 %v2555
        %2589 = vmatprep.subr.bf16.mxu0 %v2558
        %2590 = vmatpush1.bf16.msra.mxu0 %v2557
        %2591 = vmatprep.subr.bf16.mxu0 %v2560
        %2592 = vmatpush1.bf16.msra.mxu0 %v2559
        %2593 = vmatprep.subr.bf16.mxu0 %v2562
        %2594 = vmatpush1.bf16.msra.mxu0 %v2561
        %2595 = vmatprep.subr.bf16.mxu0 %v2564
        %2596 = vmatpush1.bf16.msra.mxu0 %v2563
        %2597 = vmatprep.subr.bf16.mxu0 %v2566
        %2598 = vmatpush1.bf16.msra.mxu0 %v2565
        %2599 = vmatprep.subr.bf16.mxu0 %v2568
        %2600 = vmatpush1.bf16.msra.mxu0 %v2567
        %2601 = vmatprep.subr.bf16.mxu0 %v2570
        %2602 = vmatpush1.bf16.msra.mxu0 %v2569
        %2603 = vmatprep.subr.bf16.mxu0 0
        %2604 = vmatpush1.bf16.msra.mxu0 0
        %2605 = vmatprep.subr.bf16.mxu0 0
        %2606 = vmatpush1.bf16.msra.mxu0 0
        %2607 = vmatprep.subr.bf16.mxu0 0
        %2608 = vmatpush1.bf16.msra.mxu0 0
        %2609 = vmatprep.subr.bf16.mxu0 0
        %2610 = vmatpush1.bf16.msra.mxu0 0
        %2611 = vmatprep.subr.bf16.mxu0 0
        %2612 = vmatpush1.bf16.msra.mxu0 0
        %2613 = vmatprep.subr.bf16.mxu0 0
        %2614 = vmatpush1.bf16.msra.mxu0 0
        %2615 = vmatprep.subr.bf16.mxu0 0
        %2616 = vmatpush1.bf16.msra.mxu0 0
        %2617 = vmatprep.subr.bf16.mxu0 0
        %2618 = vmatpush1.bf16.msra.mxu0 0
        %2619 = vmatprep.mubr.bf16.mxu0 0
        %2620 = vmatmul.mubr.bf16.gmra.mrb[0].mxu0 %v2477
        %v2621 = vpop.f32.mrb[0].mxu0
        %v2622 = vadd.f32 %v2500, %v2621
        %v2623 = vpop.f32.mrb[0].mxu0
        %v2624 = vadd.f32 %v2504, %v2623
        %v2625 = vpop.f32.mrb[0].mxu0
        %v2626 = vpop.f32.mrb[0].mxu0
        %2627 = vdwg.mxu0
        %v2628 = vxor.u32 %v2622, 2147483648
        %v2629 = vxor.u32 %v2624, 2147483648
        %v2630 = vmul.f32 %v2628, 1.442695
        %v2631 = vpow.pop %v2630
        %v2632 = vmul.f32 %v2629, 1.442695
        %v2633 = vpow.pop %v2632
        %v2634 = vadd.f32 %v2631, 1.0
        %v2635 = vadd.f32 %v2633, 1.0
        %v2636 = vrcp.pop %v2634
        %v2637 = vmul.f32 1.0, %v2636
        %v2638 = vrcp.pop %v2635
        %v2639 = vmul.f32 1.0, %v2638
        %v2640 = vmul.f32 %v1707, %v2159
        %v2641 = vmul.f32 %v1708, %v2161
        %v2642 = vmul.f32 %v1709, %v2163
        %v2643 = vmul.f32 %v1710, %v2165
        %v2644 = vmul.f32 %v1711, %v2167
        %v2645 = vmul.f32 %v1712, %v2169
        %v2646 = vmul.f32 %v1713, %v2171
        %v2647 = vmul.f32 %v1714, %v2173
        %v2648 = vmul.f32 %v1715, %v2175
        %v2649 = vmul.f32 %v1716, %v2177
        %v2650 = vmul.f32 %v1717, %v2179
        %v2651 = vmul.f32 %v1718, %v2181
        %v2652 = vmul.f32 %v1719, %v2183
        %v2653 = vmul.f32 %v1720, %v2185
        %v2654 = vmul.f32 %v1721, %v2187
        %v2655 = vmul.f32 %v1722, %v2189
        %v2658 = vcombine.low %v2637, %v2639
        %v2660 = vunpack.c.l.s4 1966171168
        %v2661 = vunpack.c.0.s8 %v2660
        %v2662 = vlaneseq
        %v2663 = vshrl.u32 %v2662, 7
        %v2664 = vsub.s32 %v2661, %v2663
        %v2665 = vrot.slane %v2658, %v2664
        %v2666 = vcombine.high %v2665, %v2665
        %v2668 = vunpack.c.l.s4 1966171168
        %v2669 = vunpack.c.0.s8 %v2668
        %v2670 = vlaneseq
        %v2671 = vshrl.u32 %v2670, 7
        %v2672 = vsub.s32 %v2669, %v2671
        %v2673 = vrot.slane %v2665, %v2672
        %v2675 = vunpack.c.l.s4 1966171168
        %v2676 = vunpack.c.0.s8 %v2675
        %v2677 = vlaneseq
        %v2678 = vshrl.u32 %v2677, 7
        %v2679 = vsub.s32 %v2676, %v2678
        %v2680 = vrot.slane %v2666, %v2679
        %v2681 = vcombine.high %v2673, %v2673
        %v2682 = vcombine.high %v2680, %v2680
        %v2683 = vlaneseq
        %v2684 = vshrl.u32 %v2683, 7
        %v2685 = vsub.s32 0, %v2684
        %v2686 = vrot.slane %v2673, %v2685
        %v2687 = vlaneseq
        %v2688 = vshrl.u32 %v2687, 7
        %v2689 = vsub.s32 1, %v2688
        %v2690 = vrot.slane %v2673, %v2689
        %v2691 = vlaneseq
        %v2692 = vshrl.u32 %v2691, 7
        %v2693 = vsub.s32 0, %v2692
        %v2694 = vrot.slane %v2680, %v2693
        %v2695 = vlaneseq
        %v2696 = vshrl.u32 %v2695, 7
        %v2697 = vsub.s32 1, %v2696
        %v2698 = vrot.slane %v2680, %v2697
        %v2699 = vlaneseq
        %v2700 = vshrl.u32 %v2699, 7
        %v2701 = vsub.s32 0, %v2700
        %v2702 = vrot.slane %v2681, %v2701
        %v2703 = vlaneseq
        %v2704 = vshrl.u32 %v2703, 7
        %v2705 = vsub.s32 1, %v2704
        %v2706 = vrot.slane %v2681, %v2705
        %v2707 = vlaneseq
        %v2708 = vshrl.u32 %v2707, 7
        %v2709 = vsub.s32 0, %v2708
        %v2710 = vrot.slane %v2682, %v2709
        %v2711 = vlaneseq
        %v2712 = vshrl.u32 %v2711, 7
        %v2713 = vsub.s32 1, %v2712
        %v2714 = vrot.slane %v2682, %v2713
        %v2723 = vmul.f32 %v2640, %v2686
        %v2724 = vmul.f32 %v2641, %v2690
        %v2725 = vmul.f32 %v2642, %v2686
        %v2726 = vmul.f32 %v2643, %v2690
        %v2727 = vmul.f32 %v2644, %v2694
        %v2728 = vmul.f32 %v2645, %v2698
        %v2729 = vmul.f32 %v2646, %v2694
        %v2730 = vmul.f32 %v2647, %v2698
        %v2731 = vmul.f32 %v2648, %v2702
        %v2732 = vmul.f32 %v2649, %v2706
        %v2733 = vmul.f32 %v2650, %v2702
        %v2734 = vmul.f32 %v2651, %v2706
        %v2735 = vmul.f32 %v2652, %v2710
        %v2736 = vmul.f32 %v2653, %v2714
        %v2737 = vmul.f32 %v2654, %v2710
        %v2738 = vmul.f32 %v2655, %v2714
        %v2739 = vpack.c.bf16 %v2725, %v2723
        %v2740 = vpack.c.bf16 %v2726, %v2724
        %v2741 = vpack.c.bf16 %v2729, %v2727
        %v2742 = vpack.c.bf16 %v2730, %v2728
        %v2743 = vpack.c.bf16 %v2733, %v2731
        %v2744 = vpack.c.bf16 %v2734, %v2732
        %v2745 = vpack.c.bf16 %v2737, %v2735
        %v2746 = vpack.c.bf16 %v2738, %v2736
        %v2747 = vld [vmem:[#allocation6] sm:$0xf]
        %v2748 = vld [vmem:[#allocation6 + $0x4] sm:$0xf]
        %v2749 = vld [vmem:[#allocation6 + $0x8] sm:$0xf]
        %v2750 = vld [vmem:[#allocation6 + $0xc] sm:$0xf]
        %v2751 = vld [vmem:[#allocation6 + $0x10] sm:$0xf]
        %v2752 = vld [vmem:[#allocation6 + $0x14] sm:$0xf]
        %v2753 = vld [vmem:[#allocation6 + $0x18] sm:$0xf]
        %v2754 = vld [vmem:[#allocation6 + $0x1c] sm:$0xf]
        %v2755 = vld [vmem:[#allocation6 + $0x20] sm:$0xf]
        %v2756 = vld [vmem:[#allocation6 + $0x24] sm:$0xf]
        %v2757 = vld [vmem:[#allocation6 + $0x28] sm:$0xf]
        %v2758 = vld [vmem:[#allocation6 + $0x2c] sm:$0xf]
        %v2759 = vld [vmem:[#allocation6 + $0x30] sm:$0xf]
        %v2760 = vld [vmem:[#allocation6 + $0x34] sm:$0xf]
        %v2761 = vld [vmem:[#allocation6 + $0x38] sm:$0xf]
        %v2762 = vld [vmem:[#allocation6 + $0x3c] sm:$0xf]
        %v2763 = vld [vmem:[#allocation6 + $0x40] sm:$0xf]
        %v2764 = vld [vmem:[#allocation6 + $0x44] sm:$0xf]
        %v2765 = vld [vmem:[#allocation6 + $0x48] sm:$0xf]
        %v2766 = vld [vmem:[#allocation6 + $0x4c] sm:$0xf]
        %v2767 = vld [vmem:[#allocation6 + $0x50] sm:$0xf]
        %v2768 = vld [vmem:[#allocation6 + $0x54] sm:$0xf]
        %v2769 = vld [vmem:[#allocation6 + $0x58] sm:$0xf]
        %v2770 = vld [vmem:[#allocation6 + $0x5c] sm:$0xf]
        %v2771 = vld [vmem:[#allocation6 + $0x60] sm:$0xf]
        %v2772 = vld [vmem:[#allocation6 + $0x64] sm:$0xf]
        %v2773 = vld [vmem:[#allocation6 + $0x68] sm:$0xf]
        %v2774 = vld [vmem:[#allocation6 + $0x6c] sm:$0xf]
        %v2775 = vld [vmem:[#allocation6 + $0x70] sm:$0xf]
        %v2776 = vld [vmem:[#allocation6 + $0x74] sm:$0xf]
        %v2777 = vld [vmem:[#allocation6 + $0x78] sm:$0xf]
        %v2778 = vld [vmem:[#allocation6 + $0x7c] sm:$0xf]
        %v2811 = vunpack.c.l.b16 %v2747
        %v2812 = vunpack.c.l.b16 %v2748
        %v2813 = vunpack.c.l.b16 %v2749
        %v2814 = vunpack.c.l.b16 %v2750
        %v2815 = vunpack.c.l.b16 %v2751
        %v2816 = vunpack.c.l.b16 %v2752
        %v2817 = vunpack.c.l.b16 %v2753
        %v2818 = vunpack.c.l.b16 %v2754
        %v2819 = vunpack.c.l.b16 %v2755
        %v2820 = vunpack.c.l.b16 %v2756
        %v2821 = vunpack.c.l.b16 %v2757
        %v2822 = vunpack.c.l.b16 %v2758
        %v2823 = vunpack.c.l.b16 %v2759
        %v2824 = vunpack.c.l.b16 %v2760
        %v2825 = vunpack.c.l.b16 %v2761
        %v2826 = vunpack.c.l.b16 %v2762
        %v2827 = vunpack.c.l.b16 %v2763
        %v2828 = vunpack.c.l.b16 %v2764
        %v2829 = vunpack.c.l.b16 %v2765
        %v2830 = vunpack.c.l.b16 %v2766
        %v2831 = vunpack.c.l.b16 %v2767
        %v2832 = vunpack.c.l.b16 %v2768
        %v2833 = vunpack.c.l.b16 %v2769
        %v2834 = vunpack.c.l.b16 %v2770
        %v2835 = vunpack.c.l.b16 %v2771
        %v2836 = vunpack.c.l.b16 %v2772
        %v2837 = vunpack.c.l.b16 %v2773
        %v2838 = vunpack.c.l.b16 %v2774
        %v2839 = vunpack.c.l.b16 %v2775
        %v2840 = vunpack.c.l.b16 %v2776
        %v2841 = vunpack.c.l.b16 %v2777
        %v2842 = vunpack.c.l.b16 %v2778
        %v2843 = vpack.c.b16 %v2812, %v2811
        %v2844 = vpack.c.b16 %v2814, %v2813
        %v2845 = vpack.c.b16 %v2816, %v2815
        %v2846 = vpack.c.b16 %v2818, %v2817
        %v2847 = vpack.c.b16 %v2820, %v2819
        %v2848 = vpack.c.b16 %v2822, %v2821
        %v2849 = vpack.c.b16 %v2824, %v2823
        %v2850 = vpack.c.b16 %v2826, %v2825
        %v2851 = vpack.c.b16 %v2828, %v2827
        %v2852 = vpack.c.b16 %v2830, %v2829
        %v2853 = vpack.c.b16 %v2832, %v2831
        %v2854 = vpack.c.b16 %v2834, %v2833
        %v2855 = vpack.c.b16 %v2836, %v2835
        %v2856 = vpack.c.b16 %v2838, %v2837
        %v2857 = vpack.c.b16 %v2840, %v2839
        %v2858 = vpack.c.b16 %v2842, %v2841
        %2875 = vmatprep.subr.bf16.mxu0 0
        %2876 = vmatpush1.bf16.msra.mxu0 %v2843
        %2877 = vmatprep.subr.bf16.mxu0 0
        %2878 = vmatpush1.bf16.msra.mxu0 %v2844
        %2879 = vmatprep.subr.bf16.mxu0 0
        %2880 = vmatpush1.bf16.msra.mxu0 %v2845
        %2881 = vmatprep.subr.bf16.mxu0 0
        %2882 = vmatpush1.bf16.msra.mxu0 %v2846
        %2883 = vmatprep.subr.bf16.mxu0 0
        %2884 = vmatpush1.bf16.msra.mxu0 %v2847
        %2885 = vmatprep.subr.bf16.mxu0 0
        %2886 = vmatpush1.bf16.msra.mxu0 %v2848
        %2887 = vmatprep.subr.bf16.mxu0 0
        %2888 = vmatpush1.bf16.msra.mxu0 %v2849
        %2889 = vmatprep.subr.bf16.mxu0 0
        %2890 = vmatpush1.bf16.msra.mxu0 %v2850
        %2891 = vmatprep.subr.bf16.mxu0 0
        %2892 = vmatpush1.bf16.msra.mxu0 %v2851
        %2893 = vmatprep.subr.bf16.mxu0 0
        %2894 = vmatpush1.bf16.msra.mxu0 %v2852
        %2895 = vmatprep.subr.bf16.mxu0 0
        %2896 = vmatpush1.bf16.msra.mxu0 %v2853
        %2897 = vmatprep.subr.bf16.mxu0 0
        %2898 = vmatpush1.bf16.msra.mxu0 %v2854
        %2899 = vmatprep.subr.bf16.mxu0 0
        %2900 = vmatpush1.bf16.msra.mxu0 %v2855
        %2901 = vmatprep.subr.bf16.mxu0 0
        %2902 = vmatpush1.bf16.msra.mxu0 %v2856
        %2903 = vmatprep.subr.bf16.mxu0 0
        %2904 = vmatpush1.bf16.msra.mxu0 %v2857
        %2905 = vmatprep.subr.bf16.mxu0 0
        %2906 = vmatpush1.bf16.msra.mxu0 %v2858
        %2907 = vmatprep.mubr.bf16.mxu0 %v2740
        %2908 = vmatmul.mubr.bf16.gmra.mrb[0].mxu0 %v2739
        %v2909 = vpop.f32.mrb[0].mxu0
        %v2910 = vadd.f32 0.0, %v2909
        %v2911 = vpop.f32.mrb[0].mxu0
        %v2912 = vpop.f32.mrb[0].mxu0
        %v2913 = vadd.f32 0.0, %v2912
        %v2914 = vpop.f32.mrb[0].mxu0
        %2915 = vmatprep.mubr.bf16.mxu0 %v2742
        %2916 = vmatmul.mubr.bf16.gmra.mrb[0].mxu0 %v2741
        %v2917 = vpop.f32.mrb[0].mxu0
        %v2918 = vadd.f32 0.0, %v2917
        %v2919 = vpop.f32.mrb[0].mxu0
        %v2920 = vpop.f32.mrb[0].mxu0
        %v2921 = vadd.f32 0.0, %v2920
        %v2922 = vpop.f32.mrb[0].mxu0
        %2923 = vmatprep.mubr.bf16.mxu0 %v2744
        %2924 = vmatmul.mubr.bf16.gmra.mrb[0].mxu0 %v2743
        %v2925 = vpop.f32.mrb[0].mxu0
        %v2926 = vadd.f32 0.0, %v2925
        %v2927 = vpop.f32.mrb[0].mxu0
        %v2928 = vpop.f32.mrb[0].mxu0
        %v2929 = vadd.f32 0.0, %v2928
        %v2930 = vpop.f32.mrb[0].mxu0
        %2931 = vmatprep.mubr.bf16.mxu0 %v2746
        %2932 = vmatmul.mubr.bf16.gmra.mrb[0].mxu0 %v2745
        %v2933 = vpop.f32.mrb[0].mxu0
        %v2934 = vadd.f32 0.0, %v2933
        %v2935 = vpop.f32.mrb[0].mxu0
        %v2936 = vpop.f32.mrb[0].mxu0
        %v2937 = vadd.f32 0.0, %v2936
        %v2938 = vpop.f32.mrb[0].mxu0
        %2939 = vdwg.mxu0
        %v2940 = vld [vmem:[%s8] sm:$0x1]
        %v2941 = vlaneseq
        %v2942 = vshrl.u32 %v2941, 7
        %v2943 = vsub.s32 0, %v2942
        %v2944 = vrot.slane %v2940, %v2943
        %v2945 = vmul.f32 %v2910, %v2944
        %v2946 = vmul.f32 %v2913, %v2944
        %v2947 = vmul.f32 %v2918, %v2944
        %v2948 = vmul.f32 %v2921, %v2944
        %v2949 = vmul.f32 %v2926, %v2944
        %v2950 = vmul.f32 %v2929, %v2944
        %v2951 = vmul.f32 %v2934, %v2944
        %v2952 = vmul.f32 %v2937, %v2944
        %v2953 = vld [vmem:[%s8 + $0x1] sm:$0x1]
        %v2954 = vlaneseq
        %v2955 = vshrl.u32 %v2954, 7
        %v2956 = vsub.s32 0, %v2955
        %v2957 = vrot.slane %v2953, %v2956
        %v2958 = vadd.f32 %v2945, %v2957
        %v2959 = vadd.f32 %v2946, %v2957
        %v2960 = vadd.f32 %v2947, %v2957
        %v2961 = vadd.f32 %v2948, %v2957
        %v2962 = vadd.f32 %v2949, %v2957
        %v2963 = vadd.f32 %v2950, %v2957
        %v2964 = vadd.f32 %v2951, %v2957
        %v2965 = vadd.f32 %v2952, %v2957
        %v2966 = vadd.f32 %v2958, %v397
        %v2967 = vadd.f32 %v2959, %v398
        %v2968 = vadd.f32 %v2960, %v399
        %v2969 = vadd.f32 %v2961, %v400
        %v2970 = vadd.f32 %v2962, %v401
        %v2971 = vadd.f32 %v2963, %v402
        %v2972 = vadd.f32 %v2964, %v403
        %v2973 = vadd.f32 %v2965, %v404
        %2974 = vst [vmem:[%s387] sm:$0xff] %v2966
        %2975 = vst [vmem:[%s387 + $0x8] sm:$0xff] %v2967
        %2976 = vst [vmem:[%s387 + $0x10] sm:$0xff] %v2968
        %2977 = vst [vmem:[%s387 + $0x18] sm:$0xff] %v2969
        %2978 = vst [vmem:[%s387 + $0x20] sm:$0xff] %v2970
        %2979 = vst [vmem:[%s387 + $0x28] sm:$0xff] %v2971
        %2980 = vst [vmem:[%s387 + $0x30] sm:$0xff] %v2972
        %2981 = vst [vmem:[%s387 + $0x38] sm:$0xff] %v2973
        %s2982 = sand.u32 %s228, 1
        %s2983 = scalar_lea.sflag [#allocation5], %s2982
        %s2984 = sand.u32 %s228, 1
        %s2985 = smul.addr %s2984, 64
        %s2986 = scalar_lea.vmem [#allocation11], %s2985
        // Predicated region
        $region73: #{tpu_custom_call.1} parent=55 // pred_check
          %p2987 = pneg %p238
        $region74: #{tpu_custom_call.1} parent=55 // pred_check_branch
          %2989 = sbr.rel (%p2987) target = $region76
        $region75: #{tpu_custom_call.1} parent=55 // pred_region
          %s2990 = smul.u32 4, %s26
          %s2992 = ssub.s32 1024, 1024
          %2993 = vsyncadd %s2983, %s2992
          %s2994 = smul.addr %s2990, 2
          %s2995 = smul.addr %s2994, 128
          %s2996 = scalar_lea.hbm %s9, %s2995
          %s2997 = sshll.u32 %s2986, 4
          %s2998 = int_to_ptr.vmem [resolvable:$true] %s2997
          %3003 = dma.vmem_to_hbm [thread:$0]  %s2998, 1024, %s2996, %s2983, 128, 128, 8
        $region76: #{tpu_custom_call.1} parent=55 // pred_fallthru
          _
      $region56: #{tpu_custom_call.1} parent=5 // pred_fallthru
        _
      %p3004 = scmp.le.s32.totalorder 2, %s21
      // Predicated region
      $region77: #{tpu_custom_call.1} parent=5 // pred_check
        %p3005 = pneg %p3004
      $region78: #{tpu_custom_call.1} parent=5 // pred_check_branch
        %3007 = sbr.rel (%p3005) target = $region80
      $region79: #{tpu_custom_call.1} parent=5 // pred_region
        %s3008 = ssub.s32 %s21, 2
        // Predicated region
        $region81: #{tpu_custom_call.1} parent=79 // pred_check
          %p3009 = pneg %p244
        $region82: #{tpu_custom_call.1} parent=79 // pred_check_branch
          %3011 = sbr.rel (%p3009) target = $region84
        $region83: #{tpu_custom_call.1} parent=79 // pred_region
          %s3012 = sand.u32 %s229, 1
          %s3013 = scalar_lea.sflag [#allocation5], %s3012
          %s3014 = sand.u32 %s229, 1
          %s3015 = smul.addr %s3014, 64
          %s3016 = scalar_lea.vmem [#allocation11], %s3015
          %3017 = dma.done %s3013, 1024
        $region84: #{tpu_custom_call.1} parent=79 // pred_fallthru
          _
      $region80: #{tpu_custom_call.1} parent=5 // pred_fallthru
        _
    $region6: #{tpu_custom_call.1} parent=1 // loop_footer
      %s25 = sadd.s32 1, %s21
    $region7: #{tpu_custom_call.1} parent=1 // loop_footer_branch
      %20 = sbr.rel target = $region3
    $region8: #{tpu_custom_call.1} parent=1 // loop_exit
      _
    %3018 = vsyncpa [#allocation4], 1
    %s3019 = scalar_lea.sflag [#allocation4], 1
    %3020 = vsyncpa %s3019, 1
    %3021 = vsyncpa [#allocation7], 1
    %3022 = vsyncpa [#allocation10], 1
    %3023 = vsyncpa [#allocation5], 1
    %s3024 = scalar_lea.sflag [#allocation5], 1
    %3025 = vsyncpa %s3024, 1

</llo_original>
